<compile_context>
chip_gen: v7x
topology: tpu7x:2x2x1
jax: 0.10.0
libtpu: 0.0.40
codegen_flags: <defaults>
</compile_context>

<pallas_src>
import functools

import numpy as np
import jax
import jax.numpy as jnp
from jax.experimental import pallas as pl
from jax.experimental.pallas import tpu as pltpu


# ----------------------------------------------------------------------------
# Shape-dependent constants, built once per (N, H, W) with numpy.
# ----------------------------------------------------------------------------
@functools.lru_cache(maxsize=8)
def _fused_constants(N, H, W):
    M = H * N * W
    H2, W2 = H // 2, W // 2
    M2 = H2 * N * W2

    # 2-D DFT over (h, w) acting on the flattened (h, n, w) pixel axis.
    FH = np.exp(-2j * np.pi * np.outer(np.arange(H), np.arange(H)) / H)
    FW = np.exp(-2j * np.pi * np.outer(np.arange(W), np.arange(W)) / W)
    KF = np.kron(np.kron(FH, np.eye(N)), FW)                          # (M, M) complex
    kf = np.concatenate([KF.real, KF.imag], axis=1).astype(np.float32)   # (M, 2M) [re|im]
    # real(ifft2(Y)) = (Yre @ KF.re + Yim @ KF.im) / (H*W)  (DFT matrices symmetric)
    ki = (np.concatenate([KF.real, KF.imag], axis=0) / (H * W)).astype(np.float32)  # (2M, M)

    def conv_masks(h_sz, w_sz):
        m_sz = h_sz * N * w_sz
        hh = np.arange(m_sz) // (N * w_sz)
        ww = np.arange(m_sz) % w_sz
        out = np.zeros((9, 1, m_sz), np.float32)
        for t in range(9):
            di, dj = t // 3 - 1, t % 3 - 1
            out[t, 0] = ((hh + di >= 0) & (hh + di < h_sz) &
                         (ww + dj >= 0) & (ww + dj < w_sz)).astype(np.float32)
        return out

    mask_full = conv_masks(H, W)       # (9, 1, M)
    mask_half = conv_masks(H2, W2)     # (9, 1, M2)

    # 0/1 gather matrices: maxpool lane compaction and nearest-x2 upsample.
    s_pool = np.zeros((M, M2), np.float32)
    u_up = np.zeros((M2, M), np.float32)
    for h in range(H):
        for n in range(N):
            for w in range(W):
                m = (h * N + n) * W + w
                j = ((h // 2) * N + n) * W2 + (w // 2)
                u_up[j, m] = 1.0
                if (h % 2 == 0) and (w % 2 == 0):
                    s_pool[m, j] = 1.0

    return dict(kf=kf, ki=ki, mask_full=mask_full, mask_half=mask_half,
                s_pool=s_pool, u_up=u_up)


# ----------------------------------------------------------------------------
# The single fused kernel: fftlayer_w + UNet, all in VMEM.
# ----------------------------------------------------------------------------
def fused_forward_kernel(xc_ref, kf_ref, ki_ref, wre_ref, wim_ref,
                         wenc_ref, benc_ref, wbot_ref, bbot_ref,
                         wdec_ref, bdec_ref, wout_ref, bout_ref,
                         mfull_ref, mhalf_ref, pool_ref, up_ref,
                         o_ref, *, nw):
    f32 = jnp.float32
    dot = lambda a, b: jnp.dot(a, b, preferred_element_type=f32)

    # ---- fftlayer_w: forward DFT (one stacked matmul), complex filter, real iDFT ----
    x = xc_ref[...]                              # (C, M) real
    m_len = x.shape[1]
    xf = dot(x, kf_ref[...])                     # (C, 2M) = [Xre | Xim]
    xre, xim = xf[:, :m_len], xf[:, m_len:]
    wre, wim = wre_ref[...], wim_ref[...]
    yre = xre * wre - xim * wim
    yim = xre * wim + xim * wre
    y = dot(jnp.concatenate([yre, yim], axis=1), ki_ref[...])   # (C, M) real(ifft2)

    # ---- fused 3x3 conv + bias + ReLU: 9 rolled+masked lane-dense matmuls ----
    def conv3x3(act, w_r, b_r, m_r, row_stride, relu=True):
        cout = w_r.shape[1]
        mloc = act.shape[-1]
        acc = jnp.zeros((cout, mloc), f32)
        for t in range(9):
            di, dj = t // 3 - 1, t % 3 - 1
            off = di * row_stride + dj           # lane offset of this tap
            if off == 0:
                tap = act
            else:
                tap = pltpu.roll(act, shift=(-off) % mloc, axis=1) * m_r[t]
            acc = acc + dot(w_r[t], tap)
        acc = acc + b_r[...]
        return jnp.maximum(acc, 0.0) if relu else acc

    e1 = conv3x3(y, wenc_ref, benc_ref, mfull_ref, nw)           # (8,  M)

    # 2x2 maxpool: pairwise lane maxima (w then h neighbour) + 0/1 gather matmul.
    m1 = jnp.maximum(e1, pltpu.roll(e1, shift=m_len - 1, axis=1))
    m2 = jnp.maximum(m1, pltpu.roll(m1, shift=m_len - nw, axis=1))
    p1 = dot(m2, pool_ref[...])                                  # (8,  M/4)

    bt = conv3x3(p1, wbot_ref, bbot_ref, mhalf_ref, nw // 2)     # (16, M/4)

    up = dot(bt, up_ref[...])                                    # (16, M) nearest x2
    cat = jnp.concatenate([e1, up], axis=0)                      # (24, M)

    d1 = conv3x3(cat, wdec_ref, bdec_ref, mfull_ref, nw)         # (8,  M)

    # 1x1 head; output channels zero-padded to 8 rows -> unmasked sublane store.
    o_ref[...] = (dot(wout_ref[...], d1) + bout_ref[...]).astype(o_ref.dtype)


# ----------------------------------------------------------------------------
# MyEnsemble.forward:  unet_model(fftlayer(x)),  x: (N, C, H, W) float32.
# ----------------------------------------------------------------------------
def my_ensemble_forward(x, params):
    N, C, H, W = x.shape
    M = N * H * W
    consts = _fused_constants(N, H, W)

    # (N, C, H, W) -> channel-major lane-dense (C, M), m = (h*N + n)*W + w
    xc = x.transpose(1, 2, 0, 3).reshape(C, M)
    wre = jnp.broadcast_to(params["fft_wre"][:, :, None, :], (C, H, N, W)).reshape(C, M)
    wim = jnp.broadcast_to(params["fft_wim"][:, :, None, :], (C, H, N, W)).reshape(C, M)

    def taps(w):   # HWIO (3, 3, Cin, Cout) -> tap-major (9, Cout, Cin)
        kh, kw, cin, cout = w.shape
        return w.transpose(0, 1, 3, 2).reshape(kh * kw, cout, cin)

    w_enc, w_bot, w_dec = taps(params["w_enc"]), taps(params["w_bot"]), taps(params["w_dec"])
    b_enc = params["b_enc"].reshape(-1, 1)
    b_bot = params["b_bot"].reshape(-1, 1)
    b_dec = params["b_dec"].reshape(-1, 1)

    # 1x1 head, padded to >=8 output rows (avoids a masked 4-sublane store).
    cin_head = params["w_out"].shape[2]
    w_out = params["w_out"].reshape(cin_head, -1).T              # (C, Cin_head)
    pad = (-C) % 8
    w_out = jnp.pad(w_out, ((0, pad), (0, 0)))
    b_out = jnp.pad(params["b_out"].reshape(-1, 1), ((0, pad), (0, 0)))
    cout_pad = C + pad

    out = pl.pallas_call(
        functools.partial(fused_forward_kernel, nw=N * W),
        out_shape=jax.ShapeDtypeStruct((cout_pad, M), jnp.float32),
        compiler_params=pltpu.CompilerParams(vmem_limit_bytes=32 * 1024 * 1024),
    )(xc, jnp.asarray(consts["kf"]), jnp.asarray(consts["ki"]), wre, wim,
      w_enc, b_enc, w_bot, b_bot, w_dec, b_dec, w_out, b_out,
      jnp.asarray(consts["mask_full"]), jnp.asarray(consts["mask_half"]),
      jnp.asarray(consts["s_pool"]), jnp.asarray(consts["u_up"]))

    # (C_pad, M) -> (N, C, H, W)
    return out[:C].reshape(C, H, N, W).transpose(2, 0, 1, 3)


def init_params(key, C, H, W, base=8):
    ks = jax.random.split(key, 10)

    def conv_w(k, kh, kw, cin, cout):
        std = 1.0 / jnp.sqrt(kh * kw * cin)
        return std * jax.random.normal(k, (kh, kw, cin, cout), jnp.float32)

    return {
        "fft_wre": 0.5 * jax.random.normal(ks[0], (C, H, W), jnp.float32),
        "fft_wim": 0.5 * jax.random.normal(ks[1], (C, H, W), jnp.float32),
        "w_enc": conv_w(ks[2], 3, 3, C, base),
        "b_enc": jnp.zeros((base,), jnp.float32),
        "w_bot": conv_w(ks[3], 3, 3, base, 2 * base),
        "b_bot": jnp.zeros((2 * base,), jnp.float32),
        "w_dec": conv_w(ks[4], 3, 3, base + 2 * base, base),
        "b_dec": jnp.zeros((base,), jnp.float32),
        "w_out": conv_w(ks[5], 1, 1, base, C),
        "b_out": jnp.zeros((C,), jnp.float32),
    }


# ----------------------------------------------------------------------------
# Pure-JAX reference (jnp.fft + lax.conv) for correctness validation.
# ----------------------------------------------------------------------------
def reference_forward(x, params):
    N, C, H, W = x.shape
    wf = (params["fft_wre"] + 1j * params["fft_wim"])[None]
    f = jnp.real(jnp.fft.ifft2(jnp.fft.fft2(x) * wf)).astype(jnp.float32)
    y = f.transpose(0, 2, 3, 1)                                          # NHWC

    def conv(a, w, b, relu):
        out = jax.lax.conv_general_dilated(
            a, w, window_strides=(1, 1), padding="SAME",
            dimension_numbers=("NHWC", "HWIO", "NHWC"),
            precision=jax.lax.Precision.HIGHEST) + b
        return jnp.maximum(out, 0.0) if relu else out

    e1 = conv(y, params["w_enc"], params["b_enc"], True)
    p1 = e1.reshape(N, H // 2, 2, W // 2, 2, -1).max(axis=(2, 4))
    bt = conv(p1, params["w_bot"], params["b_bot"], True)
    up = jnp.repeat(jnp.repeat(bt, 2, axis=1), 2, axis=2)
    cat = jnp.concatenate([e1, up], axis=-1)
    d1 = conv(cat, params["w_dec"], params["b_dec"], True)
    out = conv(d1, params["w_out"], params["b_out"], False)
    return out.transpose(0, 3, 1, 2)


if __name__ == "__main__":
    N, C, H, W = 2, 4, 16, 16
    key = jax.random.PRNGKey(0)
    kx, kp = jax.random.split(key)
    x = jax.random.normal(kx, (N, C, H, W), jnp.float32)
    params = init_params(kp, C, H, W)

    fwd = jax.jit(my_ensemble_forward)
    out = jax.block_until_ready(fwd(x, params))
    assert out.shape == (N, C, H, W)
    assert bool(jnp.all(jnp.isfinite(out)))

    ref_out = reference_forward(x, params)
    err = float(jnp.max(jnp.abs(out - ref_out)))
    assert err < 1e-2, f"model mismatch: {err}"

    print("KERNEL_OK")
</pallas_src>

<mosaic_0001>
module attributes {stable_mosaic.version = 11 : i64} {
  func.func @fused_forward_kernel(%arg0: memref<4x512xf32, #tpu.memory_space<vmem>>, %arg1: memref<512x1024xf32, #tpu.memory_space<vmem>>, %arg2: memref<1024x512xf32, #tpu.memory_space<vmem>>, %arg3: memref<4x512xf32, #tpu.memory_space<vmem>>, %arg4: memref<4x512xf32, #tpu.memory_space<vmem>>, %arg5: memref<9x8x4xf32, #tpu.memory_space<vmem>>, %arg6: memref<8x1xf32, #tpu.memory_space<vmem>>, %arg7: memref<9x16x8xf32, #tpu.memory_space<vmem>>, %arg8: memref<16x1xf32, #tpu.memory_space<vmem>>, %arg9: memref<9x8x24xf32, #tpu.memory_space<vmem>>, %arg10: memref<8x1xf32, #tpu.memory_space<vmem>>, %arg11: memref<8x8xf32, #tpu.memory_space<vmem>>, %arg12: memref<8x1xf32, #tpu.memory_space<vmem>>, %arg13: memref<9x1x512xf32, #tpu.memory_space<vmem>>, %arg14: memref<9x1x128xf32, #tpu.memory_space<vmem>>, %arg15: memref<512x128xf32, #tpu.memory_space<vmem>>, %arg16: memref<128x512xf32, #tpu.memory_space<vmem>>, %arg17: memref<8x512xf32, #tpu.memory_space<vmem>>) attributes {dimension_semantics = [], scalar_prefetch = 0 : i64, scratch_operands = 0 : i64, tpu.core_type = #tpu.core_type<tc>} {
    %c0 = arith.constant 0 : index
    %c0_0 = arith.constant 0 : index
    %0 = vector.load %arg0[%c0, %c0_0] : memref<4x512xf32, #tpu.memory_space<vmem>>, vector<4x512xf32>
    %c0_1 = arith.constant 0 : index
    %c0_2 = arith.constant 0 : index
    %1 = vector.load %arg1[%c0_1, %c0_2] : memref<512x1024xf32, #tpu.memory_space<vmem>>, vector<512x1024xf32>
    %cst = arith.constant dense<0.000000e+00> : vector<4x1024xf32>
    %2 = tpu.matmul %0, %1, %cst {dimension_numbers = #tpu.dot_dimension_numbers<[1], [0], [0], [1], [0, 0, 1, 1], [], []>} : vector<4x512xf32>, vector<512x1024xf32>, vector<4x1024xf32> -> vector<4x1024xf32>
    %3 = vector.extract_strided_slice %2 {offsets = [0, 0], sizes = [4, 512], strides = [1, 1]} : vector<4x1024xf32> to vector<4x512xf32>
    %4 = vector.extract_strided_slice %2 {offsets = [0, 512], sizes = [4, 512], strides = [1, 1]} : vector<4x1024xf32> to vector<4x512xf32>
    %c0_3 = arith.constant 0 : index
    %c0_4 = arith.constant 0 : index
    %5 = vector.load %arg3[%c0_3, %c0_4] : memref<4x512xf32, #tpu.memory_space<vmem>>, vector<4x512xf32>
    %c0_5 = arith.constant 0 : index
    %c0_6 = arith.constant 0 : index
    %6 = vector.load %arg4[%c0_5, %c0_6] : memref<4x512xf32, #tpu.memory_space<vmem>>, vector<4x512xf32>
    %7 = arith.mulf %3, %5 : vector<4x512xf32>
    %8 = arith.mulf %4, %6 : vector<4x512xf32>
    %9 = arith.subf %7, %8 : vector<4x512xf32>
    %10 = arith.mulf %3, %6 : vector<4x512xf32>
    %11 = arith.mulf %4, %5 : vector<4x512xf32>
    %12 = arith.addf %10, %11 : vector<4x512xf32>
    %13 = tpu.concatenate %9, %12 in 1 : vector<4x512xf32>, vector<4x512xf32> -> vector<4x1024xf32>
    %c0_7 = arith.constant 0 : index
    %c0_8 = arith.constant 0 : index
    %14 = vector.load %arg2[%c0_7, %c0_8] : memref<1024x512xf32, #tpu.memory_space<vmem>>, vector<1024x512xf32>
    %cst_9 = arith.constant dense<0.000000e+00> : vector<4x512xf32>
    %15 = tpu.matmul %13, %14, %cst_9 {dimension_numbers = #tpu.dot_dimension_numbers<[1], [0], [0], [1], [0, 0, 1, 1], [], []>} : vector<4x1024xf32>, vector<1024x512xf32>, vector<4x512xf32> -> vector<4x512xf32>
    %cst_10 = arith.constant 0.000000e+00 : f32
    %16 = vector.broadcast %cst_10 : f32 to vector<8x512xf32>
    %c33_i32 = arith.constant 33 : i32
    %17 = tpu.dynamic_rotate %15 by %c33_i32 dim 1 : vector<4x512xf32>, i32 -> vector<4x512xf32>
    %c0_11 = arith.constant 0 : index
    %c0_12 = arith.constant 0 : index
    %c0_13 = arith.constant 0 : index
    %18 = vector.load %arg13[%c0_11, %c0_12, %c0_13] : memref<9x1x512xf32, #tpu.memory_space<vmem>>, vector<1x1x512xf32>
    %19 = vector.shape_cast %18 : vector<1x1x512xf32> to vector<1x512xf32>
    %20 = vector.broadcast %19 : vector<1x512xf32> to vector<4x512xf32>
    %21 = arith.mulf %17, %20 : vector<4x512xf32>
    %c0_14 = arith.constant 0 : index
    %c0_15 = arith.constant 0 : index
    %c0_16 = arith.constant 0 : index
    %22 = vector.load %arg5[%c0_14, %c0_15, %c0_16] : memref<9x8x4xf32, #tpu.memory_space<vmem>>, vector<1x8x4xf32>
    %23 = vector.shape_cast %22 : vector<1x8x4xf32> to vector<8x4xf32>
    %cst_17 = arith.constant dense<0.000000e+00> : vector<8x512xf32>
    %24 = tpu.matmul %23, %21, %cst_17 {dimension_numbers = #tpu.dot_dimension_numbers<[1], [0], [0], [1], [0, 0, 1, 1], [], []>} : vector<8x4xf32>, vector<4x512xf32>, vector<8x512xf32> -> vector<8x512xf32>
    %25 = arith.addf %16, %24 : vector<8x512xf32>
    %c32_i32 = arith.constant 32 : i32
    %26 = tpu.dynamic_rotate %15 by %c32_i32 dim 1 : vector<4x512xf32>, i32 -> vector<4x512xf32>
    %c1 = arith.constant 1 : index
    %c0_18 = arith.constant 0 : index
    %c0_19 = arith.constant 0 : index
    %27 = vector.load %arg13[%c1, %c0_18, %c0_19] : memref<9x1x512xf32, #tpu.memory_space<vmem>>, vector<1x1x512xf32>
    %28 = vector.shape_cast %27 : vector<1x1x512xf32> to vector<1x512xf32>
    %29 = vector.broadcast %28 : vector<1x512xf32> to vector<4x512xf32>
    %30 = arith.mulf %26, %29 : vector<4x512xf32>
    %c1_20 = arith.constant 1 : index
    %c0_21 = arith.constant 0 : index
    %c0_22 = arith.constant 0 : index
    %31 = vector.load %arg5[%c1_20, %c0_21, %c0_22] : memref<9x8x4xf32, #tpu.memory_space<vmem>>, vector<1x8x4xf32>
    %32 = vector.shape_cast %31 : vector<1x8x4xf32> to vector<8x4xf32>
    %cst_23 = arith.constant dense<0.000000e+00> : vector<8x512xf32>
    %33 = tpu.matmul %32, %30, %cst_23 {dimension_numbers = #tpu.dot_dimension_numbers<[1], [0], [0], [1], [0, 0, 1, 1], [], []>} : vector<8x4xf32>, vector<4x512xf32>, vector<8x512xf32> -> vector<8x512xf32>
    %34 = arith.addf %25, %33 : vector<8x512xf32>
    %c31_i32 = arith.constant 31 : i32
    %35 = tpu.dynamic_rotate %15 by %c31_i32 dim 1 : vector<4x512xf32>, i32 -> vector<4x512xf32>
    %c2 = arith.constant 2 : index
    %c0_24 = arith.constant 0 : index
    %c0_25 = arith.constant 0 : index
    %36 = vector.load %arg13[%c2, %c0_24, %c0_25] : memref<9x1x512xf32, #tpu.memory_space<vmem>>, vector<1x1x512xf32>
    %37 = vector.shape_cast %36 : vector<1x1x512xf32> to vector<1x512xf32>
    %38 = vector.broadcast %37 : vector<1x512xf32> to vector<4x512xf32>
    %39 = arith.mulf %35, %38 : vector<4x512xf32>
    %c2_26 = arith.constant 2 : index
    %c0_27 = arith.constant 0 : index
    %c0_28 = arith.constant 0 : index
    %40 = vector.load %arg5[%c2_26, %c0_27, %c0_28] : memref<9x8x4xf32, #tpu.memory_space<vmem>>, vector<1x8x4xf32>
    %41 = vector.shape_cast %40 : vector<1x8x4xf32> to vector<8x4xf32>
    %cst_29 = arith.constant dense<0.000000e+00> : vector<8x512xf32>
    %42 = tpu.matmul %41, %39, %cst_29 {dimension_numbers = #tpu.dot_dimension_numbers<[1], [0], [0], [1], [0, 0, 1, 1], [], []>} : vector<8x4xf32>, vector<4x512xf32>, vector<8x512xf32> -> vector<8x512xf32>
    %43 = arith.addf %34, %42 : vector<8x512xf32>
    %c1_i32 = arith.constant 1 : i32
    %44 = tpu.dynamic_rotate %15 by %c1_i32 dim 1 : vector<4x512xf32>, i32 -> vector<4x512xf32>
    %c3 = arith.constant 3 : index
    %c0_30 = arith.constant 0 : index
    %c0_31 = arith.constant 0 : index
    %45 = vector.load %arg13[%c3, %c0_30, %c0_31] : memref<9x1x512xf32, #tpu.memory_space<vmem>>, vector<1x1x512xf32>
    %46 = vector.shape_cast %45 : vector<1x1x512xf32> to vector<1x512xf32>
    %47 = vector.broadcast %46 : vector<1x512xf32> to vector<4x512xf32>
    %48 = arith.mulf %44, %47 : vector<4x512xf32>
    %c3_32 = arith.constant 3 : index
    %c0_33 = arith.constant 0 : index
    %c0_34 = arith.constant 0 : index
    %49 = vector.load %arg5[%c3_32, %c0_33, %c0_34] : memref<9x8x4xf32, #tpu.memory_space<vmem>>, vector<1x8x4xf32>
    %50 = vector.shape_cast %49 : vector<1x8x4xf32> to vector<8x4xf32>
    %cst_35 = arith.constant dense<0.000000e+00> : vector<8x512xf32>
    %51 = tpu.matmul %50, %48, %cst_35 {dimension_numbers = #tpu.dot_dimension_numbers<[1], [0], [0], [1], [0, 0, 1, 1], [], []>} : vector<8x4xf32>, vector<4x512xf32>, vector<8x512xf32> -> vector<8x512xf32>
    %52 = arith.addf %43, %51 : vector<8x512xf32>
    %c4 = arith.constant 4 : index
    %c0_36 = arith.constant 0 : index
    %c0_37 = arith.constant 0 : index
    %53 = vector.load %arg5[%c4, %c0_36, %c0_37] : memref<9x8x4xf32, #tpu.memory_space<vmem>>, vector<1x8x4xf32>
    %54 = vector.shape_cast %53 : vector<1x8x4xf32> to vector<8x4xf32>
    %cst_38 = arith.constant dense<0.000000e+00> : vector<8x512xf32>
    %55 = tpu.matmul %54, %15, %cst_38 {dimension_numbers = #tpu.dot_dimension_numbers<[1], [0], [0], [1], [0, 0, 1, 1], [], []>} : vector<8x4xf32>, vector<4x512xf32>, vector<8x512xf32> -> vector<8x512xf32>
    %56 = arith.addf %52, %55 : vector<8x512xf32>
    %c511_i32 = arith.constant 511 : i32
    %57 = tpu.dynamic_rotate %15 by %c511_i32 dim 1 : vector<4x512xf32>, i32 -> vector<4x512xf32>
    %c5 = arith.constant 5 : index
    %c0_39 = arith.constant 0 : index
    %c0_40 = arith.constant 0 : index
    %58 = vector.load %arg13[%c5, %c0_39, %c0_40] : memref<9x1x512xf32, #tpu.memory_space<vmem>>, vector<1x1x512xf32>
    %59 = vector.shape_cast %58 : vector<1x1x512xf32> to vector<1x512xf32>
    %60 = vector.broadcast %59 : vector<1x512xf32> to vector<4x512xf32>
    %61 = arith.mulf %57, %60 : vector<4x512xf32>
    %c5_41 = arith.constant 5 : index
    %c0_42 = arith.constant 0 : index
    %c0_43 = arith.constant 0 : index
    %62 = vector.load %arg5[%c5_41, %c0_42, %c0_43] : memref<9x8x4xf32, #tpu.memory_space<vmem>>, vector<1x8x4xf32>
    %63 = vector.shape_cast %62 : vector<1x8x4xf32> to vector<8x4xf32>
    %cst_44 = arith.constant dense<0.000000e+00> : vector<8x512xf32>
    %64 = tpu.matmul %63, %61, %cst_44 {dimension_numbers = #tpu.dot_dimension_numbers<[1], [0], [0], [1], [0, 0, 1, 1], [], []>} : vector<8x4xf32>, vector<4x512xf32>, vector<8x512xf32> -> vector<8x512xf32>
    %65 = arith.addf %56, %64 : vector<8x512xf32>
    %c481_i32 = arith.constant 481 : i32
    %66 = tpu.dynamic_rotate %15 by %c481_i32 dim 1 : vector<4x512xf32>, i32 -> vector<4x512xf32>
    %c6 = arith.constant 6 : index
    %c0_45 = arith.constant 0 : index
    %c0_46 = arith.constant 0 : index
    %67 = vector.load %arg13[%c6, %c0_45, %c0_46] : memref<9x1x512xf32, #tpu.memory_space<vmem>>, vector<1x1x512xf32>
    %68 = vector.shape_cast %67 : vector<1x1x512xf32> to vector<1x512xf32>
    %69 = vector.broadcast %68 : vector<1x512xf32> to vector<4x512xf32>
    %70 = arith.mulf %66, %69 : vector<4x512xf32>
    %c6_47 = arith.constant 6 : index
    %c0_48 = arith.constant 0 : index
    %c0_49 = arith.constant 0 : index
    %71 = vector.load %arg5[%c6_47, %c0_48, %c0_49] : memref<9x8x4xf32, #tpu.memory_space<vmem>>, vector<1x8x4xf32>
    %72 = vector.shape_cast %71 : vector<1x8x4xf32> to vector<8x4xf32>
    %cst_50 = arith.constant dense<0.000000e+00> : vector<8x512xf32>
    %73 = tpu.matmul %72, %70, %cst_50 {dimension_numbers = #tpu.dot_dimension_numbers<[1], [0], [0], [1], [0, 0, 1, 1], [], []>} : vector<8x4xf32>, vector<4x512xf32>, vector<8x512xf32> -> vector<8x512xf32>
    %74 = arith.addf %65, %73 : vector<8x512xf32>
    %c480_i32 = arith.constant 480 : i32
    %75 = tpu.dynamic_rotate %15 by %c480_i32 dim 1 : vector<4x512xf32>, i32 -> vector<4x512xf32>
    %c7 = arith.constant 7 : index
    %c0_51 = arith.constant 0 : index
    %c0_52 = arith.constant 0 : index
    %76 = vector.load %arg13[%c7, %c0_51, %c0_52] : memref<9x1x512xf32, #tpu.memory_space<vmem>>, vector<1x1x512xf32>
    %77 = vector.shape_cast %76 : vector<1x1x512xf32> to vector<1x512xf32>
    %78 = vector.broadcast %77 : vector<1x512xf32> to vector<4x512xf32>
    %79 = arith.mulf %75, %78 : vector<4x512xf32>
    %c7_53 = arith.constant 7 : index
    %c0_54 = arith.constant 0 : index
    %c0_55 = arith.constant 0 : index
    %80 = vector.load %arg5[%c7_53, %c0_54, %c0_55] : memref<9x8x4xf32, #tpu.memory_space<vmem>>, vector<1x8x4xf32>
    %81 = vector.shape_cast %80 : vector<1x8x4xf32> to vector<8x4xf32>
    %cst_56 = arith.constant dense<0.000000e+00> : vector<8x512xf32>
    %82 = tpu.matmul %81, %79, %cst_56 {dimension_numbers = #tpu.dot_dimension_numbers<[1], [0], [0], [1], [0, 0, 1, 1], [], []>} : vector<8x4xf32>, vector<4x512xf32>, vector<8x512xf32> -> vector<8x512xf32>
    %83 = arith.addf %74, %82 : vector<8x512xf32>
    %c479_i32 = arith.constant 479 : i32
    %84 = tpu.dynamic_rotate %15 by %c479_i32 dim 1 : vector<4x512xf32>, i32 -> vector<4x512xf32>
    %c8 = arith.constant 8 : index
    %c0_57 = arith.constant 0 : index
    %c0_58 = arith.constant 0 : index
    %85 = vector.load %arg13[%c8, %c0_57, %c0_58] : memref<9x1x512xf32, #tpu.memory_space<vmem>>, vector<1x1x512xf32>
    %86 = vector.shape_cast %85 : vector<1x1x512xf32> to vector<1x512xf32>
    %87 = vector.broadcast %86 : vector<1x512xf32> to vector<4x512xf32>
    %88 = arith.mulf %84, %87 : vector<4x512xf32>
    %c8_59 = arith.constant 8 : index
    %c0_60 = arith.constant 0 : index
    %c0_61 = arith.constant 0 : index
    %89 = vector.load %arg5[%c8_59, %c0_60, %c0_61] : memref<9x8x4xf32, #tpu.memory_space<vmem>>, vector<1x8x4xf32>
    %90 = vector.shape_cast %89 : vector<1x8x4xf32> to vector<8x4xf32>
    %cst_62 = arith.constant dense<0.000000e+00> : vector<8x512xf32>
    %91 = tpu.matmul %90, %88, %cst_62 {dimension_numbers = #tpu.dot_dimension_numbers<[1], [0], [0], [1], [0, 0, 1, 1], [], []>} : vector<8x4xf32>, vector<4x512xf32>, vector<8x512xf32> -> vector<8x512xf32>
    %92 = arith.addf %83, %91 : vector<8x512xf32>
    %c0_63 = arith.constant 0 : index
    %c0_64 = arith.constant 0 : index
    %93 = vector.load %arg6[%c0_63, %c0_64] : memref<8x1xf32, #tpu.memory_space<vmem>>, vector<8x1xf32>
    %94 = vector.broadcast %93 : vector<8x1xf32> to vector<8x512xf32>
    %95 = arith.addf %92, %94 : vector<8x512xf32>
    %cst_65 = arith.constant 0.000000e+00 : f32
    %96 = vector.broadcast %cst_65 : f32 to vector<8x512xf32>
    %97 = arith.maximumf %95, %96 : vector<8x512xf32>
    %c511_i32_66 = arith.constant 511 : i32
    %98 = tpu.dynamic_rotate %97 by %c511_i32_66 dim 1 : vector<8x512xf32>, i32 -> vector<8x512xf32>
    %99 = arith.maximumf %97, %98 : vector<8x512xf32>
    %c480_i32_67 = arith.constant 480 : i32
    %100 = tpu.dynamic_rotate %99 by %c480_i32_67 dim 1 : vector<8x512xf32>, i32 -> vector<8x512xf32>
    %101 = arith.maximumf %99, %100 : vector<8x512xf32>
    %c0_68 = arith.constant 0 : index
    %c0_69 = arith.constant 0 : index
    %102 = vector.load %arg15[%c0_68, %c0_69] : memref<512x128xf32, #tpu.memory_space<vmem>>, vector<512x128xf32>
    %cst_70 = arith.constant dense<0.000000e+00> : vector<8x128xf32>
    %103 = tpu.matmul %101, %102, %cst_70 {dimension_numbers = #tpu.dot_dimension_numbers<[1], [0], [0], [1], [0, 0, 1, 1], [], []>} : vector<8x512xf32>, vector<512x128xf32>, vector<8x128xf32> -> vector<8x128xf32>
    %cst_71 = arith.constant 0.000000e+00 : f32
    %104 = vector.broadcast %cst_71 : f32 to vector<16x128xf32>
    %c17_i32 = arith.constant 17 : i32
    %105 = tpu.dynamic_rotate %103 by %c17_i32 dim 1 : vector<8x128xf32>, i32 -> vector<8x128xf32>
    %c0_72 = arith.constant 0 : index
    %c0_73 = arith.constant 0 : index
    %c0_74 = arith.constant 0 : index
    %106 = vector.load %arg14[%c0_72, %c0_73, %c0_74] : memref<9x1x128xf32, #tpu.memory_space<vmem>>, vector<1x1x128xf32>
    %107 = vector.shape_cast %106 : vector<1x1x128xf32> to vector<1x128xf32>
    %108 = vector.broadcast %107 : vector<1x128xf32> to vector<8x128xf32>
    %109 = arith.mulf %105, %108 : vector<8x128xf32>
    %c0_75 = arith.constant 0 : index
    %c0_76 = arith.constant 0 : index
    %c0_77 = arith.constant 0 : index
    %110 = vector.load %arg7[%c0_75, %c0_76, %c0_77] : memref<9x16x8xf32, #tpu.memory_space<vmem>>, vector<1x16x8xf32>
    %111 = vector.shape_cast %110 : vector<1x16x8xf32> to vector<16x8xf32>
    %cst_78 = arith.constant dense<0.000000e+00> : vector<16x128xf32>
    %112 = tpu.matmul %111, %109, %cst_78 {dimension_numbers = #tpu.dot_dimension_numbers<[1], [0], [0], [1], [0, 0, 1, 1], [], []>} : vector<16x8xf32>, vector<8x128xf32>, vector<16x128xf32> -> vector<16x128xf32>
    %113 = arith.addf %104, %112 : vector<16x128xf32>
    %c16_i32 = arith.constant 16 : i32
    %114 = tpu.dynamic_rotate %103 by %c16_i32 dim 1 : vector<8x128xf32>, i32 -> vector<8x128xf32>
    %c1_79 = arith.constant 1 : index
    %c0_80 = arith.constant 0 : index
    %c0_81 = arith.constant 0 : index
    %115 = vector.load %arg14[%c1_79, %c0_80, %c0_81] : memref<9x1x128xf32, #tpu.memory_space<vmem>>, vector<1x1x128xf32>
    %116 = vector.shape_cast %115 : vector<1x1x128xf32> to vector<1x128xf32>
    %117 = vector.broadcast %116 : vector<1x128xf32> to vector<8x128xf32>
    %118 = arith.mulf %114, %117 : vector<8x128xf32>
    %c1_82 = arith.constant 1 : index
    %c0_83 = arith.constant 0 : index
    %c0_84 = arith.constant 0 : index
    %119 = vector.load %arg7[%c1_82, %c0_83, %c0_84] : memref<9x16x8xf32, #tpu.memory_space<vmem>>, vector<1x16x8xf32>
    %120 = vector.shape_cast %119 : vector<1x16x8xf32> to vector<16x8xf32>
    %cst_85 = arith.constant dense<0.000000e+00> : vector<16x128xf32>
    %121 = tpu.matmul %120, %118, %cst_85 {dimension_numbers = #tpu.dot_dimension_numbers<[1], [0], [0], [1], [0, 0, 1, 1], [], []>} : vector<16x8xf32>, vector<8x128xf32>, vector<16x128xf32> -> vector<16x128xf32>
    %122 = arith.addf %113, %121 : vector<16x128xf32>
    %c15_i32 = arith.constant 15 : i32
    %123 = tpu.dynamic_rotate %103 by %c15_i32 dim 1 : vector<8x128xf32>, i32 -> vector<8x128xf32>
    %c2_86 = arith.constant 2 : index
    %c0_87 = arith.constant 0 : index
    %c0_88 = arith.constant 0 : index
    %124 = vector.load %arg14[%c2_86, %c0_87, %c0_88] : memref<9x1x128xf32, #tpu.memory_space<vmem>>, vector<1x1x128xf32>
    %125 = vector.shape_cast %124 : vector<1x1x128xf32> to vector<1x128xf32>
    %126 = vector.broadcast %125 : vector<1x128xf32> to vector<8x128xf32>
    %127 = arith.mulf %123, %126 : vector<8x128xf32>
    %c2_89 = arith.constant 2 : index
    %c0_90 = arith.constant 0 : index
    %c0_91 = arith.constant 0 : index
    %128 = vector.load %arg7[%c2_89, %c0_90, %c0_91] : memref<9x16x8xf32, #tpu.memory_space<vmem>>, vector<1x16x8xf32>
    %129 = vector.shape_cast %128 : vector<1x16x8xf32> to vector<16x8xf32>
    %cst_92 = arith.constant dense<0.000000e+00> : vector<16x128xf32>
    %130 = tpu.matmul %129, %127, %cst_92 {dimension_numbers = #tpu.dot_dimension_numbers<[1], [0], [0], [1], [0, 0, 1, 1], [], []>} : vector<16x8xf32>, vector<8x128xf32>, vector<16x128xf32> -> vector<16x128xf32>
    %131 = arith.addf %122, %130 : vector<16x128xf32>
    %c1_i32_93 = arith.constant 1 : i32
    %132 = tpu.dynamic_rotate %103 by %c1_i32_93 dim 1 : vector<8x128xf32>, i32 -> vector<8x128xf32>
    %c3_94 = arith.constant 3 : index
    %c0_95 = arith.constant 0 : index
    %c0_96 = arith.constant 0 : index
    %133 = vector.load %arg14[%c3_94, %c0_95, %c0_96] : memref<9x1x128xf32, #tpu.memory_space<vmem>>, vector<1x1x128xf32>
    %134 = vector.shape_cast %133 : vector<1x1x128xf32> to vector<1x128xf32>
    %135 = vector.broadcast %134 : vector<1x128xf32> to vector<8x128xf32>
    %136 = arith.mulf %132, %135 : vector<8x128xf32>
    %c3_97 = arith.constant 3 : index
    %c0_98 = arith.constant 0 : index
    %c0_99 = arith.constant 0 : index
    %137 = vector.load %arg7[%c3_97, %c0_98, %c0_99] : memref<9x16x8xf32, #tpu.memory_space<vmem>>, vector<1x16x8xf32>
    %138 = vector.shape_cast %137 : vector<1x16x8xf32> to vector<16x8xf32>
    %cst_100 = arith.constant dense<0.000000e+00> : vector<16x128xf32>
    %139 = tpu.matmul %138, %136, %cst_100 {dimension_numbers = #tpu.dot_dimension_numbers<[1], [0], [0], [1], [0, 0, 1, 1], [], []>} : vector<16x8xf32>, vector<8x128xf32>, vector<16x128xf32> -> vector<16x128xf32>
    %140 = arith.addf %131, %139 : vector<16x128xf32>
    %c4_101 = arith.constant 4 : index
    %c0_102 = arith.constant 0 : index
    %c0_103 = arith.constant 0 : index
    %141 = vector.load %arg7[%c4_101, %c0_102, %c0_103] : memref<9x16x8xf32, #tpu.memory_space<vmem>>, vector<1x16x8xf32>
    %142 = vector.shape_cast %141 : vector<1x16x8xf32> to vector<16x8xf32>
    %cst_104 = arith.constant dense<0.000000e+00> : vector<16x128xf32>
    %143 = tpu.matmul %142, %103, %cst_104 {dimension_numbers = #tpu.dot_dimension_numbers<[1], [0], [0], [1], [0, 0, 1, 1], [], []>} : vector<16x8xf32>, vector<8x128xf32>, vector<16x128xf32> -> vector<16x128xf32>
    %144 = arith.addf %140, %143 : vector<16x128xf32>
    %c127_i32 = arith.constant 127 : i32
    %145 = tpu.dynamic_rotate %103 by %c127_i32 dim 1 : vector<8x128xf32>, i32 -> vector<8x128xf32>
    %c5_105 = arith.constant 5 : index
    %c0_106 = arith.constant 0 : index
    %c0_107 = arith.constant 0 : index
    %146 = vector.load %arg14[%c5_105, %c0_106, %c0_107] : memref<9x1x128xf32, #tpu.memory_space<vmem>>, vector<1x1x128xf32>
    %147 = vector.shape_cast %146 : vector<1x1x128xf32> to vector<1x128xf32>
    %148 = vector.broadcast %147 : vector<1x128xf32> to vector<8x128xf32>
    %149 = arith.mulf %145, %148 : vector<8x128xf32>
    %c5_108 = arith.constant 5 : index
    %c0_109 = arith.constant 0 : index
    %c0_110 = arith.constant 0 : index
    %150 = vector.load %arg7[%c5_108, %c0_109, %c0_110] : memref<9x16x8xf32, #tpu.memory_space<vmem>>, vector<1x16x8xf32>
    %151 = vector.shape_cast %150 : vector<1x16x8xf32> to vector<16x8xf32>
    %cst_111 = arith.constant dense<0.000000e+00> : vector<16x128xf32>
    %152 = tpu.matmul %151, %149, %cst_111 {dimension_numbers = #tpu.dot_dimension_numbers<[1], [0], [0], [1], [0, 0, 1, 1], [], []>} : vector<16x8xf32>, vector<8x128xf32>, vector<16x128xf32> -> vector<16x128xf32>
    %153 = arith.addf %144, %152 : vector<16x128xf32>
    %c113_i32 = arith.constant 113 : i32
    %154 = tpu.dynamic_rotate %103 by %c113_i32 dim 1 : vector<8x128xf32>, i32 -> vector<8x128xf32>
    %c6_112 = arith.constant 6 : index
    %c0_113 = arith.constant 0 : index
    %c0_114 = arith.constant 0 : index
    %155 = vector.load %arg14[%c6_112, %c0_113, %c0_114] : memref<9x1x128xf32, #tpu.memory_space<vmem>>, vector<1x1x128xf32>
    %156 = vector.shape_cast %155 : vector<1x1x128xf32> to vector<1x128xf32>
    %157 = vector.broadcast %156 : vector<1x128xf32> to vector<8x128xf32>
    %158 = arith.mulf %154, %157 : vector<8x128xf32>
    %c6_115 = arith.constant 6 : index
    %c0_116 = arith.constant 0 : index
    %c0_117 = arith.constant 0 : index
    %159 = vector.load %arg7[%c6_115, %c0_116, %c0_117] : memref<9x16x8xf32, #tpu.memory_space<vmem>>, vector<1x16x8xf32>
    %160 = vector.shape_cast %159 : vector<1x16x8xf32> to vector<16x8xf32>
    %cst_118 = arith.constant dense<0.000000e+00> : vector<16x128xf32>
    %161 = tpu.matmul %160, %158, %cst_118 {dimension_numbers = #tpu.dot_dimension_numbers<[1], [0], [0], [1], [0, 0, 1, 1], [], []>} : vector<16x8xf32>, vector<8x128xf32>, vector<16x128xf32> -> vector<16x128xf32>
    %162 = arith.addf %153, %161 : vector<16x128xf32>
    %c112_i32 = arith.constant 112 : i32
    %163 = tpu.dynamic_rotate %103 by %c112_i32 dim 1 : vector<8x128xf32>, i32 -> vector<8x128xf32>
    %c7_119 = arith.constant 7 : index
    %c0_120 = arith.constant 0 : index
    %c0_121 = arith.constant 0 : index
    %164 = vector.load %arg14[%c7_119, %c0_120, %c0_121] : memref<9x1x128xf32, #tpu.memory_space<vmem>>, vector<1x1x128xf32>
    %165 = vector.shape_cast %164 : vector<1x1x128xf32> to vector<1x128xf32>
    %166 = vector.broadcast %165 : vector<1x128xf32> to vector<8x128xf32>
    %167 = arith.mulf %163, %166 : vector<8x128xf32>
    %c7_122 = arith.constant 7 : index
    %c0_123 = arith.constant 0 : index
    %c0_124 = arith.constant 0 : index
    %168 = vector.load %arg7[%c7_122, %c0_123, %c0_124] : memref<9x16x8xf32, #tpu.memory_space<vmem>>, vector<1x16x8xf32>
    %169 = vector.shape_cast %168 : vector<1x16x8xf32> to vector<16x8xf32>
    %cst_125 = arith.constant dense<0.000000e+00> : vector<16x128xf32>
    %170 = tpu.matmul %169, %167, %cst_125 {dimension_numbers = #tpu.dot_dimension_numbers<[1], [0], [0], [1], [0, 0, 1, 1], [], []>} : vector<16x8xf32>, vector<8x128xf32>, vector<16x128xf32> -> vector<16x128xf32>
    %171 = arith.addf %162, %170 : vector<16x128xf32>
    %c111_i32 = arith.constant 111 : i32
    %172 = tpu.dynamic_rotate %103 by %c111_i32 dim 1 : vector<8x128xf32>, i32 -> vector<8x128xf32>
    %c8_126 = arith.constant 8 : index
    %c0_127 = arith.constant 0 : index
    %c0_128 = arith.constant 0 : index
    %173 = vector.load %arg14[%c8_126, %c0_127, %c0_128] : memref<9x1x128xf32, #tpu.memory_space<vmem>>, vector<1x1x128xf32>
    %174 = vector.shape_cast %173 : vector<1x1x128xf32> to vector<1x128xf32>
    %175 = vector.broadcast %174 : vector<1x128xf32> to vector<8x128xf32>
    %176 = arith.mulf %172, %175 : vector<8x128xf32>
    %c8_129 = arith.constant 8 : index
    %c0_130 = arith.constant 0 : index
    %c0_131 = arith.constant 0 : index
    %177 = vector.load %arg7[%c8_129, %c0_130, %c0_131] : memref<9x16x8xf32, #tpu.memory_space<vmem>>, vector<1x16x8xf32>
    %178 = vector.shape_cast %177 : vector<1x16x8xf32> to vector<16x8xf32>
    %cst_132 = arith.constant dense<0.000000e+00> : vector<16x128xf32>
    %179 = tpu.matmul %178, %176, %cst_132 {dimension_numbers = #tpu.dot_dimension_numbers<[1], [0], [0], [1], [0, 0, 1, 1], [], []>} : vector<16x8xf32>, vector<8x128xf32>, vector<16x128xf32> -> vector<16x128xf32>
    %180 = arith.addf %171, %179 : vector<16x128xf32>
    %c0_133 = arith.constant 0 : index
    %c0_134 = arith.constant 0 : index
    %181 = vector.load %arg8[%c0_133, %c0_134] : memref<16x1xf32, #tpu.memory_space<vmem>>, vector<16x1xf32>
    %182 = vector.broadcast %181 : vector<16x1xf32> to vector<16x128xf32>
    %183 = arith.addf %180, %182 : vector<16x128xf32>
    %cst_135 = arith.constant 0.000000e+00 : f32
    %184 = vector.broadcast %cst_135 : f32 to vector<16x128xf32>
    %185 = arith.maximumf %183, %184 : vector<16x128xf32>
    %c0_136 = arith.constant 0 : index
    %c0_137 = arith.constant 0 : index
    %186 = vector.load %arg16[%c0_136, %c0_137] : memref<128x512xf32, #tpu.memory_space<vmem>>, vector<128x512xf32>
    %cst_138 = arith.constant dense<0.000000e+00> : vector<16x512xf32>
    %187 = tpu.matmul %185, %186, %cst_138 {dimension_numbers = #tpu.dot_dimension_numbers<[1], [0], [0], [1], [0, 0, 1, 1], [], []>} : vector<16x128xf32>, vector<128x512xf32>, vector<16x512xf32> -> vector<16x512xf32>
    %188 = tpu.concatenate %97, %187 in 0 : vector<8x512xf32>, vector<16x512xf32> -> vector<24x512xf32>
    %cst_139 = arith.constant 0.000000e+00 : f32
    %189 = vector.broadcast %cst_139 : f32 to vector<8x512xf32>
    %c33_i32_140 = arith.constant 33 : i32
    %190 = tpu.dynamic_rotate %188 by %c33_i32_140 dim 1 : vector<24x512xf32>, i32 -> vector<24x512xf32>
    %c0_141 = arith.constant 0 : index
    %c0_142 = arith.constant 0 : index
    %c0_143 = arith.constant 0 : index
    %191 = vector.load %arg13[%c0_141, %c0_142, %c0_143] : memref<9x1x512xf32, #tpu.memory_space<vmem>>, vector<1x1x512xf32>
    %192 = vector.shape_cast %191 : vector<1x1x512xf32> to vector<1x512xf32>
    %193 = vector.broadcast %192 : vector<1x512xf32> to vector<24x512xf32>
    %194 = arith.mulf %190, %193 : vector<24x512xf32>
    %c0_144 = arith.constant 0 : index
    %c0_145 = arith.constant 0 : index
    %c0_146 = arith.constant 0 : index
    %195 = vector.load %arg9[%c0_144, %c0_145, %c0_146] : memref<9x8x24xf32, #tpu.memory_space<vmem>>, vector<1x8x24xf32>
    %196 = vector.shape_cast %195 : vector<1x8x24xf32> to vector<8x24xf32>
    %cst_147 = arith.constant dense<0.000000e+00> : vector<8x512xf32>
    %197 = tpu.matmul %196, %194, %cst_147 {dimension_numbers = #tpu.dot_dimension_numbers<[1], [0], [0], [1], [0, 0, 1, 1], [], []>} : vector<8x24xf32>, vector<24x512xf32>, vector<8x512xf32> -> vector<8x512xf32>
    %198 = arith.addf %189, %197 : vector<8x512xf32>
    %c32_i32_148 = arith.constant 32 : i32
    %199 = tpu.dynamic_rotate %188 by %c32_i32_148 dim 1 : vector<24x512xf32>, i32 -> vector<24x512xf32>
    %c1_149 = arith.constant 1 : index
    %c0_150 = arith.constant 0 : index
    %c0_151 = arith.constant 0 : index
    %200 = vector.load %arg13[%c1_149, %c0_150, %c0_151] : memref<9x1x512xf32, #tpu.memory_space<vmem>>, vector<1x1x512xf32>
    %201 = vector.shape_cast %200 : vector<1x1x512xf32> to vector<1x512xf32>
    %202 = vector.broadcast %201 : vector<1x512xf32> to vector<24x512xf32>
    %203 = arith.mulf %199, %202 : vector<24x512xf32>
    %c1_152 = arith.constant 1 : index
    %c0_153 = arith.constant 0 : index
    %c0_154 = arith.constant 0 : index
    %204 = vector.load %arg9[%c1_152, %c0_153, %c0_154] : memref<9x8x24xf32, #tpu.memory_space<vmem>>, vector<1x8x24xf32>
    %205 = vector.shape_cast %204 : vector<1x8x24xf32> to vector<8x24xf32>
    %cst_155 = arith.constant dense<0.000000e+00> : vector<8x512xf32>
    %206 = tpu.matmul %205, %203, %cst_155 {dimension_numbers = #tpu.dot_dimension_numbers<[1], [0], [0], [1], [0, 0, 1, 1], [], []>} : vector<8x24xf32>, vector<24x512xf32>, vector<8x512xf32> -> vector<8x512xf32>
    %207 = arith.addf %198, %206 : vector<8x512xf32>
    %c31_i32_156 = arith.constant 31 : i32
    %208 = tpu.dynamic_rotate %188 by %c31_i32_156 dim 1 : vector<24x512xf32>, i32 -> vector<24x512xf32>
    %c2_157 = arith.constant 2 : index
    %c0_158 = arith.constant 0 : index
    %c0_159 = arith.constant 0 : index
    %209 = vector.load %arg13[%c2_157, %c0_158, %c0_159] : memref<9x1x512xf32, #tpu.memory_space<vmem>>, vector<1x1x512xf32>
    %210 = vector.shape_cast %209 : vector<1x1x512xf32> to vector<1x512xf32>
    %211 = vector.broadcast %210 : vector<1x512xf32> to vector<24x512xf32>
    %212 = arith.mulf %208, %211 : vector<24x512xf32>
    %c2_160 = arith.constant 2 : index
    %c0_161 = arith.constant 0 : index
    %c0_162 = arith.constant 0 : index
    %213 = vector.load %arg9[%c2_160, %c0_161, %c0_162] : memref<9x8x24xf32, #tpu.memory_space<vmem>>, vector<1x8x24xf32>
    %214 = vector.shape_cast %213 : vector<1x8x24xf32> to vector<8x24xf32>
    %cst_163 = arith.constant dense<0.000000e+00> : vector<8x512xf32>
    %215 = tpu.matmul %214, %212, %cst_163 {dimension_numbers = #tpu.dot_dimension_numbers<[1], [0], [0], [1], [0, 0, 1, 1], [], []>} : vector<8x24xf32>, vector<24x512xf32>, vector<8x512xf32> -> vector<8x512xf32>
    %216 = arith.addf %207, %215 : vector<8x512xf32>
    %c1_i32_164 = arith.constant 1 : i32
    %217 = tpu.dynamic_rotate %188 by %c1_i32_164 dim 1 : vector<24x512xf32>, i32 -> vector<24x512xf32>
    %c3_165 = arith.constant 3 : index
    %c0_166 = arith.constant 0 : index
    %c0_167 = arith.constant 0 : index
    %218 = vector.load %arg13[%c3_165, %c0_166, %c0_167] : memref<9x1x512xf32, #tpu.memory_space<vmem>>, vector<1x1x512xf32>
    %219 = vector.shape_cast %218 : vector<1x1x512xf32> to vector<1x512xf32>
    %220 = vector.broadcast %219 : vector<1x512xf32> to vector<24x512xf32>
    %221 = arith.mulf %217, %220 : vector<24x512xf32>
    %c3_168 = arith.constant 3 : index
    %c0_169 = arith.constant 0 : index
    %c0_170 = arith.constant 0 : index
    %222 = vector.load %arg9[%c3_168, %c0_169, %c0_170] : memref<9x8x24xf32, #tpu.memory_space<vmem>>, vector<1x8x24xf32>
    %223 = vector.shape_cast %222 : vector<1x8x24xf32> to vector<8x24xf32>
    %cst_171 = arith.constant dense<0.000000e+00> : vector<8x512xf32>
    %224 = tpu.matmul %223, %221, %cst_171 {dimension_numbers = #tpu.dot_dimension_numbers<[1], [0], [0], [1], [0, 0, 1, 1], [], []>} : vector<8x24xf32>, vector<24x512xf32>, vector<8x512xf32> -> vector<8x512xf32>
    %225 = arith.addf %216, %224 : vector<8x512xf32>
    %c4_172 = arith.constant 4 : index
    %c0_173 = arith.constant 0 : index
    %c0_174 = arith.constant 0 : index
    %226 = vector.load %arg9[%c4_172, %c0_173, %c0_174] : memref<9x8x24xf32, #tpu.memory_space<vmem>>, vector<1x8x24xf32>
    %227 = vector.shape_cast %226 : vector<1x8x24xf32> to vector<8x24xf32>
    %cst_175 = arith.constant dense<0.000000e+00> : vector<8x512xf32>
    %228 = tpu.matmul %227, %188, %cst_175 {dimension_numbers = #tpu.dot_dimension_numbers<[1], [0], [0], [1], [0, 0, 1, 1], [], []>} : vector<8x24xf32>, vector<24x512xf32>, vector<8x512xf32> -> vector<8x512xf32>
    %229 = arith.addf %225, %228 : vector<8x512xf32>
    %c511_i32_176 = arith.constant 511 : i32
    %230 = tpu.dynamic_rotate %188 by %c511_i32_176 dim 1 : vector<24x512xf32>, i32 -> vector<24x512xf32>
    %c5_177 = arith.constant 5 : index
    %c0_178 = arith.constant 0 : index
    %c0_179 = arith.constant 0 : index
    %231 = vector.load %arg13[%c5_177, %c0_178, %c0_179] : memref<9x1x512xf32, #tpu.memory_space<vmem>>, vector<1x1x512xf32>
    %232 = vector.shape_cast %231 : vector<1x1x512xf32> to vector<1x512xf32>
    %233 = vector.broadcast %232 : vector<1x512xf32> to vector<24x512xf32>
    %234 = arith.mulf %230, %233 : vector<24x512xf32>
    %c5_180 = arith.constant 5 : index
    %c0_181 = arith.constant 0 : index
    %c0_182 = arith.constant 0 : index
    %235 = vector.load %arg9[%c5_180, %c0_181, %c0_182] : memref<9x8x24xf32, #tpu.memory_space<vmem>>, vector<1x8x24xf32>
    %236 = vector.shape_cast %235 : vector<1x8x24xf32> to vector<8x24xf32>
    %cst_183 = arith.constant dense<0.000000e+00> : vector<8x512xf32>
    %237 = tpu.matmul %236, %234, %cst_183 {dimension_numbers = #tpu.dot_dimension_numbers<[1], [0], [0], [1], [0, 0, 1, 1], [], []>} : vector<8x24xf32>, vector<24x512xf32>, vector<8x512xf32> -> vector<8x512xf32>
    %238 = arith.addf %229, %237 : vector<8x512xf32>
    %c481_i32_184 = arith.constant 481 : i32
    %239 = tpu.dynamic_rotate %188 by %c481_i32_184 dim 1 : vector<24x512xf32>, i32 -> vector<24x512xf32>
    %c6_185 = arith.constant 6 : index
    %c0_186 = arith.constant 0 : index
    %c0_187 = arith.constant 0 : index
    %240 = vector.load %arg13[%c6_185, %c0_186, %c0_187] : memref<9x1x512xf32, #tpu.memory_space<vmem>>, vector<1x1x512xf32>
    %241 = vector.shape_cast %240 : vector<1x1x512xf32> to vector<1x512xf32>
    %242 = vector.broadcast %241 : vector<1x512xf32> to vector<24x512xf32>
    %243 = arith.mulf %239, %242 : vector<24x512xf32>
    %c6_188 = arith.constant 6 : index
    %c0_189 = arith.constant 0 : index
    %c0_190 = arith.constant 0 : index
    %244 = vector.load %arg9[%c6_188, %c0_189, %c0_190] : memref<9x8x24xf32, #tpu.memory_space<vmem>>, vector<1x8x24xf32>
    %245 = vector.shape_cast %244 : vector<1x8x24xf32> to vector<8x24xf32>
    %cst_191 = arith.constant dense<0.000000e+00> : vector<8x512xf32>
    %246 = tpu.matmul %245, %243, %cst_191 {dimension_numbers = #tpu.dot_dimension_numbers<[1], [0], [0], [1], [0, 0, 1, 1], [], []>} : vector<8x24xf32>, vector<24x512xf32>, vector<8x512xf32> -> vector<8x512xf32>
    %247 = arith.addf %238, %246 : vector<8x512xf32>
    %c480_i32_192 = arith.constant 480 : i32
    %248 = tpu.dynamic_rotate %188 by %c480_i32_192 dim 1 : vector<24x512xf32>, i32 -> vector<24x512xf32>
    %c7_193 = arith.constant 7 : index
    %c0_194 = arith.constant 0 : index
    %c0_195 = arith.constant 0 : index
    %249 = vector.load %arg13[%c7_193, %c0_194, %c0_195] : memref<9x1x512xf32, #tpu.memory_space<vmem>>, vector<1x1x512xf32>
    %250 = vector.shape_cast %249 : vector<1x1x512xf32> to vector<1x512xf32>
    %251 = vector.broadcast %250 : vector<1x512xf32> to vector<24x512xf32>
    %252 = arith.mulf %248, %251 : vector<24x512xf32>
    %c7_196 = arith.constant 7 : index
    %c0_197 = arith.constant 0 : index
    %c0_198 = arith.constant 0 : index
    %253 = vector.load %arg9[%c7_196, %c0_197, %c0_198] : memref<9x8x24xf32, #tpu.memory_space<vmem>>, vector<1x8x24xf32>
    %254 = vector.shape_cast %253 : vector<1x8x24xf32> to vector<8x24xf32>
    %cst_199 = arith.constant dense<0.000000e+00> : vector<8x512xf32>
    %255 = tpu.matmul %254, %252, %cst_199 {dimension_numbers = #tpu.dot_dimension_numbers<[1], [0], [0], [1], [0, 0, 1, 1], [], []>} : vector<8x24xf32>, vector<24x512xf32>, vector<8x512xf32> -> vector<8x512xf32>
    %256 = arith.addf %247, %255 : vector<8x512xf32>
    %c479_i32_200 = arith.constant 479 : i32
    %257 = tpu.dynamic_rotate %188 by %c479_i32_200 dim 1 : vector<24x512xf32>, i32 -> vector<24x512xf32>
    %c8_201 = arith.constant 8 : index
    %c0_202 = arith.constant 0 : index
    %c0_203 = arith.constant 0 : index
    %258 = vector.load %arg13[%c8_201, %c0_202, %c0_203] : memref<9x1x512xf32, #tpu.memory_space<vmem>>, vector<1x1x512xf32>
    %259 = vector.shape_cast %258 : vector<1x1x512xf32> to vector<1x512xf32>
    %260 = vector.broadcast %259 : vector<1x512xf32> to vector<24x512xf32>
    %261 = arith.mulf %257, %260 : vector<24x512xf32>
    %c8_204 = arith.constant 8 : index
    %c0_205 = arith.constant 0 : index
    %c0_206 = arith.constant 0 : index
    %262 = vector.load %arg9[%c8_204, %c0_205, %c0_206] : memref<9x8x24xf32, #tpu.memory_space<vmem>>, vector<1x8x24xf32>
    %263 = vector.shape_cast %262 : vector<1x8x24xf32> to vector<8x24xf32>
    %cst_207 = arith.constant dense<0.000000e+00> : vector<8x512xf32>
    %264 = tpu.matmul %263, %261, %cst_207 {dimension_numbers = #tpu.dot_dimension_numbers<[1], [0], [0], [1], [0, 0, 1, 1], [], []>} : vector<8x24xf32>, vector<24x512xf32>, vector<8x512xf32> -> vector<8x512xf32>
    %265 = arith.addf %256, %264 : vector<8x512xf32>
    %c0_208 = arith.constant 0 : index
    %c0_209 = arith.constant 0 : index
    %266 = vector.load %arg10[%c0_208, %c0_209] : memref<8x1xf32, #tpu.memory_space<vmem>>, vector<8x1xf32>
    %267 = vector.broadcast %266 : vector<8x1xf32> to vector<8x512xf32>
    %268 = arith.addf %265, %267 : vector<8x512xf32>
    %cst_210 = arith.constant 0.000000e+00 : f32
    %269 = vector.broadcast %cst_210 : f32 to vector<8x512xf32>
    %270 = arith.maximumf %268, %269 : vector<8x512xf32>
    %c0_211 = arith.constant 0 : index
    %c0_212 = arith.constant 0 : index
    %271 = vector.load %arg11[%c0_211, %c0_212] : memref<8x8xf32, #tpu.memory_space<vmem>>, vector<8x8xf32>
    %cst_213 = arith.constant dense<0.000000e+00> : vector<8x512xf32>
    %272 = tpu.matmul %271, %270, %cst_213 {dimension_numbers = #tpu.dot_dimension_numbers<[1], [0], [0], [1], [0, 0, 1, 1], [], []>} : vector<8x8xf32>, vector<8x512xf32>, vector<8x512xf32> -> vector<8x512xf32>
    %c0_214 = arith.constant 0 : index
    %c0_215 = arith.constant 0 : index
    %273 = vector.load %arg12[%c0_214, %c0_215] : memref<8x1xf32, #tpu.memory_space<vmem>>, vector<8x1xf32>
    %274 = vector.broadcast %273 : vector<8x1xf32> to vector<8x512xf32>
    %275 = arith.addf %272, %274 : vector<8x512xf32>
    %c0_216 = arith.constant 0 : index
    %c0_217 = arith.constant 0 : index
    %276 = vector.load %arg17[%c0_216, %c0_217] : memref<8x512xf32, #tpu.memory_space<vmem>>, vector<8x512xf32>
    tpu.vector_store %arg17[%c0_216, %c0_217], %275 {strides = array<i32>} : memref<8x512xf32, #tpu.memory_space<vmem>>, vector<8x512xf32>,
    return
  }
}

</mosaic_0001>

<llo_original>
// kernel: my_ensemble_forward.1
$region0: #{my_ensemble_forward.1}
  #allocation0 [shape = 'u32[]', space=smem, size = 0x4, offset = 0x4, fixed_abs, tag = 'smem constant byte address 0x4 - core index']
  #allocation1 [shape = 'u32[144,128]{1,0:T(1,128)}', space=vmem, size = 0x12000, scoped, tag = 'internal scratch']
  %s0 = inlined_call_operand.vmem [shape: f32[4,512], index: 0, kind: input, shape index: {}]
  %s1 = inlined_call_operand.hbm [shape: f32[512,1024], index: 1, kind: input, shape index: {}]
  %s2 = inlined_call_operand.hbm [shape: f32[1024,512], index: 2, kind: input, shape index: {}]
  %s3 = inlined_call_operand.vmem [shape: f32[4,512], index: 3, kind: input, shape index: {}]
  %s4 = inlined_call_operand.vmem [shape: f32[4,512], index: 4, kind: input, shape index: {}]
  %s5 = inlined_call_operand.vmem [shape: f32[9,8,4], index: 5, kind: input, shape index: {}]
  %s6 = inlined_call_operand.vmem [shape: f32[8,1], index: 6, kind: input, shape index: {}]
  %s7 = inlined_call_operand.vmem [shape: f32[9,16,8], index: 7, kind: input, shape index: {}]
  %s8 = inlined_call_operand.vmem [shape: f32[16,1], index: 8, kind: input, shape index: {}]
  %s9 = inlined_call_operand.hbm [shape: f32[9,8,24], index: 9, kind: input, shape index: {}]
  %s10 = inlined_call_operand.vmem [shape: f32[8,1], index: 10, kind: input, shape index: {}]
  %s11 = inlined_call_operand.vmem [shape: f32[8,8], index: 11, kind: input, shape index: {}]
  %s12 = inlined_call_operand.vmem [shape: f32[8,1], index: 12, kind: input, shape index: {}]
  %s13 = inlined_call_operand.hbm [shape: f32[9,1,512], index: 13, kind: input, shape index: {}]
  %s14 = inlined_call_operand.hbm [shape: f32[9,1,128], index: 14, kind: input, shape index: {}]
  %s15 = inlined_call_operand.hbm [shape: f32[512,128], index: 15, kind: input, shape index: {}]
  %s16 = inlined_call_operand.hbm [shape: f32[128,512], index: 16, kind: input, shape index: {}]
  %s17 = inlined_call_operand.vmem [shape: f32[8,512], index: 17, kind: output, shape index: {}]
  %s18 = sld [smem:[#allocation0]]
  $region106: #{my_ensemble_forward.1} parent=0
    _
  %s20 = ssub.s32 1, %s18
  %s21 = scalar_select 0, %s20, %s18
  $region1: #{my_ensemble_forward.1} parent=0
    #allocation2 [shape = 'u8[2097152]{0}', space=vmem, size = 0x200000, scoped, tag = 'input window, operand 1, single buffered']
    #allocation3 [shape = 's32[1]{0}', space=sflag, size = 0x4, scoped, tag = 'scoped memory for my_ensemble_forward.1']
    #allocation4 [shape = 'u8[2097152]{0}', space=vmem, size = 0x200000, scoped, tag = 'input window, operand 2, single buffered']
    #allocation5 [shape = 's32[1]{0}', space=sflag, size = 0x4, scoped, tag = 'scoped memory for my_ensemble_forward.1']
    #allocation6 [shape = 'u8[36864]{0}', space=vmem, size = 0x9000, scoped, tag = 'input window, operand 9, single buffered']
    #allocation7 [shape = 'u8[18432]{0}', space=vmem, size = 0x4800, scoped, tag = 'input window, operand 13, single buffered']
    #allocation8 [shape = 's32[1]{0}', space=sflag, size = 0x4, scoped, tag = 'scoped memory for my_ensemble_forward.1']
    #allocation9 [shape = 'u8[4608]{0}', space=vmem, size = 0x1400, scoped, tag = 'input window, operand 14, single buffered']
    #allocation10 [shape = 'u8[262144]{0}', space=vmem, size = 0x40000, scoped, tag = 'input window, operand 15, single buffered']
    #allocation11 [shape = 's32[1]{0}', space=sflag, size = 0x4, scoped, tag = 'scoped memory for my_ensemble_forward.1']
    #allocation12 [shape = 'u8[262144]{0}', space=vmem, size = 0x40000, scoped, tag = 'input window, operand 16, single buffered']
    %22 = vsyncpa [#allocation3], 0
    %23 = vsyncpa [#allocation5], 0
    %24 = vsyncpa [#allocation8], 0
    %25 = vsyncpa [#allocation11], 0
    // Predicated region
    $region2: #{my_ensemble_forward.1} parent=1 // pred_check
      _
    $region3: #{my_ensemble_forward.1} parent=1 // pred_check_branch
      %27 = sbr.rel (0) target = $region5
    $region4: #{my_ensemble_forward.1} parent=1 // pred_region
      _
    $region5: #{my_ensemble_forward.1} parent=1 // pred_fallthru
      _
    // Predicated region
    $region6: #{my_ensemble_forward.1} parent=1 // pred_check
      _
    $region7: #{my_ensemble_forward.1} parent=1 // pred_check_branch
      %29 = sbr.rel (0) target = $region9
    $region8: #{my_ensemble_forward.1} parent=1 // pred_region
      %s31 = ssub.s32 65536, 65536
      %32 = vsyncadd [#allocation3], %s31
      %s33 = sshll.u32 [#allocation2], 4
      %s34 = int_to_ptr.vmem [resolvable:$true] %s33
      %39 = dma.hbm_to_vmem [thread:$0]  %s1, 65536, %s34, [#allocation3], 1024, 1024, 64
    $region9: #{my_ensemble_forward.1} parent=1 // pred_fallthru
      _
    // Predicated region
    $region10: #{my_ensemble_forward.1} parent=1 // pred_check
      _
    $region11: #{my_ensemble_forward.1} parent=1 // pred_check_branch
      %41 = sbr.rel (0) target = $region13
    $region12: #{my_ensemble_forward.1} parent=1 // pred_region
      %s43 = ssub.s32 65536, 65536
      %44 = vsyncadd [#allocation5], %s43
      %s45 = sshll.u32 [#allocation4], 4
      %s46 = int_to_ptr.vmem [resolvable:$true] %s45
      %51 = dma.hbm_to_vmem [thread:$0]  %s2, 65536, %s46, [#allocation5], 512, 512, 32
    $region13: #{my_ensemble_forward.1} parent=1 // pred_fallthru
      _
    // Predicated region
    $region14: #{my_ensemble_forward.1} parent=1 // pred_check
      _
    $region15: #{my_ensemble_forward.1} parent=1 // pred_check_branch
      %53 = sbr.rel (0) target = $region17
    $region16: #{my_ensemble_forward.1} parent=1 // pred_region
      _
    $region17: #{my_ensemble_forward.1} parent=1 // pred_fallthru
      _
    // Predicated region
    $region18: #{my_ensemble_forward.1} parent=1 // pred_check
      _
    $region19: #{my_ensemble_forward.1} parent=1 // pred_check_branch
      %55 = sbr.rel (0) target = $region21
    $region20: #{my_ensemble_forward.1} parent=1 // pred_region
      _
    $region21: #{my_ensemble_forward.1} parent=1 // pred_fallthru
      _
    // Predicated region
    $region22: #{my_ensemble_forward.1} parent=1 // pred_check
      _
    $region23: #{my_ensemble_forward.1} parent=1 // pred_check_branch
      %57 = sbr.rel (0) target = $region25
    $region24: #{my_ensemble_forward.1} parent=1 // pred_region
      _
    $region25: #{my_ensemble_forward.1} parent=1 // pred_fallthru
      _
    // Predicated region
    $region26: #{my_ensemble_forward.1} parent=1 // pred_check
      _
    $region27: #{my_ensemble_forward.1} parent=1 // pred_check_branch
      %59 = sbr.rel (0) target = $region29
    $region28: #{my_ensemble_forward.1} parent=1 // pred_region
      _
    $region29: #{my_ensemble_forward.1} parent=1 // pred_fallthru
      _
    // Predicated region
    $region30: #{my_ensemble_forward.1} parent=1 // pred_check
      _
    $region31: #{my_ensemble_forward.1} parent=1 // pred_check_branch
      %61 = sbr.rel (0) target = $region33
    $region32: #{my_ensemble_forward.1} parent=1 // pred_region
      _
    $region33: #{my_ensemble_forward.1} parent=1 // pred_fallthru
      _
    // Predicated region
    $region34: #{my_ensemble_forward.1} parent=1 // pred_check
      _
    $region35: #{my_ensemble_forward.1} parent=1 // pred_check_branch
      %63 = sbr.rel (0) target = $region37
    $region36: #{my_ensemble_forward.1} parent=1 // pred_region
      _
    $region37: #{my_ensemble_forward.1} parent=1 // pred_fallthru
      _
    // Predicated region
    $region38: #{my_ensemble_forward.1} parent=1 // pred_check
      _
    $region39: #{my_ensemble_forward.1} parent=1 // pred_check_branch
      %65 = sbr.rel (0) target = $region41
    $region40: #{my_ensemble_forward.1} parent=1 // pred_region
      %s67 = ssub.s32 1152, 1152
      %68 = vsyncadd [#allocation5], %s67
      %s69 = sshll.u32 [#allocation6], 4
      %s70 = int_to_ptr.vmem [resolvable:$true] %s69
      %75 = dma.hbm_to_vmem [thread:$0]  %s9, 1152, %s70, [#allocation5], 128, 128, 8
    $region41: #{my_ensemble_forward.1} parent=1 // pred_fallthru
      _
    // Predicated region
    $region42: #{my_ensemble_forward.1} parent=1 // pred_check
      _
    $region43: #{my_ensemble_forward.1} parent=1 // pred_check_branch
      %77 = sbr.rel (0) target = $region45
    $region44: #{my_ensemble_forward.1} parent=1 // pred_region
      _
    $region45: #{my_ensemble_forward.1} parent=1 // pred_fallthru
      _
    // Predicated region
    $region46: #{my_ensemble_forward.1} parent=1 // pred_check
      _
    $region47: #{my_ensemble_forward.1} parent=1 // pred_check_branch
      %79 = sbr.rel (0) target = $region49
    $region48: #{my_ensemble_forward.1} parent=1 // pred_region
      _
    $region49: #{my_ensemble_forward.1} parent=1 // pred_fallthru
      _
    // Predicated region
    $region50: #{my_ensemble_forward.1} parent=1 // pred_check
      _
    $region51: #{my_ensemble_forward.1} parent=1 // pred_check_branch
      %81 = sbr.rel (0) target = $region53
    $region52: #{my_ensemble_forward.1} parent=1 // pred_region
      _
    $region53: #{my_ensemble_forward.1} parent=1 // pred_fallthru
      _
    // Predicated region
    $region54: #{my_ensemble_forward.1} parent=1 // pred_check
      _
    $region55: #{my_ensemble_forward.1} parent=1 // pred_check_branch
      %83 = sbr.rel (0) target = $region57
    $region56: #{my_ensemble_forward.1} parent=1 // pred_region
      %s85 = ssub.s32 576, 576
      %86 = vsyncadd [#allocation8], %s85
      %s87 = sshll.u32 [#allocation7], 4
      %s88 = int_to_ptr.vmem [resolvable:$true] %s87
      %93 = dma.hbm_to_vmem [thread:$0]  %s13, 576, %s88, [#allocation8], 64, 64, 4
    $region57: #{my_ensemble_forward.1} parent=1 // pred_fallthru
      _
    // Predicated region
    $region58: #{my_ensemble_forward.1} parent=1 // pred_check
      _
    $region59: #{my_ensemble_forward.1} parent=1 // pred_check_branch
      %95 = sbr.rel (0) target = $region61
    $region60: #{my_ensemble_forward.1} parent=1 // pred_region
      %s97 = ssub.s32 144, 144
      %98 = vsyncadd [#allocation8], %s97
      %s99 = sshll.u32 [#allocation9], 4
      %s100 = int_to_ptr.vmem [resolvable:$true] %s99
      %105 = dma.hbm_to_vmem [thread:$0]  %s14, 144, %s100, [#allocation8], 16, 16, 1
    $region61: #{my_ensemble_forward.1} parent=1 // pred_fallthru
      _
    // Predicated region
    $region62: #{my_ensemble_forward.1} parent=1 // pred_check
      _
    $region63: #{my_ensemble_forward.1} parent=1 // pred_check_branch
      %107 = sbr.rel (0) target = $region65
    $region64: #{my_ensemble_forward.1} parent=1 // pred_region
      %s109 = ssub.s32 8192, 8192
      %110 = vsyncadd [#allocation11], %s109
      %s111 = sshll.u32 [#allocation10], 4
      %s112 = int_to_ptr.vmem [resolvable:$true] %s111
      %117 = dma.hbm_to_vmem [thread:$0]  %s15, 8192, %s112, [#allocation11], 128, 128, 8
    $region65: #{my_ensemble_forward.1} parent=1 // pred_fallthru
      _
    // Predicated region
    $region66: #{my_ensemble_forward.1} parent=1 // pred_check
      _
    $region67: #{my_ensemble_forward.1} parent=1 // pred_check_branch
      %119 = sbr.rel (0) target = $region69
    $region68: #{my_ensemble_forward.1} parent=1 // pred_region
      %s121 = ssub.s32 8192, 8192
      %122 = vsyncadd [#allocation11], %s121
      %s123 = sshll.u32 [#allocation12], 4
      %s124 = int_to_ptr.vmem [resolvable:$true] %s123
      %129 = dma.hbm_to_vmem [thread:$0]  %s16, 8192, %s124, [#allocation11], 512, 512, 32
    $region69: #{my_ensemble_forward.1} parent=1 // pred_fallthru
      _
    // Predicated region
    $region70: #{my_ensemble_forward.1} parent=1 // pred_check
      _
    $region71: #{my_ensemble_forward.1} parent=1 // pred_check_branch
      %131 = sbr.rel (0) target = $region73
    $region72: #{my_ensemble_forward.1} parent=1 // pred_region
      %132 = dma.done [#allocation3], 65536
    $region73: #{my_ensemble_forward.1} parent=1 // pred_fallthru
      _
    // Predicated region
    $region74: #{my_ensemble_forward.1} parent=1 // pred_check
      _
    $region75: #{my_ensemble_forward.1} parent=1 // pred_check_branch
      %134 = sbr.rel (0) target = $region77
    $region76: #{my_ensemble_forward.1} parent=1 // pred_region
      %135 = dma.done [#allocation5], 65536
    $region77: #{my_ensemble_forward.1} parent=1 // pred_fallthru
      _
    // Predicated region
    $region78: #{my_ensemble_forward.1} parent=1 // pred_check
      _
    $region79: #{my_ensemble_forward.1} parent=1 // pred_check_branch
      %137 = sbr.rel (0) target = $region81
    $region80: #{my_ensemble_forward.1} parent=1 // pred_region
      %138 = dma.done [#allocation5], 1152
    $region81: #{my_ensemble_forward.1} parent=1 // pred_fallthru
      _
    // Predicated region
    $region82: #{my_ensemble_forward.1} parent=1 // pred_check
      _
    $region83: #{my_ensemble_forward.1} parent=1 // pred_check_branch
      %140 = sbr.rel (0) target = $region85
    $region84: #{my_ensemble_forward.1} parent=1 // pred_region
      %141 = dma.done [#allocation8], 576
    $region85: #{my_ensemble_forward.1} parent=1 // pred_fallthru
      _
    // Predicated region
    $region86: #{my_ensemble_forward.1} parent=1 // pred_check
      _
    $region87: #{my_ensemble_forward.1} parent=1 // pred_check_branch
      %143 = sbr.rel (0) target = $region89
    $region88: #{my_ensemble_forward.1} parent=1 // pred_region
      %144 = dma.done [#allocation8], 144
    $region89: #{my_ensemble_forward.1} parent=1 // pred_fallthru
      _
    // Predicated region
    $region90: #{my_ensemble_forward.1} parent=1 // pred_check
      _
    $region91: #{my_ensemble_forward.1} parent=1 // pred_check_branch
      %146 = sbr.rel (0) target = $region93
    $region92: #{my_ensemble_forward.1} parent=1 // pred_region
      %147 = dma.done [#allocation11], 8192
    $region93: #{my_ensemble_forward.1} parent=1 // pred_fallthru
      _
    // Predicated region
    $region94: #{my_ensemble_forward.1} parent=1 // pred_check
      _
    $region95: #{my_ensemble_forward.1} parent=1 // pred_check_branch
      %149 = sbr.rel (0) target = $region97
    $region96: #{my_ensemble_forward.1} parent=1 // pred_region
      %150 = dma.done [#allocation11], 8192
    $region97: #{my_ensemble_forward.1} parent=1 // pred_fallthru
      _
    %v151 = vld [vmem:[%s0] sm:$0xff]
    %v152 = vld [vmem:[%s0 + $0x8] sm:$0xff]
    %v153 = vld [vmem:[#allocation2] sm:$0xff]
    %v154 = vld [vmem:[#allocation2 + $0x8] sm:$0xff]
    %v155 = vld [vmem:[#allocation2 + $0x10] sm:$0xff]
    %v156 = vld [vmem:[#allocation2 + $0x18] sm:$0xff]
    %v157 = vld [vmem:[#allocation2 + $0x20] sm:$0xff]
    %v158 = vld [vmem:[#allocation2 + $0x28] sm:$0xff]
    %v159 = vld [vmem:[#allocation2 + $0x30] sm:$0xff]
    %v160 = vld [vmem:[#allocation2 + $0x38] sm:$0xff]
    %v161 = vld [vmem:[#allocation2 + $0x40] sm:$0xff]
    %v162 = vld [vmem:[#allocation2 + $0x48] sm:$0xff]
    %v163 = vld [vmem:[#allocation2 + $0x50] sm:$0xff]
    %v164 = vld [vmem:[#allocation2 + $0x58] sm:$0xff]
    %v165 = vld [vmem:[#allocation2 + $0x60] sm:$0xff]
    %v166 = vld [vmem:[#allocation2 + $0x68] sm:$0xff]
    %v167 = vld [vmem:[#allocation2 + $0x70] sm:$0xff]
    %v168 = vld [vmem:[#allocation2 + $0x78] sm:$0xff]
    %v169 = vld [vmem:[#allocation2 + $0x80] sm:$0xff]
    %v170 = vld [vmem:[#allocation2 + $0x88] sm:$0xff]
    %v171 = vld [vmem:[#allocation2 + $0x90] sm:$0xff]
    %v172 = vld [vmem:[#allocation2 + $0x98] sm:$0xff]
    %v173 = vld [vmem:[#allocation2 + $0xa0] sm:$0xff]
    %v174 = vld [vmem:[#allocation2 + $0xa8] sm:$0xff]
    %v175 = vld [vmem:[#allocation2 + $0xb0] sm:$0xff]
    %v176 = vld [vmem:[#allocation2 + $0xb8] sm:$0xff]
    %v177 = vld [vmem:[#allocation2 + $0xc0] sm:$0xff]
    %v178 = vld [vmem:[#allocation2 + $0xc8] sm:$0xff]
    %v179 = vld [vmem:[#allocation2 + $0xd0] sm:$0xff]
    %v180 = vld [vmem:[#allocation2 + $0xd8] sm:$0xff]
    %v181 = vld [vmem:[#allocation2 + $0xe0] sm:$0xff]
    %v182 = vld [vmem:[#allocation2 + $0xe8] sm:$0xff]
    %v183 = vld [vmem:[#allocation2 + $0xf0] sm:$0xff]
    %v184 = vld [vmem:[#allocation2 + $0xf8] sm:$0xff]
    %v185 = vld [vmem:[#allocation2 + $0x100] sm:$0xff]
    %v186 = vld [vmem:[#allocation2 + $0x108] sm:$0xff]
    %v187 = vld [vmem:[#allocation2 + $0x110] sm:$0xff]
    %v188 = vld [vmem:[#allocation2 + $0x118] sm:$0xff]
    %v189 = vld [vmem:[#allocation2 + $0x120] sm:$0xff]
    %v190 = vld [vmem:[#allocation2 + $0x128] sm:$0xff]
    %v191 = vld [vmem:[#allocation2 + $0x130] sm:$0xff]
    %v192 = vld [vmem:[#allocation2 + $0x138] sm:$0xff]
    %v193 = vld [vmem:[#allocation2 + $0x140] sm:$0xff]
    %v194 = vld [vmem:[#allocation2 + $0x148] sm:$0xff]
    %v195 = vld [vmem:[#allocation2 + $0x150] sm:$0xff]
    %v196 = vld [vmem:[#allocation2 + $0x158] sm:$0xff]
    %v197 = vld [vmem:[#allocation2 + $0x160] sm:$0xff]
    %v198 = vld [vmem:[#allocation2 + $0x168] sm:$0xff]
    %v199 = vld [vmem:[#allocation2 + $0x170] sm:$0xff]
    %v200 = vld [vmem:[#allocation2 + $0x178] sm:$0xff]
    %v201 = vld [vmem:[#allocation2 + $0x180] sm:$0xff]
    %v202 = vld [vmem:[#allocation2 + $0x188] sm:$0xff]
    %v203 = vld [vmem:[#allocation2 + $0x190] sm:$0xff]
    %v204 = vld [vmem:[#allocation2 + $0x198] sm:$0xff]
    %v205 = vld [vmem:[#allocation2 + $0x1a0] sm:$0xff]
    %v206 = vld [vmem:[#allocation2 + $0x1a8] sm:$0xff]
    %v207 = vld [vmem:[#allocation2 + $0x1b0] sm:$0xff]
    %v208 = vld [vmem:[#allocation2 + $0x1b8] sm:$0xff]
    %v209 = vld [vmem:[#allocation2 + $0x1c0] sm:$0xff]
    %v210 = vld [vmem:[#allocation2 + $0x1c8] sm:$0xff]
    %v211 = vld [vmem:[#allocation2 + $0x1d0] sm:$0xff]
    %v212 = vld [vmem:[#allocation2 + $0x1d8] sm:$0xff]
    %v213 = vld [vmem:[#allocation2 + $0x1e0] sm:$0xff]
    %v214 = vld [vmem:[#allocation2 + $0x1e8] sm:$0xff]
    %v215 = vld [vmem:[#allocation2 + $0x1f0] sm:$0xff]
    %v216 = vld [vmem:[#allocation2 + $0x1f8] sm:$0xff]
    %v217 = vld [vmem:[#allocation2 + $0x200] sm:$0xff]
    %v218 = vld [vmem:[#allocation2 + $0x208] sm:$0xff]
    %v219 = vld [vmem:[#allocation2 + $0x210] sm:$0xff]
    %v220 = vld [vmem:[#allocation2 + $0x218] sm:$0xff]
    %v221 = vld [vmem:[#allocation2 + $0x220] sm:$0xff]
    %v222 = vld [vmem:[#allocation2 + $0x228] sm:$0xff]
    %v223 = vld [vmem:[#allocation2 + $0x230] sm:$0xff]
    %v224 = vld [vmem:[#allocation2 + $0x238] sm:$0xff]
    %v225 = vld [vmem:[#allocation2 + $0x240] sm:$0xff]
    %v226 = vld [vmem:[#allocation2 + $0x248] sm:$0xff]
    %v227 = vld [vmem:[#allocation2 + $0x250] sm:$0xff]
    %v228 = vld [vmem:[#allocation2 + $0x258] sm:$0xff]
    %v229 = vld [vmem:[#allocation2 + $0x260] sm:$0xff]
    %v230 = vld [vmem:[#allocation2 + $0x268] sm:$0xff]
    %v231 = vld [vmem:[#allocation2 + $0x270] sm:$0xff]
    %v232 = vld [vmem:[#allocation2 + $0x278] sm:$0xff]
    %v233 = vld [vmem:[#allocation2 + $0x280] sm:$0xff]
    %v234 = vld [vmem:[#allocation2 + $0x288] sm:$0xff]
    %v235 = vld [vmem:[#allocation2 + $0x290] sm:$0xff]
    %v236 = vld [vmem:[#allocation2 + $0x298] sm:$0xff]
    %v237 = vld [vmem:[#allocation2 + $0x2a0] sm:$0xff]
    %v238 = vld [vmem:[#allocation2 + $0x2a8] sm:$0xff]
    %v239 = vld [vmem:[#allocation2 + $0x2b0] sm:$0xff]
    %v240 = vld [vmem:[#allocation2 + $0x2b8] sm:$0xff]
    %v241 = vld [vmem:[#allocation2 + $0x2c0] sm:$0xff]
    %v242 = vld [vmem:[#allocation2 + $0x2c8] sm:$0xff]
    %v243 = vld [vmem:[#allocation2 + $0x2d0] sm:$0xff]
    %v244 = vld [vmem:[#allocation2 + $0x2d8] sm:$0xff]
    %v245 = vld [vmem:[#allocation2 + $0x2e0] sm:$0xff]
    %v246 = vld [vmem:[#allocation2 + $0x2e8] sm:$0xff]
    %v247 = vld [vmem:[#allocation2 + $0x2f0] sm:$0xff]
    %v248 = vld [vmem:[#allocation2 + $0x2f8] sm:$0xff]
    %v249 = vld [vmem:[#allocation2 + $0x300] sm:$0xff]
    %v250 = vld [vmem:[#allocation2 + $0x308] sm:$0xff]
    %v251 = vld [vmem:[#allocation2 + $0x310] sm:$0xff]
    %v252 = vld [vmem:[#allocation2 + $0x318] sm:$0xff]
    %v253 = vld [vmem:[#allocation2 + $0x320] sm:$0xff]
    %v254 = vld [vmem:[#allocation2 + $0x328] sm:$0xff]
    %v255 = vld [vmem:[#allocation2 + $0x330] sm:$0xff]
    %v256 = vld [vmem:[#allocation2 + $0x338] sm:$0xff]
    %v257 = vld [vmem:[#allocation2 + $0x340] sm:$0xff]
    %v258 = vld [vmem:[#allocation2 + $0x348] sm:$0xff]
    %v259 = vld [vmem:[#allocation2 + $0x350] sm:$0xff]
    %v260 = vld [vmem:[#allocation2 + $0x358] sm:$0xff]
    %v261 = vld [vmem:[#allocation2 + $0x360] sm:$0xff]
    %v262 = vld [vmem:[#allocation2 + $0x368] sm:$0xff]
    %v263 = vld [vmem:[#allocation2 + $0x370] sm:$0xff]
    %v264 = vld [vmem:[#allocation2 + $0x378] sm:$0xff]
    %v265 = vld [vmem:[#allocation2 + $0x380] sm:$0xff]
    %v266 = vld [vmem:[#allocation2 + $0x388] sm:$0xff]
    %v267 = vld [vmem:[#allocation2 + $0x390] sm:$0xff]
    %v268 = vld [vmem:[#allocation2 + $0x398] sm:$0xff]
    %v269 = vld [vmem:[#allocation2 + $0x3a0] sm:$0xff]
    %v270 = vld [vmem:[#allocation2 + $0x3a8] sm:$0xff]
    %v271 = vld [vmem:[#allocation2 + $0x3b0] sm:$0xff]
    %v272 = vld [vmem:[#allocation2 + $0x3b8] sm:$0xff]
    %v273 = vld [vmem:[#allocation2 + $0x3c0] sm:$0xff]
    %v274 = vld [vmem:[#allocation2 + $0x3c8] sm:$0xff]
    %v275 = vld [vmem:[#allocation2 + $0x3d0] sm:$0xff]
    %v276 = vld [vmem:[#allocation2 + $0x3d8] sm:$0xff]
    %v277 = vld [vmem:[#allocation2 + $0x3e0] sm:$0xff]
    %v278 = vld [vmem:[#allocation2 + $0x3e8] sm:$0xff]
    %v279 = vld [vmem:[#allocation2 + $0x3f0] sm:$0xff]
    %v280 = vld [vmem:[#allocation2 + $0x3f8] sm:$0xff]
    %v281 = vld [vmem:[#allocation2 + $0x400] sm:$0xff]
    %v282 = vld [vmem:[#allocation2 + $0x408] sm:$0xff]
    %v283 = vld [vmem:[#allocation2 + $0x410] sm:$0xff]
    %v284 = vld [vmem:[#allocation2 + $0x418] sm:$0xff]
    %v285 = vld [vmem:[#allocation2 + $0x420] sm:$0xff]
    %v286 = vld [vmem:[#allocation2 + $0x428] sm:$0xff]
    %v287 = vld [vmem:[#allocation2 + $0x430] sm:$0xff]
    %v288 = vld [vmem:[#allocation2 + $0x438] sm:$0xff]
    %v289 = vld [vmem:[#allocation2 + $0x440] sm:$0xff]
    %v290 = vld [vmem:[#allocation2 + $0x448] sm:$0xff]
    %v291 = vld [vmem:[#allocation2 + $0x450] sm:$0xff]
    %v292 = vld [vmem:[#allocation2 + $0x458] sm:$0xff]
    %v293 = vld [vmem:[#allocation2 + $0x460] sm:$0xff]
    %v294 = vld [vmem:[#allocation2 + $0x468] sm:$0xff]
    %v295 = vld [vmem:[#allocation2 + $0x470] sm:$0xff]
    %v296 = vld [vmem:[#allocation2 + $0x478] sm:$0xff]
    %v297 = vld [vmem:[#allocation2 + $0x480] sm:$0xff]
    %v298 = vld [vmem:[#allocation2 + $0x488] sm:$0xff]
    %v299 = vld [vmem:[#allocation2 + $0x490] sm:$0xff]
    %v300 = vld [vmem:[#allocation2 + $0x498] sm:$0xff]
    %v301 = vld [vmem:[#allocation2 + $0x4a0] sm:$0xff]
    %v302 = vld [vmem:[#allocation2 + $0x4a8] sm:$0xff]
    %v303 = vld [vmem:[#allocation2 + $0x4b0] sm:$0xff]
    %v304 = vld [vmem:[#allocation2 + $0x4b8] sm:$0xff]
    %v305 = vld [vmem:[#allocation2 + $0x4c0] sm:$0xff]
    %v306 = vld [vmem:[#allocation2 + $0x4c8] sm:$0xff]
    %v307 = vld [vmem:[#allocation2 + $0x4d0] sm:$0xff]
    %v308 = vld [vmem:[#allocation2 + $0x4d8] sm:$0xff]
    %v309 = vld [vmem:[#allocation2 + $0x4e0] sm:$0xff]
    %v310 = vld [vmem:[#allocation2 + $0x4e8] sm:$0xff]
    %v311 = vld [vmem:[#allocation2 + $0x4f0] sm:$0xff]
    %v312 = vld [vmem:[#allocation2 + $0x4f8] sm:$0xff]
    %v313 = vld [vmem:[#allocation2 + $0x500] sm:$0xff]
    %v314 = vld [vmem:[#allocation2 + $0x508] sm:$0xff]
    %v315 = vld [vmem:[#allocation2 + $0x510] sm:$0xff]
    %v316 = vld [vmem:[#allocation2 + $0x518] sm:$0xff]
    %v317 = vld [vmem:[#allocation2 + $0x520] sm:$0xff]
    %v318 = vld [vmem:[#allocation2 + $0x528] sm:$0xff]
    %v319 = vld [vmem:[#allocation2 + $0x530] sm:$0xff]
    %v320 = vld [vmem:[#allocation2 + $0x538] sm:$0xff]
    %v321 = vld [vmem:[#allocation2 + $0x540] sm:$0xff]
    %v322 = vld [vmem:[#allocation2 + $0x548] sm:$0xff]
    %v323 = vld [vmem:[#allocation2 + $0x550] sm:$0xff]
    %v324 = vld [vmem:[#allocation2 + $0x558] sm:$0xff]
    %v325 = vld [vmem:[#allocation2 + $0x560] sm:$0xff]
    %v326 = vld [vmem:[#allocation2 + $0x568] sm:$0xff]
    %v327 = vld [vmem:[#allocation2 + $0x570] sm:$0xff]
    %v328 = vld [vmem:[#allocation2 + $0x578] sm:$0xff]
    %v329 = vld [vmem:[#allocation2 + $0x580] sm:$0xff]
    %v330 = vld [vmem:[#allocation2 + $0x588] sm:$0xff]
    %v331 = vld [vmem:[#allocation2 + $0x590] sm:$0xff]
    %v332 = vld [vmem:[#allocation2 + $0x598] sm:$0xff]
    %v333 = vld [vmem:[#allocation2 + $0x5a0] sm:$0xff]
    %v334 = vld [vmem:[#allocation2 + $0x5a8] sm:$0xff]
    %v335 = vld [vmem:[#allocation2 + $0x5b0] sm:$0xff]
    %v336 = vld [vmem:[#allocation2 + $0x5b8] sm:$0xff]
    %v337 = vld [vmem:[#allocation2 + $0x5c0] sm:$0xff]
    %v338 = vld [vmem:[#allocation2 + $0x5c8] sm:$0xff]
    %v339 = vld [vmem:[#allocation2 + $0x5d0] sm:$0xff]
    %v340 = vld [vmem:[#allocation2 + $0x5d8] sm:$0xff]
    %v341 = vld [vmem:[#allocation2 + $0x5e0] sm:$0xff]
    %v342 = vld [vmem:[#allocation2 + $0x5e8] sm:$0xff]
    %v343 = vld [vmem:[#allocation2 + $0x5f0] sm:$0xff]
    %v344 = vld [vmem:[#allocation2 + $0x5f8] sm:$0xff]
    %v345 = vld [vmem:[#allocation2 + $0x600] sm:$0xff]
    %v346 = vld [vmem:[#allocation2 + $0x608] sm:$0xff]
    %v347 = vld [vmem:[#allocation2 + $0x610] sm:$0xff]
    %v348 = vld [vmem:[#allocation2 + $0x618] sm:$0xff]
    %v349 = vld [vmem:[#allocation2 + $0x620] sm:$0xff]
    %v350 = vld [vmem:[#allocation2 + $0x628] sm:$0xff]
    %v351 = vld [vmem:[#allocation2 + $0x630] sm:$0xff]
    %v352 = vld [vmem:[#allocation2 + $0x638] sm:$0xff]
    %v353 = vld [vmem:[#allocation2 + $0x640] sm:$0xff]
    %v354 = vld [vmem:[#allocation2 + $0x648] sm:$0xff]
    %v355 = vld [vmem:[#allocation2 + $0x650] sm:$0xff]
    %v356 = vld [vmem:[#allocation2 + $0x658] sm:$0xff]
    %v357 = vld [vmem:[#allocation2 + $0x660] sm:$0xff]
    %v358 = vld [vmem:[#allocation2 + $0x668] sm:$0xff]
    %v359 = vld [vmem:[#allocation2 + $0x670] sm:$0xff]
    %v360 = vld [vmem:[#allocation2 + $0x678] sm:$0xff]
    %v361 = vld [vmem:[#allocation2 + $0x680] sm:$0xff]
    %v362 = vld [vmem:[#allocation2 + $0x688] sm:$0xff]
    %v363 = vld [vmem:[#allocation2 + $0x690] sm:$0xff]
    %v364 = vld [vmem:[#allocation2 + $0x698] sm:$0xff]
    %v365 = vld [vmem:[#allocation2 + $0x6a0] sm:$0xff]
    %v366 = vld [vmem:[#allocation2 + $0x6a8] sm:$0xff]
    %v367 = vld [vmem:[#allocation2 + $0x6b0] sm:$0xff]
    %v368 = vld [vmem:[#allocation2 + $0x6b8] sm:$0xff]
    %v369 = vld [vmem:[#allocation2 + $0x6c0] sm:$0xff]
    %v370 = vld [vmem:[#allocation2 + $0x6c8] sm:$0xff]
    %v371 = vld [vmem:[#allocation2 + $0x6d0] sm:$0xff]
    %v372 = vld [vmem:[#allocation2 + $0x6d8] sm:$0xff]
    %v373 = vld [vmem:[#allocation2 + $0x6e0] sm:$0xff]
    %v374 = vld [vmem:[#allocation2 + $0x6e8] sm:$0xff]
    %v375 = vld [vmem:[#allocation2 + $0x6f0] sm:$0xff]
    %v376 = vld [vmem:[#allocation2 + $0x6f8] sm:$0xff]
    %v377 = vld [vmem:[#allocation2 + $0x700] sm:$0xff]
    %v378 = vld [vmem:[#allocation2 + $0x708] sm:$0xff]
    %v379 = vld [vmem:[#allocation2 + $0x710] sm:$0xff]
    %v380 = vld [vmem:[#allocation2 + $0x718] sm:$0xff]
    %v381 = vld [vmem:[#allocation2 + $0x720] sm:$0xff]
    %v382 = vld [vmem:[#allocation2 + $0x728] sm:$0xff]
    %v383 = vld [vmem:[#allocation2 + $0x730] sm:$0xff]
    %v384 = vld [vmem:[#allocation2 + $0x738] sm:$0xff]
    %v385 = vld [vmem:[#allocation2 + $0x740] sm:$0xff]
    %v386 = vld [vmem:[#allocation2 + $0x748] sm:$0xff]
    %v387 = vld [vmem:[#allocation2 + $0x750] sm:$0xff]
    %v388 = vld [vmem:[#allocation2 + $0x758] sm:$0xff]
    %v389 = vld [vmem:[#allocation2 + $0x760] sm:$0xff]
    %v390 = vld [vmem:[#allocation2 + $0x768] sm:$0xff]
    %v391 = vld [vmem:[#allocation2 + $0x770] sm:$0xff]
    %v392 = vld [vmem:[#allocation2 + $0x778] sm:$0xff]
    %v393 = vld [vmem:[#allocation2 + $0x780] sm:$0xff]
    %v394 = vld [vmem:[#allocation2 + $0x788] sm:$0xff]
    %v395 = vld [vmem:[#allocation2 + $0x790] sm:$0xff]
    %v396 = vld [vmem:[#allocation2 + $0x798] sm:$0xff]
    %v397 = vld [vmem:[#allocation2 + $0x7a0] sm:$0xff]
    %v398 = vld [vmem:[#allocation2 + $0x7a8] sm:$0xff]
    %v399 = vld [vmem:[#allocation2 + $0x7b0] sm:$0xff]
    %v400 = vld [vmem:[#allocation2 + $0x7b8] sm:$0xff]
    %v401 = vld [vmem:[#allocation2 + $0x7c0] sm:$0xff]
    %v402 = vld [vmem:[#allocation2 + $0x7c8] sm:$0xff]
    %v403 = vld [vmem:[#allocation2 + $0x7d0] sm:$0xff]
    %v404 = vld [vmem:[#allocation2 + $0x7d8] sm:$0xff]
    %v405 = vld [vmem:[#allocation2 + $0x7e0] sm:$0xff]
    %v406 = vld [vmem:[#allocation2 + $0x7e8] sm:$0xff]
    %v407 = vld [vmem:[#allocation2 + $0x7f0] sm:$0xff]
    %v408 = vld [vmem:[#allocation2 + $0x7f8] sm:$0xff]
    %v409 = vld [vmem:[#allocation2 + $0x800] sm:$0xff]
    %v410 = vld [vmem:[#allocation2 + $0x808] sm:$0xff]
    %v411 = vld [vmem:[#allocation2 + $0x810] sm:$0xff]
    %v412 = vld [vmem:[#allocation2 + $0x818] sm:$0xff]
    %v413 = vld [vmem:[#allocation2 + $0x820] sm:$0xff]
    %v414 = vld [vmem:[#allocation2 + $0x828] sm:$0xff]
    %v415 = vld [vmem:[#allocation2 + $0x830] sm:$0xff]
    %v416 = vld [vmem:[#allocation2 + $0x838] sm:$0xff]
    %v417 = vld [vmem:[#allocation2 + $0x840] sm:$0xff]
    %v418 = vld [vmem:[#allocation2 + $0x848] sm:$0xff]
    %v419 = vld [vmem:[#allocation2 + $0x850] sm:$0xff]
    %v420 = vld [vmem:[#allocation2 + $0x858] sm:$0xff]
    %v421 = vld [vmem:[#allocation2 + $0x860] sm:$0xff]
    %v422 = vld [vmem:[#allocation2 + $0x868] sm:$0xff]
    %v423 = vld [vmem:[#allocation2 + $0x870] sm:$0xff]
    %v424 = vld [vmem:[#allocation2 + $0x878] sm:$0xff]
    %v425 = vld [vmem:[#allocation2 + $0x880] sm:$0xff]
    %v426 = vld [vmem:[#allocation2 + $0x888] sm:$0xff]
    %v427 = vld [vmem:[#allocation2 + $0x890] sm:$0xff]
    %v428 = vld [vmem:[#allocation2 + $0x898] sm:$0xff]
    %v429 = vld [vmem:[#allocation2 + $0x8a0] sm:$0xff]
    %v430 = vld [vmem:[#allocation2 + $0x8a8] sm:$0xff]
    %v431 = vld [vmem:[#allocation2 + $0x8b0] sm:$0xff]
    %v432 = vld [vmem:[#allocation2 + $0x8b8] sm:$0xff]
    %v433 = vld [vmem:[#allocation2 + $0x8c0] sm:$0xff]
    %v434 = vld [vmem:[#allocation2 + $0x8c8] sm:$0xff]
    %v435 = vld [vmem:[#allocation2 + $0x8d0] sm:$0xff]
    %v436 = vld [vmem:[#allocation2 + $0x8d8] sm:$0xff]
    %v437 = vld [vmem:[#allocation2 + $0x8e0] sm:$0xff]
    %v438 = vld [vmem:[#allocation2 + $0x8e8] sm:$0xff]
    %v439 = vld [vmem:[#allocation2 + $0x8f0] sm:$0xff]
    %v440 = vld [vmem:[#allocation2 + $0x8f8] sm:$0xff]
    %v441 = vld [vmem:[#allocation2 + $0x900] sm:$0xff]
    %v442 = vld [vmem:[#allocation2 + $0x908] sm:$0xff]
    %v443 = vld [vmem:[#allocation2 + $0x910] sm:$0xff]
    %v444 = vld [vmem:[#allocation2 + $0x918] sm:$0xff]
    %v445 = vld [vmem:[#allocation2 + $0x920] sm:$0xff]
    %v446 = vld [vmem:[#allocation2 + $0x928] sm:$0xff]
    %v447 = vld [vmem:[#allocation2 + $0x930] sm:$0xff]
    %v448 = vld [vmem:[#allocation2 + $0x938] sm:$0xff]
    %v449 = vld [vmem:[#allocation2 + $0x940] sm:$0xff]
    %v450 = vld [vmem:[#allocation2 + $0x948] sm:$0xff]
    %v451 = vld [vmem:[#allocation2 + $0x950] sm:$0xff]
    %v452 = vld [vmem:[#allocation2 + $0x958] sm:$0xff]
    %v453 = vld [vmem:[#allocation2 + $0x960] sm:$0xff]
    %v454 = vld [vmem:[#allocation2 + $0x968] sm:$0xff]
    %v455 = vld [vmem:[#allocation2 + $0x970] sm:$0xff]
    %v456 = vld [vmem:[#allocation2 + $0x978] sm:$0xff]
    %v457 = vld [vmem:[#allocation2 + $0x980] sm:$0xff]
    %v458 = vld [vmem:[#allocation2 + $0x988] sm:$0xff]
    %v459 = vld [vmem:[#allocation2 + $0x990] sm:$0xff]
    %v460 = vld [vmem:[#allocation2 + $0x998] sm:$0xff]
    %v461 = vld [vmem:[#allocation2 + $0x9a0] sm:$0xff]
    %v462 = vld [vmem:[#allocation2 + $0x9a8] sm:$0xff]
    %v463 = vld [vmem:[#allocation2 + $0x9b0] sm:$0xff]
    %v464 = vld [vmem:[#allocation2 + $0x9b8] sm:$0xff]
    %v465 = vld [vmem:[#allocation2 + $0x9c0] sm:$0xff]
    %v466 = vld [vmem:[#allocation2 + $0x9c8] sm:$0xff]
    %v467 = vld [vmem:[#allocation2 + $0x9d0] sm:$0xff]
    %v468 = vld [vmem:[#allocation2 + $0x9d8] sm:$0xff]
    %v469 = vld [vmem:[#allocation2 + $0x9e0] sm:$0xff]
    %v470 = vld [vmem:[#allocation2 + $0x9e8] sm:$0xff]
    %v471 = vld [vmem:[#allocation2 + $0x9f0] sm:$0xff]
    %v472 = vld [vmem:[#allocation2 + $0x9f8] sm:$0xff]
    %v473 = vld [vmem:[#allocation2 + $0xa00] sm:$0xff]
    %v474 = vld [vmem:[#allocation2 + $0xa08] sm:$0xff]
    %v475 = vld [vmem:[#allocation2 + $0xa10] sm:$0xff]
    %v476 = vld [vmem:[#allocation2 + $0xa18] sm:$0xff]
    %v477 = vld [vmem:[#allocation2 + $0xa20] sm:$0xff]
    %v478 = vld [vmem:[#allocation2 + $0xa28] sm:$0xff]
    %v479 = vld [vmem:[#allocation2 + $0xa30] sm:$0xff]
    %v480 = vld [vmem:[#allocation2 + $0xa38] sm:$0xff]
    %v481 = vld [vmem:[#allocation2 + $0xa40] sm:$0xff]
    %v482 = vld [vmem:[#allocation2 + $0xa48] sm:$0xff]
    %v483 = vld [vmem:[#allocation2 + $0xa50] sm:$0xff]
    %v484 = vld [vmem:[#allocation2 + $0xa58] sm:$0xff]
    %v485 = vld [vmem:[#allocation2 + $0xa60] sm:$0xff]
    %v486 = vld [vmem:[#allocation2 + $0xa68] sm:$0xff]
    %v487 = vld [vmem:[#allocation2 + $0xa70] sm:$0xff]
    %v488 = vld [vmem:[#allocation2 + $0xa78] sm:$0xff]
    %v489 = vld [vmem:[#allocation2 + $0xa80] sm:$0xff]
    %v490 = vld [vmem:[#allocation2 + $0xa88] sm:$0xff]
    %v491 = vld [vmem:[#allocation2 + $0xa90] sm:$0xff]
    %v492 = vld [vmem:[#allocation2 + $0xa98] sm:$0xff]
    %v493 = vld [vmem:[#allocation2 + $0xaa0] sm:$0xff]
    %v494 = vld [vmem:[#allocation2 + $0xaa8] sm:$0xff]
    %v495 = vld [vmem:[#allocation2 + $0xab0] sm:$0xff]
    %v496 = vld [vmem:[#allocation2 + $0xab8] sm:$0xff]
    %v497 = vld [vmem:[#allocation2 + $0xac0] sm:$0xff]
    %v498 = vld [vmem:[#allocation2 + $0xac8] sm:$0xff]
    %v499 = vld [vmem:[#allocation2 + $0xad0] sm:$0xff]
    %v500 = vld [vmem:[#allocation2 + $0xad8] sm:$0xff]
    %v501 = vld [vmem:[#allocation2 + $0xae0] sm:$0xff]
    %v502 = vld [vmem:[#allocation2 + $0xae8] sm:$0xff]
    %v503 = vld [vmem:[#allocation2 + $0xaf0] sm:$0xff]
    %v504 = vld [vmem:[#allocation2 + $0xaf8] sm:$0xff]
    %v505 = vld [vmem:[#allocation2 + $0xb00] sm:$0xff]
    %v506 = vld [vmem:[#allocation2 + $0xb08] sm:$0xff]
    %v507 = vld [vmem:[#allocation2 + $0xb10] sm:$0xff]
    %v508 = vld [vmem:[#allocation2 + $0xb18] sm:$0xff]
    %v509 = vld [vmem:[#allocation2 + $0xb20] sm:$0xff]
    %v510 = vld [vmem:[#allocation2 + $0xb28] sm:$0xff]
    %v511 = vld [vmem:[#allocation2 + $0xb30] sm:$0xff]
    %v512 = vld [vmem:[#allocation2 + $0xb38] sm:$0xff]
    %v513 = vld [vmem:[#allocation2 + $0xb40] sm:$0xff]
    %v514 = vld [vmem:[#allocation2 + $0xb48] sm:$0xff]
    %v515 = vld [vmem:[#allocation2 + $0xb50] sm:$0xff]
    %v516 = vld [vmem:[#allocation2 + $0xb58] sm:$0xff]
    %v517 = vld [vmem:[#allocation2 + $0xb60] sm:$0xff]
    %v518 = vld [vmem:[#allocation2 + $0xb68] sm:$0xff]
    %v519 = vld [vmem:[#allocation2 + $0xb70] sm:$0xff]
    %v520 = vld [vmem:[#allocation2 + $0xb78] sm:$0xff]
    %v521 = vld [vmem:[#allocation2 + $0xb80] sm:$0xff]
    %v522 = vld [vmem:[#allocation2 + $0xb88] sm:$0xff]
    %v523 = vld [vmem:[#allocation2 + $0xb90] sm:$0xff]
    %v524 = vld [vmem:[#allocation2 + $0xb98] sm:$0xff]
    %v525 = vld [vmem:[#allocation2 + $0xba0] sm:$0xff]
    %v526 = vld [vmem:[#allocation2 + $0xba8] sm:$0xff]
    %v527 = vld [vmem:[#allocation2 + $0xbb0] sm:$0xff]
    %v528 = vld [vmem:[#allocation2 + $0xbb8] sm:$0xff]
    %v529 = vld [vmem:[#allocation2 + $0xbc0] sm:$0xff]
    %v530 = vld [vmem:[#allocation2 + $0xbc8] sm:$0xff]
    %v531 = vld [vmem:[#allocation2 + $0xbd0] sm:$0xff]
    %v532 = vld [vmem:[#allocation2 + $0xbd8] sm:$0xff]
    %v533 = vld [vmem:[#allocation2 + $0xbe0] sm:$0xff]
    %v534 = vld [vmem:[#allocation2 + $0xbe8] sm:$0xff]
    %v535 = vld [vmem:[#allocation2 + $0xbf0] sm:$0xff]
    %v536 = vld [vmem:[#allocation2 + $0xbf8] sm:$0xff]
    %v537 = vld [vmem:[#allocation2 + $0xc00] sm:$0xff]
    %v538 = vld [vmem:[#allocation2 + $0xc08] sm:$0xff]
    %v539 = vld [vmem:[#allocation2 + $0xc10] sm:$0xff]
    %v540 = vld [vmem:[#allocation2 + $0xc18] sm:$0xff]
    %v541 = vld [vmem:[#allocation2 + $0xc20] sm:$0xff]
    %v542 = vld [vmem:[#allocation2 + $0xc28] sm:$0xff]
    %v543 = vld [vmem:[#allocation2 + $0xc30] sm:$0xff]
    %v544 = vld [vmem:[#allocation2 + $0xc38] sm:$0xff]
    %v545 = vld [vmem:[#allocation2 + $0xc40] sm:$0xff]
    %v546 = vld [vmem:[#allocation2 + $0xc48] sm:$0xff]
    %v547 = vld [vmem:[#allocation2 + $0xc50] sm:$0xff]
    %v548 = vld [vmem:[#allocation2 + $0xc58] sm:$0xff]
    %v549 = vld [vmem:[#allocation2 + $0xc60] sm:$0xff]
    %v550 = vld [vmem:[#allocation2 + $0xc68] sm:$0xff]
    %v551 = vld [vmem:[#allocation2 + $0xc70] sm:$0xff]
    %v552 = vld [vmem:[#allocation2 + $0xc78] sm:$0xff]
    %v553 = vld [vmem:[#allocation2 + $0xc80] sm:$0xff]
    %v554 = vld [vmem:[#allocation2 + $0xc88] sm:$0xff]
    %v555 = vld [vmem:[#allocation2 + $0xc90] sm:$0xff]
    %v556 = vld [vmem:[#allocation2 + $0xc98] sm:$0xff]
    %v557 = vld [vmem:[#allocation2 + $0xca0] sm:$0xff]
    %v558 = vld [vmem:[#allocation2 + $0xca8] sm:$0xff]
    %v559 = vld [vmem:[#allocation2 + $0xcb0] sm:$0xff]
    %v560 = vld [vmem:[#allocation2 + $0xcb8] sm:$0xff]
    %v561 = vld [vmem:[#allocation2 + $0xcc0] sm:$0xff]
    %v562 = vld [vmem:[#allocation2 + $0xcc8] sm:$0xff]
    %v563 = vld [vmem:[#allocation2 + $0xcd0] sm:$0xff]
    %v564 = vld [vmem:[#allocation2 + $0xcd8] sm:$0xff]
    %v565 = vld [vmem:[#allocation2 + $0xce0] sm:$0xff]
    %v566 = vld [vmem:[#allocation2 + $0xce8] sm:$0xff]
    %v567 = vld [vmem:[#allocation2 + $0xcf0] sm:$0xff]
    %v568 = vld [vmem:[#allocation2 + $0xcf8] sm:$0xff]
    %v569 = vld [vmem:[#allocation2 + $0xd00] sm:$0xff]
    %v570 = vld [vmem:[#allocation2 + $0xd08] sm:$0xff]
    %v571 = vld [vmem:[#allocation2 + $0xd10] sm:$0xff]
    %v572 = vld [vmem:[#allocation2 + $0xd18] sm:$0xff]
    %v573 = vld [vmem:[#allocation2 + $0xd20] sm:$0xff]
    %v574 = vld [vmem:[#allocation2 + $0xd28] sm:$0xff]
    %v575 = vld [vmem:[#allocation2 + $0xd30] sm:$0xff]
    %v576 = vld [vmem:[#allocation2 + $0xd38] sm:$0xff]
    %v577 = vld [vmem:[#allocation2 + $0xd40] sm:$0xff]
    %v578 = vld [vmem:[#allocation2 + $0xd48] sm:$0xff]
    %v579 = vld [vmem:[#allocation2 + $0xd50] sm:$0xff]
    %v580 = vld [vmem:[#allocation2 + $0xd58] sm:$0xff]
    %v581 = vld [vmem:[#allocation2 + $0xd60] sm:$0xff]
    %v582 = vld [vmem:[#allocation2 + $0xd68] sm:$0xff]
    %v583 = vld [vmem:[#allocation2 + $0xd70] sm:$0xff]
    %v584 = vld [vmem:[#allocation2 + $0xd78] sm:$0xff]
    %v585 = vld [vmem:[#allocation2 + $0xd80] sm:$0xff]
    %v586 = vld [vmem:[#allocation2 + $0xd88] sm:$0xff]
    %v587 = vld [vmem:[#allocation2 + $0xd90] sm:$0xff]
    %v588 = vld [vmem:[#allocation2 + $0xd98] sm:$0xff]
    %v589 = vld [vmem:[#allocation2 + $0xda0] sm:$0xff]
    %v590 = vld [vmem:[#allocation2 + $0xda8] sm:$0xff]
    %v591 = vld [vmem:[#allocation2 + $0xdb0] sm:$0xff]
    %v592 = vld [vmem:[#allocation2 + $0xdb8] sm:$0xff]
    %v593 = vld [vmem:[#allocation2 + $0xdc0] sm:$0xff]
    %v594 = vld [vmem:[#allocation2 + $0xdc8] sm:$0xff]
    %v595 = vld [vmem:[#allocation2 + $0xdd0] sm:$0xff]
    %v596 = vld [vmem:[#allocation2 + $0xdd8] sm:$0xff]
    %v597 = vld [vmem:[#allocation2 + $0xde0] sm:$0xff]
    %v598 = vld [vmem:[#allocation2 + $0xde8] sm:$0xff]
    %v599 = vld [vmem:[#allocation2 + $0xdf0] sm:$0xff]
    %v600 = vld [vmem:[#allocation2 + $0xdf8] sm:$0xff]
    %v601 = vld [vmem:[#allocation2 + $0xe00] sm:$0xff]
    %v602 = vld [vmem:[#allocation2 + $0xe08] sm:$0xff]
    %v603 = vld [vmem:[#allocation2 + $0xe10] sm:$0xff]
    %v604 = vld [vmem:[#allocation2 + $0xe18] sm:$0xff]
    %v605 = vld [vmem:[#allocation2 + $0xe20] sm:$0xff]
    %v606 = vld [vmem:[#allocation2 + $0xe28] sm:$0xff]
    %v607 = vld [vmem:[#allocation2 + $0xe30] sm:$0xff]
    %v608 = vld [vmem:[#allocation2 + $0xe38] sm:$0xff]
    %v609 = vld [vmem:[#allocation2 + $0xe40] sm:$0xff]
    %v610 = vld [vmem:[#allocation2 + $0xe48] sm:$0xff]
    %v611 = vld [vmem:[#allocation2 + $0xe50] sm:$0xff]
    %v612 = vld [vmem:[#allocation2 + $0xe58] sm:$0xff]
    %v613 = vld [vmem:[#allocation2 + $0xe60] sm:$0xff]
    %v614 = vld [vmem:[#allocation2 + $0xe68] sm:$0xff]
    %v615 = vld [vmem:[#allocation2 + $0xe70] sm:$0xff]
    %v616 = vld [vmem:[#allocation2 + $0xe78] sm:$0xff]
    %v617 = vld [vmem:[#allocation2 + $0xe80] sm:$0xff]
    %v618 = vld [vmem:[#allocation2 + $0xe88] sm:$0xff]
    %v619 = vld [vmem:[#allocation2 + $0xe90] sm:$0xff]
    %v620 = vld [vmem:[#allocation2 + $0xe98] sm:$0xff]
    %v621 = vld [vmem:[#allocation2 + $0xea0] sm:$0xff]
    %v622 = vld [vmem:[#allocation2 + $0xea8] sm:$0xff]
    %v623 = vld [vmem:[#allocation2 + $0xeb0] sm:$0xff]
    %v624 = vld [vmem:[#allocation2 + $0xeb8] sm:$0xff]
    %v625 = vld [vmem:[#allocation2 + $0xec0] sm:$0xff]
    %v626 = vld [vmem:[#allocation2 + $0xec8] sm:$0xff]
    %v627 = vld [vmem:[#allocation2 + $0xed0] sm:$0xff]
    %v628 = vld [vmem:[#allocation2 + $0xed8] sm:$0xff]
    %v629 = vld [vmem:[#allocation2 + $0xee0] sm:$0xff]
    %v630 = vld [vmem:[#allocation2 + $0xee8] sm:$0xff]
    %v631 = vld [vmem:[#allocation2 + $0xef0] sm:$0xff]
    %v632 = vld [vmem:[#allocation2 + $0xef8] sm:$0xff]
    %v633 = vld [vmem:[#allocation2 + $0xf00] sm:$0xff]
    %v634 = vld [vmem:[#allocation2 + $0xf08] sm:$0xff]
    %v635 = vld [vmem:[#allocation2 + $0xf10] sm:$0xff]
    %v636 = vld [vmem:[#allocation2 + $0xf18] sm:$0xff]
    %v637 = vld [vmem:[#allocation2 + $0xf20] sm:$0xff]
    %v638 = vld [vmem:[#allocation2 + $0xf28] sm:$0xff]
    %v639 = vld [vmem:[#allocation2 + $0xf30] sm:$0xff]
    %v640 = vld [vmem:[#allocation2 + $0xf38] sm:$0xff]
    %v641 = vld [vmem:[#allocation2 + $0xf40] sm:$0xff]
    %v642 = vld [vmem:[#allocation2 + $0xf48] sm:$0xff]
    %v643 = vld [vmem:[#allocation2 + $0xf50] sm:$0xff]
    %v644 = vld [vmem:[#allocation2 + $0xf58] sm:$0xff]
    %v645 = vld [vmem:[#allocation2 + $0xf60] sm:$0xff]
    %v646 = vld [vmem:[#allocation2 + $0xf68] sm:$0xff]
    %v647 = vld [vmem:[#allocation2 + $0xf70] sm:$0xff]
    %v648 = vld [vmem:[#allocation2 + $0xf78] sm:$0xff]
    %v649 = vld [vmem:[#allocation2 + $0xf80] sm:$0xff]
    %v650 = vld [vmem:[#allocation2 + $0xf88] sm:$0xff]
    %v651 = vld [vmem:[#allocation2 + $0xf90] sm:$0xff]
    %v652 = vld [vmem:[#allocation2 + $0xf98] sm:$0xff]
    %v653 = vld [vmem:[#allocation2 + $0xfa0] sm:$0xff]
    %v654 = vld [vmem:[#allocation2 + $0xfa8] sm:$0xff]
    %v655 = vld [vmem:[#allocation2 + $0xfb0] sm:$0xff]
    %v656 = vld [vmem:[#allocation2 + $0xfb8] sm:$0xff]
    %v657 = vld [vmem:[#allocation2 + $0xfc0] sm:$0xff]
    %v658 = vld [vmem:[#allocation2 + $0xfc8] sm:$0xff]
    %v659 = vld [vmem:[#allocation2 + $0xfd0] sm:$0xff]
    %v660 = vld [vmem:[#allocation2 + $0xfd8] sm:$0xff]
    %v661 = vld [vmem:[#allocation2 + $0xfe0] sm:$0xff]
    %v662 = vld [vmem:[#allocation2 + $0xfe8] sm:$0xff]
    %v663 = vld [vmem:[#allocation2 + $0xff0] sm:$0xff]
    %v664 = vld [vmem:[#allocation2 + $0xff8] sm:$0xff]
    %v667 = vcombine.high %v151, %v151
    %v668 = vcombine.high %v152, %v152
    %671 = vmatprep.subr.mxu0 %v154
    %672 = vmatpush1.msra.mxu0 %v153
    %673 = vmatprep.subr.mxu0 %v162
    %674 = vmatpush1.msra.mxu0 %v161
    %675 = vmatprep.subr.mxu0 %v170
    %676 = vmatpush1.msra.mxu0 %v169
    %677 = vmatprep.subr.mxu0 %v178
    %678 = vmatpush1.msra.mxu0 %v177
    %679 = vmatprep.subr.mxu0 %v186
    %680 = vmatpush1.msra.mxu0 %v185
    %681 = vmatprep.subr.mxu0 %v194
    %682 = vmatpush1.msra.mxu0 %v193
    %683 = vmatprep.subr.mxu0 %v202
    %684 = vmatpush1.msra.mxu0 %v201
    %685 = vmatprep.subr.mxu0 %v210
    %686 = vmatpush1.msra.mxu0 %v209
    %687 = vmatprep.subr.mxu0 %v218
    %688 = vmatpush1.msra.mxu0 %v217
    %689 = vmatprep.subr.mxu0 %v226
    %690 = vmatpush1.msra.mxu0 %v225
    %691 = vmatprep.subr.mxu0 %v234
    %692 = vmatpush1.msra.mxu0 %v233
    %693 = vmatprep.subr.mxu0 %v242
    %694 = vmatpush1.msra.mxu0 %v241
    %695 = vmatprep.subr.mxu0 %v250
    %696 = vmatpush1.msra.mxu0 %v249
    %697 = vmatprep.subr.mxu0 %v258
    %698 = vmatpush1.msra.mxu0 %v257
    %699 = vmatprep.subr.mxu0 %v266
    %700 = vmatpush1.msra.mxu0 %v265
    %701 = vmatprep.subr.mxu0 %v274
    %702 = vmatpush1.msra.mxu0 %v273
    %703 = vmatprep.subr.mxu0 %v282
    %704 = vmatpush1.msra.mxu0 %v281
    %705 = vmatprep.subr.mxu0 %v290
    %706 = vmatpush1.msra.mxu0 %v289
    %707 = vmatprep.subr.mxu0 %v298
    %708 = vmatpush1.msra.mxu0 %v297
    %709 = vmatprep.subr.mxu0 %v306
    %710 = vmatpush1.msra.mxu0 %v305
    %711 = vmatprep.subr.mxu0 %v314
    %712 = vmatpush1.msra.mxu0 %v313
    %713 = vmatprep.subr.mxu0 %v322
    %714 = vmatpush1.msra.mxu0 %v321
    %715 = vmatprep.subr.mxu0 %v330
    %716 = vmatpush1.msra.mxu0 %v329
    %717 = vmatprep.subr.mxu0 %v338
    %718 = vmatpush1.msra.mxu0 %v337
    %719 = vmatprep.subr.mxu0 %v346
    %720 = vmatpush1.msra.mxu0 %v345
    %721 = vmatprep.subr.mxu0 %v354
    %722 = vmatpush1.msra.mxu0 %v353
    %723 = vmatprep.subr.mxu0 %v362
    %724 = vmatpush1.msra.mxu0 %v361
    %725 = vmatprep.subr.mxu0 %v370
    %726 = vmatpush1.msra.mxu0 %v369
    %727 = vmatprep.subr.mxu0 %v378
    %728 = vmatpush1.msra.mxu0 %v377
    %729 = vmatprep.subr.mxu0 %v386
    %730 = vmatpush1.msra.mxu0 %v385
    %731 = vmatprep.subr.mxu0 %v394
    %732 = vmatpush1.msra.mxu0 %v393
    %733 = vmatprep.subr.mxu0 %v402
    %734 = vmatpush1.msra.mxu0 %v401
    %735 = vmatprep.mubr.f32.mxu0 %v667
    %736 = vmatmul.mubr.f32.gmra.mrb[0].mxu0 %v151
    %v737 = vpop.f32.mrb[0].mxu0
    %v738 = vadd.f32 0.0, %v737
    %v739 = vpop.f32.mrb[0].mxu0
    %v740 = vadd.f32 0.0, %v739
    %741 = vdwg.mxu0
    %742 = vmatprep.subr.mxu0 %v410
    %743 = vmatpush1.msra.mxu0 %v409
    %744 = vmatprep.subr.mxu0 %v418
    %745 = vmatpush1.msra.mxu0 %v417
    %746 = vmatprep.subr.mxu0 %v426
    %747 = vmatpush1.msra.mxu0 %v425
    %748 = vmatprep.subr.mxu0 %v434
    %749 = vmatpush1.msra.mxu0 %v433
    %750 = vmatprep.subr.mxu0 %v442
    %751 = vmatpush1.msra.mxu0 %v441
    %752 = vmatprep.subr.mxu0 %v450
    %753 = vmatpush1.msra.mxu0 %v449
    %754 = vmatprep.subr.mxu0 %v458
    %755 = vmatpush1.msra.mxu0 %v457
    %756 = vmatprep.subr.mxu0 %v466
    %757 = vmatpush1.msra.mxu0 %v465
    %758 = vmatprep.subr.mxu0 %v474
    %759 = vmatpush1.msra.mxu0 %v473
    %760 = vmatprep.subr.mxu0 %v482
    %761 = vmatpush1.msra.mxu0 %v481
    %762 = vmatprep.subr.mxu0 %v490
    %763 = vmatpush1.msra.mxu0 %v489
    %764 = vmatprep.subr.mxu0 %v498
    %765 = vmatpush1.msra.mxu0 %v497
    %766 = vmatprep.subr.mxu0 %v506
    %767 = vmatpush1.msra.mxu0 %v505
    %768 = vmatprep.subr.mxu0 %v514
    %769 = vmatpush1.msra.mxu0 %v513
    %770 = vmatprep.subr.mxu0 %v522
    %771 = vmatpush1.msra.mxu0 %v521
    %772 = vmatprep.subr.mxu0 %v530
    %773 = vmatpush1.msra.mxu0 %v529
    %774 = vmatprep.subr.mxu0 %v538
    %775 = vmatpush1.msra.mxu0 %v537
    %776 = vmatprep.subr.mxu0 %v546
    %777 = vmatpush1.msra.mxu0 %v545
    %778 = vmatprep.subr.mxu0 %v554
    %779 = vmatpush1.msra.mxu0 %v553
    %780 = vmatprep.subr.mxu0 %v562
    %781 = vmatpush1.msra.mxu0 %v561
    %782 = vmatprep.subr.mxu0 %v570
    %783 = vmatpush1.msra.mxu0 %v569
    %784 = vmatprep.subr.mxu0 %v578
    %785 = vmatpush1.msra.mxu0 %v577
    %786 = vmatprep.subr.mxu0 %v586
    %787 = vmatpush1.msra.mxu0 %v585
    %788 = vmatprep.subr.mxu0 %v594
    %789 = vmatpush1.msra.mxu0 %v593
    %790 = vmatprep.subr.mxu0 %v602
    %791 = vmatpush1.msra.mxu0 %v601
    %792 = vmatprep.subr.mxu0 %v610
    %793 = vmatpush1.msra.mxu0 %v609
    %794 = vmatprep.subr.mxu0 %v618
    %795 = vmatpush1.msra.mxu0 %v617
    %796 = vmatprep.subr.mxu0 %v626
    %797 = vmatpush1.msra.mxu0 %v625
    %798 = vmatprep.subr.mxu0 %v634
    %799 = vmatpush1.msra.mxu0 %v633
    %800 = vmatprep.subr.mxu0 %v642
    %801 = vmatpush1.msra.mxu0 %v641
    %802 = vmatprep.subr.mxu0 %v650
    %803 = vmatpush1.msra.mxu0 %v649
    %804 = vmatprep.subr.mxu0 %v658
    %805 = vmatpush1.msra.mxu0 %v657
    %806 = vmatprep.mubr.f32.mxu0 %v668
    %807 = vmatmul.mubr.f32.gmra.mrb[0].mxu0 %v152
    %v808 = vpop.f32.mrb[0].mxu0
    %v809 = vadd.f32 %v738, %v808
    %v810 = vpop.f32.mrb[0].mxu0
    %v811 = vadd.f32 %v740, %v810
    %812 = vdwg.mxu0
    %813 = vmatprep.subr.mxu0 %v156
    %814 = vmatpush1.msra.mxu0 %v155
    %815 = vmatprep.subr.mxu0 %v164
    %816 = vmatpush1.msra.mxu0 %v163
    %817 = vmatprep.subr.mxu0 %v172
    %818 = vmatpush1.msra.mxu0 %v171
    %819 = vmatprep.subr.mxu0 %v180
    %820 = vmatpush1.msra.mxu0 %v179
    %821 = vmatprep.subr.mxu0 %v188
    %822 = vmatpush1.msra.mxu0 %v187
    %823 = vmatprep.subr.mxu0 %v196
    %824 = vmatpush1.msra.mxu0 %v195
    %825 = vmatprep.subr.mxu0 %v204
    %826 = vmatpush1.msra.mxu0 %v203
    %827 = vmatprep.subr.mxu0 %v212
    %828 = vmatpush1.msra.mxu0 %v211
    %829 = vmatprep.subr.mxu0 %v220
    %830 = vmatpush1.msra.mxu0 %v219
    %831 = vmatprep.subr.mxu0 %v228
    %832 = vmatpush1.msra.mxu0 %v227
    %833 = vmatprep.subr.mxu0 %v236
    %834 = vmatpush1.msra.mxu0 %v235
    %835 = vmatprep.subr.mxu0 %v244
    %836 = vmatpush1.msra.mxu0 %v243
    %837 = vmatprep.subr.mxu0 %v252
    %838 = vmatpush1.msra.mxu0 %v251
    %839 = vmatprep.subr.mxu0 %v260
    %840 = vmatpush1.msra.mxu0 %v259
    %841 = vmatprep.subr.mxu0 %v268
    %842 = vmatpush1.msra.mxu0 %v267
    %843 = vmatprep.subr.mxu0 %v276
    %844 = vmatpush1.msra.mxu0 %v275
    %845 = vmatprep.subr.mxu0 %v284
    %846 = vmatpush1.msra.mxu0 %v283
    %847 = vmatprep.subr.mxu0 %v292
    %848 = vmatpush1.msra.mxu0 %v291
    %849 = vmatprep.subr.mxu0 %v300
    %850 = vmatpush1.msra.mxu0 %v299
    %851 = vmatprep.subr.mxu0 %v308
    %852 = vmatpush1.msra.mxu0 %v307
    %853 = vmatprep.subr.mxu0 %v316
    %854 = vmatpush1.msra.mxu0 %v315
    %855 = vmatprep.subr.mxu0 %v324
    %856 = vmatpush1.msra.mxu0 %v323
    %857 = vmatprep.subr.mxu0 %v332
    %858 = vmatpush1.msra.mxu0 %v331
    %859 = vmatprep.subr.mxu0 %v340
    %860 = vmatpush1.msra.mxu0 %v339
    %861 = vmatprep.subr.mxu0 %v348
    %862 = vmatpush1.msra.mxu0 %v347
    %863 = vmatprep.subr.mxu0 %v356
    %864 = vmatpush1.msra.mxu0 %v355
    %865 = vmatprep.subr.mxu0 %v364
    %866 = vmatpush1.msra.mxu0 %v363
    %867 = vmatprep.subr.mxu0 %v372
    %868 = vmatpush1.msra.mxu0 %v371
    %869 = vmatprep.subr.mxu0 %v380
    %870 = vmatpush1.msra.mxu0 %v379
    %871 = vmatprep.subr.mxu0 %v388
    %872 = vmatpush1.msra.mxu0 %v387
    %873 = vmatprep.subr.mxu0 %v396
    %874 = vmatpush1.msra.mxu0 %v395
    %875 = vmatprep.subr.mxu0 %v404
    %876 = vmatpush1.msra.mxu0 %v403
    %877 = vmatprep.mubr.f32.mxu0 %v667
    %878 = vmatmul.mubr.f32.gmra.mrb[0].mxu0 %v151
    %v879 = vpop.f32.mrb[0].mxu0
    %v880 = vadd.f32 0.0, %v879
    %v881 = vpop.f32.mrb[0].mxu0
    %v882 = vadd.f32 0.0, %v881
    %883 = vdwg.mxu0
    %884 = vmatprep.subr.mxu0 %v412
    %885 = vmatpush1.msra.mxu0 %v411
    %886 = vmatprep.subr.mxu0 %v420
    %887 = vmatpush1.msra.mxu0 %v419
    %888 = vmatprep.subr.mxu0 %v428
    %889 = vmatpush1.msra.mxu0 %v427
    %890 = vmatprep.subr.mxu0 %v436
    %891 = vmatpush1.msra.mxu0 %v435
    %892 = vmatprep.subr.mxu0 %v444
    %893 = vmatpush1.msra.mxu0 %v443
    %894 = vmatprep.subr.mxu0 %v452
    %895 = vmatpush1.msra.mxu0 %v451
    %896 = vmatprep.subr.mxu0 %v460
    %897 = vmatpush1.msra.mxu0 %v459
    %898 = vmatprep.subr.mxu0 %v468
    %899 = vmatpush1.msra.mxu0 %v467
    %900 = vmatprep.subr.mxu0 %v476
    %901 = vmatpush1.msra.mxu0 %v475
    %902 = vmatprep.subr.mxu0 %v484
    %903 = vmatpush1.msra.mxu0 %v483
    %904 = vmatprep.subr.mxu0 %v492
    %905 = vmatpush1.msra.mxu0 %v491
    %906 = vmatprep.subr.mxu0 %v500
    %907 = vmatpush1.msra.mxu0 %v499
    %908 = vmatprep.subr.mxu0 %v508
    %909 = vmatpush1.msra.mxu0 %v507
    %910 = vmatprep.subr.mxu0 %v516
    %911 = vmatpush1.msra.mxu0 %v515
    %912 = vmatprep.subr.mxu0 %v524
    %913 = vmatpush1.msra.mxu0 %v523
    %914 = vmatprep.subr.mxu0 %v532
    %915 = vmatpush1.msra.mxu0 %v531
    %916 = vmatprep.subr.mxu0 %v540
    %917 = vmatpush1.msra.mxu0 %v539
    %918 = vmatprep.subr.mxu0 %v548
    %919 = vmatpush1.msra.mxu0 %v547
    %920 = vmatprep.subr.mxu0 %v556
    %921 = vmatpush1.msra.mxu0 %v555
    %922 = vmatprep.subr.mxu0 %v564
    %923 = vmatpush1.msra.mxu0 %v563
    %924 = vmatprep.subr.mxu0 %v572
    %925 = vmatpush1.msra.mxu0 %v571
    %926 = vmatprep.subr.mxu0 %v580
    %927 = vmatpush1.msra.mxu0 %v579
    %928 = vmatprep.subr.mxu0 %v588
    %929 = vmatpush1.msra.mxu0 %v587
    %930 = vmatprep.subr.mxu0 %v596
    %931 = vmatpush1.msra.mxu0 %v595
    %932 = vmatprep.subr.mxu0 %v604
    %933 = vmatpush1.msra.mxu0 %v603
    %934 = vmatprep.subr.mxu0 %v612
    %935 = vmatpush1.msra.mxu0 %v611
    %936 = vmatprep.subr.mxu0 %v620
    %937 = vmatpush1.msra.mxu0 %v619
    %938 = vmatprep.subr.mxu0 %v628
    %939 = vmatpush1.msra.mxu0 %v627
    %940 = vmatprep.subr.mxu0 %v636
    %941 = vmatpush1.msra.mxu0 %v635
    %942 = vmatprep.subr.mxu0 %v644
    %943 = vmatpush1.msra.mxu0 %v643
    %944 = vmatprep.subr.mxu0 %v652
    %945 = vmatpush1.msra.mxu0 %v651
    %946 = vmatprep.subr.mxu0 %v660
    %947 = vmatpush1.msra.mxu0 %v659
    %948 = vmatprep.mubr.f32.mxu0 %v668
    %949 = vmatmul.mubr.f32.gmra.mrb[0].mxu0 %v152
    %v950 = vpop.f32.mrb[0].mxu0
    %v951 = vadd.f32 %v880, %v950
    %v952 = vpop.f32.mrb[0].mxu0
    %v953 = vadd.f32 %v882, %v952
    %954 = vdwg.mxu0
    %955 = vmatprep.subr.mxu0 %v158
    %956 = vmatpush1.msra.mxu0 %v157
    %957 = vmatprep.subr.mxu0 %v166
    %958 = vmatpush1.msra.mxu0 %v165
    %959 = vmatprep.subr.mxu0 %v174
    %960 = vmatpush1.msra.mxu0 %v173
    %961 = vmatprep.subr.mxu0 %v182
    %962 = vmatpush1.msra.mxu0 %v181
    %963 = vmatprep.subr.mxu0 %v190
    %964 = vmatpush1.msra.mxu0 %v189
    %965 = vmatprep.subr.mxu0 %v198
    %966 = vmatpush1.msra.mxu0 %v197
    %967 = vmatprep.subr.mxu0 %v206
    %968 = vmatpush1.msra.mxu0 %v205
    %969 = vmatprep.subr.mxu0 %v214
    %970 = vmatpush1.msra.mxu0 %v213
    %971 = vmatprep.subr.mxu0 %v222
    %972 = vmatpush1.msra.mxu0 %v221
    %973 = vmatprep.subr.mxu0 %v230
    %974 = vmatpush1.msra.mxu0 %v229
    %975 = vmatprep.subr.mxu0 %v238
    %976 = vmatpush1.msra.mxu0 %v237
    %977 = vmatprep.subr.mxu0 %v246
    %978 = vmatpush1.msra.mxu0 %v245
    %979 = vmatprep.subr.mxu0 %v254
    %980 = vmatpush1.msra.mxu0 %v253
    %981 = vmatprep.subr.mxu0 %v262
    %982 = vmatpush1.msra.mxu0 %v261
    %983 = vmatprep.subr.mxu0 %v270
    %984 = vmatpush1.msra.mxu0 %v269
    %985 = vmatprep.subr.mxu0 %v278
    %986 = vmatpush1.msra.mxu0 %v277
    %987 = vmatprep.subr.mxu0 %v286
    %988 = vmatpush1.msra.mxu0 %v285
    %989 = vmatprep.subr.mxu0 %v294
    %990 = vmatpush1.msra.mxu0 %v293
    %991 = vmatprep.subr.mxu0 %v302
    %992 = vmatpush1.msra.mxu0 %v301
    %993 = vmatprep.subr.mxu0 %v310
    %994 = vmatpush1.msra.mxu0 %v309
    %995 = vmatprep.subr.mxu0 %v318
    %996 = vmatpush1.msra.mxu0 %v317
    %997 = vmatprep.subr.mxu0 %v326
    %998 = vmatpush1.msra.mxu0 %v325
    %999 = vmatprep.subr.mxu0 %v334
    %1000 = vmatpush1.msra.mxu0 %v333
    %1001 = vmatprep.subr.mxu0 %v342
    %1002 = vmatpush1.msra.mxu0 %v341
    %1003 = vmatprep.subr.mxu0 %v350
    %1004 = vmatpush1.msra.mxu0 %v349
    %1005 = vmatprep.subr.mxu0 %v358
    %1006 = vmatpush1.msra.mxu0 %v357
    %1007 = vmatprep.subr.mxu0 %v366
    %1008 = vmatpush1.msra.mxu0 %v365
    %1009 = vmatprep.subr.mxu0 %v374
    %1010 = vmatpush1.msra.mxu0 %v373
    %1011 = vmatprep.subr.mxu0 %v382
    %1012 = vmatpush1.msra.mxu0 %v381
    %1013 = vmatprep.subr.mxu0 %v390
    %1014 = vmatpush1.msra.mxu0 %v389
    %1015 = vmatprep.subr.mxu0 %v398
    %1016 = vmatpush1.msra.mxu0 %v397
    %1017 = vmatprep.subr.mxu0 %v406
    %1018 = vmatpush1.msra.mxu0 %v405
    %1019 = vmatprep.mubr.f32.mxu0 %v667
    %1020 = vmatmul.mubr.f32.gmra.mrb[0].mxu0 %v151
    %v1021 = vpop.f32.mrb[0].mxu0
    %v1022 = vadd.f32 0.0, %v1021
    %v1023 = vpop.f32.mrb[0].mxu0
    %v1024 = vadd.f32 0.0, %v1023
    %1025 = vdwg.mxu0
    %1026 = vmatprep.subr.mxu0 %v414
    %1027 = vmatpush1.msra.mxu0 %v413
    %1028 = vmatprep.subr.mxu0 %v422
    %1029 = vmatpush1.msra.mxu0 %v421
    %1030 = vmatprep.subr.mxu0 %v430
    %1031 = vmatpush1.msra.mxu0 %v429
    %1032 = vmatprep.subr.mxu0 %v438
    %1033 = vmatpush1.msra.mxu0 %v437
    %1034 = vmatprep.subr.mxu0 %v446
    %1035 = vmatpush1.msra.mxu0 %v445
    %1036 = vmatprep.subr.mxu0 %v454
    %1037 = vmatpush1.msra.mxu0 %v453
    %1038 = vmatprep.subr.mxu0 %v462
    %1039 = vmatpush1.msra.mxu0 %v461
    %1040 = vmatprep.subr.mxu0 %v470
    %1041 = vmatpush1.msra.mxu0 %v469
    %1042 = vmatprep.subr.mxu0 %v478
    %1043 = vmatpush1.msra.mxu0 %v477
    %1044 = vmatprep.subr.mxu0 %v486
    %1045 = vmatpush1.msra.mxu0 %v485
    %1046 = vmatprep.subr.mxu0 %v494
    %1047 = vmatpush1.msra.mxu0 %v493
    %1048 = vmatprep.subr.mxu0 %v502
    %1049 = vmatpush1.msra.mxu0 %v501
    %1050 = vmatprep.subr.mxu0 %v510
    %1051 = vmatpush1.msra.mxu0 %v509
    %1052 = vmatprep.subr.mxu0 %v518
    %1053 = vmatpush1.msra.mxu0 %v517
    %1054 = vmatprep.subr.mxu0 %v526
    %1055 = vmatpush1.msra.mxu0 %v525
    %1056 = vmatprep.subr.mxu0 %v534
    %1057 = vmatpush1.msra.mxu0 %v533
    %1058 = vmatprep.subr.mxu0 %v542
    %1059 = vmatpush1.msra.mxu0 %v541
    %1060 = vmatprep.subr.mxu0 %v550
    %1061 = vmatpush1.msra.mxu0 %v549
    %1062 = vmatprep.subr.mxu0 %v558
    %1063 = vmatpush1.msra.mxu0 %v557
    %1064 = vmatprep.subr.mxu0 %v566
    %1065 = vmatpush1.msra.mxu0 %v565
    %1066 = vmatprep.subr.mxu0 %v574
    %1067 = vmatpush1.msra.mxu0 %v573
    %1068 = vmatprep.subr.mxu0 %v582
    %1069 = vmatpush1.msra.mxu0 %v581
    %1070 = vmatprep.subr.mxu0 %v590
    %1071 = vmatpush1.msra.mxu0 %v589
    %1072 = vmatprep.subr.mxu0 %v598
    %1073 = vmatpush1.msra.mxu0 %v597
    %1074 = vmatprep.subr.mxu0 %v606
    %1075 = vmatpush1.msra.mxu0 %v605
    %1076 = vmatprep.subr.mxu0 %v614
    %1077 = vmatpush1.msra.mxu0 %v613
    %1078 = vmatprep.subr.mxu0 %v622
    %1079 = vmatpush1.msra.mxu0 %v621
    %1080 = vmatprep.subr.mxu0 %v630
    %1081 = vmatpush1.msra.mxu0 %v629
    %1082 = vmatprep.subr.mxu0 %v638
    %1083 = vmatpush1.msra.mxu0 %v637
    %1084 = vmatprep.subr.mxu0 %v646
    %1085 = vmatpush1.msra.mxu0 %v645
    %1086 = vmatprep.subr.mxu0 %v654
    %1087 = vmatpush1.msra.mxu0 %v653
    %1088 = vmatprep.subr.mxu0 %v662
    %1089 = vmatpush1.msra.mxu0 %v661
    %1090 = vmatprep.mubr.f32.mxu0 %v668
    %1091 = vmatmul.mubr.f32.gmra.mrb[0].mxu0 %v152
    %v1092 = vpop.f32.mrb[0].mxu0
    %v1093 = vadd.f32 %v1022, %v1092
    %v1094 = vpop.f32.mrb[0].mxu0
    %v1095 = vadd.f32 %v1024, %v1094
    %1096 = vdwg.mxu0
    %1097 = vmatprep.subr.mxu0 %v160
    %1098 = vmatpush1.msra.mxu0 %v159
    %1099 = vmatprep.subr.mxu0 %v168
    %1100 = vmatpush1.msra.mxu0 %v167
    %1101 = vmatprep.subr.mxu0 %v176
    %1102 = vmatpush1.msra.mxu0 %v175
    %1103 = vmatprep.subr.mxu0 %v184
    %1104 = vmatpush1.msra.mxu0 %v183
    %1105 = vmatprep.subr.mxu0 %v192
    %1106 = vmatpush1.msra.mxu0 %v191
    %1107 = vmatprep.subr.mxu0 %v200
    %1108 = vmatpush1.msra.mxu0 %v199
    %1109 = vmatprep.subr.mxu0 %v208
    %1110 = vmatpush1.msra.mxu0 %v207
    %1111 = vmatprep.subr.mxu0 %v216
    %1112 = vmatpush1.msra.mxu0 %v215
    %1113 = vmatprep.subr.mxu0 %v224
    %1114 = vmatpush1.msra.mxu0 %v223
    %1115 = vmatprep.subr.mxu0 %v232
    %1116 = vmatpush1.msra.mxu0 %v231
    %1117 = vmatprep.subr.mxu0 %v240
    %1118 = vmatpush1.msra.mxu0 %v239
    %1119 = vmatprep.subr.mxu0 %v248
    %1120 = vmatpush1.msra.mxu0 %v247
    %1121 = vmatprep.subr.mxu0 %v256
    %1122 = vmatpush1.msra.mxu0 %v255
    %1123 = vmatprep.subr.mxu0 %v264
    %1124 = vmatpush1.msra.mxu0 %v263
    %1125 = vmatprep.subr.mxu0 %v272
    %1126 = vmatpush1.msra.mxu0 %v271
    %1127 = vmatprep.subr.mxu0 %v280
    %1128 = vmatpush1.msra.mxu0 %v279
    %1129 = vmatprep.subr.mxu0 %v288
    %1130 = vmatpush1.msra.mxu0 %v287
    %1131 = vmatprep.subr.mxu0 %v296
    %1132 = vmatpush1.msra.mxu0 %v295
    %1133 = vmatprep.subr.mxu0 %v304
    %1134 = vmatpush1.msra.mxu0 %v303
    %1135 = vmatprep.subr.mxu0 %v312
    %1136 = vmatpush1.msra.mxu0 %v311
    %1137 = vmatprep.subr.mxu0 %v320
    %1138 = vmatpush1.msra.mxu0 %v319
    %1139 = vmatprep.subr.mxu0 %v328
    %1140 = vmatpush1.msra.mxu0 %v327
    %1141 = vmatprep.subr.mxu0 %v336
    %1142 = vmatpush1.msra.mxu0 %v335
    %1143 = vmatprep.subr.mxu0 %v344
    %1144 = vmatpush1.msra.mxu0 %v343
    %1145 = vmatprep.subr.mxu0 %v352
    %1146 = vmatpush1.msra.mxu0 %v351
    %1147 = vmatprep.subr.mxu0 %v360
    %1148 = vmatpush1.msra.mxu0 %v359
    %1149 = vmatprep.subr.mxu0 %v368
    %1150 = vmatpush1.msra.mxu0 %v367
    %1151 = vmatprep.subr.mxu0 %v376
    %1152 = vmatpush1.msra.mxu0 %v375
    %1153 = vmatprep.subr.mxu0 %v384
    %1154 = vmatpush1.msra.mxu0 %v383
    %1155 = vmatprep.subr.mxu0 %v392
    %1156 = vmatpush1.msra.mxu0 %v391
    %1157 = vmatprep.subr.mxu0 %v400
    %1158 = vmatpush1.msra.mxu0 %v399
    %1159 = vmatprep.subr.mxu0 %v408
    %1160 = vmatpush1.msra.mxu0 %v407
    %1161 = vmatprep.mubr.f32.mxu0 %v667
    %1162 = vmatmul.mubr.f32.gmra.mrb[0].mxu0 %v151
    %v1163 = vpop.f32.mrb[0].mxu0
    %v1164 = vadd.f32 0.0, %v1163
    %v1165 = vpop.f32.mrb[0].mxu0
    %v1166 = vadd.f32 0.0, %v1165
    %1167 = vdwg.mxu0
    %1168 = vmatprep.subr.mxu0 %v416
    %1169 = vmatpush1.msra.mxu0 %v415
    %1170 = vmatprep.subr.mxu0 %v424
    %1171 = vmatpush1.msra.mxu0 %v423
    %1172 = vmatprep.subr.mxu0 %v432
    %1173 = vmatpush1.msra.mxu0 %v431
    %1174 = vmatprep.subr.mxu0 %v440
    %1175 = vmatpush1.msra.mxu0 %v439
    %1176 = vmatprep.subr.mxu0 %v448
    %1177 = vmatpush1.msra.mxu0 %v447
    %1178 = vmatprep.subr.mxu0 %v456
    %1179 = vmatpush1.msra.mxu0 %v455
    %1180 = vmatprep.subr.mxu0 %v464
    %1181 = vmatpush1.msra.mxu0 %v463
    %1182 = vmatprep.subr.mxu0 %v472
    %1183 = vmatpush1.msra.mxu0 %v471
    %1184 = vmatprep.subr.mxu0 %v480
    %1185 = vmatpush1.msra.mxu0 %v479
    %1186 = vmatprep.subr.mxu0 %v488
    %1187 = vmatpush1.msra.mxu0 %v487
    %1188 = vmatprep.subr.mxu0 %v496
    %1189 = vmatpush1.msra.mxu0 %v495
    %1190 = vmatprep.subr.mxu0 %v504
    %1191 = vmatpush1.msra.mxu0 %v503
    %1192 = vmatprep.subr.mxu0 %v512
    %1193 = vmatpush1.msra.mxu0 %v511
    %1194 = vmatprep.subr.mxu0 %v520
    %1195 = vmatpush1.msra.mxu0 %v519
    %1196 = vmatprep.subr.mxu0 %v528
    %1197 = vmatpush1.msra.mxu0 %v527
    %1198 = vmatprep.subr.mxu0 %v536
    %1199 = vmatpush1.msra.mxu0 %v535
    %1200 = vmatprep.subr.mxu0 %v544
    %1201 = vmatpush1.msra.mxu0 %v543
    %1202 = vmatprep.subr.mxu0 %v552
    %1203 = vmatpush1.msra.mxu0 %v551
    %1204 = vmatprep.subr.mxu0 %v560
    %1205 = vmatpush1.msra.mxu0 %v559
    %1206 = vmatprep.subr.mxu0 %v568
    %1207 = vmatpush1.msra.mxu0 %v567
    %1208 = vmatprep.subr.mxu0 %v576
    %1209 = vmatpush1.msra.mxu0 %v575
    %1210 = vmatprep.subr.mxu0 %v584
    %1211 = vmatpush1.msra.mxu0 %v583
    %1212 = vmatprep.subr.mxu0 %v592
    %1213 = vmatpush1.msra.mxu0 %v591
    %1214 = vmatprep.subr.mxu0 %v600
    %1215 = vmatpush1.msra.mxu0 %v599
    %1216 = vmatprep.subr.mxu0 %v608
    %1217 = vmatpush1.msra.mxu0 %v607
    %1218 = vmatprep.subr.mxu0 %v616
    %1219 = vmatpush1.msra.mxu0 %v615
    %1220 = vmatprep.subr.mxu0 %v624
    %1221 = vmatpush1.msra.mxu0 %v623
    %1222 = vmatprep.subr.mxu0 %v632
    %1223 = vmatpush1.msra.mxu0 %v631
    %1224 = vmatprep.subr.mxu0 %v640
    %1225 = vmatpush1.msra.mxu0 %v639
    %1226 = vmatprep.subr.mxu0 %v648
    %1227 = vmatpush1.msra.mxu0 %v647
    %1228 = vmatprep.subr.mxu0 %v656
    %1229 = vmatpush1.msra.mxu0 %v655
    %1230 = vmatprep.subr.mxu0 %v664
    %1231 = vmatpush1.msra.mxu0 %v663
    %1232 = vmatprep.mubr.f32.mxu0 %v668
    %1233 = vmatmul.mubr.f32.gmra.mrb[0].mxu0 %v152
    %v1234 = vpop.f32.mrb[0].mxu0
    %v1235 = vadd.f32 %v1164, %v1234
    %v1236 = vpop.f32.mrb[0].mxu0
    %v1237 = vadd.f32 %v1166, %v1236
    %1238 = vdwg.mxu0
    %v1239 = vld [vmem:[%s3] sm:$0xff]
    %v1240 = vld [vmem:[%s3 + $0x8] sm:$0xff]
    %v1241 = vld [vmem:[%s4] sm:$0xff]
    %v1242 = vld [vmem:[%s4 + $0x8] sm:$0xff]
    %v1245 = vcombine.high %v1239, %v1239
    %v1246 = vcombine.high %v1240, %v1240
    %v1249 = vmul.f32 %v809, %v1239
    %v1250 = vmul.f32 %v811, %v1245
    %v1251 = vmul.f32 %v951, %v1240
    %v1252 = vmul.f32 %v953, %v1246
    %v1255 = vcombine.high %v1241, %v1241
    %v1256 = vcombine.high %v1242, %v1242
    %v1259 = vmul.f32 %v1093, %v1241
    %v1260 = vmul.f32 %v1095, %v1255
    %v1261 = vmul.f32 %v1235, %v1242
    %v1262 = vmul.f32 %v1237, %v1256
    %v1263 = vsub.f32 %v1249, %v1259
    %v1264 = vsub.f32 %v1250, %v1260
    %v1265 = vsub.f32 %v1251, %v1261
    %v1266 = vsub.f32 %v1252, %v1262
    %v1267 = vmul.f32 %v809, %v1241
    %v1268 = vmul.f32 %v811, %v1255
    %v1269 = vmul.f32 %v951, %v1242
    %v1270 = vmul.f32 %v953, %v1256
    %v1271 = vmul.f32 %v1093, %v1239
    %v1272 = vmul.f32 %v1095, %v1245
    %v1273 = vmul.f32 %v1235, %v1240
    %v1274 = vmul.f32 %v1237, %v1246
    %v1275 = vadd.f32 %v1267, %v1271
    %v1276 = vadd.f32 %v1268, %v1272
    %v1277 = vadd.f32 %v1269, %v1273
    %v1278 = vadd.f32 %v1270, %v1274
    %v1279 = vld [vmem:[#allocation4] sm:$0xff]
    %v1280 = vld [vmem:[#allocation4 + $0x8] sm:$0xff]
    %v1281 = vld [vmem:[#allocation4 + $0x10] sm:$0xff]
    %v1282 = vld [vmem:[#allocation4 + $0x18] sm:$0xff]
    %v1283 = vld [vmem:[#allocation4 + $0x20] sm:$0xff]
    %v1284 = vld [vmem:[#allocation4 + $0x28] sm:$0xff]
    %v1285 = vld [vmem:[#allocation4 + $0x30] sm:$0xff]
    %v1286 = vld [vmem:[#allocation4 + $0x38] sm:$0xff]
    %v1287 = vld [vmem:[#allocation4 + $0x40] sm:$0xff]
    %v1288 = vld [vmem:[#allocation4 + $0x48] sm:$0xff]
    %v1289 = vld [vmem:[#allocation4 + $0x50] sm:$0xff]
    %v1290 = vld [vmem:[#allocation4 + $0x58] sm:$0xff]
    %v1291 = vld [vmem:[#allocation4 + $0x60] sm:$0xff]
    %v1292 = vld [vmem:[#allocation4 + $0x68] sm:$0xff]
    %v1293 = vld [vmem:[#allocation4 + $0x70] sm:$0xff]
    %v1294 = vld [vmem:[#allocation4 + $0x78] sm:$0xff]
    %v1295 = vld [vmem:[#allocation4 + $0x80] sm:$0xff]
    %v1296 = vld [vmem:[#allocation4 + $0x88] sm:$0xff]
    %v1297 = vld [vmem:[#allocation4 + $0x90] sm:$0xff]
    %v1298 = vld [vmem:[#allocation4 + $0x98] sm:$0xff]
    %v1299 = vld [vmem:[#allocation4 + $0xa0] sm:$0xff]
    %v1300 = vld [vmem:[#allocation4 + $0xa8] sm:$0xff]
    %v1301 = vld [vmem:[#allocation4 + $0xb0] sm:$0xff]
    %v1302 = vld [vmem:[#allocation4 + $0xb8] sm:$0xff]
    %v1303 = vld [vmem:[#allocation4 + $0xc0] sm:$0xff]
    %v1304 = vld [vmem:[#allocation4 + $0xc8] sm:$0xff]
    %v1305 = vld [vmem:[#allocation4 + $0xd0] sm:$0xff]
    %v1306 = vld [vmem:[#allocation4 + $0xd8] sm:$0xff]
    %v1307 = vld [vmem:[#allocation4 + $0xe0] sm:$0xff]
    %v1308 = vld [vmem:[#allocation4 + $0xe8] sm:$0xff]
    %v1309 = vld [vmem:[#allocation4 + $0xf0] sm:$0xff]
    %v1310 = vld [vmem:[#allocation4 + $0xf8] sm:$0xff]
    %v1311 = vld [vmem:[#allocation4 + $0x100] sm:$0xff]
    %v1312 = vld [vmem:[#allocation4 + $0x108] sm:$0xff]
    %v1313 = vld [vmem:[#allocation4 + $0x110] sm:$0xff]
    %v1314 = vld [vmem:[#allocation4 + $0x118] sm:$0xff]
    %v1315 = vld [vmem:[#allocation4 + $0x120] sm:$0xff]
    %v1316 = vld [vmem:[#allocation4 + $0x128] sm:$0xff]
    %v1317 = vld [vmem:[#allocation4 + $0x130] sm:$0xff]
    %v1318 = vld [vmem:[#allocation4 + $0x138] sm:$0xff]
    %v1319 = vld [vmem:[#allocation4 + $0x140] sm:$0xff]
    %v1320 = vld [vmem:[#allocation4 + $0x148] sm:$0xff]
    %v1321 = vld [vmem:[#allocation4 + $0x150] sm:$0xff]
    %v1322 = vld [vmem:[#allocation4 + $0x158] sm:$0xff]
    %v1323 = vld [vmem:[#allocation4 + $0x160] sm:$0xff]
    %v1324 = vld [vmem:[#allocation4 + $0x168] sm:$0xff]
    %v1325 = vld [vmem:[#allocation4 + $0x170] sm:$0xff]
    %v1326 = vld [vmem:[#allocation4 + $0x178] sm:$0xff]
    %v1327 = vld [vmem:[#allocation4 + $0x180] sm:$0xff]
    %v1328 = vld [vmem:[#allocation4 + $0x188] sm:$0xff]
    %v1329 = vld [vmem:[#allocation4 + $0x190] sm:$0xff]
    %v1330 = vld [vmem:[#allocation4 + $0x198] sm:$0xff]
    %v1331 = vld [vmem:[#allocation4 + $0x1a0] sm:$0xff]
    %v1332 = vld [vmem:[#allocation4 + $0x1a8] sm:$0xff]
    %v1333 = vld [vmem:[#allocation4 + $0x1b0] sm:$0xff]
    %v1334 = vld [vmem:[#allocation4 + $0x1b8] sm:$0xff]
    %v1335 = vld [vmem:[#allocation4 + $0x1c0] sm:$0xff]
    %v1336 = vld [vmem:[#allocation4 + $0x1c8] sm:$0xff]
    %v1337 = vld [vmem:[#allocation4 + $0x1d0] sm:$0xff]
    %v1338 = vld [vmem:[#allocation4 + $0x1d8] sm:$0xff]
    %v1339 = vld [vmem:[#allocation4 + $0x1e0] sm:$0xff]
    %v1340 = vld [vmem:[#allocation4 + $0x1e8] sm:$0xff]
    %v1341 = vld [vmem:[#allocation4 + $0x1f0] sm:$0xff]
    %v1342 = vld [vmem:[#allocation4 + $0x1f8] sm:$0xff]
    %v1343 = vld [vmem:[#allocation4 + $0x200] sm:$0xff]
    %v1344 = vld [vmem:[#allocation4 + $0x208] sm:$0xff]
    %v1345 = vld [vmem:[#allocation4 + $0x210] sm:$0xff]
    %v1346 = vld [vmem:[#allocation4 + $0x218] sm:$0xff]
    %v1347 = vld [vmem:[#allocation4 + $0x220] sm:$0xff]
    %v1348 = vld [vmem:[#allocation4 + $0x228] sm:$0xff]
    %v1349 = vld [vmem:[#allocation4 + $0x230] sm:$0xff]
    %v1350 = vld [vmem:[#allocation4 + $0x238] sm:$0xff]
    %v1351 = vld [vmem:[#allocation4 + $0x240] sm:$0xff]
    %v1352 = vld [vmem:[#allocation4 + $0x248] sm:$0xff]
    %v1353 = vld [vmem:[#allocation4 + $0x250] sm:$0xff]
    %v1354 = vld [vmem:[#allocation4 + $0x258] sm:$0xff]
    %v1355 = vld [vmem:[#allocation4 + $0x260] sm:$0xff]
    %v1356 = vld [vmem:[#allocation4 + $0x268] sm:$0xff]
    %v1357 = vld [vmem:[#allocation4 + $0x270] sm:$0xff]
    %v1358 = vld [vmem:[#allocation4 + $0x278] sm:$0xff]
    %v1359 = vld [vmem:[#allocation4 + $0x280] sm:$0xff]
    %v1360 = vld [vmem:[#allocation4 + $0x288] sm:$0xff]
    %v1361 = vld [vmem:[#allocation4 + $0x290] sm:$0xff]
    %v1362 = vld [vmem:[#allocation4 + $0x298] sm:$0xff]
    %v1363 = vld [vmem:[#allocation4 + $0x2a0] sm:$0xff]
    %v1364 = vld [vmem:[#allocation4 + $0x2a8] sm:$0xff]
    %v1365 = vld [vmem:[#allocation4 + $0x2b0] sm:$0xff]
    %v1366 = vld [vmem:[#allocation4 + $0x2b8] sm:$0xff]
    %v1367 = vld [vmem:[#allocation4 + $0x2c0] sm:$0xff]
    %v1368 = vld [vmem:[#allocation4 + $0x2c8] sm:$0xff]
    %v1369 = vld [vmem:[#allocation4 + $0x2d0] sm:$0xff]
    %v1370 = vld [vmem:[#allocation4 + $0x2d8] sm:$0xff]
    %v1371 = vld [vmem:[#allocation4 + $0x2e0] sm:$0xff]
    %v1372 = vld [vmem:[#allocation4 + $0x2e8] sm:$0xff]
    %v1373 = vld [vmem:[#allocation4 + $0x2f0] sm:$0xff]
    %v1374 = vld [vmem:[#allocation4 + $0x2f8] sm:$0xff]
    %v1375 = vld [vmem:[#allocation4 + $0x300] sm:$0xff]
    %v1376 = vld [vmem:[#allocation4 + $0x308] sm:$0xff]
    %v1377 = vld [vmem:[#allocation4 + $0x310] sm:$0xff]
    %v1378 = vld [vmem:[#allocation4 + $0x318] sm:$0xff]
    %v1379 = vld [vmem:[#allocation4 + $0x320] sm:$0xff]
    %v1380 = vld [vmem:[#allocation4 + $0x328] sm:$0xff]
    %v1381 = vld [vmem:[#allocation4 + $0x330] sm:$0xff]
    %v1382 = vld [vmem:[#allocation4 + $0x338] sm:$0xff]
    %v1383 = vld [vmem:[#allocation4 + $0x340] sm:$0xff]
    %v1384 = vld [vmem:[#allocation4 + $0x348] sm:$0xff]
    %v1385 = vld [vmem:[#allocation4 + $0x350] sm:$0xff]
    %v1386 = vld [vmem:[#allocation4 + $0x358] sm:$0xff]
    %v1387 = vld [vmem:[#allocation4 + $0x360] sm:$0xff]
    %v1388 = vld [vmem:[#allocation4 + $0x368] sm:$0xff]
    %v1389 = vld [vmem:[#allocation4 + $0x370] sm:$0xff]
    %v1390 = vld [vmem:[#allocation4 + $0x378] sm:$0xff]
    %v1391 = vld [vmem:[#allocation4 + $0x380] sm:$0xff]
    %v1392 = vld [vmem:[#allocation4 + $0x388] sm:$0xff]
    %v1393 = vld [vmem:[#allocation4 + $0x390] sm:$0xff]
    %v1394 = vld [vmem:[#allocation4 + $0x398] sm:$0xff]
    %v1395 = vld [vmem:[#allocation4 + $0x3a0] sm:$0xff]
    %v1396 = vld [vmem:[#allocation4 + $0x3a8] sm:$0xff]
    %v1397 = vld [vmem:[#allocation4 + $0x3b0] sm:$0xff]
    %v1398 = vld [vmem:[#allocation4 + $0x3b8] sm:$0xff]
    %v1399 = vld [vmem:[#allocation4 + $0x3c0] sm:$0xff]
    %v1400 = vld [vmem:[#allocation4 + $0x3c8] sm:$0xff]
    %v1401 = vld [vmem:[#allocation4 + $0x3d0] sm:$0xff]
    %v1402 = vld [vmem:[#allocation4 + $0x3d8] sm:$0xff]
    %v1403 = vld [vmem:[#allocation4 + $0x3e0] sm:$0xff]
    %v1404 = vld [vmem:[#allocation4 + $0x3e8] sm:$0xff]
    %v1405 = vld [vmem:[#allocation4 + $0x3f0] sm:$0xff]
    %v1406 = vld [vmem:[#allocation4 + $0x3f8] sm:$0xff]
    %v1407 = vld [vmem:[#allocation4 + $0x400] sm:$0xff]
    %v1408 = vld [vmem:[#allocation4 + $0x408] sm:$0xff]
    %v1409 = vld [vmem:[#allocation4 + $0x410] sm:$0xff]
    %v1410 = vld [vmem:[#allocation4 + $0x418] sm:$0xff]
    %v1411 = vld [vmem:[#allocation4 + $0x420] sm:$0xff]
    %v1412 = vld [vmem:[#allocation4 + $0x428] sm:$0xff]
    %v1413 = vld [vmem:[#allocation4 + $0x430] sm:$0xff]
    %v1414 = vld [vmem:[#allocation4 + $0x438] sm:$0xff]
    %v1415 = vld [vmem:[#allocation4 + $0x440] sm:$0xff]
    %v1416 = vld [vmem:[#allocation4 + $0x448] sm:$0xff]
    %v1417 = vld [vmem:[#allocation4 + $0x450] sm:$0xff]
    %v1418 = vld [vmem:[#allocation4 + $0x458] sm:$0xff]
    %v1419 = vld [vmem:[#allocation4 + $0x460] sm:$0xff]
    %v1420 = vld [vmem:[#allocation4 + $0x468] sm:$0xff]
    %v1421 = vld [vmem:[#allocation4 + $0x470] sm:$0xff]
    %v1422 = vld [vmem:[#allocation4 + $0x478] sm:$0xff]
    %v1423 = vld [vmem:[#allocation4 + $0x480] sm:$0xff]
    %v1424 = vld [vmem:[#allocation4 + $0x488] sm:$0xff]
    %v1425 = vld [vmem:[#allocation4 + $0x490] sm:$0xff]
    %v1426 = vld [vmem:[#allocation4 + $0x498] sm:$0xff]
    %v1427 = vld [vmem:[#allocation4 + $0x4a0] sm:$0xff]
    %v1428 = vld [vmem:[#allocation4 + $0x4a8] sm:$0xff]
    %v1429 = vld [vmem:[#allocation4 + $0x4b0] sm:$0xff]
    %v1430 = vld [vmem:[#allocation4 + $0x4b8] sm:$0xff]
    %v1431 = vld [vmem:[#allocation4 + $0x4c0] sm:$0xff]
    %v1432 = vld [vmem:[#allocation4 + $0x4c8] sm:$0xff]
    %v1433 = vld [vmem:[#allocation4 + $0x4d0] sm:$0xff]
    %v1434 = vld [vmem:[#allocation4 + $0x4d8] sm:$0xff]
    %v1435 = vld [vmem:[#allocation4 + $0x4e0] sm:$0xff]
    %v1436 = vld [vmem:[#allocation4 + $0x4e8] sm:$0xff]
    %v1437 = vld [vmem:[#allocation4 + $0x4f0] sm:$0xff]
    %v1438 = vld [vmem:[#allocation4 + $0x4f8] sm:$0xff]
    %v1439 = vld [vmem:[#allocation4 + $0x500] sm:$0xff]
    %v1440 = vld [vmem:[#allocation4 + $0x508] sm:$0xff]
    %v1441 = vld [vmem:[#allocation4 + $0x510] sm:$0xff]
    %v1442 = vld [vmem:[#allocation4 + $0x518] sm:$0xff]
    %v1443 = vld [vmem:[#allocation4 + $0x520] sm:$0xff]
    %v1444 = vld [vmem:[#allocation4 + $0x528] sm:$0xff]
    %v1445 = vld [vmem:[#allocation4 + $0x530] sm:$0xff]
    %v1446 = vld [vmem:[#allocation4 + $0x538] sm:$0xff]
    %v1447 = vld [vmem:[#allocation4 + $0x540] sm:$0xff]
    %v1448 = vld [vmem:[#allocation4 + $0x548] sm:$0xff]
    %v1449 = vld [vmem:[#allocation4 + $0x550] sm:$0xff]
    %v1450 = vld [vmem:[#allocation4 + $0x558] sm:$0xff]
    %v1451 = vld [vmem:[#allocation4 + $0x560] sm:$0xff]
    %v1452 = vld [vmem:[#allocation4 + $0x568] sm:$0xff]
    %v1453 = vld [vmem:[#allocation4 + $0x570] sm:$0xff]
    %v1454 = vld [vmem:[#allocation4 + $0x578] sm:$0xff]
    %v1455 = vld [vmem:[#allocation4 + $0x580] sm:$0xff]
    %v1456 = vld [vmem:[#allocation4 + $0x588] sm:$0xff]
    %v1457 = vld [vmem:[#allocation4 + $0x590] sm:$0xff]
    %v1458 = vld [vmem:[#allocation4 + $0x598] sm:$0xff]
    %v1459 = vld [vmem:[#allocation4 + $0x5a0] sm:$0xff]
    %v1460 = vld [vmem:[#allocation4 + $0x5a8] sm:$0xff]
    %v1461 = vld [vmem:[#allocation4 + $0x5b0] sm:$0xff]
    %v1462 = vld [vmem:[#allocation4 + $0x5b8] sm:$0xff]
    %v1463 = vld [vmem:[#allocation4 + $0x5c0] sm:$0xff]
    %v1464 = vld [vmem:[#allocation4 + $0x5c8] sm:$0xff]
    %v1465 = vld [vmem:[#allocation4 + $0x5d0] sm:$0xff]
    %v1466 = vld [vmem:[#allocation4 + $0x5d8] sm:$0xff]
    %v1467 = vld [vmem:[#allocation4 + $0x5e0] sm:$0xff]
    %v1468 = vld [vmem:[#allocation4 + $0x5e8] sm:$0xff]
    %v1469 = vld [vmem:[#allocation4 + $0x5f0] sm:$0xff]
    %v1470 = vld [vmem:[#allocation4 + $0x5f8] sm:$0xff]
    %v1471 = vld [vmem:[#allocation4 + $0x600] sm:$0xff]
    %v1472 = vld [vmem:[#allocation4 + $0x608] sm:$0xff]
    %v1473 = vld [vmem:[#allocation4 + $0x610] sm:$0xff]
    %v1474 = vld [vmem:[#allocation4 + $0x618] sm:$0xff]
    %v1475 = vld [vmem:[#allocation4 + $0x620] sm:$0xff]
    %v1476 = vld [vmem:[#allocation4 + $0x628] sm:$0xff]
    %v1477 = vld [vmem:[#allocation4 + $0x630] sm:$0xff]
    %v1478 = vld [vmem:[#allocation4 + $0x638] sm:$0xff]
    %v1479 = vld [vmem:[#allocation4 + $0x640] sm:$0xff]
    %v1480 = vld [vmem:[#allocation4 + $0x648] sm:$0xff]
    %v1481 = vld [vmem:[#allocation4 + $0x650] sm:$0xff]
    %v1482 = vld [vmem:[#allocation4 + $0x658] sm:$0xff]
    %v1483 = vld [vmem:[#allocation4 + $0x660] sm:$0xff]
    %v1484 = vld [vmem:[#allocation4 + $0x668] sm:$0xff]
    %v1485 = vld [vmem:[#allocation4 + $0x670] sm:$0xff]
    %v1486 = vld [vmem:[#allocation4 + $0x678] sm:$0xff]
    %v1487 = vld [vmem:[#allocation4 + $0x680] sm:$0xff]
    %v1488 = vld [vmem:[#allocation4 + $0x688] sm:$0xff]
    %v1489 = vld [vmem:[#allocation4 + $0x690] sm:$0xff]
    %v1490 = vld [vmem:[#allocation4 + $0x698] sm:$0xff]
    %v1491 = vld [vmem:[#allocation4 + $0x6a0] sm:$0xff]
    %v1492 = vld [vmem:[#allocation4 + $0x6a8] sm:$0xff]
    %v1493 = vld [vmem:[#allocation4 + $0x6b0] sm:$0xff]
    %v1494 = vld [vmem:[#allocation4 + $0x6b8] sm:$0xff]
    %v1495 = vld [vmem:[#allocation4 + $0x6c0] sm:$0xff]
    %v1496 = vld [vmem:[#allocation4 + $0x6c8] sm:$0xff]
    %v1497 = vld [vmem:[#allocation4 + $0x6d0] sm:$0xff]
    %v1498 = vld [vmem:[#allocation4 + $0x6d8] sm:$0xff]
    %v1499 = vld [vmem:[#allocation4 + $0x6e0] sm:$0xff]
    %v1500 = vld [vmem:[#allocation4 + $0x6e8] sm:$0xff]
    %v1501 = vld [vmem:[#allocation4 + $0x6f0] sm:$0xff]
    %v1502 = vld [vmem:[#allocation4 + $0x6f8] sm:$0xff]
    %v1503 = vld [vmem:[#allocation4 + $0x700] sm:$0xff]
    %v1504 = vld [vmem:[#allocation4 + $0x708] sm:$0xff]
    %v1505 = vld [vmem:[#allocation4 + $0x710] sm:$0xff]
    %v1506 = vld [vmem:[#allocation4 + $0x718] sm:$0xff]
    %v1507 = vld [vmem:[#allocation4 + $0x720] sm:$0xff]
    %v1508 = vld [vmem:[#allocation4 + $0x728] sm:$0xff]
    %v1509 = vld [vmem:[#allocation4 + $0x730] sm:$0xff]
    %v1510 = vld [vmem:[#allocation4 + $0x738] sm:$0xff]
    %v1511 = vld [vmem:[#allocation4 + $0x740] sm:$0xff]
    %v1512 = vld [vmem:[#allocation4 + $0x748] sm:$0xff]
    %v1513 = vld [vmem:[#allocation4 + $0x750] sm:$0xff]
    %v1514 = vld [vmem:[#allocation4 + $0x758] sm:$0xff]
    %v1515 = vld [vmem:[#allocation4 + $0x760] sm:$0xff]
    %v1516 = vld [vmem:[#allocation4 + $0x768] sm:$0xff]
    %v1517 = vld [vmem:[#allocation4 + $0x770] sm:$0xff]
    %v1518 = vld [vmem:[#allocation4 + $0x778] sm:$0xff]
    %v1519 = vld [vmem:[#allocation4 + $0x780] sm:$0xff]
    %v1520 = vld [vmem:[#allocation4 + $0x788] sm:$0xff]
    %v1521 = vld [vmem:[#allocation4 + $0x790] sm:$0xff]
    %v1522 = vld [vmem:[#allocation4 + $0x798] sm:$0xff]
    %v1523 = vld [vmem:[#allocation4 + $0x7a0] sm:$0xff]
    %v1524 = vld [vmem:[#allocation4 + $0x7a8] sm:$0xff]
    %v1525 = vld [vmem:[#allocation4 + $0x7b0] sm:$0xff]
    %v1526 = vld [vmem:[#allocation4 + $0x7b8] sm:$0xff]
    %v1527 = vld [vmem:[#allocation4 + $0x7c0] sm:$0xff]
    %v1528 = vld [vmem:[#allocation4 + $0x7c8] sm:$0xff]
    %v1529 = vld [vmem:[#allocation4 + $0x7d0] sm:$0xff]
    %v1530 = vld [vmem:[#allocation4 + $0x7d8] sm:$0xff]
    %v1531 = vld [vmem:[#allocation4 + $0x7e0] sm:$0xff]
    %v1532 = vld [vmem:[#allocation4 + $0x7e8] sm:$0xff]
    %v1533 = vld [vmem:[#allocation4 + $0x7f0] sm:$0xff]
    %v1534 = vld [vmem:[#allocation4 + $0x7f8] sm:$0xff]
    %v1535 = vld [vmem:[#allocation4 + $0x800] sm:$0xff]
    %v1536 = vld [vmem:[#allocation4 + $0x808] sm:$0xff]
    %v1537 = vld [vmem:[#allocation4 + $0x810] sm:$0xff]
    %v1538 = vld [vmem:[#allocation4 + $0x818] sm:$0xff]
    %v1539 = vld [vmem:[#allocation4 + $0x820] sm:$0xff]
    %v1540 = vld [vmem:[#allocation4 + $0x828] sm:$0xff]
    %v1541 = vld [vmem:[#allocation4 + $0x830] sm:$0xff]
    %v1542 = vld [vmem:[#allocation4 + $0x838] sm:$0xff]
    %v1543 = vld [vmem:[#allocation4 + $0x840] sm:$0xff]
    %v1544 = vld [vmem:[#allocation4 + $0x848] sm:$0xff]
    %v1545 = vld [vmem:[#allocation4 + $0x850] sm:$0xff]
    %v1546 = vld [vmem:[#allocation4 + $0x858] sm:$0xff]
    %v1547 = vld [vmem:[#allocation4 + $0x860] sm:$0xff]
    %v1548 = vld [vmem:[#allocation4 + $0x868] sm:$0xff]
    %v1549 = vld [vmem:[#allocation4 + $0x870] sm:$0xff]
    %v1550 = vld [vmem:[#allocation4 + $0x878] sm:$0xff]
    %v1551 = vld [vmem:[#allocation4 + $0x880] sm:$0xff]
    %v1552 = vld [vmem:[#allocation4 + $0x888] sm:$0xff]
    %v1553 = vld [vmem:[#allocation4 + $0x890] sm:$0xff]
    %v1554 = vld [vmem:[#allocation4 + $0x898] sm:$0xff]
    %v1555 = vld [vmem:[#allocation4 + $0x8a0] sm:$0xff]
    %v1556 = vld [vmem:[#allocation4 + $0x8a8] sm:$0xff]
    %v1557 = vld [vmem:[#allocation4 + $0x8b0] sm:$0xff]
    %v1558 = vld [vmem:[#allocation4 + $0x8b8] sm:$0xff]
    %v1559 = vld [vmem:[#allocation4 + $0x8c0] sm:$0xff]
    %v1560 = vld [vmem:[#allocation4 + $0x8c8] sm:$0xff]
    %v1561 = vld [vmem:[#allocation4 + $0x8d0] sm:$0xff]
    %v1562 = vld [vmem:[#allocation4 + $0x8d8] sm:$0xff]
    %v1563 = vld [vmem:[#allocation4 + $0x8e0] sm:$0xff]
    %v1564 = vld [vmem:[#allocation4 + $0x8e8] sm:$0xff]
    %v1565 = vld [vmem:[#allocation4 + $0x8f0] sm:$0xff]
    %v1566 = vld [vmem:[#allocation4 + $0x8f8] sm:$0xff]
    %v1567 = vld [vmem:[#allocation4 + $0x900] sm:$0xff]
    %v1568 = vld [vmem:[#allocation4 + $0x908] sm:$0xff]
    %v1569 = vld [vmem:[#allocation4 + $0x910] sm:$0xff]
    %v1570 = vld [vmem:[#allocation4 + $0x918] sm:$0xff]
    %v1571 = vld [vmem:[#allocation4 + $0x920] sm:$0xff]
    %v1572 = vld [vmem:[#allocation4 + $0x928] sm:$0xff]
    %v1573 = vld [vmem:[#allocation4 + $0x930] sm:$0xff]
    %v1574 = vld [vmem:[#allocation4 + $0x938] sm:$0xff]
    %v1575 = vld [vmem:[#allocation4 + $0x940] sm:$0xff]
    %v1576 = vld [vmem:[#allocation4 + $0x948] sm:$0xff]
    %v1577 = vld [vmem:[#allocation4 + $0x950] sm:$0xff]
    %v1578 = vld [vmem:[#allocation4 + $0x958] sm:$0xff]
    %v1579 = vld [vmem:[#allocation4 + $0x960] sm:$0xff]
    %v1580 = vld [vmem:[#allocation4 + $0x968] sm:$0xff]
    %v1581 = vld [vmem:[#allocation4 + $0x970] sm:$0xff]
    %v1582 = vld [vmem:[#allocation4 + $0x978] sm:$0xff]
    %v1583 = vld [vmem:[#allocation4 + $0x980] sm:$0xff]
    %v1584 = vld [vmem:[#allocation4 + $0x988] sm:$0xff]
    %v1585 = vld [vmem:[#allocation4 + $0x990] sm:$0xff]
    %v1586 = vld [vmem:[#allocation4 + $0x998] sm:$0xff]
    %v1587 = vld [vmem:[#allocation4 + $0x9a0] sm:$0xff]
    %v1588 = vld [vmem:[#allocation4 + $0x9a8] sm:$0xff]
    %v1589 = vld [vmem:[#allocation4 + $0x9b0] sm:$0xff]
    %v1590 = vld [vmem:[#allocation4 + $0x9b8] sm:$0xff]
    %v1591 = vld [vmem:[#allocation4 + $0x9c0] sm:$0xff]
    %v1592 = vld [vmem:[#allocation4 + $0x9c8] sm:$0xff]
    %v1593 = vld [vmem:[#allocation4 + $0x9d0] sm:$0xff]
    %v1594 = vld [vmem:[#allocation4 + $0x9d8] sm:$0xff]
    %v1595 = vld [vmem:[#allocation4 + $0x9e0] sm:$0xff]
    %v1596 = vld [vmem:[#allocation4 + $0x9e8] sm:$0xff]
    %v1597 = vld [vmem:[#allocation4 + $0x9f0] sm:$0xff]
    %v1598 = vld [vmem:[#allocation4 + $0x9f8] sm:$0xff]
    %v1599 = vld [vmem:[#allocation4 + $0xa00] sm:$0xff]
    %v1600 = vld [vmem:[#allocation4 + $0xa08] sm:$0xff]
    %v1601 = vld [vmem:[#allocation4 + $0xa10] sm:$0xff]
    %v1602 = vld [vmem:[#allocation4 + $0xa18] sm:$0xff]
    %v1603 = vld [vmem:[#allocation4 + $0xa20] sm:$0xff]
    %v1604 = vld [vmem:[#allocation4 + $0xa28] sm:$0xff]
    %v1605 = vld [vmem:[#allocation4 + $0xa30] sm:$0xff]
    %v1606 = vld [vmem:[#allocation4 + $0xa38] sm:$0xff]
    %v1607 = vld [vmem:[#allocation4 + $0xa40] sm:$0xff]
    %v1608 = vld [vmem:[#allocation4 + $0xa48] sm:$0xff]
    %v1609 = vld [vmem:[#allocation4 + $0xa50] sm:$0xff]
    %v1610 = vld [vmem:[#allocation4 + $0xa58] sm:$0xff]
    %v1611 = vld [vmem:[#allocation4 + $0xa60] sm:$0xff]
    %v1612 = vld [vmem:[#allocation4 + $0xa68] sm:$0xff]
    %v1613 = vld [vmem:[#allocation4 + $0xa70] sm:$0xff]
    %v1614 = vld [vmem:[#allocation4 + $0xa78] sm:$0xff]
    %v1615 = vld [vmem:[#allocation4 + $0xa80] sm:$0xff]
    %v1616 = vld [vmem:[#allocation4 + $0xa88] sm:$0xff]
    %v1617 = vld [vmem:[#allocation4 + $0xa90] sm:$0xff]
    %v1618 = vld [vmem:[#allocation4 + $0xa98] sm:$0xff]
    %v1619 = vld [vmem:[#allocation4 + $0xaa0] sm:$0xff]
    %v1620 = vld [vmem:[#allocation4 + $0xaa8] sm:$0xff]
    %v1621 = vld [vmem:[#allocation4 + $0xab0] sm:$0xff]
    %v1622 = vld [vmem:[#allocation4 + $0xab8] sm:$0xff]
    %v1623 = vld [vmem:[#allocation4 + $0xac0] sm:$0xff]
    %v1624 = vld [vmem:[#allocation4 + $0xac8] sm:$0xff]
    %v1625 = vld [vmem:[#allocation4 + $0xad0] sm:$0xff]
    %v1626 = vld [vmem:[#allocation4 + $0xad8] sm:$0xff]
    %v1627 = vld [vmem:[#allocation4 + $0xae0] sm:$0xff]
    %v1628 = vld [vmem:[#allocation4 + $0xae8] sm:$0xff]
    %v1629 = vld [vmem:[#allocation4 + $0xaf0] sm:$0xff]
    %v1630 = vld [vmem:[#allocation4 + $0xaf8] sm:$0xff]
    %v1631 = vld [vmem:[#allocation4 + $0xb00] sm:$0xff]
    %v1632 = vld [vmem:[#allocation4 + $0xb08] sm:$0xff]
    %v1633 = vld [vmem:[#allocation4 + $0xb10] sm:$0xff]
    %v1634 = vld [vmem:[#allocation4 + $0xb18] sm:$0xff]
    %v1635 = vld [vmem:[#allocation4 + $0xb20] sm:$0xff]
    %v1636 = vld [vmem:[#allocation4 + $0xb28] sm:$0xff]
    %v1637 = vld [vmem:[#allocation4 + $0xb30] sm:$0xff]
    %v1638 = vld [vmem:[#allocation4 + $0xb38] sm:$0xff]
    %v1639 = vld [vmem:[#allocation4 + $0xb40] sm:$0xff]
    %v1640 = vld [vmem:[#allocation4 + $0xb48] sm:$0xff]
    %v1641 = vld [vmem:[#allocation4 + $0xb50] sm:$0xff]
    %v1642 = vld [vmem:[#allocation4 + $0xb58] sm:$0xff]
    %v1643 = vld [vmem:[#allocation4 + $0xb60] sm:$0xff]
    %v1644 = vld [vmem:[#allocation4 + $0xb68] sm:$0xff]
    %v1645 = vld [vmem:[#allocation4 + $0xb70] sm:$0xff]
    %v1646 = vld [vmem:[#allocation4 + $0xb78] sm:$0xff]
    %v1647 = vld [vmem:[#allocation4 + $0xb80] sm:$0xff]
    %v1648 = vld [vmem:[#allocation4 + $0xb88] sm:$0xff]
    %v1649 = vld [vmem:[#allocation4 + $0xb90] sm:$0xff]
    %v1650 = vld [vmem:[#allocation4 + $0xb98] sm:$0xff]
    %v1651 = vld [vmem:[#allocation4 + $0xba0] sm:$0xff]
    %v1652 = vld [vmem:[#allocation4 + $0xba8] sm:$0xff]
    %v1653 = vld [vmem:[#allocation4 + $0xbb0] sm:$0xff]
    %v1654 = vld [vmem:[#allocation4 + $0xbb8] sm:$0xff]
    %v1655 = vld [vmem:[#allocation4 + $0xbc0] sm:$0xff]
    %v1656 = vld [vmem:[#allocation4 + $0xbc8] sm:$0xff]
    %v1657 = vld [vmem:[#allocation4 + $0xbd0] sm:$0xff]
    %v1658 = vld [vmem:[#allocation4 + $0xbd8] sm:$0xff]
    %v1659 = vld [vmem:[#allocation4 + $0xbe0] sm:$0xff]
    %v1660 = vld [vmem:[#allocation4 + $0xbe8] sm:$0xff]
    %v1661 = vld [vmem:[#allocation4 + $0xbf0] sm:$0xff]
    %v1662 = vld [vmem:[#allocation4 + $0xbf8] sm:$0xff]
    %v1663 = vld [vmem:[#allocation4 + $0xc00] sm:$0xff]
    %v1664 = vld [vmem:[#allocation4 + $0xc08] sm:$0xff]
    %v1665 = vld [vmem:[#allocation4 + $0xc10] sm:$0xff]
    %v1666 = vld [vmem:[#allocation4 + $0xc18] sm:$0xff]
    %v1667 = vld [vmem:[#allocation4 + $0xc20] sm:$0xff]
    %v1668 = vld [vmem:[#allocation4 + $0xc28] sm:$0xff]
    %v1669 = vld [vmem:[#allocation4 + $0xc30] sm:$0xff]
    %v1670 = vld [vmem:[#allocation4 + $0xc38] sm:$0xff]
    %v1671 = vld [vmem:[#allocation4 + $0xc40] sm:$0xff]
    %v1672 = vld [vmem:[#allocation4 + $0xc48] sm:$0xff]
    %v1673 = vld [vmem:[#allocation4 + $0xc50] sm:$0xff]
    %v1674 = vld [vmem:[#allocation4 + $0xc58] sm:$0xff]
    %v1675 = vld [vmem:[#allocation4 + $0xc60] sm:$0xff]
    %v1676 = vld [vmem:[#allocation4 + $0xc68] sm:$0xff]
    %v1677 = vld [vmem:[#allocation4 + $0xc70] sm:$0xff]
    %v1678 = vld [vmem:[#allocation4 + $0xc78] sm:$0xff]
    %v1679 = vld [vmem:[#allocation4 + $0xc80] sm:$0xff]
    %v1680 = vld [vmem:[#allocation4 + $0xc88] sm:$0xff]
    %v1681 = vld [vmem:[#allocation4 + $0xc90] sm:$0xff]
    %v1682 = vld [vmem:[#allocation4 + $0xc98] sm:$0xff]
    %v1683 = vld [vmem:[#allocation4 + $0xca0] sm:$0xff]
    %v1684 = vld [vmem:[#allocation4 + $0xca8] sm:$0xff]
    %v1685 = vld [vmem:[#allocation4 + $0xcb0] sm:$0xff]
    %v1686 = vld [vmem:[#allocation4 + $0xcb8] sm:$0xff]
    %v1687 = vld [vmem:[#allocation4 + $0xcc0] sm:$0xff]
    %v1688 = vld [vmem:[#allocation4 + $0xcc8] sm:$0xff]
    %v1689 = vld [vmem:[#allocation4 + $0xcd0] sm:$0xff]
    %v1690 = vld [vmem:[#allocation4 + $0xcd8] sm:$0xff]
    %v1691 = vld [vmem:[#allocation4 + $0xce0] sm:$0xff]
    %v1692 = vld [vmem:[#allocation4 + $0xce8] sm:$0xff]
    %v1693 = vld [vmem:[#allocation4 + $0xcf0] sm:$0xff]
    %v1694 = vld [vmem:[#allocation4 + $0xcf8] sm:$0xff]
    %v1695 = vld [vmem:[#allocation4 + $0xd00] sm:$0xff]
    %v1696 = vld [vmem:[#allocation4 + $0xd08] sm:$0xff]
    %v1697 = vld [vmem:[#allocation4 + $0xd10] sm:$0xff]
    %v1698 = vld [vmem:[#allocation4 + $0xd18] sm:$0xff]
    %v1699 = vld [vmem:[#allocation4 + $0xd20] sm:$0xff]
    %v1700 = vld [vmem:[#allocation4 + $0xd28] sm:$0xff]
    %v1701 = vld [vmem:[#allocation4 + $0xd30] sm:$0xff]
    %v1702 = vld [vmem:[#allocation4 + $0xd38] sm:$0xff]
    %v1703 = vld [vmem:[#allocation4 + $0xd40] sm:$0xff]
    %v1704 = vld [vmem:[#allocation4 + $0xd48] sm:$0xff]
    %v1705 = vld [vmem:[#allocation4 + $0xd50] sm:$0xff]
    %v1706 = vld [vmem:[#allocation4 + $0xd58] sm:$0xff]
    %v1707 = vld [vmem:[#allocation4 + $0xd60] sm:$0xff]
    %v1708 = vld [vmem:[#allocation4 + $0xd68] sm:$0xff]
    %v1709 = vld [vmem:[#allocation4 + $0xd70] sm:$0xff]
    %v1710 = vld [vmem:[#allocation4 + $0xd78] sm:$0xff]
    %v1711 = vld [vmem:[#allocation4 + $0xd80] sm:$0xff]
    %v1712 = vld [vmem:[#allocation4 + $0xd88] sm:$0xff]
    %v1713 = vld [vmem:[#allocation4 + $0xd90] sm:$0xff]
    %v1714 = vld [vmem:[#allocation4 + $0xd98] sm:$0xff]
    %v1715 = vld [vmem:[#allocation4 + $0xda0] sm:$0xff]
    %v1716 = vld [vmem:[#allocation4 + $0xda8] sm:$0xff]
    %v1717 = vld [vmem:[#allocation4 + $0xdb0] sm:$0xff]
    %v1718 = vld [vmem:[#allocation4 + $0xdb8] sm:$0xff]
    %v1719 = vld [vmem:[#allocation4 + $0xdc0] sm:$0xff]
    %v1720 = vld [vmem:[#allocation4 + $0xdc8] sm:$0xff]
    %v1721 = vld [vmem:[#allocation4 + $0xdd0] sm:$0xff]
    %v1722 = vld [vmem:[#allocation4 + $0xdd8] sm:$0xff]
    %v1723 = vld [vmem:[#allocation4 + $0xde0] sm:$0xff]
    %v1724 = vld [vmem:[#allocation4 + $0xde8] sm:$0xff]
    %v1725 = vld [vmem:[#allocation4 + $0xdf0] sm:$0xff]
    %v1726 = vld [vmem:[#allocation4 + $0xdf8] sm:$0xff]
    %v1727 = vld [vmem:[#allocation4 + $0xe00] sm:$0xff]
    %v1728 = vld [vmem:[#allocation4 + $0xe08] sm:$0xff]
    %v1729 = vld [vmem:[#allocation4 + $0xe10] sm:$0xff]
    %v1730 = vld [vmem:[#allocation4 + $0xe18] sm:$0xff]
    %v1731 = vld [vmem:[#allocation4 + $0xe20] sm:$0xff]
    %v1732 = vld [vmem:[#allocation4 + $0xe28] sm:$0xff]
    %v1733 = vld [vmem:[#allocation4 + $0xe30] sm:$0xff]
    %v1734 = vld [vmem:[#allocation4 + $0xe38] sm:$0xff]
    %v1735 = vld [vmem:[#allocation4 + $0xe40] sm:$0xff]
    %v1736 = vld [vmem:[#allocation4 + $0xe48] sm:$0xff]
    %v1737 = vld [vmem:[#allocation4 + $0xe50] sm:$0xff]
    %v1738 = vld [vmem:[#allocation4 + $0xe58] sm:$0xff]
    %v1739 = vld [vmem:[#allocation4 + $0xe60] sm:$0xff]
    %v1740 = vld [vmem:[#allocation4 + $0xe68] sm:$0xff]
    %v1741 = vld [vmem:[#allocation4 + $0xe70] sm:$0xff]
    %v1742 = vld [vmem:[#allocation4 + $0xe78] sm:$0xff]
    %v1743 = vld [vmem:[#allocation4 + $0xe80] sm:$0xff]
    %v1744 = vld [vmem:[#allocation4 + $0xe88] sm:$0xff]
    %v1745 = vld [vmem:[#allocation4 + $0xe90] sm:$0xff]
    %v1746 = vld [vmem:[#allocation4 + $0xe98] sm:$0xff]
    %v1747 = vld [vmem:[#allocation4 + $0xea0] sm:$0xff]
    %v1748 = vld [vmem:[#allocation4 + $0xea8] sm:$0xff]
    %v1749 = vld [vmem:[#allocation4 + $0xeb0] sm:$0xff]
    %v1750 = vld [vmem:[#allocation4 + $0xeb8] sm:$0xff]
    %v1751 = vld [vmem:[#allocation4 + $0xec0] sm:$0xff]
    %v1752 = vld [vmem:[#allocation4 + $0xec8] sm:$0xff]
    %v1753 = vld [vmem:[#allocation4 + $0xed0] sm:$0xff]
    %v1754 = vld [vmem:[#allocation4 + $0xed8] sm:$0xff]
    %v1755 = vld [vmem:[#allocation4 + $0xee0] sm:$0xff]
    %v1756 = vld [vmem:[#allocation4 + $0xee8] sm:$0xff]
    %v1757 = vld [vmem:[#allocation4 + $0xef0] sm:$0xff]
    %v1758 = vld [vmem:[#allocation4 + $0xef8] sm:$0xff]
    %v1759 = vld [vmem:[#allocation4 + $0xf00] sm:$0xff]
    %v1760 = vld [vmem:[#allocation4 + $0xf08] sm:$0xff]
    %v1761 = vld [vmem:[#allocation4 + $0xf10] sm:$0xff]
    %v1762 = vld [vmem:[#allocation4 + $0xf18] sm:$0xff]
    %v1763 = vld [vmem:[#allocation4 + $0xf20] sm:$0xff]
    %v1764 = vld [vmem:[#allocation4 + $0xf28] sm:$0xff]
    %v1765 = vld [vmem:[#allocation4 + $0xf30] sm:$0xff]
    %v1766 = vld [vmem:[#allocation4 + $0xf38] sm:$0xff]
    %v1767 = vld [vmem:[#allocation4 + $0xf40] sm:$0xff]
    %v1768 = vld [vmem:[#allocation4 + $0xf48] sm:$0xff]
    %v1769 = vld [vmem:[#allocation4 + $0xf50] sm:$0xff]
    %v1770 = vld [vmem:[#allocation4 + $0xf58] sm:$0xff]
    %v1771 = vld [vmem:[#allocation4 + $0xf60] sm:$0xff]
    %v1772 = vld [vmem:[#allocation4 + $0xf68] sm:$0xff]
    %v1773 = vld [vmem:[#allocation4 + $0xf70] sm:$0xff]
    %v1774 = vld [vmem:[#allocation4 + $0xf78] sm:$0xff]
    %v1775 = vld [vmem:[#allocation4 + $0xf80] sm:$0xff]
    %v1776 = vld [vmem:[#allocation4 + $0xf88] sm:$0xff]
    %v1777 = vld [vmem:[#allocation4 + $0xf90] sm:$0xff]
    %v1778 = vld [vmem:[#allocation4 + $0xf98] sm:$0xff]
    %v1779 = vld [vmem:[#allocation4 + $0xfa0] sm:$0xff]
    %v1780 = vld [vmem:[#allocation4 + $0xfa8] sm:$0xff]
    %v1781 = vld [vmem:[#allocation4 + $0xfb0] sm:$0xff]
    %v1782 = vld [vmem:[#allocation4 + $0xfb8] sm:$0xff]
    %v1783 = vld [vmem:[#allocation4 + $0xfc0] sm:$0xff]
    %v1784 = vld [vmem:[#allocation4 + $0xfc8] sm:$0xff]
    %v1785 = vld [vmem:[#allocation4 + $0xfd0] sm:$0xff]
    %v1786 = vld [vmem:[#allocation4 + $0xfd8] sm:$0xff]
    %v1787 = vld [vmem:[#allocation4 + $0xfe0] sm:$0xff]
    %v1788 = vld [vmem:[#allocation4 + $0xfe8] sm:$0xff]
    %v1789 = vld [vmem:[#allocation4 + $0xff0] sm:$0xff]
    %v1790 = vld [vmem:[#allocation4 + $0xff8] sm:$0xff]
    %1791 = vmatprep.subr.mxu0 %v1280
    %1792 = vmatpush1.msra.mxu0 %v1279
    %1793 = vmatprep.subr.mxu0 %v1284
    %1794 = vmatpush1.msra.mxu0 %v1283
    %1795 = vmatprep.subr.mxu0 %v1288
    %1796 = vmatpush1.msra.mxu0 %v1287
    %1797 = vmatprep.subr.mxu0 %v1292
    %1798 = vmatpush1.msra.mxu0 %v1291
    %1799 = vmatprep.subr.mxu0 %v1296
    %1800 = vmatpush1.msra.mxu0 %v1295
    %1801 = vmatprep.subr.mxu0 %v1300
    %1802 = vmatpush1.msra.mxu0 %v1299
    %1803 = vmatprep.subr.mxu0 %v1304
    %1804 = vmatpush1.msra.mxu0 %v1303
    %1805 = vmatprep.subr.mxu0 %v1308
    %1806 = vmatpush1.msra.mxu0 %v1307
    %1807 = vmatprep.subr.mxu0 %v1312
    %1808 = vmatpush1.msra.mxu0 %v1311
    %1809 = vmatprep.subr.mxu0 %v1316
    %1810 = vmatpush1.msra.mxu0 %v1315
    %1811 = vmatprep.subr.mxu0 %v1320
    %1812 = vmatpush1.msra.mxu0 %v1319
    %1813 = vmatprep.subr.mxu0 %v1324
    %1814 = vmatpush1.msra.mxu0 %v1323
    %1815 = vmatprep.subr.mxu0 %v1328
    %1816 = vmatpush1.msra.mxu0 %v1327
    %1817 = vmatprep.subr.mxu0 %v1332
    %1818 = vmatpush1.msra.mxu0 %v1331
    %1819 = vmatprep.subr.mxu0 %v1336
    %1820 = vmatpush1.msra.mxu0 %v1335
    %1821 = vmatprep.subr.mxu0 %v1340
    %1822 = vmatpush1.msra.mxu0 %v1339
    %1823 = vmatprep.subr.mxu0 %v1344
    %1824 = vmatpush1.msra.mxu0 %v1343
    %1825 = vmatprep.subr.mxu0 %v1348
    %1826 = vmatpush1.msra.mxu0 %v1347
    %1827 = vmatprep.subr.mxu0 %v1352
    %1828 = vmatpush1.msra.mxu0 %v1351
    %1829 = vmatprep.subr.mxu0 %v1356
    %1830 = vmatpush1.msra.mxu0 %v1355
    %1831 = vmatprep.subr.mxu0 %v1360
    %1832 = vmatpush1.msra.mxu0 %v1359
    %1833 = vmatprep.subr.mxu0 %v1364
    %1834 = vmatpush1.msra.mxu0 %v1363
    %1835 = vmatprep.subr.mxu0 %v1368
    %1836 = vmatpush1.msra.mxu0 %v1367
    %1837 = vmatprep.subr.mxu0 %v1372
    %1838 = vmatpush1.msra.mxu0 %v1371
    %1839 = vmatprep.subr.mxu0 %v1376
    %1840 = vmatpush1.msra.mxu0 %v1375
    %1841 = vmatprep.subr.mxu0 %v1380
    %1842 = vmatpush1.msra.mxu0 %v1379
    %1843 = vmatprep.subr.mxu0 %v1384
    %1844 = vmatpush1.msra.mxu0 %v1383
    %1845 = vmatprep.subr.mxu0 %v1388
    %1846 = vmatpush1.msra.mxu0 %v1387
    %1847 = vmatprep.subr.mxu0 %v1392
    %1848 = vmatpush1.msra.mxu0 %v1391
    %1849 = vmatprep.subr.mxu0 %v1396
    %1850 = vmatpush1.msra.mxu0 %v1395
    %1851 = vmatprep.subr.mxu0 %v1400
    %1852 = vmatpush1.msra.mxu0 %v1399
    %1853 = vmatprep.subr.mxu0 %v1404
    %1854 = vmatpush1.msra.mxu0 %v1403
    %1855 = vmatprep.mubr.f32.mxu0 %v1264
    %1856 = vmatmul.mubr.f32.gmra.mrb[0].mxu0 %v1263
    %v1857 = vpop.f32.mrb[0].mxu0
    %v1858 = vadd.f32 0.0, %v1857
    %v1859 = vpop.f32.mrb[0].mxu0
    %v1860 = vadd.f32 0.0, %v1859
    %1861 = vdwg.mxu0
    %1862 = vmatprep.subr.mxu0 %v1408
    %1863 = vmatpush1.msra.mxu0 %v1407
    %1864 = vmatprep.subr.mxu0 %v1412
    %1865 = vmatpush1.msra.mxu0 %v1411
    %1866 = vmatprep.subr.mxu0 %v1416
    %1867 = vmatpush1.msra.mxu0 %v1415
    %1868 = vmatprep.subr.mxu0 %v1420
    %1869 = vmatpush1.msra.mxu0 %v1419
    %1870 = vmatprep.subr.mxu0 %v1424
    %1871 = vmatpush1.msra.mxu0 %v1423
    %1872 = vmatprep.subr.mxu0 %v1428
    %1873 = vmatpush1.msra.mxu0 %v1427
    %1874 = vmatprep.subr.mxu0 %v1432
    %1875 = vmatpush1.msra.mxu0 %v1431
    %1876 = vmatprep.subr.mxu0 %v1436
    %1877 = vmatpush1.msra.mxu0 %v1435
    %1878 = vmatprep.subr.mxu0 %v1440
    %1879 = vmatpush1.msra.mxu0 %v1439
    %1880 = vmatprep.subr.mxu0 %v1444
    %1881 = vmatpush1.msra.mxu0 %v1443
    %1882 = vmatprep.subr.mxu0 %v1448
    %1883 = vmatpush1.msra.mxu0 %v1447
    %1884 = vmatprep.subr.mxu0 %v1452
    %1885 = vmatpush1.msra.mxu0 %v1451
    %1886 = vmatprep.subr.mxu0 %v1456
    %1887 = vmatpush1.msra.mxu0 %v1455
    %1888 = vmatprep.subr.mxu0 %v1460
    %1889 = vmatpush1.msra.mxu0 %v1459
    %1890 = vmatprep.subr.mxu0 %v1464
    %1891 = vmatpush1.msra.mxu0 %v1463
    %1892 = vmatprep.subr.mxu0 %v1468
    %1893 = vmatpush1.msra.mxu0 %v1467
    %1894 = vmatprep.subr.mxu0 %v1472
    %1895 = vmatpush1.msra.mxu0 %v1471
    %1896 = vmatprep.subr.mxu0 %v1476
    %1897 = vmatpush1.msra.mxu0 %v1475
    %1898 = vmatprep.subr.mxu0 %v1480
    %1899 = vmatpush1.msra.mxu0 %v1479
    %1900 = vmatprep.subr.mxu0 %v1484
    %1901 = vmatpush1.msra.mxu0 %v1483
    %1902 = vmatprep.subr.mxu0 %v1488
    %1903 = vmatpush1.msra.mxu0 %v1487
    %1904 = vmatprep.subr.mxu0 %v1492
    %1905 = vmatpush1.msra.mxu0 %v1491
    %1906 = vmatprep.subr.mxu0 %v1496
    %1907 = vmatpush1.msra.mxu0 %v1495
    %1908 = vmatprep.subr.mxu0 %v1500
    %1909 = vmatpush1.msra.mxu0 %v1499
    %1910 = vmatprep.subr.mxu0 %v1504
    %1911 = vmatpush1.msra.mxu0 %v1503
    %1912 = vmatprep.subr.mxu0 %v1508
    %1913 = vmatpush1.msra.mxu0 %v1507
    %1914 = vmatprep.subr.mxu0 %v1512
    %1915 = vmatpush1.msra.mxu0 %v1511
    %1916 = vmatprep.subr.mxu0 %v1516
    %1917 = vmatpush1.msra.mxu0 %v1515
    %1918 = vmatprep.subr.mxu0 %v1520
    %1919 = vmatpush1.msra.mxu0 %v1519
    %1920 = vmatprep.subr.mxu0 %v1524
    %1921 = vmatpush1.msra.mxu0 %v1523
    %1922 = vmatprep.subr.mxu0 %v1528
    %1923 = vmatpush1.msra.mxu0 %v1527
    %1924 = vmatprep.subr.mxu0 %v1532
    %1925 = vmatpush1.msra.mxu0 %v1531
    %1926 = vmatprep.mubr.f32.mxu0 %v1266
    %1927 = vmatmul.mubr.f32.gmra.mrb[0].mxu0 %v1265
    %v1928 = vpop.f32.mrb[0].mxu0
    %v1929 = vadd.f32 %v1858, %v1928
    %v1930 = vpop.f32.mrb[0].mxu0
    %v1931 = vadd.f32 %v1860, %v1930
    %1932 = vdwg.mxu0
    %1933 = vmatprep.subr.mxu0 %v1536
    %1934 = vmatpush1.msra.mxu0 %v1535
    %1935 = vmatprep.subr.mxu0 %v1540
    %1936 = vmatpush1.msra.mxu0 %v1539
    %1937 = vmatprep.subr.mxu0 %v1544
    %1938 = vmatpush1.msra.mxu0 %v1543
    %1939 = vmatprep.subr.mxu0 %v1548
    %1940 = vmatpush1.msra.mxu0 %v1547
    %1941 = vmatprep.subr.mxu0 %v1552
    %1942 = vmatpush1.msra.mxu0 %v1551
    %1943 = vmatprep.subr.mxu0 %v1556
    %1944 = vmatpush1.msra.mxu0 %v1555
    %1945 = vmatprep.subr.mxu0 %v1560
    %1946 = vmatpush1.msra.mxu0 %v1559
    %1947 = vmatprep.subr.mxu0 %v1564
    %1948 = vmatpush1.msra.mxu0 %v1563
    %1949 = vmatprep.subr.mxu0 %v1568
    %1950 = vmatpush1.msra.mxu0 %v1567
    %1951 = vmatprep.subr.mxu0 %v1572
    %1952 = vmatpush1.msra.mxu0 %v1571
    %1953 = vmatprep.subr.mxu0 %v1576
    %1954 = vmatpush1.msra.mxu0 %v1575
    %1955 = vmatprep.subr.mxu0 %v1580
    %1956 = vmatpush1.msra.mxu0 %v1579
    %1957 = vmatprep.subr.mxu0 %v1584
    %1958 = vmatpush1.msra.mxu0 %v1583
    %1959 = vmatprep.subr.mxu0 %v1588
    %1960 = vmatpush1.msra.mxu0 %v1587
    %1961 = vmatprep.subr.mxu0 %v1592
    %1962 = vmatpush1.msra.mxu0 %v1591
    %1963 = vmatprep.subr.mxu0 %v1596
    %1964 = vmatpush1.msra.mxu0 %v1595
    %1965 = vmatprep.subr.mxu0 %v1600
    %1966 = vmatpush1.msra.mxu0 %v1599
    %1967 = vmatprep.subr.mxu0 %v1604
    %1968 = vmatpush1.msra.mxu0 %v1603
    %1969 = vmatprep.subr.mxu0 %v1608
    %1970 = vmatpush1.msra.mxu0 %v1607
    %1971 = vmatprep.subr.mxu0 %v1612
    %1972 = vmatpush1.msra.mxu0 %v1611
    %1973 = vmatprep.subr.mxu0 %v1616
    %1974 = vmatpush1.msra.mxu0 %v1615
    %1975 = vmatprep.subr.mxu0 %v1620
    %1976 = vmatpush1.msra.mxu0 %v1619
    %1977 = vmatprep.subr.mxu0 %v1624
    %1978 = vmatpush1.msra.mxu0 %v1623
    %1979 = vmatprep.subr.mxu0 %v1628
    %1980 = vmatpush1.msra.mxu0 %v1627
    %1981 = vmatprep.subr.mxu0 %v1632
    %1982 = vmatpush1.msra.mxu0 %v1631
    %1983 = vmatprep.subr.mxu0 %v1636
    %1984 = vmatpush1.msra.mxu0 %v1635
    %1985 = vmatprep.subr.mxu0 %v1640
    %1986 = vmatpush1.msra.mxu0 %v1639
    %1987 = vmatprep.subr.mxu0 %v1644
    %1988 = vmatpush1.msra.mxu0 %v1643
    %1989 = vmatprep.subr.mxu0 %v1648
    %1990 = vmatpush1.msra.mxu0 %v1647
    %1991 = vmatprep.subr.mxu0 %v1652
    %1992 = vmatpush1.msra.mxu0 %v1651
    %1993 = vmatprep.subr.mxu0 %v1656
    %1994 = vmatpush1.msra.mxu0 %v1655
    %1995 = vmatprep.subr.mxu0 %v1660
    %1996 = vmatpush1.msra.mxu0 %v1659
    %1997 = vmatprep.mubr.f32.mxu0 %v1276
    %1998 = vmatmul.mubr.f32.gmra.mrb[0].mxu0 %v1275
    %v1999 = vpop.f32.mrb[0].mxu0
    %v2000 = vadd.f32 %v1929, %v1999
    %v2001 = vpop.f32.mrb[0].mxu0
    %v2002 = vadd.f32 %v1931, %v2001
    %2003 = vdwg.mxu0
    %2004 = vmatprep.subr.mxu0 %v1664
    %2005 = vmatpush1.msra.mxu0 %v1663
    %2006 = vmatprep.subr.mxu0 %v1668
    %2007 = vmatpush1.msra.mxu0 %v1667
    %2008 = vmatprep.subr.mxu0 %v1672
    %2009 = vmatpush1.msra.mxu0 %v1671
    %2010 = vmatprep.subr.mxu0 %v1676
    %2011 = vmatpush1.msra.mxu0 %v1675
    %2012 = vmatprep.subr.mxu0 %v1680
    %2013 = vmatpush1.msra.mxu0 %v1679
    %2014 = vmatprep.subr.mxu0 %v1684
    %2015 = vmatpush1.msra.mxu0 %v1683
    %2016 = vmatprep.subr.mxu0 %v1688
    %2017 = vmatpush1.msra.mxu0 %v1687
    %2018 = vmatprep.subr.mxu0 %v1692
    %2019 = vmatpush1.msra.mxu0 %v1691
    %2020 = vmatprep.subr.mxu0 %v1696
    %2021 = vmatpush1.msra.mxu0 %v1695
    %2022 = vmatprep.subr.mxu0 %v1700
    %2023 = vmatpush1.msra.mxu0 %v1699
    %2024 = vmatprep.subr.mxu0 %v1704
    %2025 = vmatpush1.msra.mxu0 %v1703
    %2026 = vmatprep.subr.mxu0 %v1708
    %2027 = vmatpush1.msra.mxu0 %v1707
    %2028 = vmatprep.subr.mxu0 %v1712
    %2029 = vmatpush1.msra.mxu0 %v1711
    %2030 = vmatprep.subr.mxu0 %v1716
    %2031 = vmatpush1.msra.mxu0 %v1715
    %2032 = vmatprep.subr.mxu0 %v1720
    %2033 = vmatpush1.msra.mxu0 %v1719
    %2034 = vmatprep.subr.mxu0 %v1724
    %2035 = vmatpush1.msra.mxu0 %v1723
    %2036 = vmatprep.subr.mxu0 %v1728
    %2037 = vmatpush1.msra.mxu0 %v1727
    %2038 = vmatprep.subr.mxu0 %v1732
    %2039 = vmatpush1.msra.mxu0 %v1731
    %2040 = vmatprep.subr.mxu0 %v1736
    %2041 = vmatpush1.msra.mxu0 %v1735
    %2042 = vmatprep.subr.mxu0 %v1740
    %2043 = vmatpush1.msra.mxu0 %v1739
    %2044 = vmatprep.subr.mxu0 %v1744
    %2045 = vmatpush1.msra.mxu0 %v1743
    %2046 = vmatprep.subr.mxu0 %v1748
    %2047 = vmatpush1.msra.mxu0 %v1747
    %2048 = vmatprep.subr.mxu0 %v1752
    %2049 = vmatpush1.msra.mxu0 %v1751
    %2050 = vmatprep.subr.mxu0 %v1756
    %2051 = vmatpush1.msra.mxu0 %v1755
    %2052 = vmatprep.subr.mxu0 %v1760
    %2053 = vmatpush1.msra.mxu0 %v1759
    %2054 = vmatprep.subr.mxu0 %v1764
    %2055 = vmatpush1.msra.mxu0 %v1763
    %2056 = vmatprep.subr.mxu0 %v1768
    %2057 = vmatpush1.msra.mxu0 %v1767
    %2058 = vmatprep.subr.mxu0 %v1772
    %2059 = vmatpush1.msra.mxu0 %v1771
    %2060 = vmatprep.subr.mxu0 %v1776
    %2061 = vmatpush1.msra.mxu0 %v1775
    %2062 = vmatprep.subr.mxu0 %v1780
    %2063 = vmatpush1.msra.mxu0 %v1779
    %2064 = vmatprep.subr.mxu0 %v1784
    %2065 = vmatpush1.msra.mxu0 %v1783
    %2066 = vmatprep.subr.mxu0 %v1788
    %2067 = vmatpush1.msra.mxu0 %v1787
    %2068 = vmatprep.mubr.f32.mxu0 %v1278
    %2069 = vmatmul.mubr.f32.gmra.mrb[0].mxu0 %v1277
    %v2070 = vpop.f32.mrb[0].mxu0
    %v2071 = vadd.f32 %v2000, %v2070
    %v2072 = vpop.f32.mrb[0].mxu0
    %v2073 = vadd.f32 %v2002, %v2072
    %2074 = vdwg.mxu0
    %2075 = vmatprep.subr.mxu0 %v1282
    %2076 = vmatpush1.msra.mxu0 %v1281
    %2077 = vmatprep.subr.mxu0 %v1286
    %2078 = vmatpush1.msra.mxu0 %v1285
    %2079 = vmatprep.subr.mxu0 %v1290
    %2080 = vmatpush1.msra.mxu0 %v1289
    %2081 = vmatprep.subr.mxu0 %v1294
    %2082 = vmatpush1.msra.mxu0 %v1293
    %2083 = vmatprep.subr.mxu0 %v1298
    %2084 = vmatpush1.msra.mxu0 %v1297
    %2085 = vmatprep.subr.mxu0 %v1302
    %2086 = vmatpush1.msra.mxu0 %v1301
    %2087 = vmatprep.subr.mxu0 %v1306
    %2088 = vmatpush1.msra.mxu0 %v1305
    %2089 = vmatprep.subr.mxu0 %v1310
    %2090 = vmatpush1.msra.mxu0 %v1309
    %2091 = vmatprep.subr.mxu0 %v1314
    %2092 = vmatpush1.msra.mxu0 %v1313
    %2093 = vmatprep.subr.mxu0 %v1318
    %2094 = vmatpush1.msra.mxu0 %v1317
    %2095 = vmatprep.subr.mxu0 %v1322
    %2096 = vmatpush1.msra.mxu0 %v1321
    %2097 = vmatprep.subr.mxu0 %v1326
    %2098 = vmatpush1.msra.mxu0 %v1325
    %2099 = vmatprep.subr.mxu0 %v1330
    %2100 = vmatpush1.msra.mxu0 %v1329
    %2101 = vmatprep.subr.mxu0 %v1334
    %2102 = vmatpush1.msra.mxu0 %v1333
    %2103 = vmatprep.subr.mxu0 %v1338
    %2104 = vmatpush1.msra.mxu0 %v1337
    %2105 = vmatprep.subr.mxu0 %v1342
    %2106 = vmatpush1.msra.mxu0 %v1341
    %2107 = vmatprep.subr.mxu0 %v1346
    %2108 = vmatpush1.msra.mxu0 %v1345
    %2109 = vmatprep.subr.mxu0 %v1350
    %2110 = vmatpush1.msra.mxu0 %v1349
    %2111 = vmatprep.subr.mxu0 %v1354
    %2112 = vmatpush1.msra.mxu0 %v1353
    %2113 = vmatprep.subr.mxu0 %v1358
    %2114 = vmatpush1.msra.mxu0 %v1357
    %2115 = vmatprep.subr.mxu0 %v1362
    %2116 = vmatpush1.msra.mxu0 %v1361
    %2117 = vmatprep.subr.mxu0 %v1366
    %2118 = vmatpush1.msra.mxu0 %v1365
    %2119 = vmatprep.subr.mxu0 %v1370
    %2120 = vmatpush1.msra.mxu0 %v1369
    %2121 = vmatprep.subr.mxu0 %v1374
    %2122 = vmatpush1.msra.mxu0 %v1373
    %2123 = vmatprep.subr.mxu0 %v1378
    %2124 = vmatpush1.msra.mxu0 %v1377
    %2125 = vmatprep.subr.mxu0 %v1382
    %2126 = vmatpush1.msra.mxu0 %v1381
    %2127 = vmatprep.subr.mxu0 %v1386
    %2128 = vmatpush1.msra.mxu0 %v1385
    %2129 = vmatprep.subr.mxu0 %v1390
    %2130 = vmatpush1.msra.mxu0 %v1389
    %2131 = vmatprep.subr.mxu0 %v1394
    %2132 = vmatpush1.msra.mxu0 %v1393
    %2133 = vmatprep.subr.mxu0 %v1398
    %2134 = vmatpush1.msra.mxu0 %v1397
    %2135 = vmatprep.subr.mxu0 %v1402
    %2136 = vmatpush1.msra.mxu0 %v1401
    %2137 = vmatprep.subr.mxu0 %v1406
    %2138 = vmatpush1.msra.mxu0 %v1405
    %2139 = vmatprep.mubr.f32.mxu0 %v1264
    %2140 = vmatmul.mubr.f32.gmra.mrb[0].mxu0 %v1263
    %v2141 = vpop.f32.mrb[0].mxu0
    %v2142 = vadd.f32 0.0, %v2141
    %v2143 = vpop.f32.mrb[0].mxu0
    %v2144 = vadd.f32 0.0, %v2143
    %2145 = vdwg.mxu0
    %2146 = vmatprep.subr.mxu0 %v1410
    %2147 = vmatpush1.msra.mxu0 %v1409
    %2148 = vmatprep.subr.mxu0 %v1414
    %2149 = vmatpush1.msra.mxu0 %v1413
    %2150 = vmatprep.subr.mxu0 %v1418
    %2151 = vmatpush1.msra.mxu0 %v1417
    %2152 = vmatprep.subr.mxu0 %v1422
    %2153 = vmatpush1.msra.mxu0 %v1421
    %2154 = vmatprep.subr.mxu0 %v1426
    %2155 = vmatpush1.msra.mxu0 %v1425
    %2156 = vmatprep.subr.mxu0 %v1430
    %2157 = vmatpush1.msra.mxu0 %v1429
    %2158 = vmatprep.subr.mxu0 %v1434
    %2159 = vmatpush1.msra.mxu0 %v1433
    %2160 = vmatprep.subr.mxu0 %v1438
    %2161 = vmatpush1.msra.mxu0 %v1437
    %2162 = vmatprep.subr.mxu0 %v1442
    %2163 = vmatpush1.msra.mxu0 %v1441
    %2164 = vmatprep.subr.mxu0 %v1446
    %2165 = vmatpush1.msra.mxu0 %v1445
    %2166 = vmatprep.subr.mxu0 %v1450
    %2167 = vmatpush1.msra.mxu0 %v1449
    %2168 = vmatprep.subr.mxu0 %v1454
    %2169 = vmatpush1.msra.mxu0 %v1453
    %2170 = vmatprep.subr.mxu0 %v1458
    %2171 = vmatpush1.msra.mxu0 %v1457
    %2172 = vmatprep.subr.mxu0 %v1462
    %2173 = vmatpush1.msra.mxu0 %v1461
    %2174 = vmatprep.subr.mxu0 %v1466
    %2175 = vmatpush1.msra.mxu0 %v1465
    %2176 = vmatprep.subr.mxu0 %v1470
    %2177 = vmatpush1.msra.mxu0 %v1469
    %2178 = vmatprep.subr.mxu0 %v1474
    %2179 = vmatpush1.msra.mxu0 %v1473
    %2180 = vmatprep.subr.mxu0 %v1478
    %2181 = vmatpush1.msra.mxu0 %v1477
    %2182 = vmatprep.subr.mxu0 %v1482
    %2183 = vmatpush1.msra.mxu0 %v1481
    %2184 = vmatprep.subr.mxu0 %v1486
    %2185 = vmatpush1.msra.mxu0 %v1485
    %2186 = vmatprep.subr.mxu0 %v1490
    %2187 = vmatpush1.msra.mxu0 %v1489
    %2188 = vmatprep.subr.mxu0 %v1494
    %2189 = vmatpush1.msra.mxu0 %v1493
    %2190 = vmatprep.subr.mxu0 %v1498
    %2191 = vmatpush1.msra.mxu0 %v1497
    %2192 = vmatprep.subr.mxu0 %v1502
    %2193 = vmatpush1.msra.mxu0 %v1501
    %2194 = vmatprep.subr.mxu0 %v1506
    %2195 = vmatpush1.msra.mxu0 %v1505
    %2196 = vmatprep.subr.mxu0 %v1510
    %2197 = vmatpush1.msra.mxu0 %v1509
    %2198 = vmatprep.subr.mxu0 %v1514
    %2199 = vmatpush1.msra.mxu0 %v1513
    %2200 = vmatprep.subr.mxu0 %v1518
    %2201 = vmatpush1.msra.mxu0 %v1517
    %2202 = vmatprep.subr.mxu0 %v1522
    %2203 = vmatpush1.msra.mxu0 %v1521
    %2204 = vmatprep.subr.mxu0 %v1526
    %2205 = vmatpush1.msra.mxu0 %v1525
    %2206 = vmatprep.subr.mxu0 %v1530
    %2207 = vmatpush1.msra.mxu0 %v1529
    %2208 = vmatprep.subr.mxu0 %v1534
    %2209 = vmatpush1.msra.mxu0 %v1533
    %2210 = vmatprep.mubr.f32.mxu0 %v1266
    %2211 = vmatmul.mubr.f32.gmra.mrb[0].mxu0 %v1265
    %v2212 = vpop.f32.mrb[0].mxu0
    %v2213 = vadd.f32 %v2142, %v2212
    %v2214 = vpop.f32.mrb[0].mxu0
    %v2215 = vadd.f32 %v2144, %v2214
    %2216 = vdwg.mxu0
    %2217 = vmatprep.subr.mxu0 %v1538
    %2218 = vmatpush1.msra.mxu0 %v1537
    %2219 = vmatprep.subr.mxu0 %v1542
    %2220 = vmatpush1.msra.mxu0 %v1541
    %2221 = vmatprep.subr.mxu0 %v1546
    %2222 = vmatpush1.msra.mxu0 %v1545
    %2223 = vmatprep.subr.mxu0 %v1550
    %2224 = vmatpush1.msra.mxu0 %v1549
    %2225 = vmatprep.subr.mxu0 %v1554
    %2226 = vmatpush1.msra.mxu0 %v1553
    %2227 = vmatprep.subr.mxu0 %v1558
    %2228 = vmatpush1.msra.mxu0 %v1557
    %2229 = vmatprep.subr.mxu0 %v1562
    %2230 = vmatpush1.msra.mxu0 %v1561
    %2231 = vmatprep.subr.mxu0 %v1566
    %2232 = vmatpush1.msra.mxu0 %v1565
    %2233 = vmatprep.subr.mxu0 %v1570
    %2234 = vmatpush1.msra.mxu0 %v1569
    %2235 = vmatprep.subr.mxu0 %v1574
    %2236 = vmatpush1.msra.mxu0 %v1573
    %2237 = vmatprep.subr.mxu0 %v1578
    %2238 = vmatpush1.msra.mxu0 %v1577
    %2239 = vmatprep.subr.mxu0 %v1582
    %2240 = vmatpush1.msra.mxu0 %v1581
    %2241 = vmatprep.subr.mxu0 %v1586
    %2242 = vmatpush1.msra.mxu0 %v1585
    %2243 = vmatprep.subr.mxu0 %v1590
    %2244 = vmatpush1.msra.mxu0 %v1589
    %2245 = vmatprep.subr.mxu0 %v1594
    %2246 = vmatpush1.msra.mxu0 %v1593
    %2247 = vmatprep.subr.mxu0 %v1598
    %2248 = vmatpush1.msra.mxu0 %v1597
    %2249 = vmatprep.subr.mxu0 %v1602
    %2250 = vmatpush1.msra.mxu0 %v1601
    %2251 = vmatprep.subr.mxu0 %v1606
    %2252 = vmatpush1.msra.mxu0 %v1605
    %2253 = vmatprep.subr.mxu0 %v1610
    %2254 = vmatpush1.msra.mxu0 %v1609
    %2255 = vmatprep.subr.mxu0 %v1614
    %2256 = vmatpush1.msra.mxu0 %v1613
    %2257 = vmatprep.subr.mxu0 %v1618
    %2258 = vmatpush1.msra.mxu0 %v1617
    %2259 = vmatprep.subr.mxu0 %v1622
    %2260 = vmatpush1.msra.mxu0 %v1621
    %2261 = vmatprep.subr.mxu0 %v1626
    %2262 = vmatpush1.msra.mxu0 %v1625
    %2263 = vmatprep.subr.mxu0 %v1630
    %2264 = vmatpush1.msra.mxu0 %v1629
    %2265 = vmatprep.subr.mxu0 %v1634
    %2266 = vmatpush1.msra.mxu0 %v1633
    %2267 = vmatprep.subr.mxu0 %v1638
    %2268 = vmatpush1.msra.mxu0 %v1637
    %2269 = vmatprep.subr.mxu0 %v1642
    %2270 = vmatpush1.msra.mxu0 %v1641
    %2271 = vmatprep.subr.mxu0 %v1646
    %2272 = vmatpush1.msra.mxu0 %v1645
    %2273 = vmatprep.subr.mxu0 %v1650
    %2274 = vmatpush1.msra.mxu0 %v1649
    %2275 = vmatprep.subr.mxu0 %v1654
    %2276 = vmatpush1.msra.mxu0 %v1653
    %2277 = vmatprep.subr.mxu0 %v1658
    %2278 = vmatpush1.msra.mxu0 %v1657
    %2279 = vmatprep.subr.mxu0 %v1662
    %2280 = vmatpush1.msra.mxu0 %v1661
    %2281 = vmatprep.mubr.f32.mxu0 %v1276
    %2282 = vmatmul.mubr.f32.gmra.mrb[0].mxu0 %v1275
    %v2283 = vpop.f32.mrb[0].mxu0
    %v2284 = vadd.f32 %v2213, %v2283
    %v2285 = vpop.f32.mrb[0].mxu0
    %v2286 = vadd.f32 %v2215, %v2285
    %2287 = vdwg.mxu0
    %2288 = vmatprep.subr.mxu0 %v1666
    %2289 = vmatpush1.msra.mxu0 %v1665
    %2290 = vmatprep.subr.mxu0 %v1670
    %2291 = vmatpush1.msra.mxu0 %v1669
    %2292 = vmatprep.subr.mxu0 %v1674
    %2293 = vmatpush1.msra.mxu0 %v1673
    %2294 = vmatprep.subr.mxu0 %v1678
    %2295 = vmatpush1.msra.mxu0 %v1677
    %2296 = vmatprep.subr.mxu0 %v1682
    %2297 = vmatpush1.msra.mxu0 %v1681
    %2298 = vmatprep.subr.mxu0 %v1686
    %2299 = vmatpush1.msra.mxu0 %v1685
    %2300 = vmatprep.subr.mxu0 %v1690
    %2301 = vmatpush1.msra.mxu0 %v1689
    %2302 = vmatprep.subr.mxu0 %v1694
    %2303 = vmatpush1.msra.mxu0 %v1693
    %2304 = vmatprep.subr.mxu0 %v1698
    %2305 = vmatpush1.msra.mxu0 %v1697
    %2306 = vmatprep.subr.mxu0 %v1702
    %2307 = vmatpush1.msra.mxu0 %v1701
    %2308 = vmatprep.subr.mxu0 %v1706
    %2309 = vmatpush1.msra.mxu0 %v1705
    %2310 = vmatprep.subr.mxu0 %v1710
    %2311 = vmatpush1.msra.mxu0 %v1709
    %2312 = vmatprep.subr.mxu0 %v1714
    %2313 = vmatpush1.msra.mxu0 %v1713
    %2314 = vmatprep.subr.mxu0 %v1718
    %2315 = vmatpush1.msra.mxu0 %v1717
    %2316 = vmatprep.subr.mxu0 %v1722
    %2317 = vmatpush1.msra.mxu0 %v1721
    %2318 = vmatprep.subr.mxu0 %v1726
    %2319 = vmatpush1.msra.mxu0 %v1725
    %2320 = vmatprep.subr.mxu0 %v1730
    %2321 = vmatpush1.msra.mxu0 %v1729
    %2322 = vmatprep.subr.mxu0 %v1734
    %2323 = vmatpush1.msra.mxu0 %v1733
    %2324 = vmatprep.subr.mxu0 %v1738
    %2325 = vmatpush1.msra.mxu0 %v1737
    %2326 = vmatprep.subr.mxu0 %v1742
    %2327 = vmatpush1.msra.mxu0 %v1741
    %2328 = vmatprep.subr.mxu0 %v1746
    %2329 = vmatpush1.msra.mxu0 %v1745
    %2330 = vmatprep.subr.mxu0 %v1750
    %2331 = vmatpush1.msra.mxu0 %v1749
    %2332 = vmatprep.subr.mxu0 %v1754
    %2333 = vmatpush1.msra.mxu0 %v1753
    %2334 = vmatprep.subr.mxu0 %v1758
    %2335 = vmatpush1.msra.mxu0 %v1757
    %2336 = vmatprep.subr.mxu0 %v1762
    %2337 = vmatpush1.msra.mxu0 %v1761
    %2338 = vmatprep.subr.mxu0 %v1766
    %2339 = vmatpush1.msra.mxu0 %v1765
    %2340 = vmatprep.subr.mxu0 %v1770
    %2341 = vmatpush1.msra.mxu0 %v1769
    %2342 = vmatprep.subr.mxu0 %v1774
    %2343 = vmatpush1.msra.mxu0 %v1773
    %2344 = vmatprep.subr.mxu0 %v1778
    %2345 = vmatpush1.msra.mxu0 %v1777
    %2346 = vmatprep.subr.mxu0 %v1782
    %2347 = vmatpush1.msra.mxu0 %v1781
    %2348 = vmatprep.subr.mxu0 %v1786
    %2349 = vmatpush1.msra.mxu0 %v1785
    %2350 = vmatprep.subr.mxu0 %v1790
    %2351 = vmatpush1.msra.mxu0 %v1789
    %2352 = vmatprep.mubr.f32.mxu0 %v1278
    %2353 = vmatmul.mubr.f32.gmra.mrb[0].mxu0 %v1277
    %v2354 = vpop.f32.mrb[0].mxu0
    %v2355 = vadd.f32 %v2284, %v2354
    %v2356 = vpop.f32.mrb[0].mxu0
    %v2357 = vadd.f32 %v2286, %v2356
    %2358 = vdwg.mxu0
    %2359 = vrot.lane.b32.xlu0 %v2071, 33
    %v2360 = vpop.permute.xlu0 %2359
    %2361 = vrot.lane.b32.xlu0 %v2073, 33
    %v2362 = vpop.permute.xlu0 %2361
    %2363 = vrot.lane.b32.xlu0 %v2355, 33
    %v2364 = vpop.permute.xlu0 %2363
    %2365 = vrot.lane.b32.xlu0 %v2357, 33
    %v2366 = vpop.permute.xlu0 %2365
    %v2367 = vlaneseq
    %v2368 = vand.u32 %v2367, 127
    %vm2369 = vcmp.lt.s32.totalorder %v2368, 33
    %v2370 = vsel %vm2369, %v2364, %v2366
    %v2371 = vsel %vm2369, %v2362, %v2364
    %v2372 = vsel %vm2369, %v2360, %v2362
    %v2373 = vsel %vm2369, %v2366, %v2360
    %v2374 = vld [vmem:[#allocation7] sm:$0xf]
    %v2376 = vlaneseq
    %v2377 = vshrl.u32 %v2376, 7
    %v2378 = vsub.s32 0, %v2377
    %v2379 = vrot.slane %v2374, %v2378
    %v2380 = vlaneseq
    %v2381 = vshrl.u32 %v2380, 7
    %v2382 = vsub.s32 1, %v2381
    %v2383 = vrot.slane %v2374, %v2382
    %v2384 = vlaneseq
    %v2385 = vshrl.u32 %v2384, 7
    %v2386 = vsub.s32 2, %v2385
    %v2387 = vrot.slane %v2374, %v2386
    %v2388 = vlaneseq
    %v2389 = vshrl.u32 %v2388, 7
    %v2390 = vsub.s32 3, %v2389
    %v2391 = vrot.slane %v2374, %v2390
    %v2396 = vmul.f32 %v2373, %v2379
    %v2397 = vmul.f32 %v2372, %v2383
    %v2398 = vmul.f32 %v2371, %v2387
    %v2399 = vmul.f32 %v2370, %v2391
    %v2400 = vld [vmem:[%s5] sm:$0xff]
    %2401 = vrot.lane.b32.xlu0 %v2071, 32
    %v2402 = vpop.permute.xlu0 %2401
    %2403 = vrot.lane.b32.xlu0 %v2073, 32
    %v2404 = vpop.permute.xlu0 %2403
    %2405 = vrot.lane.b32.xlu0 %v2355, 32
    %v2406 = vpop.permute.xlu0 %2405
    %2407 = vrot.lane.b32.xlu0 %v2357, 32
    %v2408 = vpop.permute.xlu0 %2407
    %vm2409 = vcmp.lt.s32.totalorder %v2368, 32
    %v2410 = vsel %vm2409, %v2406, %v2408
    %v2411 = vsel %vm2409, %v2404, %v2406
    %v2412 = vsel %vm2409, %v2402, %v2404
    %v2413 = vsel %vm2409, %v2408, %v2402
    %s2414 = scalar_lea.vmem [#allocation7], 4
    %v2415 = vld [vmem:[%s2414] sm:$0xf]
    %v2417 = vlaneseq
    %v2418 = vshrl.u32 %v2417, 7
    %v2419 = vsub.s32 0, %v2418
    %v2420 = vrot.slane %v2415, %v2419
    %v2421 = vlaneseq
    %v2422 = vshrl.u32 %v2421, 7
    %v2423 = vsub.s32 1, %v2422
    %v2424 = vrot.slane %v2415, %v2423
    %v2425 = vlaneseq
    %v2426 = vshrl.u32 %v2425, 7
    %v2427 = vsub.s32 2, %v2426
    %v2428 = vrot.slane %v2415, %v2427
    %v2429 = vlaneseq
    %v2430 = vshrl.u32 %v2429, 7
    %v2431 = vsub.s32 3, %v2430
    %v2432 = vrot.slane %v2415, %v2431
    %v2437 = vmul.f32 %v2413, %v2420
    %v2438 = vmul.f32 %v2412, %v2424
    %v2439 = vmul.f32 %v2411, %v2428
    %v2440 = vmul.f32 %v2410, %v2432
    %s2441 = scalar_lea.vmem %s5, 8
    %v2442 = vld [vmem:[%s2441] sm:$0xff]
    %vm2443 = vcmask 31744
    %v2445 = vsel %vm2443, %v2442, 0
    %vm2447 = vcmask 1043456
    %v2449 = vsel %vm2447, %v2437, 0
    %v2452 = vsel %vm2447, %v2438, 0
    %v2455 = vsel %vm2447, %v2439, 0
    %v2458 = vsel %vm2447, %v2440, 0
    %2460 = vmatprep.subr.mxu0 %v2452
    %2461 = vmatpush1.msra.mxu0 %v2449
    %2462 = vmatprep.subr.mxu0 0.0
    %2463 = vmatpush1.msra.mxu0 0.0
    %2464 = vmatprep.subr.mxu0 0.0
    %2465 = vmatpush1.msra.mxu0 0.0
    %2466 = vmatprep.subr.mxu0 0.0
    %2467 = vmatpush1.msra.mxu0 0.0
    %2468 = vmatprep.subr.mxu0 0.0
    %2469 = vmatpush1.msra.mxu0 0.0
    %2470 = vmatprep.subr.mxu0 0.0
    %2471 = vmatpush1.msra.mxu0 0.0
    %2472 = vmatprep.subr.mxu0 0.0
    %2473 = vmatpush1.msra.mxu0 0.0
    %2474 = vmatprep.subr.mxu0 0.0
    %2475 = vmatpush1.msra.mxu0 0.0
    %2476 = vmatprep.subr.mxu0 0.0
    %2477 = vmatpush1.msra.mxu0 0.0
    %2478 = vmatprep.subr.mxu0 0.0
    %2479 = vmatpush1.msra.mxu0 0.0
    %2480 = vmatprep.subr.mxu0 0.0
    %2481 = vmatpush1.msra.mxu0 0.0
    %2482 = vmatprep.subr.mxu0 0.0
    %2483 = vmatpush1.msra.mxu0 0.0
    %2484 = vmatprep.subr.mxu0 0.0
    %2485 = vmatpush1.msra.mxu0 0.0
    %2486 = vmatprep.subr.mxu0 0.0
    %2487 = vmatpush1.msra.mxu0 0.0
    %2488 = vmatprep.subr.mxu0 0.0
    %2489 = vmatpush1.msra.mxu0 0.0
    %2490 = vmatprep.subr.mxu0 0.0
    %2491 = vmatpush1.msra.mxu0 0.0
    %2492 = vmatprep.subr.mxu0 0.0
    %2493 = vmatpush1.msra.mxu0 0.0
    %2494 = vmatprep.subr.mxu0 0.0
    %2495 = vmatpush1.msra.mxu0 0.0
    %2496 = vmatprep.subr.mxu0 0.0
    %2497 = vmatpush1.msra.mxu0 0.0
    %2498 = vmatprep.subr.mxu0 0.0
    %2499 = vmatpush1.msra.mxu0 0.0
    %2500 = vmatprep.subr.mxu0 0.0
    %2501 = vmatpush1.msra.mxu0 0.0
    %2502 = vmatprep.subr.mxu0 0.0
    %2503 = vmatpush1.msra.mxu0 0.0
    %2504 = vmatprep.subr.mxu0 0.0
    %2505 = vmatpush1.msra.mxu0 0.0
    %2506 = vmatprep.subr.mxu0 0.0
    %2507 = vmatpush1.msra.mxu0 0.0
    %2508 = vmatprep.subr.mxu0 0.0
    %2509 = vmatpush1.msra.mxu0 0.0
    %2510 = vmatprep.subr.mxu0 0.0
    %2511 = vmatpush1.msra.mxu0 0.0
    %2512 = vmatprep.subr.mxu0 0.0
    %2513 = vmatpush1.msra.mxu0 0.0
    %2514 = vmatprep.subr.mxu0 0.0
    %2515 = vmatpush1.msra.mxu0 0.0
    %2516 = vmatprep.subr.mxu0 0.0
    %2517 = vmatpush1.msra.mxu0 0.0
    %2518 = vmatprep.subr.mxu0 0.0
    %2519 = vmatpush1.msra.mxu0 0.0
    %2520 = vmatprep.subr.mxu0 0.0
    %2521 = vmatpush1.msra.mxu0 0.0
    %2522 = vmatprep.subr.mxu0 0.0
    %2523 = vmatpush1.msra.mxu0 0.0
    %2524 = vmatprep.mubr.f32.mxu0 0.0
    %2525 = vmatmul.mubr.f32.gmra.mrb[0].mxu0 %v2445
    %v2526 = vpop.f32.mrb[0].mxu0
    %v2527 = vadd.f32 0.0, %v2526
    %v2528 = vpop.f32.mrb[0].mxu0
    %v2529 = vadd.f32 0.0, %v2528
    %2530 = vdwg.mxu0
    %2531 = vmatprep.subr.mxu0 %v2458
    %2532 = vmatpush1.msra.mxu0 %v2455
    %2533 = vmatprep.subr.mxu0 0.0
    %2534 = vmatpush1.msra.mxu0 0.0
    %2535 = vmatprep.subr.mxu0 0.0
    %2536 = vmatpush1.msra.mxu0 0.0
    %2537 = vmatprep.subr.mxu0 0.0
    %2538 = vmatpush1.msra.mxu0 0.0
    %2539 = vmatprep.subr.mxu0 0.0
    %2540 = vmatpush1.msra.mxu0 0.0
    %2541 = vmatprep.subr.mxu0 0.0
    %2542 = vmatpush1.msra.mxu0 0.0
    %2543 = vmatprep.subr.mxu0 0.0
    %2544 = vmatpush1.msra.mxu0 0.0
    %2545 = vmatprep.subr.mxu0 0.0
    %2546 = vmatpush1.msra.mxu0 0.0
    %2547 = vmatprep.subr.mxu0 0.0
    %2548 = vmatpush1.msra.mxu0 0.0
    %2549 = vmatprep.subr.mxu0 0.0
    %2550 = vmatpush1.msra.mxu0 0.0
    %2551 = vmatprep.subr.mxu0 0.0
    %2552 = vmatpush1.msra.mxu0 0.0
    %2553 = vmatprep.subr.mxu0 0.0
    %2554 = vmatpush1.msra.mxu0 0.0
    %2555 = vmatprep.subr.mxu0 0.0
    %2556 = vmatpush1.msra.mxu0 0.0
    %2557 = vmatprep.subr.mxu0 0.0
    %2558 = vmatpush1.msra.mxu0 0.0
    %2559 = vmatprep.subr.mxu0 0.0
    %2560 = vmatpush1.msra.mxu0 0.0
    %2561 = vmatprep.subr.mxu0 0.0
    %2562 = vmatpush1.msra.mxu0 0.0
    %2563 = vmatprep.subr.mxu0 0.0
    %2564 = vmatpush1.msra.mxu0 0.0
    %2565 = vmatprep.subr.mxu0 0.0
    %2566 = vmatpush1.msra.mxu0 0.0
    %2567 = vmatprep.subr.mxu0 0.0
    %2568 = vmatpush1.msra.mxu0 0.0
    %2569 = vmatprep.subr.mxu0 0.0
    %2570 = vmatpush1.msra.mxu0 0.0
    %2571 = vmatprep.subr.mxu0 0.0
    %2572 = vmatpush1.msra.mxu0 0.0
    %2573 = vmatprep.subr.mxu0 0.0
    %2574 = vmatpush1.msra.mxu0 0.0
    %2575 = vmatprep.subr.mxu0 0.0
    %2576 = vmatpush1.msra.mxu0 0.0
    %2577 = vmatprep.subr.mxu0 0.0
    %2578 = vmatpush1.msra.mxu0 0.0
    %2579 = vmatprep.subr.mxu0 0.0
    %2580 = vmatpush1.msra.mxu0 0.0
    %2581 = vmatprep.subr.mxu0 0.0
    %2582 = vmatpush1.msra.mxu0 0.0
    %2583 = vmatprep.subr.mxu0 0.0
    %2584 = vmatpush1.msra.mxu0 0.0
    %2585 = vmatprep.subr.mxu0 0.0
    %2586 = vmatpush1.msra.mxu0 0.0
    %2587 = vmatprep.subr.mxu0 0.0
    %2588 = vmatpush1.msra.mxu0 0.0
    %2589 = vmatprep.subr.mxu0 0.0
    %2590 = vmatpush1.msra.mxu0 0.0
    %2591 = vmatprep.subr.mxu0 0.0
    %2592 = vmatpush1.msra.mxu0 0.0
    %2593 = vmatprep.subr.mxu0 0.0
    %2594 = vmatpush1.msra.mxu0 0.0
    %2595 = vmatprep.mubr.f32.mxu0 0.0
    %2596 = vmatmul.mubr.f32.gmra.mrb[0].mxu0 %v2445
    %v2597 = vpop.f32.mrb[0].mxu0
    %v2598 = vadd.f32 0.0, %v2597
    %v2599 = vpop.f32.mrb[0].mxu0
    %v2600 = vadd.f32 0.0, %v2599
    %2601 = vdwg.mxu0
    %v2603 = vsel %vm2443, %v2400, 0
    %v2606 = vsel %vm2447, %v2396, 0
    %v2609 = vsel %vm2447, %v2397, 0
    %v2612 = vsel %vm2447, %v2398, 0
    %v2615 = vsel %vm2447, %v2399, 0
    %2617 = vmatprep.subr.mxu0 %v2609
    %2618 = vmatpush1.msra.mxu0 %v2606
    %2619 = vmatprep.subr.mxu0 0.0
    %2620 = vmatpush1.msra.mxu0 0.0
    %2621 = vmatprep.subr.mxu0 0.0
    %2622 = vmatpush1.msra.mxu0 0.0
    %2623 = vmatprep.subr.mxu0 0.0
    %2624 = vmatpush1.msra.mxu0 0.0
    %2625 = vmatprep.subr.mxu0 0.0
    %2626 = vmatpush1.msra.mxu0 0.0
    %2627 = vmatprep.subr.mxu0 0.0
    %2628 = vmatpush1.msra.mxu0 0.0
    %2629 = vmatprep.subr.mxu0 0.0
    %2630 = vmatpush1.msra.mxu0 0.0
    %2631 = vmatprep.subr.mxu0 0.0
    %2632 = vmatpush1.msra.mxu0 0.0
    %2633 = vmatprep.subr.mxu0 0.0
    %2634 = vmatpush1.msra.mxu0 0.0
    %2635 = vmatprep.subr.mxu0 0.0
    %2636 = vmatpush1.msra.mxu0 0.0
    %2637 = vmatprep.subr.mxu0 0.0
    %2638 = vmatpush1.msra.mxu0 0.0
    %2639 = vmatprep.subr.mxu0 0.0
    %2640 = vmatpush1.msra.mxu0 0.0
    %2641 = vmatprep.subr.mxu0 0.0
    %2642 = vmatpush1.msra.mxu0 0.0
    %2643 = vmatprep.subr.mxu0 0.0
    %2644 = vmatpush1.msra.mxu0 0.0
    %2645 = vmatprep.subr.mxu0 0.0
    %2646 = vmatpush1.msra.mxu0 0.0
    %2647 = vmatprep.subr.mxu0 0.0
    %2648 = vmatpush1.msra.mxu0 0.0
    %2649 = vmatprep.subr.mxu0 0.0
    %2650 = vmatpush1.msra.mxu0 0.0
    %2651 = vmatprep.subr.mxu0 0.0
    %2652 = vmatpush1.msra.mxu0 0.0
    %2653 = vmatprep.subr.mxu0 0.0
    %2654 = vmatpush1.msra.mxu0 0.0
    %2655 = vmatprep.subr.mxu0 0.0
    %2656 = vmatpush1.msra.mxu0 0.0
    %2657 = vmatprep.subr.mxu0 0.0
    %2658 = vmatpush1.msra.mxu0 0.0
    %2659 = vmatprep.subr.mxu0 0.0
    %2660 = vmatpush1.msra.mxu0 0.0
    %2661 = vmatprep.subr.mxu0 0.0
    %2662 = vmatpush1.msra.mxu0 0.0
    %2663 = vmatprep.subr.mxu0 0.0
    %2664 = vmatpush1.msra.mxu0 0.0
    %2665 = vmatprep.subr.mxu0 0.0
    %2666 = vmatpush1.msra.mxu0 0.0
    %2667 = vmatprep.subr.mxu0 0.0
    %2668 = vmatpush1.msra.mxu0 0.0
    %2669 = vmatprep.subr.mxu0 0.0
    %2670 = vmatpush1.msra.mxu0 0.0
    %2671 = vmatprep.subr.mxu0 0.0
    %2672 = vmatpush1.msra.mxu0 0.0
    %2673 = vmatprep.subr.mxu0 0.0
    %2674 = vmatpush1.msra.mxu0 0.0
    %2675 = vmatprep.subr.mxu0 0.0
    %2676 = vmatpush1.msra.mxu0 0.0
    %2677 = vmatprep.subr.mxu0 0.0
    %2678 = vmatpush1.msra.mxu0 0.0
    %2679 = vmatprep.subr.mxu0 0.0
    %2680 = vmatpush1.msra.mxu0 0.0
    %2681 = vmatprep.mubr.f32.mxu0 0.0
    %2682 = vmatmul.mubr.f32.gmra.mrb[0].mxu0 %v2603
    %v2683 = vpop.f32.mrb[0].mxu0
    %v2684 = vadd.f32 %v2527, %v2683
    %v2685 = vpop.f32.mrb[0].mxu0
    %v2686 = vadd.f32 %v2529, %v2685
    %2687 = vdwg.mxu0
    %2688 = vmatprep.subr.mxu0 %v2615
    %2689 = vmatpush1.msra.mxu0 %v2612
    %2690 = vmatprep.subr.mxu0 0.0
    %2691 = vmatpush1.msra.mxu0 0.0
    %2692 = vmatprep.subr.mxu0 0.0
    %2693 = vmatpush1.msra.mxu0 0.0
    %2694 = vmatprep.subr.mxu0 0.0
    %2695 = vmatpush1.msra.mxu0 0.0
    %2696 = vmatprep.subr.mxu0 0.0
    %2697 = vmatpush1.msra.mxu0 0.0
    %2698 = vmatprep.subr.mxu0 0.0
    %2699 = vmatpush1.msra.mxu0 0.0
    %2700 = vmatprep.subr.mxu0 0.0
    %2701 = vmatpush1.msra.mxu0 0.0
    %2702 = vmatprep.subr.mxu0 0.0
    %2703 = vmatpush1.msra.mxu0 0.0
    %2704 = vmatprep.subr.mxu0 0.0
    %2705 = vmatpush1.msra.mxu0 0.0
    %2706 = vmatprep.subr.mxu0 0.0
    %2707 = vmatpush1.msra.mxu0 0.0
    %2708 = vmatprep.subr.mxu0 0.0
    %2709 = vmatpush1.msra.mxu0 0.0
    %2710 = vmatprep.subr.mxu0 0.0
    %2711 = vmatpush1.msra.mxu0 0.0
    %2712 = vmatprep.subr.mxu0 0.0
    %2713 = vmatpush1.msra.mxu0 0.0
    %2714 = vmatprep.subr.mxu0 0.0
    %2715 = vmatpush1.msra.mxu0 0.0
    %2716 = vmatprep.subr.mxu0 0.0
    %2717 = vmatpush1.msra.mxu0 0.0
    %2718 = vmatprep.subr.mxu0 0.0
    %2719 = vmatpush1.msra.mxu0 0.0
    %2720 = vmatprep.subr.mxu0 0.0
    %2721 = vmatpush1.msra.mxu0 0.0
    %2722 = vmatprep.subr.mxu0 0.0
    %2723 = vmatpush1.msra.mxu0 0.0
    %2724 = vmatprep.subr.mxu0 0.0
    %2725 = vmatpush1.msra.mxu0 0.0
    %2726 = vmatprep.subr.mxu0 0.0
    %2727 = vmatpush1.msra.mxu0 0.0
    %2728 = vmatprep.subr.mxu0 0.0
    %2729 = vmatpush1.msra.mxu0 0.0
    %2730 = vmatprep.subr.mxu0 0.0
    %2731 = vmatpush1.msra.mxu0 0.0
    %2732 = vmatprep.subr.mxu0 0.0
    %2733 = vmatpush1.msra.mxu0 0.0
    %2734 = vmatprep.subr.mxu0 0.0
    %2735 = vmatpush1.msra.mxu0 0.0
    %2736 = vmatprep.subr.mxu0 0.0
    %2737 = vmatpush1.msra.mxu0 0.0
    %2738 = vmatprep.subr.mxu0 0.0
    %2739 = vmatpush1.msra.mxu0 0.0
    %2740 = vmatprep.subr.mxu0 0.0
    %2741 = vmatpush1.msra.mxu0 0.0
    %2742 = vmatprep.subr.mxu0 0.0
    %2743 = vmatpush1.msra.mxu0 0.0
    %2744 = vmatprep.subr.mxu0 0.0
    %2745 = vmatpush1.msra.mxu0 0.0
    %2746 = vmatprep.subr.mxu0 0.0
    %2747 = vmatpush1.msra.mxu0 0.0
    %2748 = vmatprep.subr.mxu0 0.0
    %2749 = vmatpush1.msra.mxu0 0.0
    %2750 = vmatprep.subr.mxu0 0.0
    %2751 = vmatpush1.msra.mxu0 0.0
    %2752 = vmatprep.mubr.f32.mxu0 0.0
    %2753 = vmatmul.mubr.f32.gmra.mrb[0].mxu0 %v2603
    %v2754 = vpop.f32.mrb[0].mxu0
    %v2755 = vadd.f32 %v2598, %v2754
    %v2756 = vpop.f32.mrb[0].mxu0
    %v2757 = vadd.f32 %v2600, %v2756
    %2758 = vdwg.mxu0
    %2759 = vrot.lane.b32.xlu0 %v2071, 31
    %v2760 = vpop.permute.xlu0 %2759
    %2761 = vrot.lane.b32.xlu0 %v2073, 31
    %v2762 = vpop.permute.xlu0 %2761
    %2763 = vrot.lane.b32.xlu0 %v2355, 31
    %v2764 = vpop.permute.xlu0 %2763
    %2765 = vrot.lane.b32.xlu0 %v2357, 31
    %v2766 = vpop.permute.xlu0 %2765
    %vm2767 = vcmp.lt.s32.totalorder %v2368, 31
    %v2768 = vsel %vm2767, %v2764, %v2766
    %v2769 = vsel %vm2767, %v2762, %v2764
    %v2770 = vsel %vm2767, %v2760, %v2762
    %v2771 = vsel %vm2767, %v2766, %v2760
    %s2772 = scalar_lea.vmem [#allocation7], 8
    %v2773 = vld [vmem:[%s2772] sm:$0xf]
    %v2775 = vlaneseq
    %v2776 = vshrl.u32 %v2775, 7
    %v2777 = vsub.s32 0, %v2776
    %v2778 = vrot.slane %v2773, %v2777
    %v2779 = vlaneseq
    %v2780 = vshrl.u32 %v2779, 7
    %v2781 = vsub.s32 1, %v2780
    %v2782 = vrot.slane %v2773, %v2781
    %v2783 = vlaneseq
    %v2784 = vshrl.u32 %v2783, 7
    %v2785 = vsub.s32 2, %v2784
    %v2786 = vrot.slane %v2773, %v2785
    %v2787 = vlaneseq
    %v2788 = vshrl.u32 %v2787, 7
    %v2789 = vsub.s32 3, %v2788
    %v2790 = vrot.slane %v2773, %v2789
    %v2795 = vmul.f32 %v2771, %v2778
    %v2796 = vmul.f32 %v2770, %v2782
    %v2797 = vmul.f32 %v2769, %v2786
    %v2798 = vmul.f32 %v2768, %v2790
    %s2799 = scalar_lea.vmem %s5, 16
    %v2800 = vld [vmem:[%s2799] sm:$0xff]
    %v2802 = vsel %vm2443, %v2800, 0
    %v2805 = vsel %vm2447, %v2795, 0
    %v2808 = vsel %vm2447, %v2796, 0
    %v2811 = vsel %vm2447, %v2797, 0
    %v2814 = vsel %vm2447, %v2798, 0
    %2816 = vmatprep.subr.mxu0 %v2808
    %2817 = vmatpush1.msra.mxu0 %v2805
    %2818 = vmatprep.subr.mxu0 0.0
    %2819 = vmatpush1.msra.mxu0 0.0
    %2820 = vmatprep.subr.mxu0 0.0
    %2821 = vmatpush1.msra.mxu0 0.0
    %2822 = vmatprep.subr.mxu0 0.0
    %2823 = vmatpush1.msra.mxu0 0.0
    %2824 = vmatprep.subr.mxu0 0.0
    %2825 = vmatpush1.msra.mxu0 0.0
    %2826 = vmatprep.subr.mxu0 0.0
    %2827 = vmatpush1.msra.mxu0 0.0
    %2828 = vmatprep.subr.mxu0 0.0
    %2829 = vmatpush1.msra.mxu0 0.0
    %2830 = vmatprep.subr.mxu0 0.0
    %2831 = vmatpush1.msra.mxu0 0.0
    %2832 = vmatprep.subr.mxu0 0.0
    %2833 = vmatpush1.msra.mxu0 0.0
    %2834 = vmatprep.subr.mxu0 0.0
    %2835 = vmatpush1.msra.mxu0 0.0
    %2836 = vmatprep.subr.mxu0 0.0
    %2837 = vmatpush1.msra.mxu0 0.0
    %2838 = vmatprep.subr.mxu0 0.0
    %2839 = vmatpush1.msra.mxu0 0.0
    %2840 = vmatprep.subr.mxu0 0.0
    %2841 = vmatpush1.msra.mxu0 0.0
    %2842 = vmatprep.subr.mxu0 0.0
    %2843 = vmatpush1.msra.mxu0 0.0
    %2844 = vmatprep.subr.mxu0 0.0
    %2845 = vmatpush1.msra.mxu0 0.0
    %2846 = vmatprep.subr.mxu0 0.0
    %2847 = vmatpush1.msra.mxu0 0.0
    %2848 = vmatprep.subr.mxu0 0.0
    %2849 = vmatpush1.msra.mxu0 0.0
    %2850 = vmatprep.subr.mxu0 0.0
    %2851 = vmatpush1.msra.mxu0 0.0
    %2852 = vmatprep.subr.mxu0 0.0
    %2853 = vmatpush1.msra.mxu0 0.0
    %2854 = vmatprep.subr.mxu0 0.0
    %2855 = vmatpush1.msra.mxu0 0.0
    %2856 = vmatprep.subr.mxu0 0.0
    %2857 = vmatpush1.msra.mxu0 0.0
    %2858 = vmatprep.subr.mxu0 0.0
    %2859 = vmatpush1.msra.mxu0 0.0
    %2860 = vmatprep.subr.mxu0 0.0
    %2861 = vmatpush1.msra.mxu0 0.0
    %2862 = vmatprep.subr.mxu0 0.0
    %2863 = vmatpush1.msra.mxu0 0.0
    %2864 = vmatprep.subr.mxu0 0.0
    %2865 = vmatpush1.msra.mxu0 0.0
    %2866 = vmatprep.subr.mxu0 0.0
    %2867 = vmatpush1.msra.mxu0 0.0
    %2868 = vmatprep.subr.mxu0 0.0
    %2869 = vmatpush1.msra.mxu0 0.0
    %2870 = vmatprep.subr.mxu0 0.0
    %2871 = vmatpush1.msra.mxu0 0.0
    %2872 = vmatprep.subr.mxu0 0.0
    %2873 = vmatpush1.msra.mxu0 0.0
    %2874 = vmatprep.subr.mxu0 0.0
    %2875 = vmatpush1.msra.mxu0 0.0
    %2876 = vmatprep.subr.mxu0 0.0
    %2877 = vmatpush1.msra.mxu0 0.0
    %2878 = vmatprep.subr.mxu0 0.0
    %2879 = vmatpush1.msra.mxu0 0.0
    %2880 = vmatprep.mubr.f32.mxu0 0.0
    %2881 = vmatmul.mubr.f32.gmra.mrb[0].mxu0 %v2802
    %v2882 = vpop.f32.mrb[0].mxu0
    %v2883 = vadd.f32 0.0, %v2882
    %v2884 = vpop.f32.mrb[0].mxu0
    %v2885 = vadd.f32 0.0, %v2884
    %2886 = vdwg.mxu0
    %2887 = vmatprep.subr.mxu0 %v2814
    %2888 = vmatpush1.msra.mxu0 %v2811
    %2889 = vmatprep.subr.mxu0 0.0
    %2890 = vmatpush1.msra.mxu0 0.0
    %2891 = vmatprep.subr.mxu0 0.0
    %2892 = vmatpush1.msra.mxu0 0.0
    %2893 = vmatprep.subr.mxu0 0.0
    %2894 = vmatpush1.msra.mxu0 0.0
    %2895 = vmatprep.subr.mxu0 0.0
    %2896 = vmatpush1.msra.mxu0 0.0
    %2897 = vmatprep.subr.mxu0 0.0
    %2898 = vmatpush1.msra.mxu0 0.0
    %2899 = vmatprep.subr.mxu0 0.0
    %2900 = vmatpush1.msra.mxu0 0.0
    %2901 = vmatprep.subr.mxu0 0.0
    %2902 = vmatpush1.msra.mxu0 0.0
    %2903 = vmatprep.subr.mxu0 0.0
    %2904 = vmatpush1.msra.mxu0 0.0
    %2905 = vmatprep.subr.mxu0 0.0
    %2906 = vmatpush1.msra.mxu0 0.0
    %2907 = vmatprep.subr.mxu0 0.0
    %2908 = vmatpush1.msra.mxu0 0.0
    %2909 = vmatprep.subr.mxu0 0.0
    %2910 = vmatpush1.msra.mxu0 0.0
    %2911 = vmatprep.subr.mxu0 0.0
    %2912 = vmatpush1.msra.mxu0 0.0
    %2913 = vmatprep.subr.mxu0 0.0
    %2914 = vmatpush1.msra.mxu0 0.0
    %2915 = vmatprep.subr.mxu0 0.0
    %2916 = vmatpush1.msra.mxu0 0.0
    %2917 = vmatprep.subr.mxu0 0.0
    %2918 = vmatpush1.msra.mxu0 0.0
    %2919 = vmatprep.subr.mxu0 0.0
    %2920 = vmatpush1.msra.mxu0 0.0
    %2921 = vmatprep.subr.mxu0 0.0
    %2922 = vmatpush1.msra.mxu0 0.0
    %2923 = vmatprep.subr.mxu0 0.0
    %2924 = vmatpush1.msra.mxu0 0.0
    %2925 = vmatprep.subr.mxu0 0.0
    %2926 = vmatpush1.msra.mxu0 0.0
    %2927 = vmatprep.subr.mxu0 0.0
    %2928 = vmatpush1.msra.mxu0 0.0
    %2929 = vmatprep.subr.mxu0 0.0
    %2930 = vmatpush1.msra.mxu0 0.0
    %2931 = vmatprep.subr.mxu0 0.0
    %2932 = vmatpush1.msra.mxu0 0.0
    %2933 = vmatprep.subr.mxu0 0.0
    %2934 = vmatpush1.msra.mxu0 0.0
    %2935 = vmatprep.subr.mxu0 0.0
    %2936 = vmatpush1.msra.mxu0 0.0
    %2937 = vmatprep.subr.mxu0 0.0
    %2938 = vmatpush1.msra.mxu0 0.0
    %2939 = vmatprep.subr.mxu0 0.0
    %2940 = vmatpush1.msra.mxu0 0.0
    %2941 = vmatprep.subr.mxu0 0.0
    %2942 = vmatpush1.msra.mxu0 0.0
    %2943 = vmatprep.subr.mxu0 0.0
    %2944 = vmatpush1.msra.mxu0 0.0
    %2945 = vmatprep.subr.mxu0 0.0
    %2946 = vmatpush1.msra.mxu0 0.0
    %2947 = vmatprep.subr.mxu0 0.0
    %2948 = vmatpush1.msra.mxu0 0.0
    %2949 = vmatprep.subr.mxu0 0.0
    %2950 = vmatpush1.msra.mxu0 0.0
    %2951 = vmatprep.mubr.f32.mxu0 0.0
    %2952 = vmatmul.mubr.f32.gmra.mrb[0].mxu0 %v2802
    %v2953 = vpop.f32.mrb[0].mxu0
    %v2954 = vadd.f32 0.0, %v2953
    %v2955 = vpop.f32.mrb[0].mxu0
    %v2956 = vadd.f32 0.0, %v2955
    %2957 = vdwg.mxu0
    %v2958 = vadd.f32 %v2684, %v2883
    %v2959 = vadd.f32 %v2686, %v2885
    %v2960 = vadd.f32 %v2755, %v2954
    %v2961 = vadd.f32 %v2757, %v2956
    %2962 = vrot.lane.b32.xlu0 %v2071, 1
    %v2963 = vpop.permute.xlu0 %2962
    %2964 = vrot.lane.b32.xlu0 %v2073, 1
    %v2965 = vpop.permute.xlu0 %2964
    %2966 = vrot.lane.b32.xlu0 %v2355, 1
    %v2967 = vpop.permute.xlu0 %2966
    %2968 = vrot.lane.b32.xlu0 %v2357, 1
    %v2969 = vpop.permute.xlu0 %2968
    %vm2970 = vcmp.lt.s32.totalorder %v2368, 1
    %v2971 = vsel %vm2970, %v2967, %v2969
    %v2972 = vsel %vm2970, %v2965, %v2967
    %v2973 = vsel %vm2970, %v2963, %v2965
    %v2974 = vsel %vm2970, %v2969, %v2963
    %s2975 = scalar_lea.vmem [#allocation7], 12
    %v2976 = vld [vmem:[%s2975] sm:$0xf]
    %v2978 = vlaneseq
    %v2979 = vshrl.u32 %v2978, 7
    %v2980 = vsub.s32 0, %v2979
    %v2981 = vrot.slane %v2976, %v2980
    %v2982 = vlaneseq
    %v2983 = vshrl.u32 %v2982, 7
    %v2984 = vsub.s32 1, %v2983
    %v2985 = vrot.slane %v2976, %v2984
    %v2986 = vlaneseq
    %v2987 = vshrl.u32 %v2986, 7
    %v2988 = vsub.s32 2, %v2987
    %v2989 = vrot.slane %v2976, %v2988
    %v2990 = vlaneseq
    %v2991 = vshrl.u32 %v2990, 7
    %v2992 = vsub.s32 3, %v2991
    %v2993 = vrot.slane %v2976, %v2992
    %v2998 = vmul.f32 %v2974, %v2981
    %v2999 = vmul.f32 %v2973, %v2985
    %v3000 = vmul.f32 %v2972, %v2989
    %v3001 = vmul.f32 %v2971, %v2993
    %s3002 = scalar_lea.vmem %s5, 24
    %v3003 = vld [vmem:[%s3002] sm:$0xff]
    %v3005 = vsel %vm2443, %v3003, 0
    %v3008 = vsel %vm2447, %v2998, 0
    %v3011 = vsel %vm2447, %v2999, 0
    %v3014 = vsel %vm2447, %v3000, 0
    %v3017 = vsel %vm2447, %v3001, 0
    %3019 = vmatprep.subr.mxu0 %v3011
    %3020 = vmatpush1.msra.mxu0 %v3008
    %3021 = vmatprep.subr.mxu0 0.0
    %3022 = vmatpush1.msra.mxu0 0.0
    %3023 = vmatprep.subr.mxu0 0.0
    %3024 = vmatpush1.msra.mxu0 0.0
    %3025 = vmatprep.subr.mxu0 0.0
    %3026 = vmatpush1.msra.mxu0 0.0
    %3027 = vmatprep.subr.mxu0 0.0
    %3028 = vmatpush1.msra.mxu0 0.0
    %3029 = vmatprep.subr.mxu0 0.0
    %3030 = vmatpush1.msra.mxu0 0.0
    %3031 = vmatprep.subr.mxu0 0.0
    %3032 = vmatpush1.msra.mxu0 0.0
    %3033 = vmatprep.subr.mxu0 0.0
    %3034 = vmatpush1.msra.mxu0 0.0
    %3035 = vmatprep.subr.mxu0 0.0
    %3036 = vmatpush1.msra.mxu0 0.0
    %3037 = vmatprep.subr.mxu0 0.0
    %3038 = vmatpush1.msra.mxu0 0.0
    %3039 = vmatprep.subr.mxu0 0.0
    %3040 = vmatpush1.msra.mxu0 0.0
    %3041 = vmatprep.subr.mxu0 0.0
    %3042 = vmatpush1.msra.mxu0 0.0
    %3043 = vmatprep.subr.mxu0 0.0
    %3044 = vmatpush1.msra.mxu0 0.0
    %3045 = vmatprep.subr.mxu0 0.0
    %3046 = vmatpush1.msra.mxu0 0.0
    %3047 = vmatprep.subr.mxu0 0.0
    %3048 = vmatpush1.msra.mxu0 0.0
    %3049 = vmatprep.subr.mxu0 0.0
    %3050 = vmatpush1.msra.mxu0 0.0
    %3051 = vmatprep.subr.mxu0 0.0
    %3052 = vmatpush1.msra.mxu0 0.0
    %3053 = vmatprep.subr.mxu0 0.0
    %3054 = vmatpush1.msra.mxu0 0.0
    %3055 = vmatprep.subr.mxu0 0.0
    %3056 = vmatpush1.msra.mxu0 0.0
    %3057 = vmatprep.subr.mxu0 0.0
    %3058 = vmatpush1.msra.mxu0 0.0
    %3059 = vmatprep.subr.mxu0 0.0
    %3060 = vmatpush1.msra.mxu0 0.0
    %3061 = vmatprep.subr.mxu0 0.0
    %3062 = vmatpush1.msra.mxu0 0.0
    %3063 = vmatprep.subr.mxu0 0.0
    %3064 = vmatpush1.msra.mxu0 0.0
    %3065 = vmatprep.subr.mxu0 0.0
    %3066 = vmatpush1.msra.mxu0 0.0
    %3067 = vmatprep.subr.mxu0 0.0
    %3068 = vmatpush1.msra.mxu0 0.0
    %3069 = vmatprep.subr.mxu0 0.0
    %3070 = vmatpush1.msra.mxu0 0.0
    %3071 = vmatprep.subr.mxu0 0.0
    %3072 = vmatpush1.msra.mxu0 0.0
    %3073 = vmatprep.subr.mxu0 0.0
    %3074 = vmatpush1.msra.mxu0 0.0
    %3075 = vmatprep.subr.mxu0 0.0
    %3076 = vmatpush1.msra.mxu0 0.0
    %3077 = vmatprep.subr.mxu0 0.0
    %3078 = vmatpush1.msra.mxu0 0.0
    %3079 = vmatprep.subr.mxu0 0.0
    %3080 = vmatpush1.msra.mxu0 0.0
    %3081 = vmatprep.subr.mxu0 0.0
    %3082 = vmatpush1.msra.mxu0 0.0
    %3083 = vmatprep.mubr.f32.mxu0 0.0
    %3084 = vmatmul.mubr.f32.gmra.mrb[0].mxu0 %v3005
    %v3085 = vpop.f32.mrb[0].mxu0
    %v3086 = vadd.f32 0.0, %v3085
    %v3087 = vpop.f32.mrb[0].mxu0
    %v3088 = vadd.f32 0.0, %v3087
    %3089 = vdwg.mxu0
    %3090 = vmatprep.subr.mxu0 %v3017
    %3091 = vmatpush1.msra.mxu0 %v3014
    %3092 = vmatprep.subr.mxu0 0.0
    %3093 = vmatpush1.msra.mxu0 0.0
    %3094 = vmatprep.subr.mxu0 0.0
    %3095 = vmatpush1.msra.mxu0 0.0
    %3096 = vmatprep.subr.mxu0 0.0
    %3097 = vmatpush1.msra.mxu0 0.0
    %3098 = vmatprep.subr.mxu0 0.0
    %3099 = vmatpush1.msra.mxu0 0.0
    %3100 = vmatprep.subr.mxu0 0.0
    %3101 = vmatpush1.msra.mxu0 0.0
    %3102 = vmatprep.subr.mxu0 0.0
    %3103 = vmatpush1.msra.mxu0 0.0
    %3104 = vmatprep.subr.mxu0 0.0
    %3105 = vmatpush1.msra.mxu0 0.0
    %3106 = vmatprep.subr.mxu0 0.0
    %3107 = vmatpush1.msra.mxu0 0.0
    %3108 = vmatprep.subr.mxu0 0.0
    %3109 = vmatpush1.msra.mxu0 0.0
    %3110 = vmatprep.subr.mxu0 0.0
    %3111 = vmatpush1.msra.mxu0 0.0
    %3112 = vmatprep.subr.mxu0 0.0
    %3113 = vmatpush1.msra.mxu0 0.0
    %3114 = vmatprep.subr.mxu0 0.0
    %3115 = vmatpush1.msra.mxu0 0.0
    %3116 = vmatprep.subr.mxu0 0.0
    %3117 = vmatpush1.msra.mxu0 0.0
    %3118 = vmatprep.subr.mxu0 0.0
    %3119 = vmatpush1.msra.mxu0 0.0
    %3120 = vmatprep.subr.mxu0 0.0
    %3121 = vmatpush1.msra.mxu0 0.0
    %3122 = vmatprep.subr.mxu0 0.0
    %3123 = vmatpush1.msra.mxu0 0.0
    %3124 = vmatprep.subr.mxu0 0.0
    %3125 = vmatpush1.msra.mxu0 0.0
    %3126 = vmatprep.subr.mxu0 0.0
    %3127 = vmatpush1.msra.mxu0 0.0
    %3128 = vmatprep.subr.mxu0 0.0
    %3129 = vmatpush1.msra.mxu0 0.0
    %3130 = vmatprep.subr.mxu0 0.0
    %3131 = vmatpush1.msra.mxu0 0.0
    %3132 = vmatprep.subr.mxu0 0.0
    %3133 = vmatpush1.msra.mxu0 0.0
    %3134 = vmatprep.subr.mxu0 0.0
    %3135 = vmatpush1.msra.mxu0 0.0
    %3136 = vmatprep.subr.mxu0 0.0
    %3137 = vmatpush1.msra.mxu0 0.0
    %3138 = vmatprep.subr.mxu0 0.0
    %3139 = vmatpush1.msra.mxu0 0.0
    %3140 = vmatprep.subr.mxu0 0.0
    %3141 = vmatpush1.msra.mxu0 0.0
    %3142 = vmatprep.subr.mxu0 0.0
    %3143 = vmatpush1.msra.mxu0 0.0
    %3144 = vmatprep.subr.mxu0 0.0
    %3145 = vmatpush1.msra.mxu0 0.0
    %3146 = vmatprep.subr.mxu0 0.0
    %3147 = vmatpush1.msra.mxu0 0.0
    %3148 = vmatprep.subr.mxu0 0.0
    %3149 = vmatpush1.msra.mxu0 0.0
    %3150 = vmatprep.subr.mxu0 0.0
    %3151 = vmatpush1.msra.mxu0 0.0
    %3152 = vmatprep.subr.mxu0 0.0
    %3153 = vmatpush1.msra.mxu0 0.0
    %3154 = vmatprep.mubr.f32.mxu0 0.0
    %3155 = vmatmul.mubr.f32.gmra.mrb[0].mxu0 %v3005
    %v3156 = vpop.f32.mrb[0].mxu0
    %v3157 = vadd.f32 0.0, %v3156
    %v3158 = vpop.f32.mrb[0].mxu0
    %v3159 = vadd.f32 0.0, %v3158
    %3160 = vdwg.mxu0
    %v3161 = vadd.f32 %v2958, %v3086
    %v3162 = vadd.f32 %v2959, %v3088
    %v3163 = vadd.f32 %v2960, %v3157
    %v3164 = vadd.f32 %v2961, %v3159
    %s3165 = scalar_lea.vmem %s5, 32
    %v3166 = vld [vmem:[%s3165] sm:$0xff]
    %v3168 = vsel %vm2443, %v3166, 0
    %v3171 = vsel %vm2447, %v2071, 0
    %v3174 = vsel %vm2447, %v2073, 0
    %v3177 = vsel %vm2447, %v2355, 0
    %v3180 = vsel %vm2447, %v2357, 0
    %3182 = vmatprep.subr.mxu0 %v3174
    %3183 = vmatpush1.msra.mxu0 %v3171
    %3184 = vmatprep.subr.mxu0 0.0
    %3185 = vmatpush1.msra.mxu0 0.0
    %3186 = vmatprep.subr.mxu0 0.0
    %3187 = vmatpush1.msra.mxu0 0.0
    %3188 = vmatprep.subr.mxu0 0.0
    %3189 = vmatpush1.msra.mxu0 0.0
    %3190 = vmatprep.subr.mxu0 0.0
    %3191 = vmatpush1.msra.mxu0 0.0
    %3192 = vmatprep.subr.mxu0 0.0
    %3193 = vmatpush1.msra.mxu0 0.0
    %3194 = vmatprep.subr.mxu0 0.0
    %3195 = vmatpush1.msra.mxu0 0.0
    %3196 = vmatprep.subr.mxu0 0.0
    %3197 = vmatpush1.msra.mxu0 0.0
    %3198 = vmatprep.subr.mxu0 0.0
    %3199 = vmatpush1.msra.mxu0 0.0
    %3200 = vmatprep.subr.mxu0 0.0
    %3201 = vmatpush1.msra.mxu0 0.0
    %3202 = vmatprep.subr.mxu0 0.0
    %3203 = vmatpush1.msra.mxu0 0.0
    %3204 = vmatprep.subr.mxu0 0.0
    %3205 = vmatpush1.msra.mxu0 0.0
    %3206 = vmatprep.subr.mxu0 0.0
    %3207 = vmatpush1.msra.mxu0 0.0
    %3208 = vmatprep.subr.mxu0 0.0
    %3209 = vmatpush1.msra.mxu0 0.0
    %3210 = vmatprep.subr.mxu0 0.0
    %3211 = vmatpush1.msra.mxu0 0.0
    %3212 = vmatprep.subr.mxu0 0.0
    %3213 = vmatpush1.msra.mxu0 0.0
    %3214 = vmatprep.subr.mxu0 0.0
    %3215 = vmatpush1.msra.mxu0 0.0
    %3216 = vmatprep.subr.mxu0 0.0
    %3217 = vmatpush1.msra.mxu0 0.0
    %3218 = vmatprep.subr.mxu0 0.0
    %3219 = vmatpush1.msra.mxu0 0.0
    %3220 = vmatprep.subr.mxu0 0.0
    %3221 = vmatpush1.msra.mxu0 0.0
    %3222 = vmatprep.subr.mxu0 0.0
    %3223 = vmatpush1.msra.mxu0 0.0
    %3224 = vmatprep.subr.mxu0 0.0
    %3225 = vmatpush1.msra.mxu0 0.0
    %3226 = vmatprep.subr.mxu0 0.0
    %3227 = vmatpush1.msra.mxu0 0.0
    %3228 = vmatprep.subr.mxu0 0.0
    %3229 = vmatpush1.msra.mxu0 0.0
    %3230 = vmatprep.subr.mxu0 0.0
    %3231 = vmatpush1.msra.mxu0 0.0
    %3232 = vmatprep.subr.mxu0 0.0
    %3233 = vmatpush1.msra.mxu0 0.0
    %3234 = vmatprep.subr.mxu0 0.0
    %3235 = vmatpush1.msra.mxu0 0.0
    %3236 = vmatprep.subr.mxu0 0.0
    %3237 = vmatpush1.msra.mxu0 0.0
    %3238 = vmatprep.subr.mxu0 0.0
    %3239 = vmatpush1.msra.mxu0 0.0
    %3240 = vmatprep.subr.mxu0 0.0
    %3241 = vmatpush1.msra.mxu0 0.0
    %3242 = vmatprep.subr.mxu0 0.0
    %3243 = vmatpush1.msra.mxu0 0.0
    %3244 = vmatprep.subr.mxu0 0.0
    %3245 = vmatpush1.msra.mxu0 0.0
    %3246 = vmatprep.mubr.f32.mxu0 0.0
    %3247 = vmatmul.mubr.f32.gmra.mrb[0].mxu0 %v3168
    %v3248 = vpop.f32.mrb[0].mxu0
    %v3249 = vadd.f32 0.0, %v3248
    %v3250 = vpop.f32.mrb[0].mxu0
    %v3251 = vadd.f32 0.0, %v3250
    %3252 = vdwg.mxu0
    %3253 = vmatprep.subr.mxu0 %v3180
    %3254 = vmatpush1.msra.mxu0 %v3177
    %3255 = vmatprep.subr.mxu0 0.0
    %3256 = vmatpush1.msra.mxu0 0.0
    %3257 = vmatprep.subr.mxu0 0.0
    %3258 = vmatpush1.msra.mxu0 0.0
    %3259 = vmatprep.subr.mxu0 0.0
    %3260 = vmatpush1.msra.mxu0 0.0
    %3261 = vmatprep.subr.mxu0 0.0
    %3262 = vmatpush1.msra.mxu0 0.0
    %3263 = vmatprep.subr.mxu0 0.0
    %3264 = vmatpush1.msra.mxu0 0.0
    %3265 = vmatprep.subr.mxu0 0.0
    %3266 = vmatpush1.msra.mxu0 0.0
    %3267 = vmatprep.subr.mxu0 0.0
    %3268 = vmatpush1.msra.mxu0 0.0
    %3269 = vmatprep.subr.mxu0 0.0
    %3270 = vmatpush1.msra.mxu0 0.0
    %3271 = vmatprep.subr.mxu0 0.0
    %3272 = vmatpush1.msra.mxu0 0.0
    %3273 = vmatprep.subr.mxu0 0.0
    %3274 = vmatpush1.msra.mxu0 0.0
    %3275 = vmatprep.subr.mxu0 0.0
    %3276 = vmatpush1.msra.mxu0 0.0
    %3277 = vmatprep.subr.mxu0 0.0
    %3278 = vmatpush1.msra.mxu0 0.0
    %3279 = vmatprep.subr.mxu0 0.0
    %3280 = vmatpush1.msra.mxu0 0.0
    %3281 = vmatprep.subr.mxu0 0.0
    %3282 = vmatpush1.msra.mxu0 0.0
    %3283 = vmatprep.subr.mxu0 0.0
    %3284 = vmatpush1.msra.mxu0 0.0
    %3285 = vmatprep.subr.mxu0 0.0
    %3286 = vmatpush1.msra.mxu0 0.0
    %3287 = vmatprep.subr.mxu0 0.0
    %3288 = vmatpush1.msra.mxu0 0.0
    %3289 = vmatprep.subr.mxu0 0.0
    %3290 = vmatpush1.msra.mxu0 0.0
    %3291 = vmatprep.subr.mxu0 0.0
    %3292 = vmatpush1.msra.mxu0 0.0
    %3293 = vmatprep.subr.mxu0 0.0
    %3294 = vmatpush1.msra.mxu0 0.0
    %3295 = vmatprep.subr.mxu0 0.0
    %3296 = vmatpush1.msra.mxu0 0.0
    %3297 = vmatprep.subr.mxu0 0.0
    %3298 = vmatpush1.msra.mxu0 0.0
    %3299 = vmatprep.subr.mxu0 0.0
    %3300 = vmatpush1.msra.mxu0 0.0
    %3301 = vmatprep.subr.mxu0 0.0
    %3302 = vmatpush1.msra.mxu0 0.0
    %3303 = vmatprep.subr.mxu0 0.0
    %3304 = vmatpush1.msra.mxu0 0.0
    %3305 = vmatprep.subr.mxu0 0.0
    %3306 = vmatpush1.msra.mxu0 0.0
    %3307 = vmatprep.subr.mxu0 0.0
    %3308 = vmatpush1.msra.mxu0 0.0
    %3309 = vmatprep.subr.mxu0 0.0
    %3310 = vmatpush1.msra.mxu0 0.0
    %3311 = vmatprep.subr.mxu0 0.0
    %3312 = vmatpush1.msra.mxu0 0.0
    %3313 = vmatprep.subr.mxu0 0.0
    %3314 = vmatpush1.msra.mxu0 0.0
    %3315 = vmatprep.subr.mxu0 0.0
    %3316 = vmatpush1.msra.mxu0 0.0
    %3317 = vmatprep.mubr.f32.mxu0 0.0
    %3318 = vmatmul.mubr.f32.gmra.mrb[0].mxu0 %v3168
    %v3319 = vpop.f32.mrb[0].mxu0
    %v3320 = vadd.f32 0.0, %v3319
    %v3321 = vpop.f32.mrb[0].mxu0
    %v3322 = vadd.f32 0.0, %v3321
    %3323 = vdwg.mxu0
    %v3324 = vadd.f32 %v3161, %v3249
    %v3325 = vadd.f32 %v3162, %v3251
    %v3326 = vadd.f32 %v3163, %v3320
    %v3327 = vadd.f32 %v3164, %v3322
    %3328 = vrot.lane.b32.xlu0 %v2071, 127
    %v3329 = vpop.permute.xlu0 %3328
    %3330 = vrot.lane.b32.xlu0 %v2073, 127
    %v3331 = vpop.permute.xlu0 %3330
    %3332 = vrot.lane.b32.xlu0 %v2355, 127
    %v3333 = vpop.permute.xlu0 %3332
    %3334 = vrot.lane.b32.xlu0 %v2357, 127
    %v3335 = vpop.permute.xlu0 %3334
    %vm3336 = vcmp.lt.s32.totalorder %v2368, 127
    %v3337 = vsel %vm3336, %v3333, %v3335
    %v3338 = vsel %vm3336, %v3331, %v3333
    %v3339 = vsel %vm3336, %v3329, %v3331
    %v3340 = vsel %vm3336, %v3335, %v3329
    %s3341 = scalar_lea.vmem [#allocation7], 20
    %v3342 = vld [vmem:[%s3341] sm:$0xf]
    %v3344 = vlaneseq
    %v3345 = vshrl.u32 %v3344, 7
    %v3346 = vsub.s32 0, %v3345
    %v3347 = vrot.slane %v3342, %v3346
    %v3348 = vlaneseq
    %v3349 = vshrl.u32 %v3348, 7
    %v3350 = vsub.s32 1, %v3349
    %v3351 = vrot.slane %v3342, %v3350
    %v3352 = vlaneseq
    %v3353 = vshrl.u32 %v3352, 7
    %v3354 = vsub.s32 2, %v3353
    %v3355 = vrot.slane %v3342, %v3354
    %v3356 = vlaneseq
    %v3357 = vshrl.u32 %v3356, 7
    %v3358 = vsub.s32 3, %v3357
    %v3359 = vrot.slane %v3342, %v3358
    %v3364 = vmul.f32 %v3339, %v3347
    %v3365 = vmul.f32 %v3338, %v3351
    %v3366 = vmul.f32 %v3337, %v3355
    %v3367 = vmul.f32 %v3340, %v3359
    %s3368 = scalar_lea.vmem %s5, 40
    %v3369 = vld [vmem:[%s3368] sm:$0xff]
    %v3371 = vsel %vm2443, %v3369, 0
    %v3374 = vsel %vm2447, %v3364, 0
    %v3377 = vsel %vm2447, %v3365, 0
    %v3380 = vsel %vm2447, %v3366, 0
    %v3383 = vsel %vm2447, %v3367, 0
    %3385 = vmatprep.subr.mxu0 %v3377
    %3386 = vmatpush1.msra.mxu0 %v3374
    %3387 = vmatprep.subr.mxu0 0.0
    %3388 = vmatpush1.msra.mxu0 0.0
    %3389 = vmatprep.subr.mxu0 0.0
    %3390 = vmatpush1.msra.mxu0 0.0
    %3391 = vmatprep.subr.mxu0 0.0
    %3392 = vmatpush1.msra.mxu0 0.0
    %3393 = vmatprep.subr.mxu0 0.0
    %3394 = vmatpush1.msra.mxu0 0.0
    %3395 = vmatprep.subr.mxu0 0.0
    %3396 = vmatpush1.msra.mxu0 0.0
    %3397 = vmatprep.subr.mxu0 0.0
    %3398 = vmatpush1.msra.mxu0 0.0
    %3399 = vmatprep.subr.mxu0 0.0
    %3400 = vmatpush1.msra.mxu0 0.0
    %3401 = vmatprep.subr.mxu0 0.0
    %3402 = vmatpush1.msra.mxu0 0.0
    %3403 = vmatprep.subr.mxu0 0.0
    %3404 = vmatpush1.msra.mxu0 0.0
    %3405 = vmatprep.subr.mxu0 0.0
    %3406 = vmatpush1.msra.mxu0 0.0
    %3407 = vmatprep.subr.mxu0 0.0
    %3408 = vmatpush1.msra.mxu0 0.0
    %3409 = vmatprep.subr.mxu0 0.0
    %3410 = vmatpush1.msra.mxu0 0.0
    %3411 = vmatprep.subr.mxu0 0.0
    %3412 = vmatpush1.msra.mxu0 0.0
    %3413 = vmatprep.subr.mxu0 0.0
    %3414 = vmatpush1.msra.mxu0 0.0
    %3415 = vmatprep.subr.mxu0 0.0
    %3416 = vmatpush1.msra.mxu0 0.0
    %3417 = vmatprep.subr.mxu0 0.0
    %3418 = vmatpush1.msra.mxu0 0.0
    %3419 = vmatprep.subr.mxu0 0.0
    %3420 = vmatpush1.msra.mxu0 0.0
    %3421 = vmatprep.subr.mxu0 0.0
    %3422 = vmatpush1.msra.mxu0 0.0
    %3423 = vmatprep.subr.mxu0 0.0
    %3424 = vmatpush1.msra.mxu0 0.0
    %3425 = vmatprep.subr.mxu0 0.0
    %3426 = vmatpush1.msra.mxu0 0.0
    %3427 = vmatprep.subr.mxu0 0.0
    %3428 = vmatpush1.msra.mxu0 0.0
    %3429 = vmatprep.subr.mxu0 0.0
    %3430 = vmatpush1.msra.mxu0 0.0
    %3431 = vmatprep.subr.mxu0 0.0
    %3432 = vmatpush1.msra.mxu0 0.0
    %3433 = vmatprep.subr.mxu0 0.0
    %3434 = vmatpush1.msra.mxu0 0.0
    %3435 = vmatprep.subr.mxu0 0.0
    %3436 = vmatpush1.msra.mxu0 0.0
    %3437 = vmatprep.subr.mxu0 0.0
    %3438 = vmatpush1.msra.mxu0 0.0
    %3439 = vmatprep.subr.mxu0 0.0
    %3440 = vmatpush1.msra.mxu0 0.0
    %3441 = vmatprep.subr.mxu0 0.0
    %3442 = vmatpush1.msra.mxu0 0.0
    %3443 = vmatprep.subr.mxu0 0.0
    %3444 = vmatpush1.msra.mxu0 0.0
    %3445 = vmatprep.subr.mxu0 0.0
    %3446 = vmatpush1.msra.mxu0 0.0
    %3447 = vmatprep.subr.mxu0 0.0
    %3448 = vmatpush1.msra.mxu0 0.0
    %3449 = vmatprep.mubr.f32.mxu0 0.0
    %3450 = vmatmul.mubr.f32.gmra.mrb[0].mxu0 %v3371
    %v3451 = vpop.f32.mrb[0].mxu0
    %v3452 = vadd.f32 0.0, %v3451
    %v3453 = vpop.f32.mrb[0].mxu0
    %v3454 = vadd.f32 0.0, %v3453
    %3455 = vdwg.mxu0
    %3456 = vmatprep.subr.mxu0 %v3383
    %3457 = vmatpush1.msra.mxu0 %v3380
    %3458 = vmatprep.subr.mxu0 0.0
    %3459 = vmatpush1.msra.mxu0 0.0
    %3460 = vmatprep.subr.mxu0 0.0
    %3461 = vmatpush1.msra.mxu0 0.0
    %3462 = vmatprep.subr.mxu0 0.0
    %3463 = vmatpush1.msra.mxu0 0.0
    %3464 = vmatprep.subr.mxu0 0.0
    %3465 = vmatpush1.msra.mxu0 0.0
    %3466 = vmatprep.subr.mxu0 0.0
    %3467 = vmatpush1.msra.mxu0 0.0
    %3468 = vmatprep.subr.mxu0 0.0
    %3469 = vmatpush1.msra.mxu0 0.0
    %3470 = vmatprep.subr.mxu0 0.0
    %3471 = vmatpush1.msra.mxu0 0.0
    %3472 = vmatprep.subr.mxu0 0.0
    %3473 = vmatpush1.msra.mxu0 0.0
    %3474 = vmatprep.subr.mxu0 0.0
    %3475 = vmatpush1.msra.mxu0 0.0
    %3476 = vmatprep.subr.mxu0 0.0
    %3477 = vmatpush1.msra.mxu0 0.0
    %3478 = vmatprep.subr.mxu0 0.0
    %3479 = vmatpush1.msra.mxu0 0.0
    %3480 = vmatprep.subr.mxu0 0.0
    %3481 = vmatpush1.msra.mxu0 0.0
    %3482 = vmatprep.subr.mxu0 0.0
    %3483 = vmatpush1.msra.mxu0 0.0
    %3484 = vmatprep.subr.mxu0 0.0
    %3485 = vmatpush1.msra.mxu0 0.0
    %3486 = vmatprep.subr.mxu0 0.0
    %3487 = vmatpush1.msra.mxu0 0.0
    %3488 = vmatprep.subr.mxu0 0.0
    %3489 = vmatpush1.msra.mxu0 0.0
    %3490 = vmatprep.subr.mxu0 0.0
    %3491 = vmatpush1.msra.mxu0 0.0
    %3492 = vmatprep.subr.mxu0 0.0
    %3493 = vmatpush1.msra.mxu0 0.0
    %3494 = vmatprep.subr.mxu0 0.0
    %3495 = vmatpush1.msra.mxu0 0.0
    %3496 = vmatprep.subr.mxu0 0.0
    %3497 = vmatpush1.msra.mxu0 0.0
    %3498 = vmatprep.subr.mxu0 0.0
    %3499 = vmatpush1.msra.mxu0 0.0
    %3500 = vmatprep.subr.mxu0 0.0
    %3501 = vmatpush1.msra.mxu0 0.0
    %3502 = vmatprep.subr.mxu0 0.0
    %3503 = vmatpush1.msra.mxu0 0.0
    %3504 = vmatprep.subr.mxu0 0.0
    %3505 = vmatpush1.msra.mxu0 0.0
    %3506 = vmatprep.subr.mxu0 0.0
    %3507 = vmatpush1.msra.mxu0 0.0
    %3508 = vmatprep.subr.mxu0 0.0
    %3509 = vmatpush1.msra.mxu0 0.0
    %3510 = vmatprep.subr.mxu0 0.0
    %3511 = vmatpush1.msra.mxu0 0.0
    %3512 = vmatprep.subr.mxu0 0.0
    %3513 = vmatpush1.msra.mxu0 0.0
    %3514 = vmatprep.subr.mxu0 0.0
    %3515 = vmatpush1.msra.mxu0 0.0
    %3516 = vmatprep.subr.mxu0 0.0
    %3517 = vmatpush1.msra.mxu0 0.0
    %3518 = vmatprep.subr.mxu0 0.0
    %3519 = vmatpush1.msra.mxu0 0.0
    %3520 = vmatprep.mubr.f32.mxu0 0.0
    %3521 = vmatmul.mubr.f32.gmra.mrb[0].mxu0 %v3371
    %v3522 = vpop.f32.mrb[0].mxu0
    %v3523 = vadd.f32 0.0, %v3522
    %v3524 = vpop.f32.mrb[0].mxu0
    %v3525 = vadd.f32 0.0, %v3524
    %3526 = vdwg.mxu0
    %v3527 = vadd.f32 %v3324, %v3452
    %v3528 = vadd.f32 %v3325, %v3454
    %v3529 = vadd.f32 %v3326, %v3523
    %v3530 = vadd.f32 %v3327, %v3525
    %3531 = vrot.lane.b32.xlu0 %v2071, 97
    %v3532 = vpop.permute.xlu0 %3531
    %3533 = vrot.lane.b32.xlu0 %v2073, 97
    %v3534 = vpop.permute.xlu0 %3533
    %3535 = vrot.lane.b32.xlu0 %v2355, 97
    %v3536 = vpop.permute.xlu0 %3535
    %3537 = vrot.lane.b32.xlu0 %v2357, 97
    %v3538 = vpop.permute.xlu0 %3537
    %vm3539 = vcmp.lt.s32.totalorder %v2368, 97
    %v3540 = vsel %vm3539, %v3536, %v3538
    %v3541 = vsel %vm3539, %v3534, %v3536
    %v3542 = vsel %vm3539, %v3532, %v3534
    %v3543 = vsel %vm3539, %v3538, %v3532
    %s3544 = scalar_lea.vmem [#allocation7], 24
    %v3545 = vld [vmem:[%s3544] sm:$0xf]
    %v3547 = vlaneseq
    %v3548 = vshrl.u32 %v3547, 7
    %v3549 = vsub.s32 0, %v3548
    %v3550 = vrot.slane %v3545, %v3549
    %v3551 = vlaneseq
    %v3552 = vshrl.u32 %v3551, 7
    %v3553 = vsub.s32 1, %v3552
    %v3554 = vrot.slane %v3545, %v3553
    %v3555 = vlaneseq
    %v3556 = vshrl.u32 %v3555, 7
    %v3557 = vsub.s32 2, %v3556
    %v3558 = vrot.slane %v3545, %v3557
    %v3559 = vlaneseq
    %v3560 = vshrl.u32 %v3559, 7
    %v3561 = vsub.s32 3, %v3560
    %v3562 = vrot.slane %v3545, %v3561
    %v3567 = vmul.f32 %v3542, %v3550
    %v3568 = vmul.f32 %v3541, %v3554
    %v3569 = vmul.f32 %v3540, %v3558
    %v3570 = vmul.f32 %v3543, %v3562
    %s3571 = scalar_lea.vmem %s5, 48
    %v3572 = vld [vmem:[%s3571] sm:$0xff]
    %v3574 = vsel %vm2443, %v3572, 0
    %v3577 = vsel %vm2447, %v3567, 0
    %v3580 = vsel %vm2447, %v3568, 0
    %v3583 = vsel %vm2447, %v3569, 0
    %v3586 = vsel %vm2447, %v3570, 0
    %3588 = vmatprep.subr.mxu0 %v3580
    %3589 = vmatpush1.msra.mxu0 %v3577
    %3590 = vmatprep.subr.mxu0 0.0
    %3591 = vmatpush1.msra.mxu0 0.0
    %3592 = vmatprep.subr.mxu0 0.0
    %3593 = vmatpush1.msra.mxu0 0.0
    %3594 = vmatprep.subr.mxu0 0.0
    %3595 = vmatpush1.msra.mxu0 0.0
    %3596 = vmatprep.subr.mxu0 0.0
    %3597 = vmatpush1.msra.mxu0 0.0
    %3598 = vmatprep.subr.mxu0 0.0
    %3599 = vmatpush1.msra.mxu0 0.0
    %3600 = vmatprep.subr.mxu0 0.0
    %3601 = vmatpush1.msra.mxu0 0.0
    %3602 = vmatprep.subr.mxu0 0.0
    %3603 = vmatpush1.msra.mxu0 0.0
    %3604 = vmatprep.subr.mxu0 0.0
    %3605 = vmatpush1.msra.mxu0 0.0
    %3606 = vmatprep.subr.mxu0 0.0
    %3607 = vmatpush1.msra.mxu0 0.0
    %3608 = vmatprep.subr.mxu0 0.0
    %3609 = vmatpush1.msra.mxu0 0.0
    %3610 = vmatprep.subr.mxu0 0.0
    %3611 = vmatpush1.msra.mxu0 0.0
    %3612 = vmatprep.subr.mxu0 0.0
    %3613 = vmatpush1.msra.mxu0 0.0
    %3614 = vmatprep.subr.mxu0 0.0
    %3615 = vmatpush1.msra.mxu0 0.0
    %3616 = vmatprep.subr.mxu0 0.0
    %3617 = vmatpush1.msra.mxu0 0.0
    %3618 = vmatprep.subr.mxu0 0.0
    %3619 = vmatpush1.msra.mxu0 0.0
    %3620 = vmatprep.subr.mxu0 0.0
    %3621 = vmatpush1.msra.mxu0 0.0
    %3622 = vmatprep.subr.mxu0 0.0
    %3623 = vmatpush1.msra.mxu0 0.0
    %3624 = vmatprep.subr.mxu0 0.0
    %3625 = vmatpush1.msra.mxu0 0.0
    %3626 = vmatprep.subr.mxu0 0.0
    %3627 = vmatpush1.msra.mxu0 0.0
    %3628 = vmatprep.subr.mxu0 0.0
    %3629 = vmatpush1.msra.mxu0 0.0
    %3630 = vmatprep.subr.mxu0 0.0
    %3631 = vmatpush1.msra.mxu0 0.0
    %3632 = vmatprep.subr.mxu0 0.0
    %3633 = vmatpush1.msra.mxu0 0.0
    %3634 = vmatprep.subr.mxu0 0.0
    %3635 = vmatpush1.msra.mxu0 0.0
    %3636 = vmatprep.subr.mxu0 0.0
    %3637 = vmatpush1.msra.mxu0 0.0
    %3638 = vmatprep.subr.mxu0 0.0
    %3639 = vmatpush1.msra.mxu0 0.0
    %3640 = vmatprep.subr.mxu0 0.0
    %3641 = vmatpush1.msra.mxu0 0.0
    %3642 = vmatprep.subr.mxu0 0.0
    %3643 = vmatpush1.msra.mxu0 0.0
    %3644 = vmatprep.subr.mxu0 0.0
    %3645 = vmatpush1.msra.mxu0 0.0
    %3646 = vmatprep.subr.mxu0 0.0
    %3647 = vmatpush1.msra.mxu0 0.0
    %3648 = vmatprep.subr.mxu0 0.0
    %3649 = vmatpush1.msra.mxu0 0.0
    %3650 = vmatprep.subr.mxu0 0.0
    %3651 = vmatpush1.msra.mxu0 0.0
    %3652 = vmatprep.mubr.f32.mxu0 0.0
    %3653 = vmatmul.mubr.f32.gmra.mrb[0].mxu0 %v3574
    %v3654 = vpop.f32.mrb[0].mxu0
    %v3655 = vadd.f32 0.0, %v3654
    %v3656 = vpop.f32.mrb[0].mxu0
    %v3657 = vadd.f32 0.0, %v3656
    %3658 = vdwg.mxu0
    %3659 = vmatprep.subr.mxu0 %v3586
    %3660 = vmatpush1.msra.mxu0 %v3583
    %3661 = vmatprep.subr.mxu0 0.0
    %3662 = vmatpush1.msra.mxu0 0.0
    %3663 = vmatprep.subr.mxu0 0.0
    %3664 = vmatpush1.msra.mxu0 0.0
    %3665 = vmatprep.subr.mxu0 0.0
    %3666 = vmatpush1.msra.mxu0 0.0
    %3667 = vmatprep.subr.mxu0 0.0
    %3668 = vmatpush1.msra.mxu0 0.0
    %3669 = vmatprep.subr.mxu0 0.0
    %3670 = vmatpush1.msra.mxu0 0.0
    %3671 = vmatprep.subr.mxu0 0.0
    %3672 = vmatpush1.msra.mxu0 0.0
    %3673 = vmatprep.subr.mxu0 0.0
    %3674 = vmatpush1.msra.mxu0 0.0
    %3675 = vmatprep.subr.mxu0 0.0
    %3676 = vmatpush1.msra.mxu0 0.0
    %3677 = vmatprep.subr.mxu0 0.0
    %3678 = vmatpush1.msra.mxu0 0.0
    %3679 = vmatprep.subr.mxu0 0.0
    %3680 = vmatpush1.msra.mxu0 0.0
    %3681 = vmatprep.subr.mxu0 0.0
    %3682 = vmatpush1.msra.mxu0 0.0
    %3683 = vmatprep.subr.mxu0 0.0
    %3684 = vmatpush1.msra.mxu0 0.0
    %3685 = vmatprep.subr.mxu0 0.0
    %3686 = vmatpush1.msra.mxu0 0.0
    %3687 = vmatprep.subr.mxu0 0.0
    %3688 = vmatpush1.msra.mxu0 0.0
    %3689 = vmatprep.subr.mxu0 0.0
    %3690 = vmatpush1.msra.mxu0 0.0
    %3691 = vmatprep.subr.mxu0 0.0
    %3692 = vmatpush1.msra.mxu0 0.0
    %3693 = vmatprep.subr.mxu0 0.0
    %3694 = vmatpush1.msra.mxu0 0.0
    %3695 = vmatprep.subr.mxu0 0.0
    %3696 = vmatpush1.msra.mxu0 0.0
    %3697 = vmatprep.subr.mxu0 0.0
    %3698 = vmatpush1.msra.mxu0 0.0
    %3699 = vmatprep.subr.mxu0 0.0
    %3700 = vmatpush1.msra.mxu0 0.0
    %3701 = vmatprep.subr.mxu0 0.0
    %3702 = vmatpush1.msra.mxu0 0.0
    %3703 = vmatprep.subr.mxu0 0.0
    %3704 = vmatpush1.msra.mxu0 0.0
    %3705 = vmatprep.subr.mxu0 0.0
    %3706 = vmatpush1.msra.mxu0 0.0
    %3707 = vmatprep.subr.mxu0 0.0
    %3708 = vmatpush1.msra.mxu0 0.0
    %3709 = vmatprep.subr.mxu0 0.0
    %3710 = vmatpush1.msra.mxu0 0.0
    %3711 = vmatprep.subr.mxu0 0.0
    %3712 = vmatpush1.msra.mxu0 0.0
    %3713 = vmatprep.subr.mxu0 0.0
    %3714 = vmatpush1.msra.mxu0 0.0
    %3715 = vmatprep.subr.mxu0 0.0
    %3716 = vmatpush1.msra.mxu0 0.0
    %3717 = vmatprep.subr.mxu0 0.0
    %3718 = vmatpush1.msra.mxu0 0.0
    %3719 = vmatprep.subr.mxu0 0.0
    %3720 = vmatpush1.msra.mxu0 0.0
    %3721 = vmatprep.subr.mxu0 0.0
    %3722 = vmatpush1.msra.mxu0 0.0
    %3723 = vmatprep.mubr.f32.mxu0 0.0
    %3724 = vmatmul.mubr.f32.gmra.mrb[0].mxu0 %v3574
    %v3725 = vpop.f32.mrb[0].mxu0
    %v3726 = vadd.f32 0.0, %v3725
    %v3727 = vpop.f32.mrb[0].mxu0
    %v3728 = vadd.f32 0.0, %v3727
    %3729 = vdwg.mxu0
    %v3730 = vadd.f32 %v3527, %v3655
    %v3731 = vadd.f32 %v3528, %v3657
    %v3732 = vadd.f32 %v3529, %v3726
    %v3733 = vadd.f32 %v3530, %v3728
    %3734 = vrot.lane.b32.xlu0 %v2071, 96
    %v3735 = vpop.permute.xlu0 %3734
    %3736 = vrot.lane.b32.xlu0 %v2073, 96
    %v3737 = vpop.permute.xlu0 %3736
    %3738 = vrot.lane.b32.xlu0 %v2355, 96
    %v3739 = vpop.permute.xlu0 %3738
    %3740 = vrot.lane.b32.xlu0 %v2357, 96
    %v3741 = vpop.permute.xlu0 %3740
    %vm3742 = vcmp.lt.s32.totalorder %v2368, 96
    %v3743 = vsel %vm3742, %v3739, %v3741
    %v3744 = vsel %vm3742, %v3737, %v3739
    %v3745 = vsel %vm3742, %v3735, %v3737
    %v3746 = vsel %vm3742, %v3741, %v3735
    %s3747 = scalar_lea.vmem [#allocation7], 28
    %v3748 = vld [vmem:[%s3747] sm:$0xf]
    %v3750 = vlaneseq
    %v3751 = vshrl.u32 %v3750, 7
    %v3752 = vsub.s32 0, %v3751
    %v3753 = vrot.slane %v3748, %v3752
    %v3754 = vlaneseq
    %v3755 = vshrl.u32 %v3754, 7
    %v3756 = vsub.s32 1, %v3755
    %v3757 = vrot.slane %v3748, %v3756
    %v3758 = vlaneseq
    %v3759 = vshrl.u32 %v3758, 7
    %v3760 = vsub.s32 2, %v3759
    %v3761 = vrot.slane %v3748, %v3760
    %v3762 = vlaneseq
    %v3763 = vshrl.u32 %v3762, 7
    %v3764 = vsub.s32 3, %v3763
    %v3765 = vrot.slane %v3748, %v3764
    %v3770 = vmul.f32 %v3745, %v3753
    %v3771 = vmul.f32 %v3744, %v3757
    %v3772 = vmul.f32 %v3743, %v3761
    %v3773 = vmul.f32 %v3746, %v3765
    %s3774 = scalar_lea.vmem %s5, 56
    %v3775 = vld [vmem:[%s3774] sm:$0xff]
    %v3777 = vsel %vm2443, %v3775, 0
    %v3780 = vsel %vm2447, %v3770, 0
    %v3783 = vsel %vm2447, %v3771, 0
    %v3786 = vsel %vm2447, %v3772, 0
    %v3789 = vsel %vm2447, %v3773, 0
    %3791 = vmatprep.subr.mxu0 %v3783
    %3792 = vmatpush1.msra.mxu0 %v3780
    %3793 = vmatprep.subr.mxu0 0.0
    %3794 = vmatpush1.msra.mxu0 0.0
    %3795 = vmatprep.subr.mxu0 0.0
    %3796 = vmatpush1.msra.mxu0 0.0
    %3797 = vmatprep.subr.mxu0 0.0
    %3798 = vmatpush1.msra.mxu0 0.0
    %3799 = vmatprep.subr.mxu0 0.0
    %3800 = vmatpush1.msra.mxu0 0.0
    %3801 = vmatprep.subr.mxu0 0.0
    %3802 = vmatpush1.msra.mxu0 0.0
    %3803 = vmatprep.subr.mxu0 0.0
    %3804 = vmatpush1.msra.mxu0 0.0
    %3805 = vmatprep.subr.mxu0 0.0
    %3806 = vmatpush1.msra.mxu0 0.0
    %3807 = vmatprep.subr.mxu0 0.0
    %3808 = vmatpush1.msra.mxu0 0.0
    %3809 = vmatprep.subr.mxu0 0.0
    %3810 = vmatpush1.msra.mxu0 0.0
    %3811 = vmatprep.subr.mxu0 0.0
    %3812 = vmatpush1.msra.mxu0 0.0
    %3813 = vmatprep.subr.mxu0 0.0
    %3814 = vmatpush1.msra.mxu0 0.0
    %3815 = vmatprep.subr.mxu0 0.0
    %3816 = vmatpush1.msra.mxu0 0.0
    %3817 = vmatprep.subr.mxu0 0.0
    %3818 = vmatpush1.msra.mxu0 0.0
    %3819 = vmatprep.subr.mxu0 0.0
    %3820 = vmatpush1.msra.mxu0 0.0
    %3821 = vmatprep.subr.mxu0 0.0
    %3822 = vmatpush1.msra.mxu0 0.0
    %3823 = vmatprep.subr.mxu0 0.0
    %3824 = vmatpush1.msra.mxu0 0.0
    %3825 = vmatprep.subr.mxu0 0.0
    %3826 = vmatpush1.msra.mxu0 0.0
    %3827 = vmatprep.subr.mxu0 0.0
    %3828 = vmatpush1.msra.mxu0 0.0
    %3829 = vmatprep.subr.mxu0 0.0
    %3830 = vmatpush1.msra.mxu0 0.0
    %3831 = vmatprep.subr.mxu0 0.0
    %3832 = vmatpush1.msra.mxu0 0.0
    %3833 = vmatprep.subr.mxu0 0.0
    %3834 = vmatpush1.msra.mxu0 0.0
    %3835 = vmatprep.subr.mxu0 0.0
    %3836 = vmatpush1.msra.mxu0 0.0
    %3837 = vmatprep.subr.mxu0 0.0
    %3838 = vmatpush1.msra.mxu0 0.0
    %3839 = vmatprep.subr.mxu0 0.0
    %3840 = vmatpush1.msra.mxu0 0.0
    %3841 = vmatprep.subr.mxu0 0.0
    %3842 = vmatpush1.msra.mxu0 0.0
    %3843 = vmatprep.subr.mxu0 0.0
    %3844 = vmatpush1.msra.mxu0 0.0
    %3845 = vmatprep.subr.mxu0 0.0
    %3846 = vmatpush1.msra.mxu0 0.0
    %3847 = vmatprep.subr.mxu0 0.0
    %3848 = vmatpush1.msra.mxu0 0.0
    %3849 = vmatprep.subr.mxu0 0.0
    %3850 = vmatpush1.msra.mxu0 0.0
    %3851 = vmatprep.subr.mxu0 0.0
    %3852 = vmatpush1.msra.mxu0 0.0
    %3853 = vmatprep.subr.mxu0 0.0
    %3854 = vmatpush1.msra.mxu0 0.0
    %3855 = vmatprep.mubr.f32.mxu0 0.0
    %3856 = vmatmul.mubr.f32.gmra.mrb[0].mxu0 %v3777
    %v3857 = vpop.f32.mrb[0].mxu0
    %v3858 = vadd.f32 0.0, %v3857
    %v3859 = vpop.f32.mrb[0].mxu0
    %v3860 = vadd.f32 0.0, %v3859
    %3861 = vdwg.mxu0
    %3862 = vmatprep.subr.mxu0 %v3789
    %3863 = vmatpush1.msra.mxu0 %v3786
    %3864 = vmatprep.subr.mxu0 0.0
    %3865 = vmatpush1.msra.mxu0 0.0
    %3866 = vmatprep.subr.mxu0 0.0
    %3867 = vmatpush1.msra.mxu0 0.0
    %3868 = vmatprep.subr.mxu0 0.0
    %3869 = vmatpush1.msra.mxu0 0.0
    %3870 = vmatprep.subr.mxu0 0.0
    %3871 = vmatpush1.msra.mxu0 0.0
    %3872 = vmatprep.subr.mxu0 0.0
    %3873 = vmatpush1.msra.mxu0 0.0
    %3874 = vmatprep.subr.mxu0 0.0
    %3875 = vmatpush1.msra.mxu0 0.0
    %3876 = vmatprep.subr.mxu0 0.0
    %3877 = vmatpush1.msra.mxu0 0.0
    %3878 = vmatprep.subr.mxu0 0.0
    %3879 = vmatpush1.msra.mxu0 0.0
    %3880 = vmatprep.subr.mxu0 0.0
    %3881 = vmatpush1.msra.mxu0 0.0
    %3882 = vmatprep.subr.mxu0 0.0
    %3883 = vmatpush1.msra.mxu0 0.0
    %3884 = vmatprep.subr.mxu0 0.0
    %3885 = vmatpush1.msra.mxu0 0.0
    %3886 = vmatprep.subr.mxu0 0.0
    %3887 = vmatpush1.msra.mxu0 0.0
    %3888 = vmatprep.subr.mxu0 0.0
    %3889 = vmatpush1.msra.mxu0 0.0
    %3890 = vmatprep.subr.mxu0 0.0
    %3891 = vmatpush1.msra.mxu0 0.0
    %3892 = vmatprep.subr.mxu0 0.0
    %3893 = vmatpush1.msra.mxu0 0.0
    %3894 = vmatprep.subr.mxu0 0.0
    %3895 = vmatpush1.msra.mxu0 0.0
    %3896 = vmatprep.subr.mxu0 0.0
    %3897 = vmatpush1.msra.mxu0 0.0
    %3898 = vmatprep.subr.mxu0 0.0
    %3899 = vmatpush1.msra.mxu0 0.0
    %3900 = vmatprep.subr.mxu0 0.0
    %3901 = vmatpush1.msra.mxu0 0.0
    %3902 = vmatprep.subr.mxu0 0.0
    %3903 = vmatpush1.msra.mxu0 0.0
    %3904 = vmatprep.subr.mxu0 0.0
    %3905 = vmatpush1.msra.mxu0 0.0
    %3906 = vmatprep.subr.mxu0 0.0
    %3907 = vmatpush1.msra.mxu0 0.0
    %3908 = vmatprep.subr.mxu0 0.0
    %3909 = vmatpush1.msra.mxu0 0.0
    %3910 = vmatprep.subr.mxu0 0.0
    %3911 = vmatpush1.msra.mxu0 0.0
    %3912 = vmatprep.subr.mxu0 0.0
    %3913 = vmatpush1.msra.mxu0 0.0
    %3914 = vmatprep.subr.mxu0 0.0
    %3915 = vmatpush1.msra.mxu0 0.0
    %3916 = vmatprep.subr.mxu0 0.0
    %3917 = vmatpush1.msra.mxu0 0.0
    %3918 = vmatprep.subr.mxu0 0.0
    %3919 = vmatpush1.msra.mxu0 0.0
    %3920 = vmatprep.subr.mxu0 0.0
    %3921 = vmatpush1.msra.mxu0 0.0
    %3922 = vmatprep.subr.mxu0 0.0
    %3923 = vmatpush1.msra.mxu0 0.0
    %3924 = vmatprep.subr.mxu0 0.0
    %3925 = vmatpush1.msra.mxu0 0.0
    %3926 = vmatprep.mubr.f32.mxu0 0.0
    %3927 = vmatmul.mubr.f32.gmra.mrb[0].mxu0 %v3777
    %v3928 = vpop.f32.mrb[0].mxu0
    %v3929 = vadd.f32 0.0, %v3928
    %v3930 = vpop.f32.mrb[0].mxu0
    %v3931 = vadd.f32 0.0, %v3930
    %3932 = vdwg.mxu0
    %v3933 = vadd.f32 %v3730, %v3858
    %v3934 = vadd.f32 %v3731, %v3860
    %v3935 = vadd.f32 %v3732, %v3929
    %v3936 = vadd.f32 %v3733, %v3931
    %3937 = vrot.lane.b32.xlu0 %v2071, 95
    %v3938 = vpop.permute.xlu0 %3937
    %3939 = vrot.lane.b32.xlu0 %v2073, 95
    %v3940 = vpop.permute.xlu0 %3939
    %3941 = vrot.lane.b32.xlu0 %v2355, 95
    %v3942 = vpop.permute.xlu0 %3941
    %3943 = vrot.lane.b32.xlu0 %v2357, 95
    %v3944 = vpop.permute.xlu0 %3943
    %vm3945 = vcmp.lt.s32.totalorder %v2368, 95
    %v3946 = vsel %vm3945, %v3942, %v3944
    %v3947 = vsel %vm3945, %v3940, %v3942
    %v3948 = vsel %vm3945, %v3938, %v3940
    %v3949 = vsel %vm3945, %v3944, %v3938
    %s3950 = scalar_lea.vmem [#allocation7], 32
    %v3951 = vld [vmem:[%s3950] sm:$0xf]
    %v3953 = vlaneseq
    %v3954 = vshrl.u32 %v3953, 7
    %v3955 = vsub.s32 0, %v3954
    %v3956 = vrot.slane %v3951, %v3955
    %v3957 = vlaneseq
    %v3958 = vshrl.u32 %v3957, 7
    %v3959 = vsub.s32 1, %v3958
    %v3960 = vrot.slane %v3951, %v3959
    %v3961 = vlaneseq
    %v3962 = vshrl.u32 %v3961, 7
    %v3963 = vsub.s32 2, %v3962
    %v3964 = vrot.slane %v3951, %v3963
    %v3965 = vlaneseq
    %v3966 = vshrl.u32 %v3965, 7
    %v3967 = vsub.s32 3, %v3966
    %v3968 = vrot.slane %v3951, %v3967
    %v3973 = vmul.f32 %v3948, %v3956
    %v3974 = vmul.f32 %v3947, %v3960
    %v3975 = vmul.f32 %v3946, %v3964
    %v3976 = vmul.f32 %v3949, %v3968
    %s3977 = scalar_lea.vmem %s5, 64
    %v3978 = vld [vmem:[%s3977] sm:$0xff]
    %v3980 = vsel %vm2443, %v3978, 0
    %v3983 = vsel %vm2447, %v3973, 0
    %v3986 = vsel %vm2447, %v3974, 0
    %v3989 = vsel %vm2447, %v3975, 0
    %v3992 = vsel %vm2447, %v3976, 0
    %3994 = vmatprep.subr.mxu0 %v3986
    %3995 = vmatpush1.msra.mxu0 %v3983
    %3996 = vmatprep.subr.mxu0 0.0
    %3997 = vmatpush1.msra.mxu0 0.0
    %3998 = vmatprep.subr.mxu0 0.0
    %3999 = vmatpush1.msra.mxu0 0.0
    %4000 = vmatprep.subr.mxu0 0.0
    %4001 = vmatpush1.msra.mxu0 0.0
    %4002 = vmatprep.subr.mxu0 0.0
    %4003 = vmatpush1.msra.mxu0 0.0
    %4004 = vmatprep.subr.mxu0 0.0
    %4005 = vmatpush1.msra.mxu0 0.0
    %4006 = vmatprep.subr.mxu0 0.0
    %4007 = vmatpush1.msra.mxu0 0.0
    %4008 = vmatprep.subr.mxu0 0.0
    %4009 = vmatpush1.msra.mxu0 0.0
    %4010 = vmatprep.subr.mxu0 0.0
    %4011 = vmatpush1.msra.mxu0 0.0
    %4012 = vmatprep.subr.mxu0 0.0
    %4013 = vmatpush1.msra.mxu0 0.0
    %4014 = vmatprep.subr.mxu0 0.0
    %4015 = vmatpush1.msra.mxu0 0.0
    %4016 = vmatprep.subr.mxu0 0.0
    %4017 = vmatpush1.msra.mxu0 0.0
    %4018 = vmatprep.subr.mxu0 0.0
    %4019 = vmatpush1.msra.mxu0 0.0
    %4020 = vmatprep.subr.mxu0 0.0
    %4021 = vmatpush1.msra.mxu0 0.0
    %4022 = vmatprep.subr.mxu0 0.0
    %4023 = vmatpush1.msra.mxu0 0.0
    %4024 = vmatprep.subr.mxu0 0.0
    %4025 = vmatpush1.msra.mxu0 0.0
    %4026 = vmatprep.subr.mxu0 0.0
    %4027 = vmatpush1.msra.mxu0 0.0
    %4028 = vmatprep.subr.mxu0 0.0
    %4029 = vmatpush1.msra.mxu0 0.0
    %4030 = vmatprep.subr.mxu0 0.0
    %4031 = vmatpush1.msra.mxu0 0.0
    %4032 = vmatprep.subr.mxu0 0.0
    %4033 = vmatpush1.msra.mxu0 0.0
    %4034 = vmatprep.subr.mxu0 0.0
    %4035 = vmatpush1.msra.mxu0 0.0
    %4036 = vmatprep.subr.mxu0 0.0
    %4037 = vmatpush1.msra.mxu0 0.0
    %4038 = vmatprep.subr.mxu0 0.0
    %4039 = vmatpush1.msra.mxu0 0.0
    %4040 = vmatprep.subr.mxu0 0.0
    %4041 = vmatpush1.msra.mxu0 0.0
    %4042 = vmatprep.subr.mxu0 0.0
    %4043 = vmatpush1.msra.mxu0 0.0
    %4044 = vmatprep.subr.mxu0 0.0
    %4045 = vmatpush1.msra.mxu0 0.0
    %4046 = vmatprep.subr.mxu0 0.0
    %4047 = vmatpush1.msra.mxu0 0.0
    %4048 = vmatprep.subr.mxu0 0.0
    %4049 = vmatpush1.msra.mxu0 0.0
    %4050 = vmatprep.subr.mxu0 0.0
    %4051 = vmatpush1.msra.mxu0 0.0
    %4052 = vmatprep.subr.mxu0 0.0
    %4053 = vmatpush1.msra.mxu0 0.0
    %4054 = vmatprep.subr.mxu0 0.0
    %4055 = vmatpush1.msra.mxu0 0.0
    %4056 = vmatprep.subr.mxu0 0.0
    %4057 = vmatpush1.msra.mxu0 0.0
    %4058 = vmatprep.mubr.f32.mxu0 0.0
    %4059 = vmatmul.mubr.f32.gmra.mrb[0].mxu0 %v3980
    %v4060 = vpop.f32.mrb[0].mxu0
    %v4061 = vadd.f32 0.0, %v4060
    %v4062 = vpop.f32.mrb[0].mxu0
    %v4063 = vadd.f32 0.0, %v4062
    %4064 = vdwg.mxu0
    %4065 = vmatprep.subr.mxu0 %v3992
    %4066 = vmatpush1.msra.mxu0 %v3989
    %4067 = vmatprep.subr.mxu0 0.0
    %4068 = vmatpush1.msra.mxu0 0.0
    %4069 = vmatprep.subr.mxu0 0.0
    %4070 = vmatpush1.msra.mxu0 0.0
    %4071 = vmatprep.subr.mxu0 0.0
    %4072 = vmatpush1.msra.mxu0 0.0
    %4073 = vmatprep.subr.mxu0 0.0
    %4074 = vmatpush1.msra.mxu0 0.0
    %4075 = vmatprep.subr.mxu0 0.0
    %4076 = vmatpush1.msra.mxu0 0.0
    %4077 = vmatprep.subr.mxu0 0.0
    %4078 = vmatpush1.msra.mxu0 0.0
    %4079 = vmatprep.subr.mxu0 0.0
    %4080 = vmatpush1.msra.mxu0 0.0
    %4081 = vmatprep.subr.mxu0 0.0
    %4082 = vmatpush1.msra.mxu0 0.0
    %4083 = vmatprep.subr.mxu0 0.0
    %4084 = vmatpush1.msra.mxu0 0.0
    %4085 = vmatprep.subr.mxu0 0.0
    %4086 = vmatpush1.msra.mxu0 0.0
    %4087 = vmatprep.subr.mxu0 0.0
    %4088 = vmatpush1.msra.mxu0 0.0
    %4089 = vmatprep.subr.mxu0 0.0
    %4090 = vmatpush1.msra.mxu0 0.0
    %4091 = vmatprep.subr.mxu0 0.0
    %4092 = vmatpush1.msra.mxu0 0.0
    %4093 = vmatprep.subr.mxu0 0.0
    %4094 = vmatpush1.msra.mxu0 0.0
    %4095 = vmatprep.subr.mxu0 0.0
    %4096 = vmatpush1.msra.mxu0 0.0
    %4097 = vmatprep.subr.mxu0 0.0
    %4098 = vmatpush1.msra.mxu0 0.0
    %4099 = vmatprep.subr.mxu0 0.0
    %4100 = vmatpush1.msra.mxu0 0.0
    %4101 = vmatprep.subr.mxu0 0.0
    %4102 = vmatpush1.msra.mxu0 0.0
    %4103 = vmatprep.subr.mxu0 0.0
    %4104 = vmatpush1.msra.mxu0 0.0
    %4105 = vmatprep.subr.mxu0 0.0
    %4106 = vmatpush1.msra.mxu0 0.0
    %4107 = vmatprep.subr.mxu0 0.0
    %4108 = vmatpush1.msra.mxu0 0.0
    %4109 = vmatprep.subr.mxu0 0.0
    %4110 = vmatpush1.msra.mxu0 0.0
    %4111 = vmatprep.subr.mxu0 0.0
    %4112 = vmatpush1.msra.mxu0 0.0
    %4113 = vmatprep.subr.mxu0 0.0
    %4114 = vmatpush1.msra.mxu0 0.0
    %4115 = vmatprep.subr.mxu0 0.0
    %4116 = vmatpush1.msra.mxu0 0.0
    %4117 = vmatprep.subr.mxu0 0.0
    %4118 = vmatpush1.msra.mxu0 0.0
    %4119 = vmatprep.subr.mxu0 0.0
    %4120 = vmatpush1.msra.mxu0 0.0
    %4121 = vmatprep.subr.mxu0 0.0
    %4122 = vmatpush1.msra.mxu0 0.0
    %4123 = vmatprep.subr.mxu0 0.0
    %4124 = vmatpush1.msra.mxu0 0.0
    %4125 = vmatprep.subr.mxu0 0.0
    %4126 = vmatpush1.msra.mxu0 0.0
    %4127 = vmatprep.subr.mxu0 0.0
    %4128 = vmatpush1.msra.mxu0 0.0
    %4129 = vmatprep.mubr.f32.mxu0 0.0
    %4130 = vmatmul.mubr.f32.gmra.mrb[0].mxu0 %v3980
    %v4131 = vpop.f32.mrb[0].mxu0
    %v4132 = vadd.f32 0.0, %v4131
    %v4133 = vpop.f32.mrb[0].mxu0
    %v4134 = vadd.f32 0.0, %v4133
    %4135 = vdwg.mxu0
    %v4136 = vadd.f32 %v3933, %v4061
    %v4137 = vadd.f32 %v3934, %v4063
    %v4138 = vadd.f32 %v3935, %v4132
    %v4139 = vadd.f32 %v3936, %v4134
    %v4140 = vld [vmem:[%s6] sm:$0xff]
    %4142 = vset.pattern.permute.xlu0 0
    %4143 = vperm.xlu0 %4142, %v4140
    %v4144 = vpop.permute.xlu0 %4143
    %v4146 = vadd.f32 %v4136, %v4144
    %v4147 = vadd.f32 %v4137, %v4144
    %v4148 = vadd.f32 %v4138, %v4144
    %v4149 = vadd.f32 %v4139, %v4144
    %v4150 = vmax.f32 %v4146, 0.0
    %v4151 = vmax.f32 %v4147, 0.0
    %v4152 = vmax.f32 %v4148, 0.0
    %v4153 = vmax.f32 %v4149, 0.0
    %4154 = vrot.lane.b32.xlu0 %v4150, 127
    %v4155 = vpop.permute.xlu0 %4154
    %4156 = vrot.lane.b32.xlu0 %v4151, 127
    %v4157 = vpop.permute.xlu0 %4156
    %4158 = vrot.lane.b32.xlu0 %v4152, 127
    %v4159 = vpop.permute.xlu0 %4158
    %4160 = vrot.lane.b32.xlu0 %v4153, 127
    %v4161 = vpop.permute.xlu0 %4160
    %v4162 = vsel %vm3336, %v4159, %v4161
    %v4163 = vsel %vm3336, %v4157, %v4159
    %v4164 = vsel %vm3336, %v4155, %v4157
    %v4165 = vsel %vm3336, %v4161, %v4155
    %v4166 = vmax.f32 %v4150, %v4164
    %v4167 = vmax.f32 %v4151, %v4163
    %v4168 = vmax.f32 %v4152, %v4162
    %v4169 = vmax.f32 %v4153, %v4165
    %4170 = vrot.lane.b32.xlu0 %v4166, 96
    %v4171 = vpop.permute.xlu0 %4170
    %4172 = vrot.lane.b32.xlu0 %v4167, 96
    %v4173 = vpop.permute.xlu0 %4172
    %4174 = vrot.lane.b32.xlu0 %v4168, 96
    %v4175 = vpop.permute.xlu0 %4174
    %4176 = vrot.lane.b32.xlu0 %v4169, 96
    %v4177 = vpop.permute.xlu0 %4176
    %v4178 = vsel %vm3742, %v4175, %v4177
    %v4179 = vsel %vm3742, %v4173, %v4175
    %v4180 = vsel %vm3742, %v4171, %v4173
    %v4181 = vsel %vm3742, %v4177, %v4171
    %v4182 = vmax.f32 %v4166, %v4180
    %v4183 = vmax.f32 %v4167, %v4179
    %v4184 = vmax.f32 %v4168, %v4178
    %v4185 = vmax.f32 %v4169, %v4181
    %v4186 = vld [vmem:[#allocation10] sm:$0xff]
    %v4187 = vld [vmem:[#allocation10 + $0x8] sm:$0xff]
    %v4188 = vld [vmem:[#allocation10 + $0x10] sm:$0xff]
    %v4189 = vld [vmem:[#allocation10 + $0x18] sm:$0xff]
    %v4190 = vld [vmem:[#allocation10 + $0x20] sm:$0xff]
    %v4191 = vld [vmem:[#allocation10 + $0x28] sm:$0xff]
    %v4192 = vld [vmem:[#allocation10 + $0x30] sm:$0xff]
    %v4193 = vld [vmem:[#allocation10 + $0x38] sm:$0xff]
    %v4194 = vld [vmem:[#allocation10 + $0x40] sm:$0xff]
    %v4195 = vld [vmem:[#allocation10 + $0x48] sm:$0xff]
    %v4196 = vld [vmem:[#allocation10 + $0x50] sm:$0xff]
    %v4197 = vld [vmem:[#allocation10 + $0x58] sm:$0xff]
    %v4198 = vld [vmem:[#allocation10 + $0x60] sm:$0xff]
    %v4199 = vld [vmem:[#allocation10 + $0x68] sm:$0xff]
    %v4200 = vld [vmem:[#allocation10 + $0x70] sm:$0xff]
    %v4201 = vld [vmem:[#allocation10 + $0x78] sm:$0xff]
    %v4202 = vld [vmem:[#allocation10 + $0x80] sm:$0xff]
    %v4203 = vld [vmem:[#allocation10 + $0x88] sm:$0xff]
    %v4204 = vld [vmem:[#allocation10 + $0x90] sm:$0xff]
    %v4205 = vld [vmem:[#allocation10 + $0x98] sm:$0xff]
    %v4206 = vld [vmem:[#allocation10 + $0xa0] sm:$0xff]
    %v4207 = vld [vmem:[#allocation10 + $0xa8] sm:$0xff]
    %v4208 = vld [vmem:[#allocation10 + $0xb0] sm:$0xff]
    %v4209 = vld [vmem:[#allocation10 + $0xb8] sm:$0xff]
    %v4210 = vld [vmem:[#allocation10 + $0xc0] sm:$0xff]
    %v4211 = vld [vmem:[#allocation10 + $0xc8] sm:$0xff]
    %v4212 = vld [vmem:[#allocation10 + $0xd0] sm:$0xff]
    %v4213 = vld [vmem:[#allocation10 + $0xd8] sm:$0xff]
    %v4214 = vld [vmem:[#allocation10 + $0xe0] sm:$0xff]
    %v4215 = vld [vmem:[#allocation10 + $0xe8] sm:$0xff]
    %v4216 = vld [vmem:[#allocation10 + $0xf0] sm:$0xff]
    %v4217 = vld [vmem:[#allocation10 + $0xf8] sm:$0xff]
    %v4218 = vld [vmem:[#allocation10 + $0x100] sm:$0xff]
    %v4219 = vld [vmem:[#allocation10 + $0x108] sm:$0xff]
    %v4220 = vld [vmem:[#allocation10 + $0x110] sm:$0xff]
    %v4221 = vld [vmem:[#allocation10 + $0x118] sm:$0xff]
    %v4222 = vld [vmem:[#allocation10 + $0x120] sm:$0xff]
    %v4223 = vld [vmem:[#allocation10 + $0x128] sm:$0xff]
    %v4224 = vld [vmem:[#allocation10 + $0x130] sm:$0xff]
    %v4225 = vld [vmem:[#allocation10 + $0x138] sm:$0xff]
    %v4226 = vld [vmem:[#allocation10 + $0x140] sm:$0xff]
    %v4227 = vld [vmem:[#allocation10 + $0x148] sm:$0xff]
    %v4228 = vld [vmem:[#allocation10 + $0x150] sm:$0xff]
    %v4229 = vld [vmem:[#allocation10 + $0x158] sm:$0xff]
    %v4230 = vld [vmem:[#allocation10 + $0x160] sm:$0xff]
    %v4231 = vld [vmem:[#allocation10 + $0x168] sm:$0xff]
    %v4232 = vld [vmem:[#allocation10 + $0x170] sm:$0xff]
    %v4233 = vld [vmem:[#allocation10 + $0x178] sm:$0xff]
    %v4234 = vld [vmem:[#allocation10 + $0x180] sm:$0xff]
    %v4235 = vld [vmem:[#allocation10 + $0x188] sm:$0xff]
    %v4236 = vld [vmem:[#allocation10 + $0x190] sm:$0xff]
    %v4237 = vld [vmem:[#allocation10 + $0x198] sm:$0xff]
    %v4238 = vld [vmem:[#allocation10 + $0x1a0] sm:$0xff]
    %v4239 = vld [vmem:[#allocation10 + $0x1a8] sm:$0xff]
    %v4240 = vld [vmem:[#allocation10 + $0x1b0] sm:$0xff]
    %v4241 = vld [vmem:[#allocation10 + $0x1b8] sm:$0xff]
    %v4242 = vld [vmem:[#allocation10 + $0x1c0] sm:$0xff]
    %v4243 = vld [vmem:[#allocation10 + $0x1c8] sm:$0xff]
    %v4244 = vld [vmem:[#allocation10 + $0x1d0] sm:$0xff]
    %v4245 = vld [vmem:[#allocation10 + $0x1d8] sm:$0xff]
    %v4246 = vld [vmem:[#allocation10 + $0x1e0] sm:$0xff]
    %v4247 = vld [vmem:[#allocation10 + $0x1e8] sm:$0xff]
    %v4248 = vld [vmem:[#allocation10 + $0x1f0] sm:$0xff]
    %v4249 = vld [vmem:[#allocation10 + $0x1f8] sm:$0xff]
    %4250 = vmatprep.subr.mxu0 0.0
    %4251 = vmatpush1.msra.mxu0 %v4186
    %4252 = vmatprep.subr.mxu0 0.0
    %4253 = vmatpush1.msra.mxu0 %v4187
    %4254 = vmatprep.subr.mxu0 0.0
    %4255 = vmatpush1.msra.mxu0 %v4188
    %4256 = vmatprep.subr.mxu0 0.0
    %4257 = vmatpush1.msra.mxu0 %v4189
    %4258 = vmatprep.subr.mxu0 0.0
    %4259 = vmatpush1.msra.mxu0 %v4190
    %4260 = vmatprep.subr.mxu0 0.0
    %4261 = vmatpush1.msra.mxu0 %v4191
    %4262 = vmatprep.subr.mxu0 0.0
    %4263 = vmatpush1.msra.mxu0 %v4192
    %4264 = vmatprep.subr.mxu0 0.0
    %4265 = vmatpush1.msra.mxu0 %v4193
    %4266 = vmatprep.subr.mxu0 0.0
    %4267 = vmatpush1.msra.mxu0 %v4194
    %4268 = vmatprep.subr.mxu0 0.0
    %4269 = vmatpush1.msra.mxu0 %v4195
    %4270 = vmatprep.subr.mxu0 0.0
    %4271 = vmatpush1.msra.mxu0 %v4196
    %4272 = vmatprep.subr.mxu0 0.0
    %4273 = vmatpush1.msra.mxu0 %v4197
    %4274 = vmatprep.subr.mxu0 0.0
    %4275 = vmatpush1.msra.mxu0 %v4198
    %4276 = vmatprep.subr.mxu0 0.0
    %4277 = vmatpush1.msra.mxu0 %v4199
    %4278 = vmatprep.subr.mxu0 0.0
    %4279 = vmatpush1.msra.mxu0 %v4200
    %4280 = vmatprep.subr.mxu0 0.0
    %4281 = vmatpush1.msra.mxu0 %v4201
    %4282 = vmatprep.subr.mxu0 0.0
    %4283 = vmatpush1.msra.mxu0 %v4202
    %4284 = vmatprep.subr.mxu0 0.0
    %4285 = vmatpush1.msra.mxu0 %v4203
    %4286 = vmatprep.subr.mxu0 0.0
    %4287 = vmatpush1.msra.mxu0 %v4204
    %4288 = vmatprep.subr.mxu0 0.0
    %4289 = vmatpush1.msra.mxu0 %v4205
    %4290 = vmatprep.subr.mxu0 0.0
    %4291 = vmatpush1.msra.mxu0 %v4206
    %4292 = vmatprep.subr.mxu0 0.0
    %4293 = vmatpush1.msra.mxu0 %v4207
    %4294 = vmatprep.subr.mxu0 0.0
    %4295 = vmatpush1.msra.mxu0 %v4208
    %4296 = vmatprep.subr.mxu0 0.0
    %4297 = vmatpush1.msra.mxu0 %v4209
    %4298 = vmatprep.subr.mxu0 0.0
    %4299 = vmatpush1.msra.mxu0 %v4210
    %4300 = vmatprep.subr.mxu0 0.0
    %4301 = vmatpush1.msra.mxu0 %v4211
    %4302 = vmatprep.subr.mxu0 0.0
    %4303 = vmatpush1.msra.mxu0 %v4212
    %4304 = vmatprep.subr.mxu0 0.0
    %4305 = vmatpush1.msra.mxu0 %v4213
    %4306 = vmatprep.subr.mxu0 0.0
    %4307 = vmatpush1.msra.mxu0 %v4214
    %4308 = vmatprep.subr.mxu0 0.0
    %4309 = vmatpush1.msra.mxu0 %v4215
    %4310 = vmatprep.subr.mxu0 0.0
    %4311 = vmatpush1.msra.mxu0 %v4216
    %4312 = vmatprep.subr.mxu0 0.0
    %4313 = vmatpush1.msra.mxu0 %v4217
    %4314 = vmatprep.mubr.f32.mxu0 %v4183
    %4315 = vmatmul.mubr.f32.gmra.mrb[0].mxu0 %v4182
    %v4316 = vpop.f32.mrb[0].mxu0
    %v4317 = vadd.f32 0.0, %v4316
    %v4318 = vpop.f32.mrb[0].mxu0
    %4319 = vdwg.mxu0
    %4320 = vmatprep.subr.mxu0 0.0
    %4321 = vmatpush1.msra.mxu0 %v4218
    %4322 = vmatprep.subr.mxu0 0.0
    %4323 = vmatpush1.msra.mxu0 %v4219
    %4324 = vmatprep.subr.mxu0 0.0
    %4325 = vmatpush1.msra.mxu0 %v4220
    %4326 = vmatprep.subr.mxu0 0.0
    %4327 = vmatpush1.msra.mxu0 %v4221
    %4328 = vmatprep.subr.mxu0 0.0
    %4329 = vmatpush1.msra.mxu0 %v4222
    %4330 = vmatprep.subr.mxu0 0.0
    %4331 = vmatpush1.msra.mxu0 %v4223
    %4332 = vmatprep.subr.mxu0 0.0
    %4333 = vmatpush1.msra.mxu0 %v4224
    %4334 = vmatprep.subr.mxu0 0.0
    %4335 = vmatpush1.msra.mxu0 %v4225
    %4336 = vmatprep.subr.mxu0 0.0
    %4337 = vmatpush1.msra.mxu0 %v4226
    %4338 = vmatprep.subr.mxu0 0.0
    %4339 = vmatpush1.msra.mxu0 %v4227
    %4340 = vmatprep.subr.mxu0 0.0
    %4341 = vmatpush1.msra.mxu0 %v4228
    %4342 = vmatprep.subr.mxu0 0.0
    %4343 = vmatpush1.msra.mxu0 %v4229
    %4344 = vmatprep.subr.mxu0 0.0
    %4345 = vmatpush1.msra.mxu0 %v4230
    %4346 = vmatprep.subr.mxu0 0.0
    %4347 = vmatpush1.msra.mxu0 %v4231
    %4348 = vmatprep.subr.mxu0 0.0
    %4349 = vmatpush1.msra.mxu0 %v4232
    %4350 = vmatprep.subr.mxu0 0.0
    %4351 = vmatpush1.msra.mxu0 %v4233
    %4352 = vmatprep.subr.mxu0 0.0
    %4353 = vmatpush1.msra.mxu0 %v4234
    %4354 = vmatprep.subr.mxu0 0.0
    %4355 = vmatpush1.msra.mxu0 %v4235
    %4356 = vmatprep.subr.mxu0 0.0
    %4357 = vmatpush1.msra.mxu0 %v4236
    %4358 = vmatprep.subr.mxu0 0.0
    %4359 = vmatpush1.msra.mxu0 %v4237
    %4360 = vmatprep.subr.mxu0 0.0
    %4361 = vmatpush1.msra.mxu0 %v4238
    %4362 = vmatprep.subr.mxu0 0.0
    %4363 = vmatpush1.msra.mxu0 %v4239
    %4364 = vmatprep.subr.mxu0 0.0
    %4365 = vmatpush1.msra.mxu0 %v4240
    %4366 = vmatprep.subr.mxu0 0.0
    %4367 = vmatpush1.msra.mxu0 %v4241
    %4368 = vmatprep.subr.mxu0 0.0
    %4369 = vmatpush1.msra.mxu0 %v4242
    %4370 = vmatprep.subr.mxu0 0.0
    %4371 = vmatpush1.msra.mxu0 %v4243
    %4372 = vmatprep.subr.mxu0 0.0
    %4373 = vmatpush1.msra.mxu0 %v4244
    %4374 = vmatprep.subr.mxu0 0.0
    %4375 = vmatpush1.msra.mxu0 %v4245
    %4376 = vmatprep.subr.mxu0 0.0
    %4377 = vmatpush1.msra.mxu0 %v4246
    %4378 = vmatprep.subr.mxu0 0.0
    %4379 = vmatpush1.msra.mxu0 %v4247
    %4380 = vmatprep.subr.mxu0 0.0
    %4381 = vmatpush1.msra.mxu0 %v4248
    %4382 = vmatprep.subr.mxu0 0.0
    %4383 = vmatpush1.msra.mxu0 %v4249
    %4384 = vmatprep.mubr.f32.mxu0 %v4185
    %4385 = vmatmul.mubr.f32.gmra.mrb[0].mxu0 %v4184
    %v4386 = vpop.f32.mrb[0].mxu0
    %v4387 = vadd.f32 %v4317, %v4386
    %v4388 = vpop.f32.mrb[0].mxu0
    %4389 = vdwg.mxu0
    %4390 = vrot.lane.b32.xlu0 %v4387, 17
    %v4391 = vpop.permute.xlu0 %4390
    %v4392 = vld [vmem:[#allocation9] sm:$0x1]
    %v4394 = vlaneseq
    %v4395 = vshrl.u32 %v4394, 7
    %v4396 = vsub.s32 0, %v4395
    %v4397 = vrot.slane %v4392, %v4396
    %v4399 = vmul.f32 %v4391, %v4397
    %v4400 = vld [vmem:[%s7] sm:$0xff]
    %v4401 = vld [vmem:[%s7 + $0x8] sm:$0xff]
    %4402 = vrot.lane.b32.xlu0 %v4387, 16
    %v4403 = vpop.permute.xlu0 %4402
    %s4404 = scalar_lea.vmem [#allocation9], 1
    %v4405 = vld [vmem:[%s4404] sm:$0x1]
    %v4407 = vlaneseq
    %v4408 = vshrl.u32 %v4407, 7
    %v4409 = vsub.s32 0, %v4408
    %v4410 = vrot.slane %v4405, %v4409
    %v4412 = vmul.f32 %v4403, %v4410
    %s4413 = scalar_lea.vmem %s7, 16
    %v4414 = vld [vmem:[%s4413] sm:$0xff]
    %v4415 = vld [vmem:[%s4413 + $0x8] sm:$0xff]
    %vm4416 = vcmask 64512
    %v4418 = vsel %vm4416, %v4414, 0
    %v4421 = vsel %vm4416, %v4415, 0
    %4423 = vmatprep.subr.mxu0 0.0
    %4424 = vmatpush1.msra.mxu0 %v4412
    %4425 = vmatprep.subr.mxu0 0.0
    %4426 = vmatpush1.msra.mxu0 0.0
    %4427 = vmatprep.subr.mxu0 0.0
    %4428 = vmatpush1.msra.mxu0 0.0
    %4429 = vmatprep.subr.mxu0 0.0
    %4430 = vmatpush1.msra.mxu0 0.0
    %4431 = vmatprep.subr.mxu0 0.0
    %4432 = vmatpush1.msra.mxu0 0.0
    %4433 = vmatprep.subr.mxu0 0.0
    %4434 = vmatpush1.msra.mxu0 0.0
    %4435 = vmatprep.subr.mxu0 0.0
    %4436 = vmatpush1.msra.mxu0 0.0
    %4437 = vmatprep.subr.mxu0 0.0
    %4438 = vmatpush1.msra.mxu0 0.0
    %4439 = vmatprep.subr.mxu0 0.0
    %4440 = vmatpush1.msra.mxu0 0.0
    %4441 = vmatprep.subr.mxu0 0.0
    %4442 = vmatpush1.msra.mxu0 0.0
    %4443 = vmatprep.subr.mxu0 0.0
    %4444 = vmatpush1.msra.mxu0 0.0
    %4445 = vmatprep.subr.mxu0 0.0
    %4446 = vmatpush1.msra.mxu0 0.0
    %4447 = vmatprep.subr.mxu0 0.0
    %4448 = vmatpush1.msra.mxu0 0.0
    %4449 = vmatprep.subr.mxu0 0.0
    %4450 = vmatpush1.msra.mxu0 0.0
    %4451 = vmatprep.subr.mxu0 0.0
    %4452 = vmatpush1.msra.mxu0 0.0
    %4453 = vmatprep.subr.mxu0 0.0
    %4454 = vmatpush1.msra.mxu0 0.0
    %4455 = vmatprep.subr.mxu0 0.0
    %4456 = vmatpush1.msra.mxu0 0.0
    %4457 = vmatprep.subr.mxu0 0.0
    %4458 = vmatpush1.msra.mxu0 0.0
    %4459 = vmatprep.subr.mxu0 0.0
    %4460 = vmatpush1.msra.mxu0 0.0
    %4461 = vmatprep.subr.mxu0 0.0
    %4462 = vmatpush1.msra.mxu0 0.0
    %4463 = vmatprep.subr.mxu0 0.0
    %4464 = vmatpush1.msra.mxu0 0.0
    %4465 = vmatprep.subr.mxu0 0.0
    %4466 = vmatpush1.msra.mxu0 0.0
    %4467 = vmatprep.subr.mxu0 0.0
    %4468 = vmatpush1.msra.mxu0 0.0
    %4469 = vmatprep.subr.mxu0 0.0
    %4470 = vmatpush1.msra.mxu0 0.0
    %4471 = vmatprep.subr.mxu0 0.0
    %4472 = vmatpush1.msra.mxu0 0.0
    %4473 = vmatprep.subr.mxu0 0.0
    %4474 = vmatpush1.msra.mxu0 0.0
    %4475 = vmatprep.subr.mxu0 0.0
    %4476 = vmatpush1.msra.mxu0 0.0
    %4477 = vmatprep.subr.mxu0 0.0
    %4478 = vmatpush1.msra.mxu0 0.0
    %4479 = vmatprep.subr.mxu0 0.0
    %4480 = vmatpush1.msra.mxu0 0.0
    %4481 = vmatprep.subr.mxu0 0.0
    %4482 = vmatpush1.msra.mxu0 0.0
    %4483 = vmatprep.subr.mxu0 0.0
    %4484 = vmatpush1.msra.mxu0 0.0
    %4485 = vmatprep.subr.mxu0 0.0
    %4486 = vmatpush1.msra.mxu0 0.0
    %4487 = vmatprep.mubr.f32.mxu0 0.0
    %4488 = vmatmul.mubr.f32.gmra.mrb[0].mxu0 %v4418
    %v4489 = vpop.f32.mrb[0].mxu0
    %v4490 = vadd.f32 0.0, %v4489
    %v4491 = vpop.f32.mrb[0].mxu0
    %4492 = vmatprep.mubr.f32.mxu0 0.0
    %4493 = vmatmul.mubr.f32.gmra.mrb[0].mxu0 %v4421
    %v4494 = vpop.f32.mrb[0].mxu0
    %v4495 = vadd.f32 0.0, %v4494
    %v4496 = vpop.f32.mrb[0].mxu0
    %4497 = vdwg.mxu0
    %v4499 = vsel %vm4416, %v4400, 0
    %v4502 = vsel %vm4416, %v4401, 0
    %4504 = vmatprep.subr.mxu0 0.0
    %4505 = vmatpush1.msra.mxu0 %v4399
    %4506 = vmatprep.subr.mxu0 0.0
    %4507 = vmatpush1.msra.mxu0 0.0
    %4508 = vmatprep.subr.mxu0 0.0
    %4509 = vmatpush1.msra.mxu0 0.0
    %4510 = vmatprep.subr.mxu0 0.0
    %4511 = vmatpush1.msra.mxu0 0.0
    %4512 = vmatprep.subr.mxu0 0.0
    %4513 = vmatpush1.msra.mxu0 0.0
    %4514 = vmatprep.subr.mxu0 0.0
    %4515 = vmatpush1.msra.mxu0 0.0
    %4516 = vmatprep.subr.mxu0 0.0
    %4517 = vmatpush1.msra.mxu0 0.0
    %4518 = vmatprep.subr.mxu0 0.0
    %4519 = vmatpush1.msra.mxu0 0.0
    %4520 = vmatprep.subr.mxu0 0.0
    %4521 = vmatpush1.msra.mxu0 0.0
    %4522 = vmatprep.subr.mxu0 0.0
    %4523 = vmatpush1.msra.mxu0 0.0
    %4524 = vmatprep.subr.mxu0 0.0
    %4525 = vmatpush1.msra.mxu0 0.0
    %4526 = vmatprep.subr.mxu0 0.0
    %4527 = vmatpush1.msra.mxu0 0.0
    %4528 = vmatprep.subr.mxu0 0.0
    %4529 = vmatpush1.msra.mxu0 0.0
    %4530 = vmatprep.subr.mxu0 0.0
    %4531 = vmatpush1.msra.mxu0 0.0
    %4532 = vmatprep.subr.mxu0 0.0
    %4533 = vmatpush1.msra.mxu0 0.0
    %4534 = vmatprep.subr.mxu0 0.0
    %4535 = vmatpush1.msra.mxu0 0.0
    %4536 = vmatprep.subr.mxu0 0.0
    %4537 = vmatpush1.msra.mxu0 0.0
    %4538 = vmatprep.subr.mxu0 0.0
    %4539 = vmatpush1.msra.mxu0 0.0
    %4540 = vmatprep.subr.mxu0 0.0
    %4541 = vmatpush1.msra.mxu0 0.0
    %4542 = vmatprep.subr.mxu0 0.0
    %4543 = vmatpush1.msra.mxu0 0.0
    %4544 = vmatprep.subr.mxu0 0.0
    %4545 = vmatpush1.msra.mxu0 0.0
    %4546 = vmatprep.subr.mxu0 0.0
    %4547 = vmatpush1.msra.mxu0 0.0
    %4548 = vmatprep.subr.mxu0 0.0
    %4549 = vmatpush1.msra.mxu0 0.0
    %4550 = vmatprep.subr.mxu0 0.0
    %4551 = vmatpush1.msra.mxu0 0.0
    %4552 = vmatprep.subr.mxu0 0.0
    %4553 = vmatpush1.msra.mxu0 0.0
    %4554 = vmatprep.subr.mxu0 0.0
    %4555 = vmatpush1.msra.mxu0 0.0
    %4556 = vmatprep.subr.mxu0 0.0
    %4557 = vmatpush1.msra.mxu0 0.0
    %4558 = vmatprep.subr.mxu0 0.0
    %4559 = vmatpush1.msra.mxu0 0.0
    %4560 = vmatprep.subr.mxu0 0.0
    %4561 = vmatpush1.msra.mxu0 0.0
    %4562 = vmatprep.subr.mxu0 0.0
    %4563 = vmatpush1.msra.mxu0 0.0
    %4564 = vmatprep.subr.mxu0 0.0
    %4565 = vmatpush1.msra.mxu0 0.0
    %4566 = vmatprep.subr.mxu0 0.0
    %4567 = vmatpush1.msra.mxu0 0.0
    %4568 = vmatprep.mubr.f32.mxu0 0.0
    %4569 = vmatmul.mubr.f32.gmra.mrb[0].mxu0 %v4499
    %v4570 = vpop.f32.mrb[0].mxu0
    %v4571 = vadd.f32 %v4490, %v4570
    %v4572 = vpop.f32.mrb[0].mxu0
    %4573 = vmatprep.mubr.f32.mxu0 0.0
    %4574 = vmatmul.mubr.f32.gmra.mrb[0].mxu0 %v4502
    %v4575 = vpop.f32.mrb[0].mxu0
    %v4576 = vadd.f32 %v4495, %v4575
    %v4577 = vpop.f32.mrb[0].mxu0
    %4578 = vdwg.mxu0
    %4579 = vrot.lane.b32.xlu0 %v4387, 15
    %v4580 = vpop.permute.xlu0 %4579
    %s4581 = scalar_lea.vmem [#allocation9], 2
    %v4582 = vld [vmem:[%s4581] sm:$0x1]
    %v4584 = vlaneseq
    %v4585 = vshrl.u32 %v4584, 7
    %v4586 = vsub.s32 0, %v4585
    %v4587 = vrot.slane %v4582, %v4586
    %v4589 = vmul.f32 %v4580, %v4587
    %s4590 = scalar_lea.vmem %s7, 32
    %v4591 = vld [vmem:[%s4590] sm:$0xff]
    %v4592 = vld [vmem:[%s4590 + $0x8] sm:$0xff]
    %v4594 = vsel %vm4416, %v4591, 0
    %v4597 = vsel %vm4416, %v4592, 0
    %4599 = vmatprep.subr.mxu0 0.0
    %4600 = vmatpush1.msra.mxu0 %v4589
    %4601 = vmatprep.subr.mxu0 0.0
    %4602 = vmatpush1.msra.mxu0 0.0
    %4603 = vmatprep.subr.mxu0 0.0
    %4604 = vmatpush1.msra.mxu0 0.0
    %4605 = vmatprep.subr.mxu0 0.0
    %4606 = vmatpush1.msra.mxu0 0.0
    %4607 = vmatprep.subr.mxu0 0.0
    %4608 = vmatpush1.msra.mxu0 0.0
    %4609 = vmatprep.subr.mxu0 0.0
    %4610 = vmatpush1.msra.mxu0 0.0
    %4611 = vmatprep.subr.mxu0 0.0
    %4612 = vmatpush1.msra.mxu0 0.0
    %4613 = vmatprep.subr.mxu0 0.0
    %4614 = vmatpush1.msra.mxu0 0.0
    %4615 = vmatprep.subr.mxu0 0.0
    %4616 = vmatpush1.msra.mxu0 0.0
    %4617 = vmatprep.subr.mxu0 0.0
    %4618 = vmatpush1.msra.mxu0 0.0
    %4619 = vmatprep.subr.mxu0 0.0
    %4620 = vmatpush1.msra.mxu0 0.0
    %4621 = vmatprep.subr.mxu0 0.0
    %4622 = vmatpush1.msra.mxu0 0.0
    %4623 = vmatprep.subr.mxu0 0.0
    %4624 = vmatpush1.msra.mxu0 0.0
    %4625 = vmatprep.subr.mxu0 0.0
    %4626 = vmatpush1.msra.mxu0 0.0
    %4627 = vmatprep.subr.mxu0 0.0
    %4628 = vmatpush1.msra.mxu0 0.0
    %4629 = vmatprep.subr.mxu0 0.0
    %4630 = vmatpush1.msra.mxu0 0.0
    %4631 = vmatprep.subr.mxu0 0.0
    %4632 = vmatpush1.msra.mxu0 0.0
    %4633 = vmatprep.subr.mxu0 0.0
    %4634 = vmatpush1.msra.mxu0 0.0
    %4635 = vmatprep.subr.mxu0 0.0
    %4636 = vmatpush1.msra.mxu0 0.0
    %4637 = vmatprep.subr.mxu0 0.0
    %4638 = vmatpush1.msra.mxu0 0.0
    %4639 = vmatprep.subr.mxu0 0.0
    %4640 = vmatpush1.msra.mxu0 0.0
    %4641 = vmatprep.subr.mxu0 0.0
    %4642 = vmatpush1.msra.mxu0 0.0
    %4643 = vmatprep.subr.mxu0 0.0
    %4644 = vmatpush1.msra.mxu0 0.0
    %4645 = vmatprep.subr.mxu0 0.0
    %4646 = vmatpush1.msra.mxu0 0.0
    %4647 = vmatprep.subr.mxu0 0.0
    %4648 = vmatpush1.msra.mxu0 0.0
    %4649 = vmatprep.subr.mxu0 0.0
    %4650 = vmatpush1.msra.mxu0 0.0
    %4651 = vmatprep.subr.mxu0 0.0
    %4652 = vmatpush1.msra.mxu0 0.0
    %4653 = vmatprep.subr.mxu0 0.0
    %4654 = vmatpush1.msra.mxu0 0.0
    %4655 = vmatprep.subr.mxu0 0.0
    %4656 = vmatpush1.msra.mxu0 0.0
    %4657 = vmatprep.subr.mxu0 0.0
    %4658 = vmatpush1.msra.mxu0 0.0
    %4659 = vmatprep.subr.mxu0 0.0
    %4660 = vmatpush1.msra.mxu0 0.0
    %4661 = vmatprep.subr.mxu0 0.0
    %4662 = vmatpush1.msra.mxu0 0.0
    %4663 = vmatprep.mubr.f32.mxu0 0.0
    %4664 = vmatmul.mubr.f32.gmra.mrb[0].mxu0 %v4594
    %v4665 = vpop.f32.mrb[0].mxu0
    %v4666 = vadd.f32 0.0, %v4665
    %v4667 = vpop.f32.mrb[0].mxu0
    %4668 = vmatprep.mubr.f32.mxu0 0.0
    %4669 = vmatmul.mubr.f32.gmra.mrb[0].mxu0 %v4597
    %v4670 = vpop.f32.mrb[0].mxu0
    %v4671 = vadd.f32 0.0, %v4670
    %v4672 = vpop.f32.mrb[0].mxu0
    %4673 = vdwg.mxu0
    %v4674 = vadd.f32 %v4571, %v4666
    %v4675 = vadd.f32 %v4576, %v4671
    %4676 = vrot.lane.b32.xlu0 %v4387, 1
    %v4677 = vpop.permute.xlu0 %4676
    %s4678 = scalar_lea.vmem [#allocation9], 3
    %v4679 = vld [vmem:[%s4678] sm:$0x1]
    %v4681 = vlaneseq
    %v4682 = vshrl.u32 %v4681, 7
    %v4683 = vsub.s32 0, %v4682
    %v4684 = vrot.slane %v4679, %v4683
    %v4686 = vmul.f32 %v4677, %v4684
    %s4687 = scalar_lea.vmem %s7, 48
    %v4688 = vld [vmem:[%s4687] sm:$0xff]
    %v4689 = vld [vmem:[%s4687 + $0x8] sm:$0xff]
    %v4691 = vsel %vm4416, %v4688, 0
    %v4694 = vsel %vm4416, %v4689, 0
    %4696 = vmatprep.subr.mxu0 0.0
    %4697 = vmatpush1.msra.mxu0 %v4686
    %4698 = vmatprep.subr.mxu0 0.0
    %4699 = vmatpush1.msra.mxu0 0.0
    %4700 = vmatprep.subr.mxu0 0.0
    %4701 = vmatpush1.msra.mxu0 0.0
    %4702 = vmatprep.subr.mxu0 0.0
    %4703 = vmatpush1.msra.mxu0 0.0
    %4704 = vmatprep.subr.mxu0 0.0
    %4705 = vmatpush1.msra.mxu0 0.0
    %4706 = vmatprep.subr.mxu0 0.0
    %4707 = vmatpush1.msra.mxu0 0.0
    %4708 = vmatprep.subr.mxu0 0.0
    %4709 = vmatpush1.msra.mxu0 0.0
    %4710 = vmatprep.subr.mxu0 0.0
    %4711 = vmatpush1.msra.mxu0 0.0
    %4712 = vmatprep.subr.mxu0 0.0
    %4713 = vmatpush1.msra.mxu0 0.0
    %4714 = vmatprep.subr.mxu0 0.0
    %4715 = vmatpush1.msra.mxu0 0.0
    %4716 = vmatprep.subr.mxu0 0.0
    %4717 = vmatpush1.msra.mxu0 0.0
    %4718 = vmatprep.subr.mxu0 0.0
    %4719 = vmatpush1.msra.mxu0 0.0
    %4720 = vmatprep.subr.mxu0 0.0
    %4721 = vmatpush1.msra.mxu0 0.0
    %4722 = vmatprep.subr.mxu0 0.0
    %4723 = vmatpush1.msra.mxu0 0.0
    %4724 = vmatprep.subr.mxu0 0.0
    %4725 = vmatpush1.msra.mxu0 0.0
    %4726 = vmatprep.subr.mxu0 0.0
    %4727 = vmatpush1.msra.mxu0 0.0
    %4728 = vmatprep.subr.mxu0 0.0
    %4729 = vmatpush1.msra.mxu0 0.0
    %4730 = vmatprep.subr.mxu0 0.0
    %4731 = vmatpush1.msra.mxu0 0.0
    %4732 = vmatprep.subr.mxu0 0.0
    %4733 = vmatpush1.msra.mxu0 0.0
    %4734 = vmatprep.subr.mxu0 0.0
    %4735 = vmatpush1.msra.mxu0 0.0
    %4736 = vmatprep.subr.mxu0 0.0
    %4737 = vmatpush1.msra.mxu0 0.0
    %4738 = vmatprep.subr.mxu0 0.0
    %4739 = vmatpush1.msra.mxu0 0.0
    %4740 = vmatprep.subr.mxu0 0.0
    %4741 = vmatpush1.msra.mxu0 0.0
    %4742 = vmatprep.subr.mxu0 0.0
    %4743 = vmatpush1.msra.mxu0 0.0
    %4744 = vmatprep.subr.mxu0 0.0
    %4745 = vmatpush1.msra.mxu0 0.0
    %4746 = vmatprep.subr.mxu0 0.0
    %4747 = vmatpush1.msra.mxu0 0.0
    %4748 = vmatprep.subr.mxu0 0.0
    %4749 = vmatpush1.msra.mxu0 0.0
    %4750 = vmatprep.subr.mxu0 0.0
    %4751 = vmatpush1.msra.mxu0 0.0
    %4752 = vmatprep.subr.mxu0 0.0
    %4753 = vmatpush1.msra.mxu0 0.0
    %4754 = vmatprep.subr.mxu0 0.0
    %4755 = vmatpush1.msra.mxu0 0.0
    %4756 = vmatprep.subr.mxu0 0.0
    %4757 = vmatpush1.msra.mxu0 0.0
    %4758 = vmatprep.subr.mxu0 0.0
    %4759 = vmatpush1.msra.mxu0 0.0
    %4760 = vmatprep.mubr.f32.mxu0 0.0
    %4761 = vmatmul.mubr.f32.gmra.mrb[0].mxu0 %v4691
    %v4762 = vpop.f32.mrb[0].mxu0
    %v4763 = vadd.f32 0.0, %v4762
    %v4764 = vpop.f32.mrb[0].mxu0
    %4765 = vmatprep.mubr.f32.mxu0 0.0
    %4766 = vmatmul.mubr.f32.gmra.mrb[0].mxu0 %v4694
    %v4767 = vpop.f32.mrb[0].mxu0
    %v4768 = vadd.f32 0.0, %v4767
    %v4769 = vpop.f32.mrb[0].mxu0
    %4770 = vdwg.mxu0
    %v4771 = vadd.f32 %v4674, %v4763
    %v4772 = vadd.f32 %v4675, %v4768
    %s4773 = scalar_lea.vmem %s7, 64
    %v4774 = vld [vmem:[%s4773] sm:$0xff]
    %v4775 = vld [vmem:[%s4773 + $0x8] sm:$0xff]
    %v4777 = vsel %vm4416, %v4774, 0
    %v4780 = vsel %vm4416, %v4775, 0
    %4782 = vmatprep.subr.mxu0 0.0
    %4783 = vmatpush1.msra.mxu0 %v4387
    %4784 = vmatprep.subr.mxu0 0.0
    %4785 = vmatpush1.msra.mxu0 0.0
    %4786 = vmatprep.subr.mxu0 0.0
    %4787 = vmatpush1.msra.mxu0 0.0
    %4788 = vmatprep.subr.mxu0 0.0
    %4789 = vmatpush1.msra.mxu0 0.0
    %4790 = vmatprep.subr.mxu0 0.0
    %4791 = vmatpush1.msra.mxu0 0.0
    %4792 = vmatprep.subr.mxu0 0.0
    %4793 = vmatpush1.msra.mxu0 0.0
    %4794 = vmatprep.subr.mxu0 0.0
    %4795 = vmatpush1.msra.mxu0 0.0
    %4796 = vmatprep.subr.mxu0 0.0
    %4797 = vmatpush1.msra.mxu0 0.0
    %4798 = vmatprep.subr.mxu0 0.0
    %4799 = vmatpush1.msra.mxu0 0.0
    %4800 = vmatprep.subr.mxu0 0.0
    %4801 = vmatpush1.msra.mxu0 0.0
    %4802 = vmatprep.subr.mxu0 0.0
    %4803 = vmatpush1.msra.mxu0 0.0
    %4804 = vmatprep.subr.mxu0 0.0
    %4805 = vmatpush1.msra.mxu0 0.0
    %4806 = vmatprep.subr.mxu0 0.0
    %4807 = vmatpush1.msra.mxu0 0.0
    %4808 = vmatprep.subr.mxu0 0.0
    %4809 = vmatpush1.msra.mxu0 0.0
    %4810 = vmatprep.subr.mxu0 0.0
    %4811 = vmatpush1.msra.mxu0 0.0
    %4812 = vmatprep.subr.mxu0 0.0
    %4813 = vmatpush1.msra.mxu0 0.0
    %4814 = vmatprep.subr.mxu0 0.0
    %4815 = vmatpush1.msra.mxu0 0.0
    %4816 = vmatprep.subr.mxu0 0.0
    %4817 = vmatpush1.msra.mxu0 0.0
    %4818 = vmatprep.subr.mxu0 0.0
    %4819 = vmatpush1.msra.mxu0 0.0
    %4820 = vmatprep.subr.mxu0 0.0
    %4821 = vmatpush1.msra.mxu0 0.0
    %4822 = vmatprep.subr.mxu0 0.0
    %4823 = vmatpush1.msra.mxu0 0.0
    %4824 = vmatprep.subr.mxu0 0.0
    %4825 = vmatpush1.msra.mxu0 0.0
    %4826 = vmatprep.subr.mxu0 0.0
    %4827 = vmatpush1.msra.mxu0 0.0
    %4828 = vmatprep.subr.mxu0 0.0
    %4829 = vmatpush1.msra.mxu0 0.0
    %4830 = vmatprep.subr.mxu0 0.0
    %4831 = vmatpush1.msra.mxu0 0.0
    %4832 = vmatprep.subr.mxu0 0.0
    %4833 = vmatpush1.msra.mxu0 0.0
    %4834 = vmatprep.subr.mxu0 0.0
    %4835 = vmatpush1.msra.mxu0 0.0
    %4836 = vmatprep.subr.mxu0 0.0
    %4837 = vmatpush1.msra.mxu0 0.0
    %4838 = vmatprep.subr.mxu0 0.0
    %4839 = vmatpush1.msra.mxu0 0.0
    %4840 = vmatprep.subr.mxu0 0.0
    %4841 = vmatpush1.msra.mxu0 0.0
    %4842 = vmatprep.subr.mxu0 0.0
    %4843 = vmatpush1.msra.mxu0 0.0
    %4844 = vmatprep.subr.mxu0 0.0
    %4845 = vmatpush1.msra.mxu0 0.0
    %4846 = vmatprep.mubr.f32.mxu0 0.0
    %4847 = vmatmul.mubr.f32.gmra.mrb[0].mxu0 %v4777
    %v4848 = vpop.f32.mrb[0].mxu0
    %v4849 = vadd.f32 0.0, %v4848
    %v4850 = vpop.f32.mrb[0].mxu0
    %4851 = vmatprep.mubr.f32.mxu0 0.0
    %4852 = vmatmul.mubr.f32.gmra.mrb[0].mxu0 %v4780
    %v4853 = vpop.f32.mrb[0].mxu0
    %v4854 = vadd.f32 0.0, %v4853
    %v4855 = vpop.f32.mrb[0].mxu0
    %4856 = vdwg.mxu0
    %v4857 = vadd.f32 %v4771, %v4849
    %v4858 = vadd.f32 %v4772, %v4854
    %4859 = vrot.lane.b32.xlu0 %v4387, 127
    %v4860 = vpop.permute.xlu0 %4859
    %s4861 = scalar_lea.vmem [#allocation9], 5
    %v4862 = vld [vmem:[%s4861] sm:$0x1]
    %v4864 = vlaneseq
    %v4865 = vshrl.u32 %v4864, 7
    %v4866 = vsub.s32 0, %v4865
    %v4867 = vrot.slane %v4862, %v4866
    %v4869 = vmul.f32 %v4860, %v4867
    %s4870 = scalar_lea.vmem %s7, 80
    %v4871 = vld [vmem:[%s4870] sm:$0xff]
    %v4872 = vld [vmem:[%s4870 + $0x8] sm:$0xff]
    %v4874 = vsel %vm4416, %v4871, 0
    %v4877 = vsel %vm4416, %v4872, 0
    %4879 = vmatprep.subr.mxu0 0.0
    %4880 = vmatpush1.msra.mxu0 %v4869
    %4881 = vmatprep.subr.mxu0 0.0
    %4882 = vmatpush1.msra.mxu0 0.0
    %4883 = vmatprep.subr.mxu0 0.0
    %4884 = vmatpush1.msra.mxu0 0.0
    %4885 = vmatprep.subr.mxu0 0.0
    %4886 = vmatpush1.msra.mxu0 0.0
    %4887 = vmatprep.subr.mxu0 0.0
    %4888 = vmatpush1.msra.mxu0 0.0
    %4889 = vmatprep.subr.mxu0 0.0
    %4890 = vmatpush1.msra.mxu0 0.0
    %4891 = vmatprep.subr.mxu0 0.0
    %4892 = vmatpush1.msra.mxu0 0.0
    %4893 = vmatprep.subr.mxu0 0.0
    %4894 = vmatpush1.msra.mxu0 0.0
    %4895 = vmatprep.subr.mxu0 0.0
    %4896 = vmatpush1.msra.mxu0 0.0
    %4897 = vmatprep.subr.mxu0 0.0
    %4898 = vmatpush1.msra.mxu0 0.0
    %4899 = vmatprep.subr.mxu0 0.0
    %4900 = vmatpush1.msra.mxu0 0.0
    %4901 = vmatprep.subr.mxu0 0.0
    %4902 = vmatpush1.msra.mxu0 0.0
    %4903 = vmatprep.subr.mxu0 0.0
    %4904 = vmatpush1.msra.mxu0 0.0
    %4905 = vmatprep.subr.mxu0 0.0
    %4906 = vmatpush1.msra.mxu0 0.0
    %4907 = vmatprep.subr.mxu0 0.0
    %4908 = vmatpush1.msra.mxu0 0.0
    %4909 = vmatprep.subr.mxu0 0.0
    %4910 = vmatpush1.msra.mxu0 0.0
    %4911 = vmatprep.subr.mxu0 0.0
    %4912 = vmatpush1.msra.mxu0 0.0
    %4913 = vmatprep.subr.mxu0 0.0
    %4914 = vmatpush1.msra.mxu0 0.0
    %4915 = vmatprep.subr.mxu0 0.0
    %4916 = vmatpush1.msra.mxu0 0.0
    %4917 = vmatprep.subr.mxu0 0.0
    %4918 = vmatpush1.msra.mxu0 0.0
    %4919 = vmatprep.subr.mxu0 0.0
    %4920 = vmatpush1.msra.mxu0 0.0
    %4921 = vmatprep.subr.mxu0 0.0
    %4922 = vmatpush1.msra.mxu0 0.0
    %4923 = vmatprep.subr.mxu0 0.0
    %4924 = vmatpush1.msra.mxu0 0.0
    %4925 = vmatprep.subr.mxu0 0.0
    %4926 = vmatpush1.msra.mxu0 0.0
    %4927 = vmatprep.subr.mxu0 0.0
    %4928 = vmatpush1.msra.mxu0 0.0
    %4929 = vmatprep.subr.mxu0 0.0
    %4930 = vmatpush1.msra.mxu0 0.0
    %4931 = vmatprep.subr.mxu0 0.0
    %4932 = vmatpush1.msra.mxu0 0.0
    %4933 = vmatprep.subr.mxu0 0.0
    %4934 = vmatpush1.msra.mxu0 0.0
    %4935 = vmatprep.subr.mxu0 0.0
    %4936 = vmatpush1.msra.mxu0 0.0
    %4937 = vmatprep.subr.mxu0 0.0
    %4938 = vmatpush1.msra.mxu0 0.0
    %4939 = vmatprep.subr.mxu0 0.0
    %4940 = vmatpush1.msra.mxu0 0.0
    %4941 = vmatprep.subr.mxu0 0.0
    %4942 = vmatpush1.msra.mxu0 0.0
    %4943 = vmatprep.mubr.f32.mxu0 0.0
    %4944 = vmatmul.mubr.f32.gmra.mrb[0].mxu0 %v4874
    %v4945 = vpop.f32.mrb[0].mxu0
    %v4946 = vadd.f32 0.0, %v4945
    %v4947 = vpop.f32.mrb[0].mxu0
    %4948 = vmatprep.mubr.f32.mxu0 0.0
    %4949 = vmatmul.mubr.f32.gmra.mrb[0].mxu0 %v4877
    %v4950 = vpop.f32.mrb[0].mxu0
    %v4951 = vadd.f32 0.0, %v4950
    %v4952 = vpop.f32.mrb[0].mxu0
    %4953 = vdwg.mxu0
    %v4954 = vadd.f32 %v4857, %v4946
    %v4955 = vadd.f32 %v4858, %v4951
    %4956 = vrot.lane.b32.xlu0 %v4387, 113
    %v4957 = vpop.permute.xlu0 %4956
    %s4958 = scalar_lea.vmem [#allocation9], 6
    %v4959 = vld [vmem:[%s4958] sm:$0x1]
    %v4961 = vlaneseq
    %v4962 = vshrl.u32 %v4961, 7
    %v4963 = vsub.s32 0, %v4962
    %v4964 = vrot.slane %v4959, %v4963
    %v4966 = vmul.f32 %v4957, %v4964
    %s4967 = scalar_lea.vmem %s7, 96
    %v4968 = vld [vmem:[%s4967] sm:$0xff]
    %v4969 = vld [vmem:[%s4967 + $0x8] sm:$0xff]
    %v4971 = vsel %vm4416, %v4968, 0
    %v4974 = vsel %vm4416, %v4969, 0
    %4976 = vmatprep.subr.mxu0 0.0
    %4977 = vmatpush1.msra.mxu0 %v4966
    %4978 = vmatprep.subr.mxu0 0.0
    %4979 = vmatpush1.msra.mxu0 0.0
    %4980 = vmatprep.subr.mxu0 0.0
    %4981 = vmatpush1.msra.mxu0 0.0
    %4982 = vmatprep.subr.mxu0 0.0
    %4983 = vmatpush1.msra.mxu0 0.0
    %4984 = vmatprep.subr.mxu0 0.0
    %4985 = vmatpush1.msra.mxu0 0.0
    %4986 = vmatprep.subr.mxu0 0.0
    %4987 = vmatpush1.msra.mxu0 0.0
    %4988 = vmatprep.subr.mxu0 0.0
    %4989 = vmatpush1.msra.mxu0 0.0
    %4990 = vmatprep.subr.mxu0 0.0
    %4991 = vmatpush1.msra.mxu0 0.0
    %4992 = vmatprep.subr.mxu0 0.0
    %4993 = vmatpush1.msra.mxu0 0.0
    %4994 = vmatprep.subr.mxu0 0.0
    %4995 = vmatpush1.msra.mxu0 0.0
    %4996 = vmatprep.subr.mxu0 0.0
    %4997 = vmatpush1.msra.mxu0 0.0
    %4998 = vmatprep.subr.mxu0 0.0
    %4999 = vmatpush1.msra.mxu0 0.0
    %5000 = vmatprep.subr.mxu0 0.0
    %5001 = vmatpush1.msra.mxu0 0.0
    %5002 = vmatprep.subr.mxu0 0.0
    %5003 = vmatpush1.msra.mxu0 0.0
    %5004 = vmatprep.subr.mxu0 0.0
    %5005 = vmatpush1.msra.mxu0 0.0
    %5006 = vmatprep.subr.mxu0 0.0
    %5007 = vmatpush1.msra.mxu0 0.0
    %5008 = vmatprep.subr.mxu0 0.0
    %5009 = vmatpush1.msra.mxu0 0.0
    %5010 = vmatprep.subr.mxu0 0.0
    %5011 = vmatpush1.msra.mxu0 0.0
    %5012 = vmatprep.subr.mxu0 0.0
    %5013 = vmatpush1.msra.mxu0 0.0
    %5014 = vmatprep.subr.mxu0 0.0
    %5015 = vmatpush1.msra.mxu0 0.0
    %5016 = vmatprep.subr.mxu0 0.0
    %5017 = vmatpush1.msra.mxu0 0.0
    %5018 = vmatprep.subr.mxu0 0.0
    %5019 = vmatpush1.msra.mxu0 0.0
    %5020 = vmatprep.subr.mxu0 0.0
    %5021 = vmatpush1.msra.mxu0 0.0
    %5022 = vmatprep.subr.mxu0 0.0
    %5023 = vmatpush1.msra.mxu0 0.0
    %5024 = vmatprep.subr.mxu0 0.0
    %5025 = vmatpush1.msra.mxu0 0.0
    %5026 = vmatprep.subr.mxu0 0.0
    %5027 = vmatpush1.msra.mxu0 0.0
    %5028 = vmatprep.subr.mxu0 0.0
    %5029 = vmatpush1.msra.mxu0 0.0
    %5030 = vmatprep.subr.mxu0 0.0
    %5031 = vmatpush1.msra.mxu0 0.0
    %5032 = vmatprep.subr.mxu0 0.0
    %5033 = vmatpush1.msra.mxu0 0.0
    %5034 = vmatprep.subr.mxu0 0.0
    %5035 = vmatpush1.msra.mxu0 0.0
    %5036 = vmatprep.subr.mxu0 0.0
    %5037 = vmatpush1.msra.mxu0 0.0
    %5038 = vmatprep.subr.mxu0 0.0
    %5039 = vmatpush1.msra.mxu0 0.0
    %5040 = vmatprep.mubr.f32.mxu0 0.0
    %5041 = vmatmul.mubr.f32.gmra.mrb[0].mxu0 %v4971
    %v5042 = vpop.f32.mrb[0].mxu0
    %v5043 = vadd.f32 0.0, %v5042
    %v5044 = vpop.f32.mrb[0].mxu0
    %5045 = vmatprep.mubr.f32.mxu0 0.0
    %5046 = vmatmul.mubr.f32.gmra.mrb[0].mxu0 %v4974
    %v5047 = vpop.f32.mrb[0].mxu0
    %v5048 = vadd.f32 0.0, %v5047
    %v5049 = vpop.f32.mrb[0].mxu0
    %5050 = vdwg.mxu0
    %v5051 = vadd.f32 %v4954, %v5043
    %v5052 = vadd.f32 %v4955, %v5048
    %5053 = vrot.lane.b32.xlu0 %v4387, 112
    %v5054 = vpop.permute.xlu0 %5053
    %s5055 = scalar_lea.vmem [#allocation9], 7
    %v5056 = vld [vmem:[%s5055] sm:$0x1]
    %v5058 = vlaneseq
    %v5059 = vshrl.u32 %v5058, 7
    %v5060 = vsub.s32 0, %v5059
    %v5061 = vrot.slane %v5056, %v5060
    %v5063 = vmul.f32 %v5054, %v5061
    %s5064 = scalar_lea.vmem %s7, 112
    %v5065 = vld [vmem:[%s5064] sm:$0xff]
    %v5066 = vld [vmem:[%s5064 + $0x8] sm:$0xff]
    %v5068 = vsel %vm4416, %v5065, 0
    %v5071 = vsel %vm4416, %v5066, 0
    %5073 = vmatprep.subr.mxu0 0.0
    %5074 = vmatpush1.msra.mxu0 %v5063
    %5075 = vmatprep.subr.mxu0 0.0
    %5076 = vmatpush1.msra.mxu0 0.0
    %5077 = vmatprep.subr.mxu0 0.0
    %5078 = vmatpush1.msra.mxu0 0.0
    %5079 = vmatprep.subr.mxu0 0.0
    %5080 = vmatpush1.msra.mxu0 0.0
    %5081 = vmatprep.subr.mxu0 0.0
    %5082 = vmatpush1.msra.mxu0 0.0
    %5083 = vmatprep.subr.mxu0 0.0
    %5084 = vmatpush1.msra.mxu0 0.0
    %5085 = vmatprep.subr.mxu0 0.0
    %5086 = vmatpush1.msra.mxu0 0.0
    %5087 = vmatprep.subr.mxu0 0.0
    %5088 = vmatpush1.msra.mxu0 0.0
    %5089 = vmatprep.subr.mxu0 0.0
    %5090 = vmatpush1.msra.mxu0 0.0
    %5091 = vmatprep.subr.mxu0 0.0
    %5092 = vmatpush1.msra.mxu0 0.0
    %5093 = vmatprep.subr.mxu0 0.0
    %5094 = vmatpush1.msra.mxu0 0.0
    %5095 = vmatprep.subr.mxu0 0.0
    %5096 = vmatpush1.msra.mxu0 0.0
    %5097 = vmatprep.subr.mxu0 0.0
    %5098 = vmatpush1.msra.mxu0 0.0
    %5099 = vmatprep.subr.mxu0 0.0
    %5100 = vmatpush1.msra.mxu0 0.0
    %5101 = vmatprep.subr.mxu0 0.0
    %5102 = vmatpush1.msra.mxu0 0.0
    %5103 = vmatprep.subr.mxu0 0.0
    %5104 = vmatpush1.msra.mxu0 0.0
    %5105 = vmatprep.subr.mxu0 0.0
    %5106 = vmatpush1.msra.mxu0 0.0
    %5107 = vmatprep.subr.mxu0 0.0
    %5108 = vmatpush1.msra.mxu0 0.0
    %5109 = vmatprep.subr.mxu0 0.0
    %5110 = vmatpush1.msra.mxu0 0.0
    %5111 = vmatprep.subr.mxu0 0.0
    %5112 = vmatpush1.msra.mxu0 0.0
    %5113 = vmatprep.subr.mxu0 0.0
    %5114 = vmatpush1.msra.mxu0 0.0
    %5115 = vmatprep.subr.mxu0 0.0
    %5116 = vmatpush1.msra.mxu0 0.0
    %5117 = vmatprep.subr.mxu0 0.0
    %5118 = vmatpush1.msra.mxu0 0.0
    %5119 = vmatprep.subr.mxu0 0.0
    %5120 = vmatpush1.msra.mxu0 0.0
    %5121 = vmatprep.subr.mxu0 0.0
    %5122 = vmatpush1.msra.mxu0 0.0
    %5123 = vmatprep.subr.mxu0 0.0
    %5124 = vmatpush1.msra.mxu0 0.0
    %5125 = vmatprep.subr.mxu0 0.0
    %5126 = vmatpush1.msra.mxu0 0.0
    %5127 = vmatprep.subr.mxu0 0.0
    %5128 = vmatpush1.msra.mxu0 0.0
    %5129 = vmatprep.subr.mxu0 0.0
    %5130 = vmatpush1.msra.mxu0 0.0
    %5131 = vmatprep.subr.mxu0 0.0
    %5132 = vmatpush1.msra.mxu0 0.0
    %5133 = vmatprep.subr.mxu0 0.0
    %5134 = vmatpush1.msra.mxu0 0.0
    %5135 = vmatprep.subr.mxu0 0.0
    %5136 = vmatpush1.msra.mxu0 0.0
    %5137 = vmatprep.mubr.f32.mxu0 0.0
    %5138 = vmatmul.mubr.f32.gmra.mrb[0].mxu0 %v5068
    %v5139 = vpop.f32.mrb[0].mxu0
    %v5140 = vadd.f32 0.0, %v5139
    %v5141 = vpop.f32.mrb[0].mxu0
    %5142 = vmatprep.mubr.f32.mxu0 0.0
    %5143 = vmatmul.mubr.f32.gmra.mrb[0].mxu0 %v5071
    %v5144 = vpop.f32.mrb[0].mxu0
    %v5145 = vadd.f32 0.0, %v5144
    %v5146 = vpop.f32.mrb[0].mxu0
    %5147 = vdwg.mxu0
    %v5148 = vadd.f32 %v5051, %v5140
    %v5149 = vadd.f32 %v5052, %v5145
    %5150 = vrot.lane.b32.xlu0 %v4387, 111
    %v5151 = vpop.permute.xlu0 %5150
    %s5152 = scalar_lea.vmem [#allocation9], 8
    %v5153 = vld [vmem:[%s5152] sm:$0x1]
    %v5155 = vlaneseq
    %v5156 = vshrl.u32 %v5155, 7
    %v5157 = vsub.s32 0, %v5156
    %v5158 = vrot.slane %v5153, %v5157
    %v5160 = vmul.f32 %v5151, %v5158
    %s5161 = scalar_lea.vmem %s7, 128
    %v5162 = vld [vmem:[%s5161] sm:$0xff]
    %v5163 = vld [vmem:[%s5161 + $0x8] sm:$0xff]
    %v5165 = vsel %vm4416, %v5162, 0
    %v5168 = vsel %vm4416, %v5163, 0
    %5170 = vmatprep.subr.mxu0 0.0
    %5171 = vmatpush1.msra.mxu0 %v5160
    %5172 = vmatprep.subr.mxu0 0.0
    %5173 = vmatpush1.msra.mxu0 0.0
    %5174 = vmatprep.subr.mxu0 0.0
    %5175 = vmatpush1.msra.mxu0 0.0
    %5176 = vmatprep.subr.mxu0 0.0
    %5177 = vmatpush1.msra.mxu0 0.0
    %5178 = vmatprep.subr.mxu0 0.0
    %5179 = vmatpush1.msra.mxu0 0.0
    %5180 = vmatprep.subr.mxu0 0.0
    %5181 = vmatpush1.msra.mxu0 0.0
    %5182 = vmatprep.subr.mxu0 0.0
    %5183 = vmatpush1.msra.mxu0 0.0
    %5184 = vmatprep.subr.mxu0 0.0
    %5185 = vmatpush1.msra.mxu0 0.0
    %5186 = vmatprep.subr.mxu0 0.0
    %5187 = vmatpush1.msra.mxu0 0.0
    %5188 = vmatprep.subr.mxu0 0.0
    %5189 = vmatpush1.msra.mxu0 0.0
    %5190 = vmatprep.subr.mxu0 0.0
    %5191 = vmatpush1.msra.mxu0 0.0
    %5192 = vmatprep.subr.mxu0 0.0
    %5193 = vmatpush1.msra.mxu0 0.0
    %5194 = vmatprep.subr.mxu0 0.0
    %5195 = vmatpush1.msra.mxu0 0.0
    %5196 = vmatprep.subr.mxu0 0.0
    %5197 = vmatpush1.msra.mxu0 0.0
    %5198 = vmatprep.subr.mxu0 0.0
    %5199 = vmatpush1.msra.mxu0 0.0
    %5200 = vmatprep.subr.mxu0 0.0
    %5201 = vmatpush1.msra.mxu0 0.0
    %5202 = vmatprep.subr.mxu0 0.0
    %5203 = vmatpush1.msra.mxu0 0.0
    %5204 = vmatprep.subr.mxu0 0.0
    %5205 = vmatpush1.msra.mxu0 0.0
    %5206 = vmatprep.subr.mxu0 0.0
    %5207 = vmatpush1.msra.mxu0 0.0
    %5208 = vmatprep.subr.mxu0 0.0
    %5209 = vmatpush1.msra.mxu0 0.0
    %5210 = vmatprep.subr.mxu0 0.0
    %5211 = vmatpush1.msra.mxu0 0.0
    %5212 = vmatprep.subr.mxu0 0.0
    %5213 = vmatpush1.msra.mxu0 0.0
    %5214 = vmatprep.subr.mxu0 0.0
    %5215 = vmatpush1.msra.mxu0 0.0
    %5216 = vmatprep.subr.mxu0 0.0
    %5217 = vmatpush1.msra.mxu0 0.0
    %5218 = vmatprep.subr.mxu0 0.0
    %5219 = vmatpush1.msra.mxu0 0.0
    %5220 = vmatprep.subr.mxu0 0.0
    %5221 = vmatpush1.msra.mxu0 0.0
    %5222 = vmatprep.subr.mxu0 0.0
    %5223 = vmatpush1.msra.mxu0 0.0
    %5224 = vmatprep.subr.mxu0 0.0
    %5225 = vmatpush1.msra.mxu0 0.0
    %5226 = vmatprep.subr.mxu0 0.0
    %5227 = vmatpush1.msra.mxu0 0.0
    %5228 = vmatprep.subr.mxu0 0.0
    %5229 = vmatpush1.msra.mxu0 0.0
    %5230 = vmatprep.subr.mxu0 0.0
    %5231 = vmatpush1.msra.mxu0 0.0
    %5232 = vmatprep.subr.mxu0 0.0
    %5233 = vmatpush1.msra.mxu0 0.0
    %5234 = vmatprep.mubr.f32.mxu0 0.0
    %5235 = vmatmul.mubr.f32.gmra.mrb[0].mxu0 %v5165
    %v5236 = vpop.f32.mrb[0].mxu0
    %v5237 = vadd.f32 0.0, %v5236
    %v5238 = vpop.f32.mrb[0].mxu0
    %5239 = vmatprep.mubr.f32.mxu0 0.0
    %5240 = vmatmul.mubr.f32.gmra.mrb[0].mxu0 %v5168
    %v5241 = vpop.f32.mrb[0].mxu0
    %v5242 = vadd.f32 0.0, %v5241
    %v5243 = vpop.f32.mrb[0].mxu0
    %5244 = vdwg.mxu0
    %v5245 = vadd.f32 %v5148, %v5237
    %v5246 = vadd.f32 %v5149, %v5242
    %v5247 = vld [vmem:[%s8] sm:$0xff]
    %v5248 = vld [vmem:[%s8 + $0x8] sm:$0xff]
    %5250 = vset.pattern.permute.xlu0 0
    %5251 = vperm.xlu0 %5250, %v5247
    %v5252 = vpop.permute.xlu0 %5251
    %5255 = vset.pattern.permute.xlu0 0
    %5256 = vperm.xlu0 %5255, %v5248
    %v5257 = vpop.permute.xlu0 %5256
    %v5259 = vadd.f32 %v5245, %v5252
    %v5260 = vadd.f32 %v5246, %v5257
    %v5261 = vmax.f32 %v5259, 0.0
    %v5262 = vmax.f32 %v5260, 0.0
    %v5263 = vld [vmem:[#allocation12] sm:$0xff]
    %v5264 = vld [vmem:[#allocation12 + $0x8] sm:$0xff]
    %v5265 = vld [vmem:[#allocation12 + $0x10] sm:$0xff]
    %v5266 = vld [vmem:[#allocation12 + $0x18] sm:$0xff]
    %v5267 = vld [vmem:[#allocation12 + $0x20] sm:$0xff]
    %v5268 = vld [vmem:[#allocation12 + $0x28] sm:$0xff]
    %v5269 = vld [vmem:[#allocation12 + $0x30] sm:$0xff]
    %v5270 = vld [vmem:[#allocation12 + $0x38] sm:$0xff]
    %v5271 = vld [vmem:[#allocation12 + $0x40] sm:$0xff]
    %v5272 = vld [vmem:[#allocation12 + $0x48] sm:$0xff]
    %v5273 = vld [vmem:[#allocation12 + $0x50] sm:$0xff]
    %v5274 = vld [vmem:[#allocation12 + $0x58] sm:$0xff]
    %v5275 = vld [vmem:[#allocation12 + $0x60] sm:$0xff]
    %v5276 = vld [vmem:[#allocation12 + $0x68] sm:$0xff]
    %v5277 = vld [vmem:[#allocation12 + $0x70] sm:$0xff]
    %v5278 = vld [vmem:[#allocation12 + $0x78] sm:$0xff]
    %v5279 = vld [vmem:[#allocation12 + $0x80] sm:$0xff]
    %v5280 = vld [vmem:[#allocation12 + $0x88] sm:$0xff]
    %v5281 = vld [vmem:[#allocation12 + $0x90] sm:$0xff]
    %v5282 = vld [vmem:[#allocation12 + $0x98] sm:$0xff]
    %v5283 = vld [vmem:[#allocation12 + $0xa0] sm:$0xff]
    %v5284 = vld [vmem:[#allocation12 + $0xa8] sm:$0xff]
    %v5285 = vld [vmem:[#allocation12 + $0xb0] sm:$0xff]
    %v5286 = vld [vmem:[#allocation12 + $0xb8] sm:$0xff]
    %v5287 = vld [vmem:[#allocation12 + $0xc0] sm:$0xff]
    %v5288 = vld [vmem:[#allocation12 + $0xc8] sm:$0xff]
    %v5289 = vld [vmem:[#allocation12 + $0xd0] sm:$0xff]
    %v5290 = vld [vmem:[#allocation12 + $0xd8] sm:$0xff]
    %v5291 = vld [vmem:[#allocation12 + $0xe0] sm:$0xff]
    %v5292 = vld [vmem:[#allocation12 + $0xe8] sm:$0xff]
    %v5293 = vld [vmem:[#allocation12 + $0xf0] sm:$0xff]
    %v5294 = vld [vmem:[#allocation12 + $0xf8] sm:$0xff]
    %v5295 = vld [vmem:[#allocation12 + $0x100] sm:$0xff]
    %v5296 = vld [vmem:[#allocation12 + $0x108] sm:$0xff]
    %v5297 = vld [vmem:[#allocation12 + $0x110] sm:$0xff]
    %v5298 = vld [vmem:[#allocation12 + $0x118] sm:$0xff]
    %v5299 = vld [vmem:[#allocation12 + $0x120] sm:$0xff]
    %v5300 = vld [vmem:[#allocation12 + $0x128] sm:$0xff]
    %v5301 = vld [vmem:[#allocation12 + $0x130] sm:$0xff]
    %v5302 = vld [vmem:[#allocation12 + $0x138] sm:$0xff]
    %v5303 = vld [vmem:[#allocation12 + $0x140] sm:$0xff]
    %v5304 = vld [vmem:[#allocation12 + $0x148] sm:$0xff]
    %v5305 = vld [vmem:[#allocation12 + $0x150] sm:$0xff]
    %v5306 = vld [vmem:[#allocation12 + $0x158] sm:$0xff]
    %v5307 = vld [vmem:[#allocation12 + $0x160] sm:$0xff]
    %v5308 = vld [vmem:[#allocation12 + $0x168] sm:$0xff]
    %v5309 = vld [vmem:[#allocation12 + $0x170] sm:$0xff]
    %v5310 = vld [vmem:[#allocation12 + $0x178] sm:$0xff]
    %v5311 = vld [vmem:[#allocation12 + $0x180] sm:$0xff]
    %v5312 = vld [vmem:[#allocation12 + $0x188] sm:$0xff]
    %v5313 = vld [vmem:[#allocation12 + $0x190] sm:$0xff]
    %v5314 = vld [vmem:[#allocation12 + $0x198] sm:$0xff]
    %v5315 = vld [vmem:[#allocation12 + $0x1a0] sm:$0xff]
    %v5316 = vld [vmem:[#allocation12 + $0x1a8] sm:$0xff]
    %v5317 = vld [vmem:[#allocation12 + $0x1b0] sm:$0xff]
    %v5318 = vld [vmem:[#allocation12 + $0x1b8] sm:$0xff]
    %v5319 = vld [vmem:[#allocation12 + $0x1c0] sm:$0xff]
    %v5320 = vld [vmem:[#allocation12 + $0x1c8] sm:$0xff]
    %v5321 = vld [vmem:[#allocation12 + $0x1d0] sm:$0xff]
    %v5322 = vld [vmem:[#allocation12 + $0x1d8] sm:$0xff]
    %v5323 = vld [vmem:[#allocation12 + $0x1e0] sm:$0xff]
    %v5324 = vld [vmem:[#allocation12 + $0x1e8] sm:$0xff]
    %v5325 = vld [vmem:[#allocation12 + $0x1f0] sm:$0xff]
    %v5326 = vld [vmem:[#allocation12 + $0x1f8] sm:$0xff]
    %5327 = vmatprep.subr.mxu0 %v5264
    %5328 = vmatpush1.msra.mxu0 %v5263
    %5329 = vmatprep.subr.mxu0 %v5268
    %5330 = vmatpush1.msra.mxu0 %v5267
    %5331 = vmatprep.subr.mxu0 %v5272
    %5332 = vmatpush1.msra.mxu0 %v5271
    %5333 = vmatprep.subr.mxu0 %v5276
    %5334 = vmatpush1.msra.mxu0 %v5275
    %5335 = vmatprep.subr.mxu0 %v5280
    %5336 = vmatpush1.msra.mxu0 %v5279
    %5337 = vmatprep.subr.mxu0 %v5284
    %5338 = vmatpush1.msra.mxu0 %v5283
    %5339 = vmatprep.subr.mxu0 %v5288
    %5340 = vmatpush1.msra.mxu0 %v5287
    %5341 = vmatprep.subr.mxu0 %v5292
    %5342 = vmatpush1.msra.mxu0 %v5291
    %5343 = vmatprep.subr.mxu0 %v5296
    %5344 = vmatpush1.msra.mxu0 %v5295
    %5345 = vmatprep.subr.mxu0 %v5300
    %5346 = vmatpush1.msra.mxu0 %v5299
    %5347 = vmatprep.subr.mxu0 %v5304
    %5348 = vmatpush1.msra.mxu0 %v5303
    %5349 = vmatprep.subr.mxu0 %v5308
    %5350 = vmatpush1.msra.mxu0 %v5307
    %5351 = vmatprep.subr.mxu0 %v5312
    %5352 = vmatpush1.msra.mxu0 %v5311
    %5353 = vmatprep.subr.mxu0 %v5316
    %5354 = vmatpush1.msra.mxu0 %v5315
    %5355 = vmatprep.subr.mxu0 %v5320
    %5356 = vmatpush1.msra.mxu0 %v5319
    %5357 = vmatprep.subr.mxu0 %v5324
    %5358 = vmatpush1.msra.mxu0 %v5323
    %5359 = vmatprep.subr.mxu0 0.0
    %5360 = vmatpush1.msra.mxu0 0.0
    %5361 = vmatprep.subr.mxu0 0.0
    %5362 = vmatpush1.msra.mxu0 0.0
    %5363 = vmatprep.subr.mxu0 0.0
    %5364 = vmatpush1.msra.mxu0 0.0
    %5365 = vmatprep.subr.mxu0 0.0
    %5366 = vmatpush1.msra.mxu0 0.0
    %5367 = vmatprep.subr.mxu0 0.0
    %5368 = vmatpush1.msra.mxu0 0.0
    %5369 = vmatprep.subr.mxu0 0.0
    %5370 = vmatpush1.msra.mxu0 0.0
    %5371 = vmatprep.subr.mxu0 0.0
    %5372 = vmatpush1.msra.mxu0 0.0
    %5373 = vmatprep.subr.mxu0 0.0
    %5374 = vmatpush1.msra.mxu0 0.0
    %5375 = vmatprep.subr.mxu0 0.0
    %5376 = vmatpush1.msra.mxu0 0.0
    %5377 = vmatprep.subr.mxu0 0.0
    %5378 = vmatpush1.msra.mxu0 0.0
    %5379 = vmatprep.subr.mxu0 0.0
    %5380 = vmatpush1.msra.mxu0 0.0
    %5381 = vmatprep.subr.mxu0 0.0
    %5382 = vmatpush1.msra.mxu0 0.0
    %5383 = vmatprep.subr.mxu0 0.0
    %5384 = vmatpush1.msra.mxu0 0.0
    %5385 = vmatprep.subr.mxu0 0.0
    %5386 = vmatpush1.msra.mxu0 0.0
    %5387 = vmatprep.subr.mxu0 0.0
    %5388 = vmatpush1.msra.mxu0 0.0
    %5389 = vmatprep.subr.mxu0 0.0
    %5390 = vmatpush1.msra.mxu0 0.0
    %5391 = vmatprep.mubr.f32.mxu0 0.0
    %5392 = vmatmul.mubr.f32.gmra.mrb[0].mxu0 %v5261
    %v5393 = vpop.f32.mrb[0].mxu0
    %v5394 = vadd.f32 0.0, %v5393
    %v5395 = vpop.f32.mrb[0].mxu0
    %v5396 = vadd.f32 0.0, %v5395
    %5397 = vmatprep.mubr.f32.mxu0 0.0
    %5398 = vmatmul.mubr.f32.gmra.mrb[0].mxu0 %v5262
    %v5399 = vpop.f32.mrb[0].mxu0
    %v5400 = vadd.f32 0.0, %v5399
    %v5401 = vpop.f32.mrb[0].mxu0
    %v5402 = vadd.f32 0.0, %v5401
    %5403 = vdwg.mxu0
    %5404 = vmatprep.subr.mxu0 %v5266
    %5405 = vmatpush1.msra.mxu0 %v5265
    %5406 = vmatprep.subr.mxu0 %v5270
    %5407 = vmatpush1.msra.mxu0 %v5269
    %5408 = vmatprep.subr.mxu0 %v5274
    %5409 = vmatpush1.msra.mxu0 %v5273
    %5410 = vmatprep.subr.mxu0 %v5278
    %5411 = vmatpush1.msra.mxu0 %v5277
    %5412 = vmatprep.subr.mxu0 %v5282
    %5413 = vmatpush1.msra.mxu0 %v5281
    %5414 = vmatprep.subr.mxu0 %v5286
    %5415 = vmatpush1.msra.mxu0 %v5285
    %5416 = vmatprep.subr.mxu0 %v5290
    %5417 = vmatpush1.msra.mxu0 %v5289
    %5418 = vmatprep.subr.mxu0 %v5294
    %5419 = vmatpush1.msra.mxu0 %v5293
    %5420 = vmatprep.subr.mxu0 %v5298
    %5421 = vmatpush1.msra.mxu0 %v5297
    %5422 = vmatprep.subr.mxu0 %v5302
    %5423 = vmatpush1.msra.mxu0 %v5301
    %5424 = vmatprep.subr.mxu0 %v5306
    %5425 = vmatpush1.msra.mxu0 %v5305
    %5426 = vmatprep.subr.mxu0 %v5310
    %5427 = vmatpush1.msra.mxu0 %v5309
    %5428 = vmatprep.subr.mxu0 %v5314
    %5429 = vmatpush1.msra.mxu0 %v5313
    %5430 = vmatprep.subr.mxu0 %v5318
    %5431 = vmatpush1.msra.mxu0 %v5317
    %5432 = vmatprep.subr.mxu0 %v5322
    %5433 = vmatpush1.msra.mxu0 %v5321
    %5434 = vmatprep.subr.mxu0 %v5326
    %5435 = vmatpush1.msra.mxu0 %v5325
    %5436 = vmatprep.subr.mxu0 0.0
    %5437 = vmatpush1.msra.mxu0 0.0
    %5438 = vmatprep.subr.mxu0 0.0
    %5439 = vmatpush1.msra.mxu0 0.0
    %5440 = vmatprep.subr.mxu0 0.0
    %5441 = vmatpush1.msra.mxu0 0.0
    %5442 = vmatprep.subr.mxu0 0.0
    %5443 = vmatpush1.msra.mxu0 0.0
    %5444 = vmatprep.subr.mxu0 0.0
    %5445 = vmatpush1.msra.mxu0 0.0
    %5446 = vmatprep.subr.mxu0 0.0
    %5447 = vmatpush1.msra.mxu0 0.0
    %5448 = vmatprep.subr.mxu0 0.0
    %5449 = vmatpush1.msra.mxu0 0.0
    %5450 = vmatprep.subr.mxu0 0.0
    %5451 = vmatpush1.msra.mxu0 0.0
    %5452 = vmatprep.subr.mxu0 0.0
    %5453 = vmatpush1.msra.mxu0 0.0
    %5454 = vmatprep.subr.mxu0 0.0
    %5455 = vmatpush1.msra.mxu0 0.0
    %5456 = vmatprep.subr.mxu0 0.0
    %5457 = vmatpush1.msra.mxu0 0.0
    %5458 = vmatprep.subr.mxu0 0.0
    %5459 = vmatpush1.msra.mxu0 0.0
    %5460 = vmatprep.subr.mxu0 0.0
    %5461 = vmatpush1.msra.mxu0 0.0
    %5462 = vmatprep.subr.mxu0 0.0
    %5463 = vmatpush1.msra.mxu0 0.0
    %5464 = vmatprep.subr.mxu0 0.0
    %5465 = vmatpush1.msra.mxu0 0.0
    %5466 = vmatprep.subr.mxu0 0.0
    %5467 = vmatpush1.msra.mxu0 0.0
    %5468 = vmatprep.mubr.f32.mxu0 0.0
    %5469 = vmatmul.mubr.f32.gmra.mrb[0].mxu0 %v5261
    %v5470 = vpop.f32.mrb[0].mxu0
    %v5471 = vadd.f32 0.0, %v5470
    %v5472 = vpop.f32.mrb[0].mxu0
    %v5473 = vadd.f32 0.0, %v5472
    %5474 = vmatprep.mubr.f32.mxu0 0.0
    %5475 = vmatmul.mubr.f32.gmra.mrb[0].mxu0 %v5262
    %v5476 = vpop.f32.mrb[0].mxu0
    %v5477 = vadd.f32 0.0, %v5476
    %v5478 = vpop.f32.mrb[0].mxu0
    %v5479 = vadd.f32 0.0, %v5478
    %5480 = vdwg.mxu0
    %5481 = vrot.lane.b32.xlu0 %v4150, 33
    %v5482 = vpop.permute.xlu0 %5481
    %5483 = vrot.lane.b32.xlu0 %v5394, 33
    %v5484 = vpop.permute.xlu0 %5483
    %5485 = vrot.lane.b32.xlu0 %v5400, 33
    %v5486 = vpop.permute.xlu0 %5485
    %5487 = vrot.lane.b32.xlu0 %v4151, 33
    %v5488 = vpop.permute.xlu0 %5487
    %5489 = vrot.lane.b32.xlu0 %v5396, 33
    %v5490 = vpop.permute.xlu0 %5489
    %5491 = vrot.lane.b32.xlu0 %v5402, 33
    %v5492 = vpop.permute.xlu0 %5491
    %5493 = vrot.lane.b32.xlu0 %v4152, 33
    %v5494 = vpop.permute.xlu0 %5493
    %5495 = vrot.lane.b32.xlu0 %v5471, 33
    %v5496 = vpop.permute.xlu0 %5495
    %5497 = vrot.lane.b32.xlu0 %v5477, 33
    %v5498 = vpop.permute.xlu0 %5497
    %5499 = vrot.lane.b32.xlu0 %v4153, 33
    %v5500 = vpop.permute.xlu0 %5499
    %5501 = vrot.lane.b32.xlu0 %v5473, 33
    %v5502 = vpop.permute.xlu0 %5501
    %5503 = vrot.lane.b32.xlu0 %v5479, 33
    %v5504 = vpop.permute.xlu0 %5503
    %v5505 = vsel %vm2369, %v5494, %v5500
    %v5506 = vsel %vm2369, %v5496, %v5502
    %v5507 = vsel %vm2369, %v5498, %v5504
    %v5508 = vsel %vm2369, %v5488, %v5494
    %v5509 = vsel %vm2369, %v5490, %v5496
    %v5510 = vsel %vm2369, %v5492, %v5498
    %v5511 = vsel %vm2369, %v5482, %v5488
    %v5512 = vsel %vm2369, %v5484, %v5490
    %v5513 = vsel %vm2369, %v5486, %v5492
    %v5514 = vsel %vm2369, %v5500, %v5482
    %v5515 = vsel %vm2369, %v5502, %v5484
    %v5516 = vsel %vm2369, %v5504, %v5486
    %v5517 = vmul.f32 %v5514, %v2379
    %v5518 = vmul.f32 %v5511, %v2383
    %v5519 = vmul.f32 %v5508, %v2387
    %v5520 = vmul.f32 %v5505, %v2391
    %v5521 = vmul.f32 %v5515, %v2379
    %v5522 = vmul.f32 %v5512, %v2383
    %v5523 = vmul.f32 %v5509, %v2387
    %v5524 = vmul.f32 %v5506, %v2391
    %v5525 = vmul.f32 %v5516, %v2379
    %v5526 = vmul.f32 %v5513, %v2383
    %v5527 = vmul.f32 %v5510, %v2387
    %v5528 = vmul.f32 %v5507, %v2391
    %v5529 = vld [vmem:[#allocation6] sm:$0xff]
    %5530 = vrot.lane.b32.xlu0 %v4150, 32
    %v5531 = vpop.permute.xlu0 %5530
    %5532 = vrot.lane.b32.xlu0 %v5394, 32
    %v5533 = vpop.permute.xlu0 %5532
    %5534 = vrot.lane.b32.xlu0 %v5400, 32
    %v5535 = vpop.permute.xlu0 %5534
    %5536 = vrot.lane.b32.xlu0 %v4151, 32
    %v5537 = vpop.permute.xlu0 %5536
    %5538 = vrot.lane.b32.xlu0 %v5396, 32
    %v5539 = vpop.permute.xlu0 %5538
    %5540 = vrot.lane.b32.xlu0 %v5402, 32
    %v5541 = vpop.permute.xlu0 %5540
    %5542 = vrot.lane.b32.xlu0 %v4152, 32
    %v5543 = vpop.permute.xlu0 %5542
    %5544 = vrot.lane.b32.xlu0 %v5471, 32
    %v5545 = vpop.permute.xlu0 %5544
    %5546 = vrot.lane.b32.xlu0 %v5477, 32
    %v5547 = vpop.permute.xlu0 %5546
    %5548 = vrot.lane.b32.xlu0 %v4153, 32
    %v5549 = vpop.permute.xlu0 %5548
    %5550 = vrot.lane.b32.xlu0 %v5473, 32
    %v5551 = vpop.permute.xlu0 %5550
    %5552 = vrot.lane.b32.xlu0 %v5479, 32
    %v5553 = vpop.permute.xlu0 %5552
    %v5554 = vsel %vm2409, %v5543, %v5549
    %v5555 = vsel %vm2409, %v5545, %v5551
    %v5556 = vsel %vm2409, %v5547, %v5553
    %v5557 = vsel %vm2409, %v5537, %v5543
    %v5558 = vsel %vm2409, %v5539, %v5545
    %v5559 = vsel %vm2409, %v5541, %v5547
    %v5560 = vsel %vm2409, %v5531, %v5537
    %v5561 = vsel %vm2409, %v5533, %v5539
    %v5562 = vsel %vm2409, %v5535, %v5541
    %v5563 = vsel %vm2409, %v5549, %v5531
    %v5564 = vsel %vm2409, %v5551, %v5533
    %v5565 = vsel %vm2409, %v5553, %v5535
    %v5566 = vmul.f32 %v5563, %v2420
    %v5567 = vmul.f32 %v5560, %v2424
    %v5568 = vmul.f32 %v5557, %v2428
    %v5569 = vmul.f32 %v5554, %v2432
    %v5570 = vmul.f32 %v5564, %v2420
    %v5571 = vmul.f32 %v5561, %v2424
    %v5572 = vmul.f32 %v5558, %v2428
    %v5573 = vmul.f32 %v5555, %v2432
    %v5574 = vmul.f32 %v5565, %v2420
    %v5575 = vmul.f32 %v5562, %v2424
    %v5576 = vmul.f32 %v5559, %v2428
    %v5577 = vmul.f32 %v5556, %v2432
    %s5578 = scalar_lea.vmem [#allocation6], 8
    %v5579 = vld [vmem:[%s5578] sm:$0xff]
    %vm5580 = vcmask 195584
    %v5582 = vsel %vm5580, %v5579, 0
    %5584 = vmatprep.subr.mxu0 %v5567
    %5585 = vmatpush1.msra.mxu0 %v5566
    %5586 = vmatprep.subr.mxu0 %v5571
    %5587 = vmatpush1.msra.mxu0 %v5570
    %5588 = vmatprep.subr.mxu0 %v5575
    %5589 = vmatpush1.msra.mxu0 %v5574
    %5590 = vmatprep.subr.mxu0 0.0
    %5591 = vmatpush1.msra.mxu0 0.0
    %5592 = vmatprep.subr.mxu0 0.0
    %5593 = vmatpush1.msra.mxu0 0.0
    %5594 = vmatprep.subr.mxu0 0.0
    %5595 = vmatpush1.msra.mxu0 0.0
    %5596 = vmatprep.subr.mxu0 0.0
    %5597 = vmatpush1.msra.mxu0 0.0
    %5598 = vmatprep.subr.mxu0 0.0
    %5599 = vmatpush1.msra.mxu0 0.0
    %5600 = vmatprep.subr.mxu0 0.0
    %5601 = vmatpush1.msra.mxu0 0.0
    %5602 = vmatprep.subr.mxu0 0.0
    %5603 = vmatpush1.msra.mxu0 0.0
    %5604 = vmatprep.subr.mxu0 0.0
    %5605 = vmatpush1.msra.mxu0 0.0
    %5606 = vmatprep.subr.mxu0 0.0
    %5607 = vmatpush1.msra.mxu0 0.0
    %5608 = vmatprep.subr.mxu0 0.0
    %5609 = vmatpush1.msra.mxu0 0.0
    %5610 = vmatprep.subr.mxu0 0.0
    %5611 = vmatpush1.msra.mxu0 0.0
    %5612 = vmatprep.subr.mxu0 0.0
    %5613 = vmatpush1.msra.mxu0 0.0
    %5614 = vmatprep.subr.mxu0 0.0
    %5615 = vmatpush1.msra.mxu0 0.0
    %5616 = vmatprep.subr.mxu0 0.0
    %5617 = vmatpush1.msra.mxu0 0.0
    %5618 = vmatprep.subr.mxu0 0.0
    %5619 = vmatpush1.msra.mxu0 0.0
    %5620 = vmatprep.subr.mxu0 0.0
    %5621 = vmatpush1.msra.mxu0 0.0
    %5622 = vmatprep.subr.mxu0 0.0
    %5623 = vmatpush1.msra.mxu0 0.0
    %5624 = vmatprep.subr.mxu0 0.0
    %5625 = vmatpush1.msra.mxu0 0.0
    %5626 = vmatprep.subr.mxu0 0.0
    %5627 = vmatpush1.msra.mxu0 0.0
    %5628 = vmatprep.subr.mxu0 0.0
    %5629 = vmatpush1.msra.mxu0 0.0
    %5630 = vmatprep.subr.mxu0 0.0
    %5631 = vmatpush1.msra.mxu0 0.0
    %5632 = vmatprep.subr.mxu0 0.0
    %5633 = vmatpush1.msra.mxu0 0.0
    %5634 = vmatprep.subr.mxu0 0.0
    %5635 = vmatpush1.msra.mxu0 0.0
    %5636 = vmatprep.subr.mxu0 0.0
    %5637 = vmatpush1.msra.mxu0 0.0
    %5638 = vmatprep.subr.mxu0 0.0
    %5639 = vmatpush1.msra.mxu0 0.0
    %5640 = vmatprep.subr.mxu0 0.0
    %5641 = vmatpush1.msra.mxu0 0.0
    %5642 = vmatprep.subr.mxu0 0.0
    %5643 = vmatpush1.msra.mxu0 0.0
    %5644 = vmatprep.subr.mxu0 0.0
    %5645 = vmatpush1.msra.mxu0 0.0
    %5646 = vmatprep.subr.mxu0 0.0
    %5647 = vmatpush1.msra.mxu0 0.0
    %5648 = vmatprep.mubr.f32.mxu0 0.0
    %5649 = vmatmul.mubr.f32.gmra.mrb[0].mxu0 %v5582
    %v5650 = vpop.f32.mrb[0].mxu0
    %v5651 = vadd.f32 0.0, %v5650
    %v5652 = vpop.f32.mrb[0].mxu0
    %v5653 = vadd.f32 0.0, %v5652
    %5654 = vdwg.mxu0
    %5655 = vmatprep.subr.mxu0 %v5569
    %5656 = vmatpush1.msra.mxu0 %v5568
    %5657 = vmatprep.subr.mxu0 %v5573
    %5658 = vmatpush1.msra.mxu0 %v5572
    %5659 = vmatprep.subr.mxu0 %v5577
    %5660 = vmatpush1.msra.mxu0 %v5576
    %5661 = vmatprep.subr.mxu0 0.0
    %5662 = vmatpush1.msra.mxu0 0.0
    %5663 = vmatprep.subr.mxu0 0.0
    %5664 = vmatpush1.msra.mxu0 0.0
    %5665 = vmatprep.subr.mxu0 0.0
    %5666 = vmatpush1.msra.mxu0 0.0
    %5667 = vmatprep.subr.mxu0 0.0
    %5668 = vmatpush1.msra.mxu0 0.0
    %5669 = vmatprep.subr.mxu0 0.0
    %5670 = vmatpush1.msra.mxu0 0.0
    %5671 = vmatprep.subr.mxu0 0.0
    %5672 = vmatpush1.msra.mxu0 0.0
    %5673 = vmatprep.subr.mxu0 0.0
    %5674 = vmatpush1.msra.mxu0 0.0
    %5675 = vmatprep.subr.mxu0 0.0
    %5676 = vmatpush1.msra.mxu0 0.0
    %5677 = vmatprep.subr.mxu0 0.0
    %5678 = vmatpush1.msra.mxu0 0.0
    %5679 = vmatprep.subr.mxu0 0.0
    %5680 = vmatpush1.msra.mxu0 0.0
    %5681 = vmatprep.subr.mxu0 0.0
    %5682 = vmatpush1.msra.mxu0 0.0
    %5683 = vmatprep.subr.mxu0 0.0
    %5684 = vmatpush1.msra.mxu0 0.0
    %5685 = vmatprep.subr.mxu0 0.0
    %5686 = vmatpush1.msra.mxu0 0.0
    %5687 = vmatprep.subr.mxu0 0.0
    %5688 = vmatpush1.msra.mxu0 0.0
    %5689 = vmatprep.subr.mxu0 0.0
    %5690 = vmatpush1.msra.mxu0 0.0
    %5691 = vmatprep.subr.mxu0 0.0
    %5692 = vmatpush1.msra.mxu0 0.0
    %5693 = vmatprep.subr.mxu0 0.0
    %5694 = vmatpush1.msra.mxu0 0.0
    %5695 = vmatprep.subr.mxu0 0.0
    %5696 = vmatpush1.msra.mxu0 0.0
    %5697 = vmatprep.subr.mxu0 0.0
    %5698 = vmatpush1.msra.mxu0 0.0
    %5699 = vmatprep.subr.mxu0 0.0
    %5700 = vmatpush1.msra.mxu0 0.0
    %5701 = vmatprep.subr.mxu0 0.0
    %5702 = vmatpush1.msra.mxu0 0.0
    %5703 = vmatprep.subr.mxu0 0.0
    %5704 = vmatpush1.msra.mxu0 0.0
    %5705 = vmatprep.subr.mxu0 0.0
    %5706 = vmatpush1.msra.mxu0 0.0
    %5707 = vmatprep.subr.mxu0 0.0
    %5708 = vmatpush1.msra.mxu0 0.0
    %5709 = vmatprep.subr.mxu0 0.0
    %5710 = vmatpush1.msra.mxu0 0.0
    %5711 = vmatprep.subr.mxu0 0.0
    %5712 = vmatpush1.msra.mxu0 0.0
    %5713 = vmatprep.subr.mxu0 0.0
    %5714 = vmatpush1.msra.mxu0 0.0
    %5715 = vmatprep.subr.mxu0 0.0
    %5716 = vmatpush1.msra.mxu0 0.0
    %5717 = vmatprep.subr.mxu0 0.0
    %5718 = vmatpush1.msra.mxu0 0.0
    %5719 = vmatprep.mubr.f32.mxu0 0.0
    %5720 = vmatmul.mubr.f32.gmra.mrb[0].mxu0 %v5582
    %v5721 = vpop.f32.mrb[0].mxu0
    %v5722 = vadd.f32 0.0, %v5721
    %v5723 = vpop.f32.mrb[0].mxu0
    %v5724 = vadd.f32 0.0, %v5723
    %5725 = vdwg.mxu0
    %v5727 = vsel %vm5580, %v5529, 0
    %5729 = vmatprep.subr.mxu0 %v5518
    %5730 = vmatpush1.msra.mxu0 %v5517
    %5731 = vmatprep.subr.mxu0 %v5522
    %5732 = vmatpush1.msra.mxu0 %v5521
    %5733 = vmatprep.subr.mxu0 %v5526
    %5734 = vmatpush1.msra.mxu0 %v5525
    %5735 = vmatprep.subr.mxu0 0.0
    %5736 = vmatpush1.msra.mxu0 0.0
    %5737 = vmatprep.subr.mxu0 0.0
    %5738 = vmatpush1.msra.mxu0 0.0
    %5739 = vmatprep.subr.mxu0 0.0
    %5740 = vmatpush1.msra.mxu0 0.0
    %5741 = vmatprep.subr.mxu0 0.0
    %5742 = vmatpush1.msra.mxu0 0.0
    %5743 = vmatprep.subr.mxu0 0.0
    %5744 = vmatpush1.msra.mxu0 0.0
    %5745 = vmatprep.subr.mxu0 0.0
    %5746 = vmatpush1.msra.mxu0 0.0
    %5747 = vmatprep.subr.mxu0 0.0
    %5748 = vmatpush1.msra.mxu0 0.0
    %5749 = vmatprep.subr.mxu0 0.0
    %5750 = vmatpush1.msra.mxu0 0.0
    %5751 = vmatprep.subr.mxu0 0.0
    %5752 = vmatpush1.msra.mxu0 0.0
    %5753 = vmatprep.subr.mxu0 0.0
    %5754 = vmatpush1.msra.mxu0 0.0
    %5755 = vmatprep.subr.mxu0 0.0
    %5756 = vmatpush1.msra.mxu0 0.0
    %5757 = vmatprep.subr.mxu0 0.0
    %5758 = vmatpush1.msra.mxu0 0.0
    %5759 = vmatprep.subr.mxu0 0.0
    %5760 = vmatpush1.msra.mxu0 0.0
    %5761 = vmatprep.subr.mxu0 0.0
    %5762 = vmatpush1.msra.mxu0 0.0
    %5763 = vmatprep.subr.mxu0 0.0
    %5764 = vmatpush1.msra.mxu0 0.0
    %5765 = vmatprep.subr.mxu0 0.0
    %5766 = vmatpush1.msra.mxu0 0.0
    %5767 = vmatprep.subr.mxu0 0.0
    %5768 = vmatpush1.msra.mxu0 0.0
    %5769 = vmatprep.subr.mxu0 0.0
    %5770 = vmatpush1.msra.mxu0 0.0
    %5771 = vmatprep.subr.mxu0 0.0
    %5772 = vmatpush1.msra.mxu0 0.0
    %5773 = vmatprep.subr.mxu0 0.0
    %5774 = vmatpush1.msra.mxu0 0.0
    %5775 = vmatprep.subr.mxu0 0.0
    %5776 = vmatpush1.msra.mxu0 0.0
    %5777 = vmatprep.subr.mxu0 0.0
    %5778 = vmatpush1.msra.mxu0 0.0
    %5779 = vmatprep.subr.mxu0 0.0
    %5780 = vmatpush1.msra.mxu0 0.0
    %5781 = vmatprep.subr.mxu0 0.0
    %5782 = vmatpush1.msra.mxu0 0.0
    %5783 = vmatprep.subr.mxu0 0.0
    %5784 = vmatpush1.msra.mxu0 0.0
    %5785 = vmatprep.subr.mxu0 0.0
    %5786 = vmatpush1.msra.mxu0 0.0
    %5787 = vmatprep.subr.mxu0 0.0
    %5788 = vmatpush1.msra.mxu0 0.0
    %5789 = vmatprep.subr.mxu0 0.0
    %5790 = vmatpush1.msra.mxu0 0.0
    %5791 = vmatprep.subr.mxu0 0.0
    %5792 = vmatpush1.msra.mxu0 0.0
    %5793 = vmatprep.mubr.f32.mxu0 0.0
    %5794 = vmatmul.mubr.f32.gmra.mrb[0].mxu0 %v5727
    %v5795 = vpop.f32.mrb[0].mxu0
    %v5796 = vadd.f32 %v5651, %v5795
    %v5797 = vpop.f32.mrb[0].mxu0
    %v5798 = vadd.f32 %v5653, %v5797
    %5799 = vdwg.mxu0
    %5800 = vmatprep.subr.mxu0 %v5520
    %5801 = vmatpush1.msra.mxu0 %v5519
    %5802 = vmatprep.subr.mxu0 %v5524
    %5803 = vmatpush1.msra.mxu0 %v5523
    %5804 = vmatprep.subr.mxu0 %v5528
    %5805 = vmatpush1.msra.mxu0 %v5527
    %5806 = vmatprep.subr.mxu0 0.0
    %5807 = vmatpush1.msra.mxu0 0.0
    %5808 = vmatprep.subr.mxu0 0.0
    %5809 = vmatpush1.msra.mxu0 0.0
    %5810 = vmatprep.subr.mxu0 0.0
    %5811 = vmatpush1.msra.mxu0 0.0
    %5812 = vmatprep.subr.mxu0 0.0
    %5813 = vmatpush1.msra.mxu0 0.0
    %5814 = vmatprep.subr.mxu0 0.0
    %5815 = vmatpush1.msra.mxu0 0.0
    %5816 = vmatprep.subr.mxu0 0.0
    %5817 = vmatpush1.msra.mxu0 0.0
    %5818 = vmatprep.subr.mxu0 0.0
    %5819 = vmatpush1.msra.mxu0 0.0
    %5820 = vmatprep.subr.mxu0 0.0
    %5821 = vmatpush1.msra.mxu0 0.0
    %5822 = vmatprep.subr.mxu0 0.0
    %5823 = vmatpush1.msra.mxu0 0.0
    %5824 = vmatprep.subr.mxu0 0.0
    %5825 = vmatpush1.msra.mxu0 0.0
    %5826 = vmatprep.subr.mxu0 0.0
    %5827 = vmatpush1.msra.mxu0 0.0
    %5828 = vmatprep.subr.mxu0 0.0
    %5829 = vmatpush1.msra.mxu0 0.0
    %5830 = vmatprep.subr.mxu0 0.0
    %5831 = vmatpush1.msra.mxu0 0.0
    %5832 = vmatprep.subr.mxu0 0.0
    %5833 = vmatpush1.msra.mxu0 0.0
    %5834 = vmatprep.subr.mxu0 0.0
    %5835 = vmatpush1.msra.mxu0 0.0
    %5836 = vmatprep.subr.mxu0 0.0
    %5837 = vmatpush1.msra.mxu0 0.0
    %5838 = vmatprep.subr.mxu0 0.0
    %5839 = vmatpush1.msra.mxu0 0.0
    %5840 = vmatprep.subr.mxu0 0.0
    %5841 = vmatpush1.msra.mxu0 0.0
    %5842 = vmatprep.subr.mxu0 0.0
    %5843 = vmatpush1.msra.mxu0 0.0
    %5844 = vmatprep.subr.mxu0 0.0
    %5845 = vmatpush1.msra.mxu0 0.0
    %5846 = vmatprep.subr.mxu0 0.0
    %5847 = vmatpush1.msra.mxu0 0.0
    %5848 = vmatprep.subr.mxu0 0.0
    %5849 = vmatpush1.msra.mxu0 0.0
    %5850 = vmatprep.subr.mxu0 0.0
    %5851 = vmatpush1.msra.mxu0 0.0
    %5852 = vmatprep.subr.mxu0 0.0
    %5853 = vmatpush1.msra.mxu0 0.0
    %5854 = vmatprep.subr.mxu0 0.0
    %5855 = vmatpush1.msra.mxu0 0.0
    %5856 = vmatprep.subr.mxu0 0.0
    %5857 = vmatpush1.msra.mxu0 0.0
    %5858 = vmatprep.subr.mxu0 0.0
    %5859 = vmatpush1.msra.mxu0 0.0
    %5860 = vmatprep.subr.mxu0 0.0
    %5861 = vmatpush1.msra.mxu0 0.0
    %5862 = vmatprep.subr.mxu0 0.0
    %5863 = vmatpush1.msra.mxu0 0.0
    %5864 = vmatprep.mubr.f32.mxu0 0.0
    %5865 = vmatmul.mubr.f32.gmra.mrb[0].mxu0 %v5727
    %v5866 = vpop.f32.mrb[0].mxu0
    %v5867 = vadd.f32 %v5722, %v5866
    %v5868 = vpop.f32.mrb[0].mxu0
    %v5869 = vadd.f32 %v5724, %v5868
    %5870 = vdwg.mxu0
    %5871 = vrot.lane.b32.xlu0 %v4150, 31
    %v5872 = vpop.permute.xlu0 %5871
    %5873 = vrot.lane.b32.xlu0 %v5394, 31
    %v5874 = vpop.permute.xlu0 %5873
    %5875 = vrot.lane.b32.xlu0 %v5400, 31
    %v5876 = vpop.permute.xlu0 %5875
    %5877 = vrot.lane.b32.xlu0 %v4151, 31
    %v5878 = vpop.permute.xlu0 %5877
    %5879 = vrot.lane.b32.xlu0 %v5396, 31
    %v5880 = vpop.permute.xlu0 %5879
    %5881 = vrot.lane.b32.xlu0 %v5402, 31
    %v5882 = vpop.permute.xlu0 %5881
    %5883 = vrot.lane.b32.xlu0 %v4152, 31
    %v5884 = vpop.permute.xlu0 %5883
    %5885 = vrot.lane.b32.xlu0 %v5471, 31
    %v5886 = vpop.permute.xlu0 %5885
    %5887 = vrot.lane.b32.xlu0 %v5477, 31
    %v5888 = vpop.permute.xlu0 %5887
    %5889 = vrot.lane.b32.xlu0 %v4153, 31
    %v5890 = vpop.permute.xlu0 %5889
    %5891 = vrot.lane.b32.xlu0 %v5473, 31
    %v5892 = vpop.permute.xlu0 %5891
    %5893 = vrot.lane.b32.xlu0 %v5479, 31
    %v5894 = vpop.permute.xlu0 %5893
    %v5895 = vsel %vm2767, %v5884, %v5890
    %v5896 = vsel %vm2767, %v5886, %v5892
    %v5897 = vsel %vm2767, %v5888, %v5894
    %v5898 = vsel %vm2767, %v5878, %v5884
    %v5899 = vsel %vm2767, %v5880, %v5886
    %v5900 = vsel %vm2767, %v5882, %v5888
    %v5901 = vsel %vm2767, %v5872, %v5878
    %v5902 = vsel %vm2767, %v5874, %v5880
    %v5903 = vsel %vm2767, %v5876, %v5882
    %v5904 = vsel %vm2767, %v5890, %v5872
    %v5905 = vsel %vm2767, %v5892, %v5874
    %v5906 = vsel %vm2767, %v5894, %v5876
    %v5907 = vmul.f32 %v5904, %v2778
    %v5908 = vmul.f32 %v5901, %v2782
    %v5909 = vmul.f32 %v5898, %v2786
    %v5910 = vmul.f32 %v5895, %v2790
    %v5911 = vmul.f32 %v5905, %v2778
    %v5912 = vmul.f32 %v5902, %v2782
    %v5913 = vmul.f32 %v5899, %v2786
    %v5914 = vmul.f32 %v5896, %v2790
    %v5915 = vmul.f32 %v5906, %v2778
    %v5916 = vmul.f32 %v5903, %v2782
    %v5917 = vmul.f32 %v5900, %v2786
    %v5918 = vmul.f32 %v5897, %v2790
    %s5919 = scalar_lea.vmem [#allocation6], 16
    %v5920 = vld [vmem:[%s5919] sm:$0xff]
    %v5922 = vsel %vm5580, %v5920, 0
    %5924 = vmatprep.subr.mxu0 %v5908
    %5925 = vmatpush1.msra.mxu0 %v5907
    %5926 = vmatprep.subr.mxu0 %v5912
    %5927 = vmatpush1.msra.mxu0 %v5911
    %5928 = vmatprep.subr.mxu0 %v5916
    %5929 = vmatpush1.msra.mxu0 %v5915
    %5930 = vmatprep.subr.mxu0 0.0
    %5931 = vmatpush1.msra.mxu0 0.0
    %5932 = vmatprep.subr.mxu0 0.0
    %5933 = vmatpush1.msra.mxu0 0.0
    %5934 = vmatprep.subr.mxu0 0.0
    %5935 = vmatpush1.msra.mxu0 0.0
    %5936 = vmatprep.subr.mxu0 0.0
    %5937 = vmatpush1.msra.mxu0 0.0
    %5938 = vmatprep.subr.mxu0 0.0
    %5939 = vmatpush1.msra.mxu0 0.0
    %5940 = vmatprep.subr.mxu0 0.0
    %5941 = vmatpush1.msra.mxu0 0.0
    %5942 = vmatprep.subr.mxu0 0.0
    %5943 = vmatpush1.msra.mxu0 0.0
    %5944 = vmatprep.subr.mxu0 0.0
    %5945 = vmatpush1.msra.mxu0 0.0
    %5946 = vmatprep.subr.mxu0 0.0
    %5947 = vmatpush1.msra.mxu0 0.0
    %5948 = vmatprep.subr.mxu0 0.0
    %5949 = vmatpush1.msra.mxu0 0.0
    %5950 = vmatprep.subr.mxu0 0.0
    %5951 = vmatpush1.msra.mxu0 0.0
    %5952 = vmatprep.subr.mxu0 0.0
    %5953 = vmatpush1.msra.mxu0 0.0
    %5954 = vmatprep.subr.mxu0 0.0
    %5955 = vmatpush1.msra.mxu0 0.0
    %5956 = vmatprep.subr.mxu0 0.0
    %5957 = vmatpush1.msra.mxu0 0.0
    %5958 = vmatprep.subr.mxu0 0.0
    %5959 = vmatpush1.msra.mxu0 0.0
    %5960 = vmatprep.subr.mxu0 0.0
    %5961 = vmatpush1.msra.mxu0 0.0
    %5962 = vmatprep.subr.mxu0 0.0
    %5963 = vmatpush1.msra.mxu0 0.0
    %5964 = vmatprep.subr.mxu0 0.0
    %5965 = vmatpush1.msra.mxu0 0.0
    %5966 = vmatprep.subr.mxu0 0.0
    %5967 = vmatpush1.msra.mxu0 0.0
    %5968 = vmatprep.subr.mxu0 0.0
    %5969 = vmatpush1.msra.mxu0 0.0
    %5970 = vmatprep.subr.mxu0 0.0
    %5971 = vmatpush1.msra.mxu0 0.0
    %5972 = vmatprep.subr.mxu0 0.0
    %5973 = vmatpush1.msra.mxu0 0.0
    %5974 = vmatprep.subr.mxu0 0.0
    %5975 = vmatpush1.msra.mxu0 0.0
    %5976 = vmatprep.subr.mxu0 0.0
    %5977 = vmatpush1.msra.mxu0 0.0
    %5978 = vmatprep.subr.mxu0 0.0
    %5979 = vmatpush1.msra.mxu0 0.0
    %5980 = vmatprep.subr.mxu0 0.0
    %5981 = vmatpush1.msra.mxu0 0.0
    %5982 = vmatprep.subr.mxu0 0.0
    %5983 = vmatpush1.msra.mxu0 0.0
    %5984 = vmatprep.subr.mxu0 0.0
    %5985 = vmatpush1.msra.mxu0 0.0
    %5986 = vmatprep.subr.mxu0 0.0
    %5987 = vmatpush1.msra.mxu0 0.0
    %5988 = vmatprep.mubr.f32.mxu0 0.0
    %5989 = vmatmul.mubr.f32.gmra.mrb[0].mxu0 %v5922
    %v5990 = vpop.f32.mrb[0].mxu0
    %v5991 = vadd.f32 0.0, %v5990
    %v5992 = vpop.f32.mrb[0].mxu0
    %v5993 = vadd.f32 0.0, %v5992
    %5994 = vdwg.mxu0
    %5995 = vmatprep.subr.mxu0 %v5910
    %5996 = vmatpush1.msra.mxu0 %v5909
    %5997 = vmatprep.subr.mxu0 %v5914
    %5998 = vmatpush1.msra.mxu0 %v5913
    %5999 = vmatprep.subr.mxu0 %v5918
    %6000 = vmatpush1.msra.mxu0 %v5917
    %6001 = vmatprep.subr.mxu0 0.0
    %6002 = vmatpush1.msra.mxu0 0.0
    %6003 = vmatprep.subr.mxu0 0.0
    %6004 = vmatpush1.msra.mxu0 0.0
    %6005 = vmatprep.subr.mxu0 0.0
    %6006 = vmatpush1.msra.mxu0 0.0
    %6007 = vmatprep.subr.mxu0 0.0
    %6008 = vmatpush1.msra.mxu0 0.0
    %6009 = vmatprep.subr.mxu0 0.0
    %6010 = vmatpush1.msra.mxu0 0.0
    %6011 = vmatprep.subr.mxu0 0.0
    %6012 = vmatpush1.msra.mxu0 0.0
    %6013 = vmatprep.subr.mxu0 0.0
    %6014 = vmatpush1.msra.mxu0 0.0
    %6015 = vmatprep.subr.mxu0 0.0
    %6016 = vmatpush1.msra.mxu0 0.0
    %6017 = vmatprep.subr.mxu0 0.0
    %6018 = vmatpush1.msra.mxu0 0.0
    %6019 = vmatprep.subr.mxu0 0.0
    %6020 = vmatpush1.msra.mxu0 0.0
    %6021 = vmatprep.subr.mxu0 0.0
    %6022 = vmatpush1.msra.mxu0 0.0
    %6023 = vmatprep.subr.mxu0 0.0
    %6024 = vmatpush1.msra.mxu0 0.0
    %6025 = vmatprep.subr.mxu0 0.0
    %6026 = vmatpush1.msra.mxu0 0.0
    %6027 = vmatprep.subr.mxu0 0.0
    %6028 = vmatpush1.msra.mxu0 0.0
    %6029 = vmatprep.subr.mxu0 0.0
    %6030 = vmatpush1.msra.mxu0 0.0
    %6031 = vmatprep.subr.mxu0 0.0
    %6032 = vmatpush1.msra.mxu0 0.0
    %6033 = vmatprep.subr.mxu0 0.0
    %6034 = vmatpush1.msra.mxu0 0.0
    %6035 = vmatprep.subr.mxu0 0.0
    %6036 = vmatpush1.msra.mxu0 0.0
    %6037 = vmatprep.subr.mxu0 0.0
    %6038 = vmatpush1.msra.mxu0 0.0
    %6039 = vmatprep.subr.mxu0 0.0
    %6040 = vmatpush1.msra.mxu0 0.0
    %6041 = vmatprep.subr.mxu0 0.0
    %6042 = vmatpush1.msra.mxu0 0.0
    %6043 = vmatprep.subr.mxu0 0.0
    %6044 = vmatpush1.msra.mxu0 0.0
    %6045 = vmatprep.subr.mxu0 0.0
    %6046 = vmatpush1.msra.mxu0 0.0
    %6047 = vmatprep.subr.mxu0 0.0
    %6048 = vmatpush1.msra.mxu0 0.0
    %6049 = vmatprep.subr.mxu0 0.0
    %6050 = vmatpush1.msra.mxu0 0.0
    %6051 = vmatprep.subr.mxu0 0.0
    %6052 = vmatpush1.msra.mxu0 0.0
    %6053 = vmatprep.subr.mxu0 0.0
    %6054 = vmatpush1.msra.mxu0 0.0
    %6055 = vmatprep.subr.mxu0 0.0
    %6056 = vmatpush1.msra.mxu0 0.0
    %6057 = vmatprep.subr.mxu0 0.0
    %6058 = vmatpush1.msra.mxu0 0.0
    %6059 = vmatprep.mubr.f32.mxu0 0.0
    %6060 = vmatmul.mubr.f32.gmra.mrb[0].mxu0 %v5922
    %v6061 = vpop.f32.mrb[0].mxu0
    %v6062 = vadd.f32 0.0, %v6061
    %v6063 = vpop.f32.mrb[0].mxu0
    %v6064 = vadd.f32 0.0, %v6063
    %6065 = vdwg.mxu0
    %v6066 = vadd.f32 %v5796, %v5991
    %v6067 = vadd.f32 %v5798, %v5993
    %v6068 = vadd.f32 %v5867, %v6062
    %v6069 = vadd.f32 %v5869, %v6064
    %6070 = vrot.lane.b32.xlu0 %v4150, 1
    %v6071 = vpop.permute.xlu0 %6070
    %6072 = vrot.lane.b32.xlu0 %v5394, 1
    %v6073 = vpop.permute.xlu0 %6072
    %6074 = vrot.lane.b32.xlu0 %v5400, 1
    %v6075 = vpop.permute.xlu0 %6074
    %6076 = vrot.lane.b32.xlu0 %v4151, 1
    %v6077 = vpop.permute.xlu0 %6076
    %6078 = vrot.lane.b32.xlu0 %v5396, 1
    %v6079 = vpop.permute.xlu0 %6078
    %6080 = vrot.lane.b32.xlu0 %v5402, 1
    %v6081 = vpop.permute.xlu0 %6080
    %6082 = vrot.lane.b32.xlu0 %v4152, 1
    %v6083 = vpop.permute.xlu0 %6082
    %6084 = vrot.lane.b32.xlu0 %v5471, 1
    %v6085 = vpop.permute.xlu0 %6084
    %6086 = vrot.lane.b32.xlu0 %v5477, 1
    %v6087 = vpop.permute.xlu0 %6086
    %6088 = vrot.lane.b32.xlu0 %v4153, 1
    %v6089 = vpop.permute.xlu0 %6088
    %6090 = vrot.lane.b32.xlu0 %v5473, 1
    %v6091 = vpop.permute.xlu0 %6090
    %6092 = vrot.lane.b32.xlu0 %v5479, 1
    %v6093 = vpop.permute.xlu0 %6092
    %v6094 = vsel %vm2970, %v6083, %v6089
    %v6095 = vsel %vm2970, %v6085, %v6091
    %v6096 = vsel %vm2970, %v6087, %v6093
    %v6097 = vsel %vm2970, %v6077, %v6083
    %v6098 = vsel %vm2970, %v6079, %v6085
    %v6099 = vsel %vm2970, %v6081, %v6087
    %v6100 = vsel %vm2970, %v6071, %v6077
    %v6101 = vsel %vm2970, %v6073, %v6079
    %v6102 = vsel %vm2970, %v6075, %v6081
    %v6103 = vsel %vm2970, %v6089, %v6071
    %v6104 = vsel %vm2970, %v6091, %v6073
    %v6105 = vsel %vm2970, %v6093, %v6075
    %v6106 = vmul.f32 %v6103, %v2981
    %v6107 = vmul.f32 %v6100, %v2985
    %v6108 = vmul.f32 %v6097, %v2989
    %v6109 = vmul.f32 %v6094, %v2993
    %v6110 = vmul.f32 %v6104, %v2981
    %v6111 = vmul.f32 %v6101, %v2985
    %v6112 = vmul.f32 %v6098, %v2989
    %v6113 = vmul.f32 %v6095, %v2993
    %v6114 = vmul.f32 %v6105, %v2981
    %v6115 = vmul.f32 %v6102, %v2985
    %v6116 = vmul.f32 %v6099, %v2989
    %v6117 = vmul.f32 %v6096, %v2993
    %s6118 = scalar_lea.vmem [#allocation6], 24
    %v6119 = vld [vmem:[%s6118] sm:$0xff]
    %v6121 = vsel %vm5580, %v6119, 0
    %6123 = vmatprep.subr.mxu0 %v6107
    %6124 = vmatpush1.msra.mxu0 %v6106
    %6125 = vmatprep.subr.mxu0 %v6111
    %6126 = vmatpush1.msra.mxu0 %v6110
    %6127 = vmatprep.subr.mxu0 %v6115
    %6128 = vmatpush1.msra.mxu0 %v6114
    %6129 = vmatprep.subr.mxu0 0.0
    %6130 = vmatpush1.msra.mxu0 0.0
    %6131 = vmatprep.subr.mxu0 0.0
    %6132 = vmatpush1.msra.mxu0 0.0
    %6133 = vmatprep.subr.mxu0 0.0
    %6134 = vmatpush1.msra.mxu0 0.0
    %6135 = vmatprep.subr.mxu0 0.0
    %6136 = vmatpush1.msra.mxu0 0.0
    %6137 = vmatprep.subr.mxu0 0.0
    %6138 = vmatpush1.msra.mxu0 0.0
    %6139 = vmatprep.subr.mxu0 0.0
    %6140 = vmatpush1.msra.mxu0 0.0
    %6141 = vmatprep.subr.mxu0 0.0
    %6142 = vmatpush1.msra.mxu0 0.0
    %6143 = vmatprep.subr.mxu0 0.0
    %6144 = vmatpush1.msra.mxu0 0.0
    %6145 = vmatprep.subr.mxu0 0.0
    %6146 = vmatpush1.msra.mxu0 0.0
    %6147 = vmatprep.subr.mxu0 0.0
    %6148 = vmatpush1.msra.mxu0 0.0
    %6149 = vmatprep.subr.mxu0 0.0
    %6150 = vmatpush1.msra.mxu0 0.0
    %6151 = vmatprep.subr.mxu0 0.0
    %6152 = vmatpush1.msra.mxu0 0.0
    %6153 = vmatprep.subr.mxu0 0.0
    %6154 = vmatpush1.msra.mxu0 0.0
    %6155 = vmatprep.subr.mxu0 0.0
    %6156 = vmatpush1.msra.mxu0 0.0
    %6157 = vmatprep.subr.mxu0 0.0
    %6158 = vmatpush1.msra.mxu0 0.0
    %6159 = vmatprep.subr.mxu0 0.0
    %6160 = vmatpush1.msra.mxu0 0.0
    %6161 = vmatprep.subr.mxu0 0.0
    %6162 = vmatpush1.msra.mxu0 0.0
    %6163 = vmatprep.subr.mxu0 0.0
    %6164 = vmatpush1.msra.mxu0 0.0
    %6165 = vmatprep.subr.mxu0 0.0
    %6166 = vmatpush1.msra.mxu0 0.0
    %6167 = vmatprep.subr.mxu0 0.0
    %6168 = vmatpush1.msra.mxu0 0.0
    %6169 = vmatprep.subr.mxu0 0.0
    %6170 = vmatpush1.msra.mxu0 0.0
    %6171 = vmatprep.subr.mxu0 0.0
    %6172 = vmatpush1.msra.mxu0 0.0
    %6173 = vmatprep.subr.mxu0 0.0
    %6174 = vmatpush1.msra.mxu0 0.0
    %6175 = vmatprep.subr.mxu0 0.0
    %6176 = vmatpush1.msra.mxu0 0.0
    %6177 = vmatprep.subr.mxu0 0.0
    %6178 = vmatpush1.msra.mxu0 0.0
    %6179 = vmatprep.subr.mxu0 0.0
    %6180 = vmatpush1.msra.mxu0 0.0
    %6181 = vmatprep.subr.mxu0 0.0
    %6182 = vmatpush1.msra.mxu0 0.0
    %6183 = vmatprep.subr.mxu0 0.0
    %6184 = vmatpush1.msra.mxu0 0.0
    %6185 = vmatprep.subr.mxu0 0.0
    %6186 = vmatpush1.msra.mxu0 0.0
    %6187 = vmatprep.mubr.f32.mxu0 0.0
    %6188 = vmatmul.mubr.f32.gmra.mrb[0].mxu0 %v6121
    %v6189 = vpop.f32.mrb[0].mxu0
    %v6190 = vadd.f32 0.0, %v6189
    %v6191 = vpop.f32.mrb[0].mxu0
    %v6192 = vadd.f32 0.0, %v6191
    %6193 = vdwg.mxu0
    %6194 = vmatprep.subr.mxu0 %v6109
    %6195 = vmatpush1.msra.mxu0 %v6108
    %6196 = vmatprep.subr.mxu0 %v6113
    %6197 = vmatpush1.msra.mxu0 %v6112
    %6198 = vmatprep.subr.mxu0 %v6117
    %6199 = vmatpush1.msra.mxu0 %v6116
    %6200 = vmatprep.subr.mxu0 0.0
    %6201 = vmatpush1.msra.mxu0 0.0
    %6202 = vmatprep.subr.mxu0 0.0
    %6203 = vmatpush1.msra.mxu0 0.0
    %6204 = vmatprep.subr.mxu0 0.0
    %6205 = vmatpush1.msra.mxu0 0.0
    %6206 = vmatprep.subr.mxu0 0.0
    %6207 = vmatpush1.msra.mxu0 0.0
    %6208 = vmatprep.subr.mxu0 0.0
    %6209 = vmatpush1.msra.mxu0 0.0
    %6210 = vmatprep.subr.mxu0 0.0
    %6211 = vmatpush1.msra.mxu0 0.0
    %6212 = vmatprep.subr.mxu0 0.0
    %6213 = vmatpush1.msra.mxu0 0.0
    %6214 = vmatprep.subr.mxu0 0.0
    %6215 = vmatpush1.msra.mxu0 0.0
    %6216 = vmatprep.subr.mxu0 0.0
    %6217 = vmatpush1.msra.mxu0 0.0
    %6218 = vmatprep.subr.mxu0 0.0
    %6219 = vmatpush1.msra.mxu0 0.0
    %6220 = vmatprep.subr.mxu0 0.0
    %6221 = vmatpush1.msra.mxu0 0.0
    %6222 = vmatprep.subr.mxu0 0.0
    %6223 = vmatpush1.msra.mxu0 0.0
    %6224 = vmatprep.subr.mxu0 0.0
    %6225 = vmatpush1.msra.mxu0 0.0
    %6226 = vmatprep.subr.mxu0 0.0
    %6227 = vmatpush1.msra.mxu0 0.0
    %6228 = vmatprep.subr.mxu0 0.0
    %6229 = vmatpush1.msra.mxu0 0.0
    %6230 = vmatprep.subr.mxu0 0.0
    %6231 = vmatpush1.msra.mxu0 0.0
    %6232 = vmatprep.subr.mxu0 0.0
    %6233 = vmatpush1.msra.mxu0 0.0
    %6234 = vmatprep.subr.mxu0 0.0
    %6235 = vmatpush1.msra.mxu0 0.0
    %6236 = vmatprep.subr.mxu0 0.0
    %6237 = vmatpush1.msra.mxu0 0.0
    %6238 = vmatprep.subr.mxu0 0.0
    %6239 = vmatpush1.msra.mxu0 0.0
    %6240 = vmatprep.subr.mxu0 0.0
    %6241 = vmatpush1.msra.mxu0 0.0
    %6242 = vmatprep.subr.mxu0 0.0
    %6243 = vmatpush1.msra.mxu0 0.0
    %6244 = vmatprep.subr.mxu0 0.0
    %6245 = vmatpush1.msra.mxu0 0.0
    %6246 = vmatprep.subr.mxu0 0.0
    %6247 = vmatpush1.msra.mxu0 0.0
    %6248 = vmatprep.subr.mxu0 0.0
    %6249 = vmatpush1.msra.mxu0 0.0
    %6250 = vmatprep.subr.mxu0 0.0
    %6251 = vmatpush1.msra.mxu0 0.0
    %6252 = vmatprep.subr.mxu0 0.0
    %6253 = vmatpush1.msra.mxu0 0.0
    %6254 = vmatprep.subr.mxu0 0.0
    %6255 = vmatpush1.msra.mxu0 0.0
    %6256 = vmatprep.subr.mxu0 0.0
    %6257 = vmatpush1.msra.mxu0 0.0
    %6258 = vmatprep.mubr.f32.mxu0 0.0
    %6259 = vmatmul.mubr.f32.gmra.mrb[0].mxu0 %v6121
    %v6260 = vpop.f32.mrb[0].mxu0
    %v6261 = vadd.f32 0.0, %v6260
    %v6262 = vpop.f32.mrb[0].mxu0
    %v6263 = vadd.f32 0.0, %v6262
    %6264 = vdwg.mxu0
    %v6265 = vadd.f32 %v6066, %v6190
    %v6266 = vadd.f32 %v6067, %v6192
    %v6267 = vadd.f32 %v6068, %v6261
    %v6268 = vadd.f32 %v6069, %v6263
    %s6269 = scalar_lea.vmem [#allocation6], 32
    %v6270 = vld [vmem:[%s6269] sm:$0xff]
    %v6272 = vsel %vm5580, %v6270, 0
    %6274 = vmatprep.subr.mxu0 %v4151
    %6275 = vmatpush1.msra.mxu0 %v4150
    %6276 = vmatprep.subr.mxu0 %v5396
    %6277 = vmatpush1.msra.mxu0 %v5394
    %6278 = vmatprep.subr.mxu0 %v5402
    %6279 = vmatpush1.msra.mxu0 %v5400
    %6280 = vmatprep.subr.mxu0 0.0
    %6281 = vmatpush1.msra.mxu0 0.0
    %6282 = vmatprep.subr.mxu0 0.0
    %6283 = vmatpush1.msra.mxu0 0.0
    %6284 = vmatprep.subr.mxu0 0.0
    %6285 = vmatpush1.msra.mxu0 0.0
    %6286 = vmatprep.subr.mxu0 0.0
    %6287 = vmatpush1.msra.mxu0 0.0
    %6288 = vmatprep.subr.mxu0 0.0
    %6289 = vmatpush1.msra.mxu0 0.0
    %6290 = vmatprep.subr.mxu0 0.0
    %6291 = vmatpush1.msra.mxu0 0.0
    %6292 = vmatprep.subr.mxu0 0.0
    %6293 = vmatpush1.msra.mxu0 0.0
    %6294 = vmatprep.subr.mxu0 0.0
    %6295 = vmatpush1.msra.mxu0 0.0
    %6296 = vmatprep.subr.mxu0 0.0
    %6297 = vmatpush1.msra.mxu0 0.0
    %6298 = vmatprep.subr.mxu0 0.0
    %6299 = vmatpush1.msra.mxu0 0.0
    %6300 = vmatprep.subr.mxu0 0.0
    %6301 = vmatpush1.msra.mxu0 0.0
    %6302 = vmatprep.subr.mxu0 0.0
    %6303 = vmatpush1.msra.mxu0 0.0
    %6304 = vmatprep.subr.mxu0 0.0
    %6305 = vmatpush1.msra.mxu0 0.0
    %6306 = vmatprep.subr.mxu0 0.0
    %6307 = vmatpush1.msra.mxu0 0.0
    %6308 = vmatprep.subr.mxu0 0.0
    %6309 = vmatpush1.msra.mxu0 0.0
    %6310 = vmatprep.subr.mxu0 0.0
    %6311 = vmatpush1.msra.mxu0 0.0
    %6312 = vmatprep.subr.mxu0 0.0
    %6313 = vmatpush1.msra.mxu0 0.0
    %6314 = vmatprep.subr.mxu0 0.0
    %6315 = vmatpush1.msra.mxu0 0.0
    %6316 = vmatprep.subr.mxu0 0.0
    %6317 = vmatpush1.msra.mxu0 0.0
    %6318 = vmatprep.subr.mxu0 0.0
    %6319 = vmatpush1.msra.mxu0 0.0
    %6320 = vmatprep.subr.mxu0 0.0
    %6321 = vmatpush1.msra.mxu0 0.0
    %6322 = vmatprep.subr.mxu0 0.0
    %6323 = vmatpush1.msra.mxu0 0.0
    %6324 = vmatprep.subr.mxu0 0.0
    %6325 = vmatpush1.msra.mxu0 0.0
    %6326 = vmatprep.subr.mxu0 0.0
    %6327 = vmatpush1.msra.mxu0 0.0
    %6328 = vmatprep.subr.mxu0 0.0
    %6329 = vmatpush1.msra.mxu0 0.0
    %6330 = vmatprep.subr.mxu0 0.0
    %6331 = vmatpush1.msra.mxu0 0.0
    %6332 = vmatprep.subr.mxu0 0.0
    %6333 = vmatpush1.msra.mxu0 0.0
    %6334 = vmatprep.subr.mxu0 0.0
    %6335 = vmatpush1.msra.mxu0 0.0
    %6336 = vmatprep.subr.mxu0 0.0
    %6337 = vmatpush1.msra.mxu0 0.0
    %6338 = vmatprep.mubr.f32.mxu0 0.0
    %6339 = vmatmul.mubr.f32.gmra.mrb[0].mxu0 %v6272
    %v6340 = vpop.f32.mrb[0].mxu0
    %v6341 = vadd.f32 0.0, %v6340
    %v6342 = vpop.f32.mrb[0].mxu0
    %v6343 = vadd.f32 0.0, %v6342
    %6344 = vdwg.mxu0
    %6345 = vmatprep.subr.mxu0 %v4153
    %6346 = vmatpush1.msra.mxu0 %v4152
    %6347 = vmatprep.subr.mxu0 %v5473
    %6348 = vmatpush1.msra.mxu0 %v5471
    %6349 = vmatprep.subr.mxu0 %v5479
    %6350 = vmatpush1.msra.mxu0 %v5477
    %6351 = vmatprep.subr.mxu0 0.0
    %6352 = vmatpush1.msra.mxu0 0.0
    %6353 = vmatprep.subr.mxu0 0.0
    %6354 = vmatpush1.msra.mxu0 0.0
    %6355 = vmatprep.subr.mxu0 0.0
    %6356 = vmatpush1.msra.mxu0 0.0
    %6357 = vmatprep.subr.mxu0 0.0
    %6358 = vmatpush1.msra.mxu0 0.0
    %6359 = vmatprep.subr.mxu0 0.0
    %6360 = vmatpush1.msra.mxu0 0.0
    %6361 = vmatprep.subr.mxu0 0.0
    %6362 = vmatpush1.msra.mxu0 0.0
    %6363 = vmatprep.subr.mxu0 0.0
    %6364 = vmatpush1.msra.mxu0 0.0
    %6365 = vmatprep.subr.mxu0 0.0
    %6366 = vmatpush1.msra.mxu0 0.0
    %6367 = vmatprep.subr.mxu0 0.0
    %6368 = vmatpush1.msra.mxu0 0.0
    %6369 = vmatprep.subr.mxu0 0.0
    %6370 = vmatpush1.msra.mxu0 0.0
    %6371 = vmatprep.subr.mxu0 0.0
    %6372 = vmatpush1.msra.mxu0 0.0
    %6373 = vmatprep.subr.mxu0 0.0
    %6374 = vmatpush1.msra.mxu0 0.0
    %6375 = vmatprep.subr.mxu0 0.0
    %6376 = vmatpush1.msra.mxu0 0.0
    %6377 = vmatprep.subr.mxu0 0.0
    %6378 = vmatpush1.msra.mxu0 0.0
    %6379 = vmatprep.subr.mxu0 0.0
    %6380 = vmatpush1.msra.mxu0 0.0
    %6381 = vmatprep.subr.mxu0 0.0
    %6382 = vmatpush1.msra.mxu0 0.0
    %6383 = vmatprep.subr.mxu0 0.0
    %6384 = vmatpush1.msra.mxu0 0.0
    %6385 = vmatprep.subr.mxu0 0.0
    %6386 = vmatpush1.msra.mxu0 0.0
    %6387 = vmatprep.subr.mxu0 0.0
    %6388 = vmatpush1.msra.mxu0 0.0
    %6389 = vmatprep.subr.mxu0 0.0
    %6390 = vmatpush1.msra.mxu0 0.0
    %6391 = vmatprep.subr.mxu0 0.0
    %6392 = vmatpush1.msra.mxu0 0.0
    %6393 = vmatprep.subr.mxu0 0.0
    %6394 = vmatpush1.msra.mxu0 0.0
    %6395 = vmatprep.subr.mxu0 0.0
    %6396 = vmatpush1.msra.mxu0 0.0
    %6397 = vmatprep.subr.mxu0 0.0
    %6398 = vmatpush1.msra.mxu0 0.0
    %6399 = vmatprep.subr.mxu0 0.0
    %6400 = vmatpush1.msra.mxu0 0.0
    %6401 = vmatprep.subr.mxu0 0.0
    %6402 = vmatpush1.msra.mxu0 0.0
    %6403 = vmatprep.subr.mxu0 0.0
    %6404 = vmatpush1.msra.mxu0 0.0
    %6405 = vmatprep.subr.mxu0 0.0
    %6406 = vmatpush1.msra.mxu0 0.0
    %6407 = vmatprep.subr.mxu0 0.0
    %6408 = vmatpush1.msra.mxu0 0.0
    %6409 = vmatprep.mubr.f32.mxu0 0.0
    %6410 = vmatmul.mubr.f32.gmra.mrb[0].mxu0 %v6272
    %v6411 = vpop.f32.mrb[0].mxu0
    %v6412 = vadd.f32 0.0, %v6411
    %v6413 = vpop.f32.mrb[0].mxu0
    %v6414 = vadd.f32 0.0, %v6413
    %6415 = vdwg.mxu0
    %v6416 = vadd.f32 %v6265, %v6341
    %v6417 = vadd.f32 %v6266, %v6343
    %v6418 = vadd.f32 %v6267, %v6412
    %v6419 = vadd.f32 %v6268, %v6414
    %6420 = vrot.lane.b32.xlu0 %v5394, 127
    %v6421 = vpop.permute.xlu0 %6420
    %6422 = vrot.lane.b32.xlu0 %v5400, 127
    %v6423 = vpop.permute.xlu0 %6422
    %6424 = vrot.lane.b32.xlu0 %v5396, 127
    %v6425 = vpop.permute.xlu0 %6424
    %6426 = vrot.lane.b32.xlu0 %v5402, 127
    %v6427 = vpop.permute.xlu0 %6426
    %6428 = vrot.lane.b32.xlu0 %v5471, 127
    %v6429 = vpop.permute.xlu0 %6428
    %6430 = vrot.lane.b32.xlu0 %v5477, 127
    %v6431 = vpop.permute.xlu0 %6430
    %6432 = vrot.lane.b32.xlu0 %v5473, 127
    %v6433 = vpop.permute.xlu0 %6432
    %6434 = vrot.lane.b32.xlu0 %v5479, 127
    %v6435 = vpop.permute.xlu0 %6434
    %v6436 = vsel %vm3336, %v6429, %v6433
    %v6437 = vsel %vm3336, %v6431, %v6435
    %v6438 = vsel %vm3336, %v6425, %v6429
    %v6439 = vsel %vm3336, %v6427, %v6431
    %v6440 = vsel %vm3336, %v6421, %v6425
    %v6441 = vsel %vm3336, %v6423, %v6427
    %v6442 = vsel %vm3336, %v6433, %v6421
    %v6443 = vsel %vm3336, %v6435, %v6423
    %v6444 = vmul.f32 %v4164, %v3347
    %v6445 = vmul.f32 %v4163, %v3351
    %v6446 = vmul.f32 %v4162, %v3355
    %v6447 = vmul.f32 %v4165, %v3359
    %v6448 = vmul.f32 %v6440, %v3347
    %v6449 = vmul.f32 %v6438, %v3351
    %v6450 = vmul.f32 %v6436, %v3355
    %v6451 = vmul.f32 %v6442, %v3359
    %v6452 = vmul.f32 %v6441, %v3347
    %v6453 = vmul.f32 %v6439, %v3351
    %v6454 = vmul.f32 %v6437, %v3355
    %v6455 = vmul.f32 %v6443, %v3359
    %s6456 = scalar_lea.vmem [#allocation6], 40
    %v6457 = vld [vmem:[%s6456] sm:$0xff]
    %v6459 = vsel %vm5580, %v6457, 0
    %6461 = vmatprep.subr.mxu0 %v6445
    %6462 = vmatpush1.msra.mxu0 %v6444
    %6463 = vmatprep.subr.mxu0 %v6449
    %6464 = vmatpush1.msra.mxu0 %v6448
    %6465 = vmatprep.subr.mxu0 %v6453
    %6466 = vmatpush1.msra.mxu0 %v6452
    %6467 = vmatprep.subr.mxu0 0.0
    %6468 = vmatpush1.msra.mxu0 0.0
    %6469 = vmatprep.subr.mxu0 0.0
    %6470 = vmatpush1.msra.mxu0 0.0
    %6471 = vmatprep.subr.mxu0 0.0
    %6472 = vmatpush1.msra.mxu0 0.0
    %6473 = vmatprep.subr.mxu0 0.0
    %6474 = vmatpush1.msra.mxu0 0.0
    %6475 = vmatprep.subr.mxu0 0.0
    %6476 = vmatpush1.msra.mxu0 0.0
    %6477 = vmatprep.subr.mxu0 0.0
    %6478 = vmatpush1.msra.mxu0 0.0
    %6479 = vmatprep.subr.mxu0 0.0
    %6480 = vmatpush1.msra.mxu0 0.0
    %6481 = vmatprep.subr.mxu0 0.0
    %6482 = vmatpush1.msra.mxu0 0.0
    %6483 = vmatprep.subr.mxu0 0.0
    %6484 = vmatpush1.msra.mxu0 0.0
    %6485 = vmatprep.subr.mxu0 0.0
    %6486 = vmatpush1.msra.mxu0 0.0
    %6487 = vmatprep.subr.mxu0 0.0
    %6488 = vmatpush1.msra.mxu0 0.0
    %6489 = vmatprep.subr.mxu0 0.0
    %6490 = vmatpush1.msra.mxu0 0.0
    %6491 = vmatprep.subr.mxu0 0.0
    %6492 = vmatpush1.msra.mxu0 0.0
    %6493 = vmatprep.subr.mxu0 0.0
    %6494 = vmatpush1.msra.mxu0 0.0
    %6495 = vmatprep.subr.mxu0 0.0
    %6496 = vmatpush1.msra.mxu0 0.0
    %6497 = vmatprep.subr.mxu0 0.0
    %6498 = vmatpush1.msra.mxu0 0.0
    %6499 = vmatprep.subr.mxu0 0.0
    %6500 = vmatpush1.msra.mxu0 0.0
    %6501 = vmatprep.subr.mxu0 0.0
    %6502 = vmatpush1.msra.mxu0 0.0
    %6503 = vmatprep.subr.mxu0 0.0
    %6504 = vmatpush1.msra.mxu0 0.0
    %6505 = vmatprep.subr.mxu0 0.0
    %6506 = vmatpush1.msra.mxu0 0.0
    %6507 = vmatprep.subr.mxu0 0.0
    %6508 = vmatpush1.msra.mxu0 0.0
    %6509 = vmatprep.subr.mxu0 0.0
    %6510 = vmatpush1.msra.mxu0 0.0
    %6511 = vmatprep.subr.mxu0 0.0
    %6512 = vmatpush1.msra.mxu0 0.0
    %6513 = vmatprep.subr.mxu0 0.0
    %6514 = vmatpush1.msra.mxu0 0.0
    %6515 = vmatprep.subr.mxu0 0.0
    %6516 = vmatpush1.msra.mxu0 0.0
    %6517 = vmatprep.subr.mxu0 0.0
    %6518 = vmatpush1.msra.mxu0 0.0
    %6519 = vmatprep.subr.mxu0 0.0
    %6520 = vmatpush1.msra.mxu0 0.0
    %6521 = vmatprep.subr.mxu0 0.0
    %6522 = vmatpush1.msra.mxu0 0.0
    %6523 = vmatprep.subr.mxu0 0.0
    %6524 = vmatpush1.msra.mxu0 0.0
    %6525 = vmatprep.mubr.f32.mxu0 0.0
    %6526 = vmatmul.mubr.f32.gmra.mrb[0].mxu0 %v6459
    %v6527 = vpop.f32.mrb[0].mxu0
    %v6528 = vadd.f32 0.0, %v6527
    %v6529 = vpop.f32.mrb[0].mxu0
    %v6530 = vadd.f32 0.0, %v6529
    %6531 = vdwg.mxu0
    %6532 = vmatprep.subr.mxu0 %v6447
    %6533 = vmatpush1.msra.mxu0 %v6446
    %6534 = vmatprep.subr.mxu0 %v6451
    %6535 = vmatpush1.msra.mxu0 %v6450
    %6536 = vmatprep.subr.mxu0 %v6455
    %6537 = vmatpush1.msra.mxu0 %v6454
    %6538 = vmatprep.subr.mxu0 0.0
    %6539 = vmatpush1.msra.mxu0 0.0
    %6540 = vmatprep.subr.mxu0 0.0
    %6541 = vmatpush1.msra.mxu0 0.0
    %6542 = vmatprep.subr.mxu0 0.0
    %6543 = vmatpush1.msra.mxu0 0.0
    %6544 = vmatprep.subr.mxu0 0.0
    %6545 = vmatpush1.msra.mxu0 0.0
    %6546 = vmatprep.subr.mxu0 0.0
    %6547 = vmatpush1.msra.mxu0 0.0
    %6548 = vmatprep.subr.mxu0 0.0
    %6549 = vmatpush1.msra.mxu0 0.0
    %6550 = vmatprep.subr.mxu0 0.0
    %6551 = vmatpush1.msra.mxu0 0.0
    %6552 = vmatprep.subr.mxu0 0.0
    %6553 = vmatpush1.msra.mxu0 0.0
    %6554 = vmatprep.subr.mxu0 0.0
    %6555 = vmatpush1.msra.mxu0 0.0
    %6556 = vmatprep.subr.mxu0 0.0
    %6557 = vmatpush1.msra.mxu0 0.0
    %6558 = vmatprep.subr.mxu0 0.0
    %6559 = vmatpush1.msra.mxu0 0.0
    %6560 = vmatprep.subr.mxu0 0.0
    %6561 = vmatpush1.msra.mxu0 0.0
    %6562 = vmatprep.subr.mxu0 0.0
    %6563 = vmatpush1.msra.mxu0 0.0
    %6564 = vmatprep.subr.mxu0 0.0
    %6565 = vmatpush1.msra.mxu0 0.0
    %6566 = vmatprep.subr.mxu0 0.0
    %6567 = vmatpush1.msra.mxu0 0.0
    %6568 = vmatprep.subr.mxu0 0.0
    %6569 = vmatpush1.msra.mxu0 0.0
    %6570 = vmatprep.subr.mxu0 0.0
    %6571 = vmatpush1.msra.mxu0 0.0
    %6572 = vmatprep.subr.mxu0 0.0
    %6573 = vmatpush1.msra.mxu0 0.0
    %6574 = vmatprep.subr.mxu0 0.0
    %6575 = vmatpush1.msra.mxu0 0.0
    %6576 = vmatprep.subr.mxu0 0.0
    %6577 = vmatpush1.msra.mxu0 0.0
    %6578 = vmatprep.subr.mxu0 0.0
    %6579 = vmatpush1.msra.mxu0 0.0
    %6580 = vmatprep.subr.mxu0 0.0
    %6581 = vmatpush1.msra.mxu0 0.0
    %6582 = vmatprep.subr.mxu0 0.0
    %6583 = vmatpush1.msra.mxu0 0.0
    %6584 = vmatprep.subr.mxu0 0.0
    %6585 = vmatpush1.msra.mxu0 0.0
    %6586 = vmatprep.subr.mxu0 0.0
    %6587 = vmatpush1.msra.mxu0 0.0
    %6588 = vmatprep.subr.mxu0 0.0
    %6589 = vmatpush1.msra.mxu0 0.0
    %6590 = vmatprep.subr.mxu0 0.0
    %6591 = vmatpush1.msra.mxu0 0.0
    %6592 = vmatprep.subr.mxu0 0.0
    %6593 = vmatpush1.msra.mxu0 0.0
    %6594 = vmatprep.subr.mxu0 0.0
    %6595 = vmatpush1.msra.mxu0 0.0
    %6596 = vmatprep.mubr.f32.mxu0 0.0
    %6597 = vmatmul.mubr.f32.gmra.mrb[0].mxu0 %v6459
    %v6598 = vpop.f32.mrb[0].mxu0
    %v6599 = vadd.f32 0.0, %v6598
    %v6600 = vpop.f32.mrb[0].mxu0
    %v6601 = vadd.f32 0.0, %v6600
    %6602 = vdwg.mxu0
    %v6603 = vadd.f32 %v6416, %v6528
    %v6604 = vadd.f32 %v6417, %v6530
    %v6605 = vadd.f32 %v6418, %v6599
    %v6606 = vadd.f32 %v6419, %v6601
    %6607 = vrot.lane.b32.xlu0 %v4150, 97
    %v6608 = vpop.permute.xlu0 %6607
    %6609 = vrot.lane.b32.xlu0 %v5394, 97
    %v6610 = vpop.permute.xlu0 %6609
    %6611 = vrot.lane.b32.xlu0 %v5400, 97
    %v6612 = vpop.permute.xlu0 %6611
    %6613 = vrot.lane.b32.xlu0 %v4151, 97
    %v6614 = vpop.permute.xlu0 %6613
    %6615 = vrot.lane.b32.xlu0 %v5396, 97
    %v6616 = vpop.permute.xlu0 %6615
    %6617 = vrot.lane.b32.xlu0 %v5402, 97
    %v6618 = vpop.permute.xlu0 %6617
    %6619 = vrot.lane.b32.xlu0 %v4152, 97
    %v6620 = vpop.permute.xlu0 %6619
    %6621 = vrot.lane.b32.xlu0 %v5471, 97
    %v6622 = vpop.permute.xlu0 %6621
    %6623 = vrot.lane.b32.xlu0 %v5477, 97
    %v6624 = vpop.permute.xlu0 %6623
    %6625 = vrot.lane.b32.xlu0 %v4153, 97
    %v6626 = vpop.permute.xlu0 %6625
    %6627 = vrot.lane.b32.xlu0 %v5473, 97
    %v6628 = vpop.permute.xlu0 %6627
    %6629 = vrot.lane.b32.xlu0 %v5479, 97
    %v6630 = vpop.permute.xlu0 %6629
    %v6631 = vsel %vm3539, %v6620, %v6626
    %v6632 = vsel %vm3539, %v6622, %v6628
    %v6633 = vsel %vm3539, %v6624, %v6630
    %v6634 = vsel %vm3539, %v6614, %v6620
    %v6635 = vsel %vm3539, %v6616, %v6622
    %v6636 = vsel %vm3539, %v6618, %v6624
    %v6637 = vsel %vm3539, %v6608, %v6614
    %v6638 = vsel %vm3539, %v6610, %v6616
    %v6639 = vsel %vm3539, %v6612, %v6618
    %v6640 = vsel %vm3539, %v6626, %v6608
    %v6641 = vsel %vm3539, %v6628, %v6610
    %v6642 = vsel %vm3539, %v6630, %v6612
    %v6643 = vmul.f32 %v6637, %v3550
    %v6644 = vmul.f32 %v6634, %v3554
    %v6645 = vmul.f32 %v6631, %v3558
    %v6646 = vmul.f32 %v6640, %v3562
    %v6647 = vmul.f32 %v6638, %v3550
    %v6648 = vmul.f32 %v6635, %v3554
    %v6649 = vmul.f32 %v6632, %v3558
    %v6650 = vmul.f32 %v6641, %v3562
    %v6651 = vmul.f32 %v6639, %v3550
    %v6652 = vmul.f32 %v6636, %v3554
    %v6653 = vmul.f32 %v6633, %v3558
    %v6654 = vmul.f32 %v6642, %v3562
    %s6655 = scalar_lea.vmem [#allocation6], 48
    %v6656 = vld [vmem:[%s6655] sm:$0xff]
    %v6658 = vsel %vm5580, %v6656, 0
    %6660 = vmatprep.subr.mxu0 %v6644
    %6661 = vmatpush1.msra.mxu0 %v6643
    %6662 = vmatprep.subr.mxu0 %v6648
    %6663 = vmatpush1.msra.mxu0 %v6647
    %6664 = vmatprep.subr.mxu0 %v6652
    %6665 = vmatpush1.msra.mxu0 %v6651
    %6666 = vmatprep.subr.mxu0 0.0
    %6667 = vmatpush1.msra.mxu0 0.0
    %6668 = vmatprep.subr.mxu0 0.0
    %6669 = vmatpush1.msra.mxu0 0.0
    %6670 = vmatprep.subr.mxu0 0.0
    %6671 = vmatpush1.msra.mxu0 0.0
    %6672 = vmatprep.subr.mxu0 0.0
    %6673 = vmatpush1.msra.mxu0 0.0
    %6674 = vmatprep.subr.mxu0 0.0
    %6675 = vmatpush1.msra.mxu0 0.0
    %6676 = vmatprep.subr.mxu0 0.0
    %6677 = vmatpush1.msra.mxu0 0.0
    %6678 = vmatprep.subr.mxu0 0.0
    %6679 = vmatpush1.msra.mxu0 0.0
    %6680 = vmatprep.subr.mxu0 0.0
    %6681 = vmatpush1.msra.mxu0 0.0
    %6682 = vmatprep.subr.mxu0 0.0
    %6683 = vmatpush1.msra.mxu0 0.0
    %6684 = vmatprep.subr.mxu0 0.0
    %6685 = vmatpush1.msra.mxu0 0.0
    %6686 = vmatprep.subr.mxu0 0.0
    %6687 = vmatpush1.msra.mxu0 0.0
    %6688 = vmatprep.subr.mxu0 0.0
    %6689 = vmatpush1.msra.mxu0 0.0
    %6690 = vmatprep.subr.mxu0 0.0
    %6691 = vmatpush1.msra.mxu0 0.0
    %6692 = vmatprep.subr.mxu0 0.0
    %6693 = vmatpush1.msra.mxu0 0.0
    %6694 = vmatprep.subr.mxu0 0.0
    %6695 = vmatpush1.msra.mxu0 0.0
    %6696 = vmatprep.subr.mxu0 0.0
    %6697 = vmatpush1.msra.mxu0 0.0
    %6698 = vmatprep.subr.mxu0 0.0
    %6699 = vmatpush1.msra.mxu0 0.0
    %6700 = vmatprep.subr.mxu0 0.0
    %6701 = vmatpush1.msra.mxu0 0.0
    %6702 = vmatprep.subr.mxu0 0.0
    %6703 = vmatpush1.msra.mxu0 0.0
    %6704 = vmatprep.subr.mxu0 0.0
    %6705 = vmatpush1.msra.mxu0 0.0
    %6706 = vmatprep.subr.mxu0 0.0
    %6707 = vmatpush1.msra.mxu0 0.0
    %6708 = vmatprep.subr.mxu0 0.0
    %6709 = vmatpush1.msra.mxu0 0.0
    %6710 = vmatprep.subr.mxu0 0.0
    %6711 = vmatpush1.msra.mxu0 0.0
    %6712 = vmatprep.subr.mxu0 0.0
    %6713 = vmatpush1.msra.mxu0 0.0
    %6714 = vmatprep.subr.mxu0 0.0
    %6715 = vmatpush1.msra.mxu0 0.0
    %6716 = vmatprep.subr.mxu0 0.0
    %6717 = vmatpush1.msra.mxu0 0.0
    %6718 = vmatprep.subr.mxu0 0.0
    %6719 = vmatpush1.msra.mxu0 0.0
    %6720 = vmatprep.subr.mxu0 0.0
    %6721 = vmatpush1.msra.mxu0 0.0
    %6722 = vmatprep.subr.mxu0 0.0
    %6723 = vmatpush1.msra.mxu0 0.0
    %6724 = vmatprep.mubr.f32.mxu0 0.0
    %6725 = vmatmul.mubr.f32.gmra.mrb[0].mxu0 %v6658
    %v6726 = vpop.f32.mrb[0].mxu0
    %v6727 = vadd.f32 0.0, %v6726
    %v6728 = vpop.f32.mrb[0].mxu0
    %v6729 = vadd.f32 0.0, %v6728
    %6730 = vdwg.mxu0
    %6731 = vmatprep.subr.mxu0 %v6646
    %6732 = vmatpush1.msra.mxu0 %v6645
    %6733 = vmatprep.subr.mxu0 %v6650
    %6734 = vmatpush1.msra.mxu0 %v6649
    %6735 = vmatprep.subr.mxu0 %v6654
    %6736 = vmatpush1.msra.mxu0 %v6653
    %6737 = vmatprep.subr.mxu0 0.0
    %6738 = vmatpush1.msra.mxu0 0.0
    %6739 = vmatprep.subr.mxu0 0.0
    %6740 = vmatpush1.msra.mxu0 0.0
    %6741 = vmatprep.subr.mxu0 0.0
    %6742 = vmatpush1.msra.mxu0 0.0
    %6743 = vmatprep.subr.mxu0 0.0
    %6744 = vmatpush1.msra.mxu0 0.0
    %6745 = vmatprep.subr.mxu0 0.0
    %6746 = vmatpush1.msra.mxu0 0.0
    %6747 = vmatprep.subr.mxu0 0.0
    %6748 = vmatpush1.msra.mxu0 0.0
    %6749 = vmatprep.subr.mxu0 0.0
    %6750 = vmatpush1.msra.mxu0 0.0
    %6751 = vmatprep.subr.mxu0 0.0
    %6752 = vmatpush1.msra.mxu0 0.0
    %6753 = vmatprep.subr.mxu0 0.0
    %6754 = vmatpush1.msra.mxu0 0.0
    %6755 = vmatprep.subr.mxu0 0.0
    %6756 = vmatpush1.msra.mxu0 0.0
    %6757 = vmatprep.subr.mxu0 0.0
    %6758 = vmatpush1.msra.mxu0 0.0
    %6759 = vmatprep.subr.mxu0 0.0
    %6760 = vmatpush1.msra.mxu0 0.0
    %6761 = vmatprep.subr.mxu0 0.0
    %6762 = vmatpush1.msra.mxu0 0.0
    %6763 = vmatprep.subr.mxu0 0.0
    %6764 = vmatpush1.msra.mxu0 0.0
    %6765 = vmatprep.subr.mxu0 0.0
    %6766 = vmatpush1.msra.mxu0 0.0
    %6767 = vmatprep.subr.mxu0 0.0
    %6768 = vmatpush1.msra.mxu0 0.0
    %6769 = vmatprep.subr.mxu0 0.0
    %6770 = vmatpush1.msra.mxu0 0.0
    %6771 = vmatprep.subr.mxu0 0.0
    %6772 = vmatpush1.msra.mxu0 0.0
    %6773 = vmatprep.subr.mxu0 0.0
    %6774 = vmatpush1.msra.mxu0 0.0
    %6775 = vmatprep.subr.mxu0 0.0
    %6776 = vmatpush1.msra.mxu0 0.0
    %6777 = vmatprep.subr.mxu0 0.0
    %6778 = vmatpush1.msra.mxu0 0.0
    %6779 = vmatprep.subr.mxu0 0.0
    %6780 = vmatpush1.msra.mxu0 0.0
    %6781 = vmatprep.subr.mxu0 0.0
    %6782 = vmatpush1.msra.mxu0 0.0
    %6783 = vmatprep.subr.mxu0 0.0
    %6784 = vmatpush1.msra.mxu0 0.0
    %6785 = vmatprep.subr.mxu0 0.0
    %6786 = vmatpush1.msra.mxu0 0.0
    %6787 = vmatprep.subr.mxu0 0.0
    %6788 = vmatpush1.msra.mxu0 0.0
    %6789 = vmatprep.subr.mxu0 0.0
    %6790 = vmatpush1.msra.mxu0 0.0
    %6791 = vmatprep.subr.mxu0 0.0
    %6792 = vmatpush1.msra.mxu0 0.0
    %6793 = vmatprep.subr.mxu0 0.0
    %6794 = vmatpush1.msra.mxu0 0.0
    %6795 = vmatprep.mubr.f32.mxu0 0.0
    %6796 = vmatmul.mubr.f32.gmra.mrb[0].mxu0 %v6658
    %v6797 = vpop.f32.mrb[0].mxu0
    %v6798 = vadd.f32 0.0, %v6797
    %v6799 = vpop.f32.mrb[0].mxu0
    %v6800 = vadd.f32 0.0, %v6799
    %6801 = vdwg.mxu0
    %v6802 = vadd.f32 %v6603, %v6727
    %v6803 = vadd.f32 %v6604, %v6729
    %v6804 = vadd.f32 %v6605, %v6798
    %v6805 = vadd.f32 %v6606, %v6800
    %6806 = vrot.lane.b32.xlu0 %v4150, 96
    %v6807 = vpop.permute.xlu0 %6806
    %6808 = vrot.lane.b32.xlu0 %v5394, 96
    %v6809 = vpop.permute.xlu0 %6808
    %6810 = vrot.lane.b32.xlu0 %v5400, 96
    %v6811 = vpop.permute.xlu0 %6810
    %6812 = vrot.lane.b32.xlu0 %v4151, 96
    %v6813 = vpop.permute.xlu0 %6812
    %6814 = vrot.lane.b32.xlu0 %v5396, 96
    %v6815 = vpop.permute.xlu0 %6814
    %6816 = vrot.lane.b32.xlu0 %v5402, 96
    %v6817 = vpop.permute.xlu0 %6816
    %6818 = vrot.lane.b32.xlu0 %v4152, 96
    %v6819 = vpop.permute.xlu0 %6818
    %6820 = vrot.lane.b32.xlu0 %v5471, 96
    %v6821 = vpop.permute.xlu0 %6820
    %6822 = vrot.lane.b32.xlu0 %v5477, 96
    %v6823 = vpop.permute.xlu0 %6822
    %6824 = vrot.lane.b32.xlu0 %v4153, 96
    %v6825 = vpop.permute.xlu0 %6824
    %6826 = vrot.lane.b32.xlu0 %v5473, 96
    %v6827 = vpop.permute.xlu0 %6826
    %6828 = vrot.lane.b32.xlu0 %v5479, 96
    %v6829 = vpop.permute.xlu0 %6828
    %v6830 = vsel %vm3742, %v6819, %v6825
    %v6831 = vsel %vm3742, %v6821, %v6827
    %v6832 = vsel %vm3742, %v6823, %v6829
    %v6833 = vsel %vm3742, %v6813, %v6819
    %v6834 = vsel %vm3742, %v6815, %v6821
    %v6835 = vsel %vm3742, %v6817, %v6823
    %v6836 = vsel %vm3742, %v6807, %v6813
    %v6837 = vsel %vm3742, %v6809, %v6815
    %v6838 = vsel %vm3742, %v6811, %v6817
    %v6839 = vsel %vm3742, %v6825, %v6807
    %v6840 = vsel %vm3742, %v6827, %v6809
    %v6841 = vsel %vm3742, %v6829, %v6811
    %v6842 = vmul.f32 %v6836, %v3753
    %v6843 = vmul.f32 %v6833, %v3757
    %v6844 = vmul.f32 %v6830, %v3761
    %v6845 = vmul.f32 %v6839, %v3765
    %v6846 = vmul.f32 %v6837, %v3753
    %v6847 = vmul.f32 %v6834, %v3757
    %v6848 = vmul.f32 %v6831, %v3761
    %v6849 = vmul.f32 %v6840, %v3765
    %v6850 = vmul.f32 %v6838, %v3753
    %v6851 = vmul.f32 %v6835, %v3757
    %v6852 = vmul.f32 %v6832, %v3761
    %v6853 = vmul.f32 %v6841, %v3765
    %s6854 = scalar_lea.vmem [#allocation6], 56
    %v6855 = vld [vmem:[%s6854] sm:$0xff]
    %v6857 = vsel %vm5580, %v6855, 0
    %6859 = vmatprep.subr.mxu0 %v6843
    %6860 = vmatpush1.msra.mxu0 %v6842
    %6861 = vmatprep.subr.mxu0 %v6847
    %6862 = vmatpush1.msra.mxu0 %v6846
    %6863 = vmatprep.subr.mxu0 %v6851
    %6864 = vmatpush1.msra.mxu0 %v6850
    %6865 = vmatprep.subr.mxu0 0.0
    %6866 = vmatpush1.msra.mxu0 0.0
    %6867 = vmatprep.subr.mxu0 0.0
    %6868 = vmatpush1.msra.mxu0 0.0
    %6869 = vmatprep.subr.mxu0 0.0
    %6870 = vmatpush1.msra.mxu0 0.0
    %6871 = vmatprep.subr.mxu0 0.0
    %6872 = vmatpush1.msra.mxu0 0.0
    %6873 = vmatprep.subr.mxu0 0.0
    %6874 = vmatpush1.msra.mxu0 0.0
    %6875 = vmatprep.subr.mxu0 0.0
    %6876 = vmatpush1.msra.mxu0 0.0
    %6877 = vmatprep.subr.mxu0 0.0
    %6878 = vmatpush1.msra.mxu0 0.0
    %6879 = vmatprep.subr.mxu0 0.0
    %6880 = vmatpush1.msra.mxu0 0.0
    %6881 = vmatprep.subr.mxu0 0.0
    %6882 = vmatpush1.msra.mxu0 0.0
    %6883 = vmatprep.subr.mxu0 0.0
    %6884 = vmatpush1.msra.mxu0 0.0
    %6885 = vmatprep.subr.mxu0 0.0
    %6886 = vmatpush1.msra.mxu0 0.0
    %6887 = vmatprep.subr.mxu0 0.0
    %6888 = vmatpush1.msra.mxu0 0.0
    %6889 = vmatprep.subr.mxu0 0.0
    %6890 = vmatpush1.msra.mxu0 0.0
    %6891 = vmatprep.subr.mxu0 0.0
    %6892 = vmatpush1.msra.mxu0 0.0
    %6893 = vmatprep.subr.mxu0 0.0
    %6894 = vmatpush1.msra.mxu0 0.0
    %6895 = vmatprep.subr.mxu0 0.0
    %6896 = vmatpush1.msra.mxu0 0.0
    %6897 = vmatprep.subr.mxu0 0.0
    %6898 = vmatpush1.msra.mxu0 0.0
    %6899 = vmatprep.subr.mxu0 0.0
    %6900 = vmatpush1.msra.mxu0 0.0
    %6901 = vmatprep.subr.mxu0 0.0
    %6902 = vmatpush1.msra.mxu0 0.0
    %6903 = vmatprep.subr.mxu0 0.0
    %6904 = vmatpush1.msra.mxu0 0.0
    %6905 = vmatprep.subr.mxu0 0.0
    %6906 = vmatpush1.msra.mxu0 0.0
    %6907 = vmatprep.subr.mxu0 0.0
    %6908 = vmatpush1.msra.mxu0 0.0
    %6909 = vmatprep.subr.mxu0 0.0
    %6910 = vmatpush1.msra.mxu0 0.0
    %6911 = vmatprep.subr.mxu0 0.0
    %6912 = vmatpush1.msra.mxu0 0.0
    %6913 = vmatprep.subr.mxu0 0.0
    %6914 = vmatpush1.msra.mxu0 0.0
    %6915 = vmatprep.subr.mxu0 0.0
    %6916 = vmatpush1.msra.mxu0 0.0
    %6917 = vmatprep.subr.mxu0 0.0
    %6918 = vmatpush1.msra.mxu0 0.0
    %6919 = vmatprep.subr.mxu0 0.0
    %6920 = vmatpush1.msra.mxu0 0.0
    %6921 = vmatprep.subr.mxu0 0.0
    %6922 = vmatpush1.msra.mxu0 0.0
    %6923 = vmatprep.mubr.f32.mxu0 0.0
    %6924 = vmatmul.mubr.f32.gmra.mrb[0].mxu0 %v6857
    %v6925 = vpop.f32.mrb[0].mxu0
    %v6926 = vadd.f32 0.0, %v6925
    %v6927 = vpop.f32.mrb[0].mxu0
    %v6928 = vadd.f32 0.0, %v6927
    %6929 = vdwg.mxu0
    %6930 = vmatprep.subr.mxu0 %v6845
    %6931 = vmatpush1.msra.mxu0 %v6844
    %6932 = vmatprep.subr.mxu0 %v6849
    %6933 = vmatpush1.msra.mxu0 %v6848
    %6934 = vmatprep.subr.mxu0 %v6853
    %6935 = vmatpush1.msra.mxu0 %v6852
    %6936 = vmatprep.subr.mxu0 0.0
    %6937 = vmatpush1.msra.mxu0 0.0
    %6938 = vmatprep.subr.mxu0 0.0
    %6939 = vmatpush1.msra.mxu0 0.0
    %6940 = vmatprep.subr.mxu0 0.0
    %6941 = vmatpush1.msra.mxu0 0.0
    %6942 = vmatprep.subr.mxu0 0.0
    %6943 = vmatpush1.msra.mxu0 0.0
    %6944 = vmatprep.subr.mxu0 0.0
    %6945 = vmatpush1.msra.mxu0 0.0
    %6946 = vmatprep.subr.mxu0 0.0
    %6947 = vmatpush1.msra.mxu0 0.0
    %6948 = vmatprep.subr.mxu0 0.0
    %6949 = vmatpush1.msra.mxu0 0.0
    %6950 = vmatprep.subr.mxu0 0.0
    %6951 = vmatpush1.msra.mxu0 0.0
    %6952 = vmatprep.subr.mxu0 0.0
    %6953 = vmatpush1.msra.mxu0 0.0
    %6954 = vmatprep.subr.mxu0 0.0
    %6955 = vmatpush1.msra.mxu0 0.0
    %6956 = vmatprep.subr.mxu0 0.0
    %6957 = vmatpush1.msra.mxu0 0.0
    %6958 = vmatprep.subr.mxu0 0.0
    %6959 = vmatpush1.msra.mxu0 0.0
    %6960 = vmatprep.subr.mxu0 0.0
    %6961 = vmatpush1.msra.mxu0 0.0
    %6962 = vmatprep.subr.mxu0 0.0
    %6963 = vmatpush1.msra.mxu0 0.0
    %6964 = vmatprep.subr.mxu0 0.0
    %6965 = vmatpush1.msra.mxu0 0.0
    %6966 = vmatprep.subr.mxu0 0.0
    %6967 = vmatpush1.msra.mxu0 0.0
    %6968 = vmatprep.subr.mxu0 0.0
    %6969 = vmatpush1.msra.mxu0 0.0
    %6970 = vmatprep.subr.mxu0 0.0
    %6971 = vmatpush1.msra.mxu0 0.0
    %6972 = vmatprep.subr.mxu0 0.0
    %6973 = vmatpush1.msra.mxu0 0.0
    %6974 = vmatprep.subr.mxu0 0.0
    %6975 = vmatpush1.msra.mxu0 0.0
    %6976 = vmatprep.subr.mxu0 0.0
    %6977 = vmatpush1.msra.mxu0 0.0
    %6978 = vmatprep.subr.mxu0 0.0
    %6979 = vmatpush1.msra.mxu0 0.0
    %6980 = vmatprep.subr.mxu0 0.0
    %6981 = vmatpush1.msra.mxu0 0.0
    %6982 = vmatprep.subr.mxu0 0.0
    %6983 = vmatpush1.msra.mxu0 0.0
    %6984 = vmatprep.subr.mxu0 0.0
    %6985 = vmatpush1.msra.mxu0 0.0
    %6986 = vmatprep.subr.mxu0 0.0
    %6987 = vmatpush1.msra.mxu0 0.0
    %6988 = vmatprep.subr.mxu0 0.0
    %6989 = vmatpush1.msra.mxu0 0.0
    %6990 = vmatprep.subr.mxu0 0.0
    %6991 = vmatpush1.msra.mxu0 0.0
    %6992 = vmatprep.subr.mxu0 0.0
    %6993 = vmatpush1.msra.mxu0 0.0
    %6994 = vmatprep.mubr.f32.mxu0 0.0
    %6995 = vmatmul.mubr.f32.gmra.mrb[0].mxu0 %v6857
    %v6996 = vpop.f32.mrb[0].mxu0
    %v6997 = vadd.f32 0.0, %v6996
    %v6998 = vpop.f32.mrb[0].mxu0
    %v6999 = vadd.f32 0.0, %v6998
    %7000 = vdwg.mxu0
    %v7001 = vadd.f32 %v6802, %v6926
    %v7002 = vadd.f32 %v6803, %v6928
    %v7003 = vadd.f32 %v6804, %v6997
    %v7004 = vadd.f32 %v6805, %v6999
    %7005 = vrot.lane.b32.xlu0 %v4150, 95
    %v7006 = vpop.permute.xlu0 %7005
    %7007 = vrot.lane.b32.xlu0 %v5394, 95
    %v7008 = vpop.permute.xlu0 %7007
    %7009 = vrot.lane.b32.xlu0 %v5400, 95
    %v7010 = vpop.permute.xlu0 %7009
    %7011 = vrot.lane.b32.xlu0 %v4151, 95
    %v7012 = vpop.permute.xlu0 %7011
    %7013 = vrot.lane.b32.xlu0 %v5396, 95
    %v7014 = vpop.permute.xlu0 %7013
    %7015 = vrot.lane.b32.xlu0 %v5402, 95
    %v7016 = vpop.permute.xlu0 %7015
    %7017 = vrot.lane.b32.xlu0 %v4152, 95
    %v7018 = vpop.permute.xlu0 %7017
    %7019 = vrot.lane.b32.xlu0 %v5471, 95
    %v7020 = vpop.permute.xlu0 %7019
    %7021 = vrot.lane.b32.xlu0 %v5477, 95
    %v7022 = vpop.permute.xlu0 %7021
    %7023 = vrot.lane.b32.xlu0 %v4153, 95
    %v7024 = vpop.permute.xlu0 %7023
    %7025 = vrot.lane.b32.xlu0 %v5473, 95
    %v7026 = vpop.permute.xlu0 %7025
    %7027 = vrot.lane.b32.xlu0 %v5479, 95
    %v7028 = vpop.permute.xlu0 %7027
    %v7029 = vsel %vm3945, %v7018, %v7024
    %v7030 = vsel %vm3945, %v7020, %v7026
    %v7031 = vsel %vm3945, %v7022, %v7028
    %v7032 = vsel %vm3945, %v7012, %v7018
    %v7033 = vsel %vm3945, %v7014, %v7020
    %v7034 = vsel %vm3945, %v7016, %v7022
    %v7035 = vsel %vm3945, %v7006, %v7012
    %v7036 = vsel %vm3945, %v7008, %v7014
    %v7037 = vsel %vm3945, %v7010, %v7016
    %v7038 = vsel %vm3945, %v7024, %v7006
    %v7039 = vsel %vm3945, %v7026, %v7008
    %v7040 = vsel %vm3945, %v7028, %v7010
    %v7041 = vmul.f32 %v7035, %v3956
    %v7042 = vmul.f32 %v7032, %v3960
    %v7043 = vmul.f32 %v7029, %v3964
    %v7044 = vmul.f32 %v7038, %v3968
    %v7045 = vmul.f32 %v7036, %v3956
    %v7046 = vmul.f32 %v7033, %v3960
    %v7047 = vmul.f32 %v7030, %v3964
    %v7048 = vmul.f32 %v7039, %v3968
    %v7049 = vmul.f32 %v7037, %v3956
    %v7050 = vmul.f32 %v7034, %v3960
    %v7051 = vmul.f32 %v7031, %v3964
    %v7052 = vmul.f32 %v7040, %v3968
    %s7053 = scalar_lea.vmem [#allocation6], 64
    %v7054 = vld [vmem:[%s7053] sm:$0xff]
    %v7056 = vsel %vm5580, %v7054, 0
    %7058 = vmatprep.subr.mxu0 %v7042
    %7059 = vmatpush1.msra.mxu0 %v7041
    %7060 = vmatprep.subr.mxu0 %v7046
    %7061 = vmatpush1.msra.mxu0 %v7045
    %7062 = vmatprep.subr.mxu0 %v7050
    %7063 = vmatpush1.msra.mxu0 %v7049
    %7064 = vmatprep.subr.mxu0 0.0
    %7065 = vmatpush1.msra.mxu0 0.0
    %7066 = vmatprep.subr.mxu0 0.0
    %7067 = vmatpush1.msra.mxu0 0.0
    %7068 = vmatprep.subr.mxu0 0.0
    %7069 = vmatpush1.msra.mxu0 0.0
    %7070 = vmatprep.subr.mxu0 0.0
    %7071 = vmatpush1.msra.mxu0 0.0
    %7072 = vmatprep.subr.mxu0 0.0
    %7073 = vmatpush1.msra.mxu0 0.0
    %7074 = vmatprep.subr.mxu0 0.0
    %7075 = vmatpush1.msra.mxu0 0.0
    %7076 = vmatprep.subr.mxu0 0.0
    %7077 = vmatpush1.msra.mxu0 0.0
    %7078 = vmatprep.subr.mxu0 0.0
    %7079 = vmatpush1.msra.mxu0 0.0
    %7080 = vmatprep.subr.mxu0 0.0
    %7081 = vmatpush1.msra.mxu0 0.0
    %7082 = vmatprep.subr.mxu0 0.0
    %7083 = vmatpush1.msra.mxu0 0.0
    %7084 = vmatprep.subr.mxu0 0.0
    %7085 = vmatpush1.msra.mxu0 0.0
    %7086 = vmatprep.subr.mxu0 0.0
    %7087 = vmatpush1.msra.mxu0 0.0
    %7088 = vmatprep.subr.mxu0 0.0
    %7089 = vmatpush1.msra.mxu0 0.0
    %7090 = vmatprep.subr.mxu0 0.0
    %7091 = vmatpush1.msra.mxu0 0.0
    %7092 = vmatprep.subr.mxu0 0.0
    %7093 = vmatpush1.msra.mxu0 0.0
    %7094 = vmatprep.subr.mxu0 0.0
    %7095 = vmatpush1.msra.mxu0 0.0
    %7096 = vmatprep.subr.mxu0 0.0
    %7097 = vmatpush1.msra.mxu0 0.0
    %7098 = vmatprep.subr.mxu0 0.0
    %7099 = vmatpush1.msra.mxu0 0.0
    %7100 = vmatprep.subr.mxu0 0.0
    %7101 = vmatpush1.msra.mxu0 0.0
    %7102 = vmatprep.subr.mxu0 0.0
    %7103 = vmatpush1.msra.mxu0 0.0
    %7104 = vmatprep.subr.mxu0 0.0
    %7105 = vmatpush1.msra.mxu0 0.0
    %7106 = vmatprep.subr.mxu0 0.0
    %7107 = vmatpush1.msra.mxu0 0.0
    %7108 = vmatprep.subr.mxu0 0.0
    %7109 = vmatpush1.msra.mxu0 0.0
    %7110 = vmatprep.subr.mxu0 0.0
    %7111 = vmatpush1.msra.mxu0 0.0
    %7112 = vmatprep.subr.mxu0 0.0
    %7113 = vmatpush1.msra.mxu0 0.0
    %7114 = vmatprep.subr.mxu0 0.0
    %7115 = vmatpush1.msra.mxu0 0.0
    %7116 = vmatprep.subr.mxu0 0.0
    %7117 = vmatpush1.msra.mxu0 0.0
    %7118 = vmatprep.subr.mxu0 0.0
    %7119 = vmatpush1.msra.mxu0 0.0
    %7120 = vmatprep.subr.mxu0 0.0
    %7121 = vmatpush1.msra.mxu0 0.0
    %7122 = vmatprep.mubr.f32.mxu0 0.0
    %7123 = vmatmul.mubr.f32.gmra.mrb[0].mxu0 %v7056
    %v7124 = vpop.f32.mrb[0].mxu0
    %v7125 = vadd.f32 0.0, %v7124
    %v7126 = vpop.f32.mrb[0].mxu0
    %v7127 = vadd.f32 0.0, %v7126
    %7128 = vdwg.mxu0
    %7129 = vmatprep.subr.mxu0 %v7044
    %7130 = vmatpush1.msra.mxu0 %v7043
    %7131 = vmatprep.subr.mxu0 %v7048
    %7132 = vmatpush1.msra.mxu0 %v7047
    %7133 = vmatprep.subr.mxu0 %v7052
    %7134 = vmatpush1.msra.mxu0 %v7051
    %7135 = vmatprep.subr.mxu0 0.0
    %7136 = vmatpush1.msra.mxu0 0.0
    %7137 = vmatprep.subr.mxu0 0.0
    %7138 = vmatpush1.msra.mxu0 0.0
    %7139 = vmatprep.subr.mxu0 0.0
    %7140 = vmatpush1.msra.mxu0 0.0
    %7141 = vmatprep.subr.mxu0 0.0
    %7142 = vmatpush1.msra.mxu0 0.0
    %7143 = vmatprep.subr.mxu0 0.0
    %7144 = vmatpush1.msra.mxu0 0.0
    %7145 = vmatprep.subr.mxu0 0.0
    %7146 = vmatpush1.msra.mxu0 0.0
    %7147 = vmatprep.subr.mxu0 0.0
    %7148 = vmatpush1.msra.mxu0 0.0
    %7149 = vmatprep.subr.mxu0 0.0
    %7150 = vmatpush1.msra.mxu0 0.0
    %7151 = vmatprep.subr.mxu0 0.0
    %7152 = vmatpush1.msra.mxu0 0.0
    %7153 = vmatprep.subr.mxu0 0.0
    %7154 = vmatpush1.msra.mxu0 0.0
    %7155 = vmatprep.subr.mxu0 0.0
    %7156 = vmatpush1.msra.mxu0 0.0
    %7157 = vmatprep.subr.mxu0 0.0
    %7158 = vmatpush1.msra.mxu0 0.0
    %7159 = vmatprep.subr.mxu0 0.0
    %7160 = vmatpush1.msra.mxu0 0.0
    %7161 = vmatprep.subr.mxu0 0.0
    %7162 = vmatpush1.msra.mxu0 0.0
    %7163 = vmatprep.subr.mxu0 0.0
    %7164 = vmatpush1.msra.mxu0 0.0
    %7165 = vmatprep.subr.mxu0 0.0
    %7166 = vmatpush1.msra.mxu0 0.0
    %7167 = vmatprep.subr.mxu0 0.0
    %7168 = vmatpush1.msra.mxu0 0.0
    %7169 = vmatprep.subr.mxu0 0.0
    %7170 = vmatpush1.msra.mxu0 0.0
    %7171 = vmatprep.subr.mxu0 0.0
    %7172 = vmatpush1.msra.mxu0 0.0
    %7173 = vmatprep.subr.mxu0 0.0
    %7174 = vmatpush1.msra.mxu0 0.0
    %7175 = vmatprep.subr.mxu0 0.0
    %7176 = vmatpush1.msra.mxu0 0.0
    %7177 = vmatprep.subr.mxu0 0.0
    %7178 = vmatpush1.msra.mxu0 0.0
    %7179 = vmatprep.subr.mxu0 0.0
    %7180 = vmatpush1.msra.mxu0 0.0
    %7181 = vmatprep.subr.mxu0 0.0
    %7182 = vmatpush1.msra.mxu0 0.0
    %7183 = vmatprep.subr.mxu0 0.0
    %7184 = vmatpush1.msra.mxu0 0.0
    %7185 = vmatprep.subr.mxu0 0.0
    %7186 = vmatpush1.msra.mxu0 0.0
    %7187 = vmatprep.subr.mxu0 0.0
    %7188 = vmatpush1.msra.mxu0 0.0
    %7189 = vmatprep.subr.mxu0 0.0
    %7190 = vmatpush1.msra.mxu0 0.0
    %7191 = vmatprep.subr.mxu0 0.0
    %7192 = vmatpush1.msra.mxu0 0.0
    %7193 = vmatprep.mubr.f32.mxu0 0.0
    %7194 = vmatmul.mubr.f32.gmra.mrb[0].mxu0 %v7056
    %v7195 = vpop.f32.mrb[0].mxu0
    %v7196 = vadd.f32 0.0, %v7195
    %v7197 = vpop.f32.mrb[0].mxu0
    %v7198 = vadd.f32 0.0, %v7197
    %7199 = vdwg.mxu0
    %v7200 = vadd.f32 %v7001, %v7125
    %v7201 = vadd.f32 %v7002, %v7127
    %v7202 = vadd.f32 %v7003, %v7196
    %v7203 = vadd.f32 %v7004, %v7198
    %v7204 = vld [vmem:[%s10] sm:$0xff]
    %7206 = vset.pattern.permute.xlu0 0
    %7207 = vperm.xlu0 %7206, %v7204
    %v7208 = vpop.permute.xlu0 %7207
    %v7210 = vadd.f32 %v7200, %v7208
    %v7211 = vadd.f32 %v7201, %v7208
    %v7212 = vadd.f32 %v7202, %v7208
    %v7213 = vadd.f32 %v7203, %v7208
    %v7214 = vmax.f32 %v7210, 0.0
    %v7215 = vmax.f32 %v7211, 0.0
    %v7216 = vmax.f32 %v7212, 0.0
    %v7217 = vmax.f32 %v7213, 0.0
    %v7218 = vld [vmem:[%s11] sm:$0xff]
    %v7219 = vld [vmem:[%s12] sm:$0xff]
    %7221 = vset.pattern.permute.xlu0 0
    %7222 = vperm.xlu0 %7221, %v7219
    %v7223 = vpop.permute.xlu0 %7222
    %v7226 = vsel %vm4416, %v7218, 0
    %7228 = vmatprep.subr.mxu0 %v7215
    %7229 = vmatpush1.msra.mxu0 %v7214
    %7230 = vmatprep.subr.mxu0 0.0
    %7231 = vmatpush1.msra.mxu0 0.0
    %7232 = vmatprep.subr.mxu0 0.0
    %7233 = vmatpush1.msra.mxu0 0.0
    %7234 = vmatprep.subr.mxu0 0.0
    %7235 = vmatpush1.msra.mxu0 0.0
    %7236 = vmatprep.subr.mxu0 0.0
    %7237 = vmatpush1.msra.mxu0 0.0
    %7238 = vmatprep.subr.mxu0 0.0
    %7239 = vmatpush1.msra.mxu0 0.0
    %7240 = vmatprep.subr.mxu0 0.0
    %7241 = vmatpush1.msra.mxu0 0.0
    %7242 = vmatprep.subr.mxu0 0.0
    %7243 = vmatpush1.msra.mxu0 0.0
    %7244 = vmatprep.subr.mxu0 0.0
    %7245 = vmatpush1.msra.mxu0 0.0
    %7246 = vmatprep.subr.mxu0 0.0
    %7247 = vmatpush1.msra.mxu0 0.0
    %7248 = vmatprep.subr.mxu0 0.0
    %7249 = vmatpush1.msra.mxu0 0.0
    %7250 = vmatprep.subr.mxu0 0.0
    %7251 = vmatpush1.msra.mxu0 0.0
    %7252 = vmatprep.subr.mxu0 0.0
    %7253 = vmatpush1.msra.mxu0 0.0
    %7254 = vmatprep.subr.mxu0 0.0
    %7255 = vmatpush1.msra.mxu0 0.0
    %7256 = vmatprep.subr.mxu0 0.0
    %7257 = vmatpush1.msra.mxu0 0.0
    %7258 = vmatprep.subr.mxu0 0.0
    %7259 = vmatpush1.msra.mxu0 0.0
    %7260 = vmatprep.subr.mxu0 0.0
    %7261 = vmatpush1.msra.mxu0 0.0
    %7262 = vmatprep.subr.mxu0 0.0
    %7263 = vmatpush1.msra.mxu0 0.0
    %7264 = vmatprep.subr.mxu0 0.0
    %7265 = vmatpush1.msra.mxu0 0.0
    %7266 = vmatprep.subr.mxu0 0.0
    %7267 = vmatpush1.msra.mxu0 0.0
    %7268 = vmatprep.subr.mxu0 0.0
    %7269 = vmatpush1.msra.mxu0 0.0
    %7270 = vmatprep.subr.mxu0 0.0
    %7271 = vmatpush1.msra.mxu0 0.0
    %7272 = vmatprep.subr.mxu0 0.0
    %7273 = vmatpush1.msra.mxu0 0.0
    %7274 = vmatprep.subr.mxu0 0.0
    %7275 = vmatpush1.msra.mxu0 0.0
    %7276 = vmatprep.subr.mxu0 0.0
    %7277 = vmatpush1.msra.mxu0 0.0
    %7278 = vmatprep.subr.mxu0 0.0
    %7279 = vmatpush1.msra.mxu0 0.0
    %7280 = vmatprep.subr.mxu0 0.0
    %7281 = vmatpush1.msra.mxu0 0.0
    %7282 = vmatprep.subr.mxu0 0.0
    %7283 = vmatpush1.msra.mxu0 0.0
    %7284 = vmatprep.subr.mxu0 0.0
    %7285 = vmatpush1.msra.mxu0 0.0
    %7286 = vmatprep.subr.mxu0 0.0
    %7287 = vmatpush1.msra.mxu0 0.0
    %7288 = vmatprep.subr.mxu0 0.0
    %7289 = vmatpush1.msra.mxu0 0.0
    %7290 = vmatprep.subr.mxu0 0.0
    %7291 = vmatpush1.msra.mxu0 0.0
    %7292 = vmatprep.mubr.f32.mxu0 0.0
    %7293 = vmatmul.mubr.f32.gmra.mrb[0].mxu0 %v7226
    %v7294 = vpop.f32.mrb[0].mxu0
    %v7295 = vadd.f32 %v7223, %v7294
    %v7296 = vpop.f32.mrb[0].mxu0
    %v7297 = vadd.f32 %v7223, %v7296
    %7298 = vdwg.mxu0
    %7299 = vmatprep.subr.mxu0 %v7217
    %7300 = vmatpush1.msra.mxu0 %v7216
    %7301 = vmatprep.subr.mxu0 0.0
    %7302 = vmatpush1.msra.mxu0 0.0
    %7303 = vmatprep.subr.mxu0 0.0
    %7304 = vmatpush1.msra.mxu0 0.0
    %7305 = vmatprep.subr.mxu0 0.0
    %7306 = vmatpush1.msra.mxu0 0.0
    %7307 = vmatprep.subr.mxu0 0.0
    %7308 = vmatpush1.msra.mxu0 0.0
    %7309 = vmatprep.subr.mxu0 0.0
    %7310 = vmatpush1.msra.mxu0 0.0
    %7311 = vmatprep.subr.mxu0 0.0
    %7312 = vmatpush1.msra.mxu0 0.0
    %7313 = vmatprep.subr.mxu0 0.0
    %7314 = vmatpush1.msra.mxu0 0.0
    %7315 = vmatprep.subr.mxu0 0.0
    %7316 = vmatpush1.msra.mxu0 0.0
    %7317 = vmatprep.subr.mxu0 0.0
    %7318 = vmatpush1.msra.mxu0 0.0
    %7319 = vmatprep.subr.mxu0 0.0
    %7320 = vmatpush1.msra.mxu0 0.0
    %7321 = vmatprep.subr.mxu0 0.0
    %7322 = vmatpush1.msra.mxu0 0.0
    %7323 = vmatprep.subr.mxu0 0.0
    %7324 = vmatpush1.msra.mxu0 0.0
    %7325 = vmatprep.subr.mxu0 0.0
    %7326 = vmatpush1.msra.mxu0 0.0
    %7327 = vmatprep.subr.mxu0 0.0
    %7328 = vmatpush1.msra.mxu0 0.0
    %7329 = vmatprep.subr.mxu0 0.0
    %7330 = vmatpush1.msra.mxu0 0.0
    %7331 = vmatprep.subr.mxu0 0.0
    %7332 = vmatpush1.msra.mxu0 0.0
    %7333 = vmatprep.subr.mxu0 0.0
    %7334 = vmatpush1.msra.mxu0 0.0
    %7335 = vmatprep.subr.mxu0 0.0
    %7336 = vmatpush1.msra.mxu0 0.0
    %7337 = vmatprep.subr.mxu0 0.0
    %7338 = vmatpush1.msra.mxu0 0.0
    %7339 = vmatprep.subr.mxu0 0.0
    %7340 = vmatpush1.msra.mxu0 0.0
    %7341 = vmatprep.subr.mxu0 0.0
    %7342 = vmatpush1.msra.mxu0 0.0
    %7343 = vmatprep.subr.mxu0 0.0
    %7344 = vmatpush1.msra.mxu0 0.0
    %7345 = vmatprep.subr.mxu0 0.0
    %7346 = vmatpush1.msra.mxu0 0.0
    %7347 = vmatprep.subr.mxu0 0.0
    %7348 = vmatpush1.msra.mxu0 0.0
    %7349 = vmatprep.subr.mxu0 0.0
    %7350 = vmatpush1.msra.mxu0 0.0
    %7351 = vmatprep.subr.mxu0 0.0
    %7352 = vmatpush1.msra.mxu0 0.0
    %7353 = vmatprep.subr.mxu0 0.0
    %7354 = vmatpush1.msra.mxu0 0.0
    %7355 = vmatprep.subr.mxu0 0.0
    %7356 = vmatpush1.msra.mxu0 0.0
    %7357 = vmatprep.subr.mxu0 0.0
    %7358 = vmatpush1.msra.mxu0 0.0
    %7359 = vmatprep.subr.mxu0 0.0
    %7360 = vmatpush1.msra.mxu0 0.0
    %7361 = vmatprep.subr.mxu0 0.0
    %7362 = vmatpush1.msra.mxu0 0.0
    %7363 = vmatprep.mubr.f32.mxu0 0.0
    %7364 = vmatmul.mubr.f32.gmra.mrb[0].mxu0 %v7226
    %v7365 = vpop.f32.mrb[0].mxu0
    %v7366 = vadd.f32 %v7223, %v7365
    %v7367 = vpop.f32.mrb[0].mxu0
    %v7368 = vadd.f32 %v7223, %v7367
    %7369 = vdwg.mxu0
    %7370 = vst [vmem:[%s17] sm:$0xff] %v7295
    %7371 = vst [vmem:[%s17 + $0x8] sm:$0xff] %v7297
    %7372 = vst [vmem:[%s17 + $0x10] sm:$0xff] %v7366
    %7373 = vst [vmem:[%s17 + $0x18] sm:$0xff] %v7368
    // Predicated region
    $region98: #{my_ensemble_forward.1} parent=1 // pred_check
      _
    $region99: #{my_ensemble_forward.1} parent=1 // pred_check_branch
      %7375 = sbr.rel (0) target = $region101
    $region100: #{my_ensemble_forward.1} parent=1 // pred_region
      _
    $region101: #{my_ensemble_forward.1} parent=1 // pred_fallthru
      _
    // Predicated region
    $region102: #{my_ensemble_forward.1} parent=1 // pred_check
      _
    $region103: #{my_ensemble_forward.1} parent=1 // pred_check_branch
      %7377 = sbr.rel (0) target = $region105
    $region104: #{my_ensemble_forward.1} parent=1 // pred_region
      _
    $region105: #{my_ensemble_forward.1} parent=1 // pred_fallthru
      _
    %7378 = vsyncpa [#allocation3], 1
    %7379 = vsyncpa [#allocation5], 1
    %7380 = vsyncpa [#allocation8], 1
    %7381 = vsyncpa [#allocation11], 1

</llo_original>
